<compile_context>
chip_gen: v6e
topology: v6e:2x2x1
jax: 0.10.0
libtpu: 0.0.40
codegen_flags: <defaults>
</compile_context>

<pallas_src>
import functools

import jax
import jax.numpy as jnp
import numpy as np
from jax import lax
from jax.experimental import pallas as pl
from jax.experimental.pallas import tpu as pltpu

BN_EPS = 1e-5  # PyTorch nn.BatchNorm2d default

# 3x3 taps, row-major (dy, dx) — matches reshaping an HWIO weight to (9*Cin, Cout).
_TAPS = tuple((dy, dx) for dy in (-1, 0, 1) for dx in (-1, 0, 1))


def _halo_rows(W):
    """Zero-halo rows added before/after the flattened (H*W, C) activation (8-aligned)."""
    return ((W + 1 + 7) // 8) * 8


# ------------------------------ Pallas kernel ------------------------------ #
def _basic_block_kernel(x_ref, w1_ref, b1_ref, w2_ref, b2_ref, o_ref,
                        pa_ref, pb_ref, *, H, W, TM):
    """One batch element per grid step.

    x_ref  : (1, H*W, C)        f32  NHWC flattened to rows (row index = h*W + w)
    w*_ref : (9*C, C)           bf16 HWIO weights reshaped tap-major, BN scale folded in
    b*_ref : (1, C)             f32  folded bias (conv bias + BN shift)
    o_ref  : (1, H*W, C)        f32
    pa_ref : (H*W + 2*PAD, C)   f32  halo buffer holding x        (SAME padding in VMEM)
    pb_ref : (H*W + 2*PAD, C)   f32  halo buffer holding relu(bn1(conv1(x)))
    """
    M = H * W
    C = x_ref.shape[-1]
    PAD = _halo_rows(W)
    n_chunks = M // TM

    # Zero the halo pad rows once per grid step (never overwritten below).
    zeros_pad = jnp.zeros((PAD, C), jnp.float32)
    for ref in (pa_ref, pb_ref):
        ref[pl.ds(0, PAD), :] = zeros_pad
        ref[pl.ds(PAD + M, PAD), :] = zeros_pad

    # Stage the input into halo buffer A with one aligned store.
    pa_ref[pl.ds(PAD, M), :] = x_ref[0]

    # Image-column coordinate of every output row in a chunk (chunk-invariant since
    # TM % W == 0); masks the dx=+-1 taps that would wrap across image rows.
    w_coord = lax.broadcasted_iota(jnp.int32, (TM, 1), 0) % W
    not_left = w_coord >= 1        # tap dx = -1 valid
    not_right = w_coord <= W - 2   # tap dx = +1 valid

    def conv_chunk(src_ref, w_ref, row0):
        """3x3 conv for TM output rows starting at row0: 9 accumulating MXU matmuls fed
        straight from masked halo slabs — no im2col materialization."""
        acc = None
        for t, (dy, dx) in enumerate(_TAPS):
            slab = src_ref[pl.ds(PAD + row0 + dy * W + dx, TM), :].astype(jnp.bfloat16)
            if dx == -1:
                slab = jnp.where(not_left, slab, 0.0)
            elif dx == 1:
                slab = jnp.where(not_right, slab, 0.0)
            part = jnp.dot(slab, w_ref[t * C:(t + 1) * C, :],
                           preferred_element_type=jnp.float32)
            acc = part if acc is None else acc + part
        return acc

    # conv1 -> bn1 (scale folded into weights) -> relu, written straight into halo B.
    for c in range(n_chunks):
        row0 = c * TM
        y1 = jnp.maximum(conv_chunk(pa_ref, w1_ref, row0) + b1_ref[...], 0.0)
        pb_ref[pl.ds(PAD + row0, TM), :] = y1

    # conv2 -> bn2 -> + residual (exact f32 x from halo A) -> relu.
    for c in range(n_chunks):
        row0 = c * TM
        y2 = conv_chunk(pb_ref, w2_ref, row0) + b2_ref[...]
        y2 = y2 + pa_ref[pl.ds(PAD + row0, TM), :]
        o_ref[0, pl.ds(row0, TM), :] = jnp.maximum(y2, 0.0).astype(o_ref.dtype)


# -------------------------------- wrapper ---------------------------------- #
def _fold_conv_bn(w_hwio, conv_b, gamma, beta, mean, var):
    """Fold Conv2d bias + eval-mode BatchNorm2d into (bf16 scaled weight, f32 bias)."""
    cin, cout = w_hwio.shape[2], w_hwio.shape[3]
    scale = gamma / jnp.sqrt(var + BN_EPS)                       # (cout,)
    w_mat = (w_hwio.reshape(9 * cin, cout) * scale[None, :]).astype(jnp.bfloat16)
    bias = ((conv_b - mean) * scale + beta).reshape(1, cout).astype(jnp.float32)
    return w_mat, bias


def basic_block_nhwc(x_nhwc, params):
    """Fused BasicBlock forward.  x_nhwc: (N, H, W, C) f32.  Returns NHWC f32."""
    p1, p2 = params
    N, H, W, C = x_nhwc.shape
    M = H * W
    assert C % 128 == 0, "channels must be a multiple of 128 (lane-dense layout)"
    assert W % 8 == 0, "image width must be a multiple of 8 (sublane-aligned halo)"
    assert p1[0].shape[2] == C and p2[0].shape[3] == C, \
        "residual path requires inplanes == planes (stride=1, downsample=None)"

    w1, b1 = _fold_conv_bn(*p1)
    w2, b2 = _fold_conv_bn(*p2)

    # Chunk size: whole image rows, ~128 flattened rows per chunk.
    rows_img = max(1, min(H, max(1, 128 // W)))
    while H % rows_img:
        rows_img -= 1
    TM = rows_img * W

    x = x_nhwc.reshape(N, M, C)
    PAD = _halo_rows(W)
    kernel = functools.partial(_basic_block_kernel, H=H, W=W, TM=TM)

    out = pl.pallas_call(
        kernel,
        out_shape=jax.ShapeDtypeStruct((N, M, C), jnp.float32),
        grid=(N,),
        in_specs=[
            pl.BlockSpec((1, M, C), lambda n: (n, 0, 0)),
            pl.BlockSpec((9 * C, C), lambda n: (0, 0)),   # resident weights
            pl.BlockSpec((1, C), lambda n: (0, 0)),
            pl.BlockSpec((9 * C, C), lambda n: (0, 0)),
            pl.BlockSpec((1, C), lambda n: (0, 0)),
        ],
        out_specs=pl.BlockSpec((1, M, C), lambda n: (n, 0, 0)),
        scratch_shapes=[
            pltpu.VMEM((M + 2 * PAD, C), jnp.float32),    # halo buffer A (x)
            pltpu.VMEM((M + 2 * PAD, C), jnp.float32),    # halo buffer B (relu(bn1(conv1)))
        ],
        compiler_params=pltpu.CompilerParams(
            dimension_semantics=("parallel",)),
    )(x, w1, b1, w2, b2)

    return out.reshape(N, H, W, C)


def basic_block_nchw(x_nchw, params):
    """NCHW convenience wrapper (layout change should live in the surrounding network)."""
    out = basic_block_nhwc(jnp.transpose(x_nchw, (0, 2, 3, 1)), params)
    return jnp.transpose(out, (0, 3, 1, 2))


basic_block = jax.jit(basic_block_nhwc)


# ---------------------------- pure-JAX reference ---------------------------- #
def ref_basic_block_nhwc(x, params, structural=False):
    """Eval-mode reference in NHWC.

    structural=True mirrors the kernel's arithmetic exactly (BN scale folded into the
    weight before bf16 rounding, bf16 activations, f32 accumulation); structural=False
    is the full-f32 module semantics.
    """
    p1, p2 = params

    def conv_bn(inp, p):
        w, cb, g, be, mu, var = p
        scale = g / jnp.sqrt(var + BN_EPS)
        bias = (cb - mu) * scale + be
        if structural:
            w_eff = (w * scale[None, None, None, :]).astype(jnp.bfloat16).astype(jnp.float32)
            inp_eff = inp.astype(jnp.bfloat16).astype(jnp.float32)
            y = lax.conv_general_dilated(
                inp_eff, w_eff, (1, 1), 'SAME',
                dimension_numbers=('NHWC', 'HWIO', 'NHWC'),
                precision=lax.Precision.HIGHEST,
                preferred_element_type=jnp.float32)
            return y + bias
        y = lax.conv_general_dilated(
            inp, w, (1, 1), 'SAME',
            dimension_numbers=('NHWC', 'HWIO', 'NHWC'),
            precision=lax.Precision.HIGHEST,
            preferred_element_type=jnp.float32)
        return y * scale + bias

    y1 = jnp.maximum(conv_bn(x, p1), 0.0)
    y2 = conv_bn(y1, p2)
    return jnp.maximum(y2 + x, 0.0)


def init_basic_block_params(key, planes):
    """Deterministic Conv2d(3x3, bias=True) + BatchNorm2d(eval) params for both layers."""
    def one(k):
        kw, kb, kg, kbe, km, kv = jax.random.split(k, 6)
        bound = 1.0 / np.sqrt(9.0 * planes)
        w = jax.random.uniform(kw, (3, 3, planes, planes), jnp.float32, -bound, bound)
        b = jax.random.uniform(kb, (planes,), jnp.float32, -bound, bound)
        gamma = jax.random.uniform(kg, (planes,), jnp.float32, 0.8, 1.2)
        beta = 0.1 * jax.random.normal(kbe, (planes,), jnp.float32)
        mean = 0.1 * jax.random.normal(km, (planes,), jnp.float32)
        var = jax.random.uniform(kv, (planes,), jnp.float32, 0.8, 1.2)
        return (w, b, gamma, beta, mean, var)
    k1, k2 = jax.random.split(key)
    return one(k1), one(k2)


# ----------------------------------- main ----------------------------------- #
if __name__ == "__main__":
    key = jax.random.PRNGKey(0)
    kx, kp = jax.random.split(key)

    # BasicBlock(inplanes=128, planes=128, stride=1, downsample=None)
    N, C, H, W = 2, 128, 16, 16
    x_nchw = jax.random.normal(kx, (N, C, H, W), jnp.float32)
    params = init_basic_block_params(kp, C)

    # The fused kernel is NHWC-native; the layout change lives in the surrounding
    # network rather than inside the kernel wrapper (per perf review).
    x_nhwc = jnp.transpose(x_nchw, (0, 2, 3, 1))

    out = jax.block_until_ready(basic_block(x_nhwc, params))

    ref_struct = jax.block_until_ready(ref_basic_block_nhwc(x_nhwc, params, structural=True))
    ref_f32 = jax.block_until_ready(ref_basic_block_nhwc(x_nhwc, params, structural=False))

    assert out.shape == (N, H, W, C), out.shape
    err_struct = float(np.max(np.abs(np.asarray(out) - np.asarray(ref_struct))))
    err_f32 = float(np.max(np.abs(np.asarray(out) - np.asarray(ref_f32))))
    # Structural (same bf16 rounding points as the kernel): tight tolerance.
    assert np.allclose(np.asarray(out), np.asarray(ref_struct),
                       rtol=1e-2, atol=1e-2), err_struct
    # Full-f32 module semantics: bounds the bf16 quantization error.
    assert np.allclose(np.asarray(out), np.asarray(ref_f32),
                       rtol=5e-2, atol=5e-2), err_f32
    print("KERNEL_OK")
</pallas_src>

<mosaic_0001>
module attributes {stable_mosaic.version = 11 : i64} {
  func.func @_basic_block_kernel(%arg0: i32, %arg1: memref<1x256x128xf32, #tpu.memory_space<vmem>>, %arg2: memref<1152x128xbf16, #tpu.memory_space<vmem>>, %arg3: memref<1x128xf32, #tpu.memory_space<vmem>>, %arg4: memref<1152x128xbf16, #tpu.memory_space<vmem>>, %arg5: memref<1x128xf32, #tpu.memory_space<vmem>>, %arg6: memref<1x256x128xf32, #tpu.memory_space<vmem>>, %arg7: memref<304x128xf32, #tpu.memory_space<vmem>>, %arg8: memref<304x128xf32, #tpu.memory_space<vmem>>) attributes {dimension_semantics = [#tpu.dimension_semantics<parallel>], iteration_bounds = array<i64: 2>, scalar_prefetch = 0 : i64, scratch_operands = 2 : i64, tpu.core_type = #tpu.core_type<tc>, window_params = [{transform_indices = @transform_0, window_bounds = array<i64: 1, 256, 128>}, {pipeline_mode = #tpu.pipeline_mode<synchronous>, transform_indices = @transform_1, window_bounds = array<i64: 1152, 128>}, {pipeline_mode = #tpu.pipeline_mode<synchronous>, transform_indices = @transform_2, window_bounds = array<i64: 1, 128>}, {pipeline_mode = #tpu.pipeline_mode<synchronous>, transform_indices = @transform_3, window_bounds = array<i64: 1152, 128>}, {pipeline_mode = #tpu.pipeline_mode<synchronous>, transform_indices = @transform_4, window_bounds = array<i64: 1, 128>}, {transform_indices = @transform_5, window_bounds = array<i64: 1, 256, 128>}]} {
    %cst = arith.constant 0.000000e+00 : f32
    %0 = vector.broadcast %cst : f32 to vector<24x128xf32>
    %c0 = arith.constant 0 : index
    %c0_0 = arith.constant 0 : index
    %1 = vector.load %arg7[%c0, %c0_0] : memref<304x128xf32, #tpu.memory_space<vmem>>, vector<24x128xf32>
    tpu.vector_store %arg7[%c0, %c0_0], %0 {strides = array<i32>} : memref<304x128xf32, #tpu.memory_space<vmem>>, vector<24x128xf32>,
    %c280 = arith.constant 280 : index
    %c0_1 = arith.constant 0 : index
    %2 = vector.load %arg7[%c280, %c0_1] : memref<304x128xf32, #tpu.memory_space<vmem>>, vector<24x128xf32>
    tpu.vector_store %arg7[%c280, %c0_1], %0 {strides = array<i32>} : memref<304x128xf32, #tpu.memory_space<vmem>>, vector<24x128xf32>,
    %c0_2 = arith.constant 0 : index
    %c0_3 = arith.constant 0 : index
    %3 = vector.load %arg8[%c0_2, %c0_3] : memref<304x128xf32, #tpu.memory_space<vmem>>, vector<24x128xf32>
    tpu.vector_store %arg8[%c0_2, %c0_3], %0 {strides = array<i32>} : memref<304x128xf32, #tpu.memory_space<vmem>>, vector<24x128xf32>,
    %c280_4 = arith.constant 280 : index
    %c0_5 = arith.constant 0 : index
    %4 = vector.load %arg8[%c280_4, %c0_5] : memref<304x128xf32, #tpu.memory_space<vmem>>, vector<24x128xf32>
    tpu.vector_store %arg8[%c280_4, %c0_5], %0 {strides = array<i32>} : memref<304x128xf32, #tpu.memory_space<vmem>>, vector<24x128xf32>,
    %c0_6 = arith.constant 0 : index
    %c0_7 = arith.constant 0 : index
    %c0_8 = arith.constant 0 : index
    %5 = vector.load %arg1[%c0_6, %c0_7, %c0_8] : memref<1x256x128xf32, #tpu.memory_space<vmem>>, vector<1x256x128xf32>
    %6 = vector.shape_cast %5 : vector<1x256x128xf32> to vector<256x128xf32>
    %c24 = arith.constant 24 : index
    %c0_9 = arith.constant 0 : index
    %7 = vector.load %arg7[%c24, %c0_9] : memref<304x128xf32, #tpu.memory_space<vmem>>, vector<256x128xf32>
    tpu.vector_store %arg7[%c24, %c0_9], %6 {strides = array<i32>} : memref<304x128xf32, #tpu.memory_space<vmem>>, vector<256x128xf32>,
    %8 = tpu.iota {dimensions = array<i32: 0>} : vector<128x1xi32>
    %c16_i32 = arith.constant 16 : i32
    %c0_i32 = arith.constant 0 : i32
    %9 = arith.cmpi eq, %c16_i32, %c0_i32 : i32
    %c1_i32 = arith.constant 1 : i32
    %10 = arith.select %9, %c1_i32, %c16_i32 : i32
    %11 = vector.broadcast %10 : i32 to vector<128x1xi32>
    %12 = arith.remsi %8, %11 : vector<128x1xi32>
    %c0_i32_10 = arith.constant 0 : i32
    %13 = vector.broadcast %c0_i32_10 : i32 to vector<128x1xi32>
    %14 = arith.cmpi ne, %12, %13 : vector<128x1xi32>
    %c0_i32_11 = arith.constant 0 : i32
    %15 = vector.broadcast %c0_i32_11 : i32 to vector<128x1xi32>
    %16 = arith.cmpi slt, %12, %15 : vector<128x1xi32>
    %c0_i32_12 = arith.constant 0 : i32
    %17 = arith.cmpi slt, %10, %c0_i32_12 : i32
    %18 = vector.broadcast %17 : i1 to vector<128x1xi1>
    %19 = vector.broadcast %18 : vector<128x1xi1> to vector<128x1xi1>
    %20 = arith.xori %16, %19 : vector<128x1xi1>
    %21 = arith.andi %20, %14 : vector<128x1xi1>
    %22 = vector.broadcast %10 : i32 to vector<128x1xi32>
    %23 = arith.addi %12, %22 : vector<128x1xi32>
    %24 = arith.select %21, %23, %12 : vector<128x1xi1>, vector<128x1xi32>
    %c1_i32_13 = arith.constant 1 : i32
    %25 = vector.broadcast %c1_i32_13 : i32 to vector<128x1xi32>
    %26 = arith.cmpi sge, %24, %25 : vector<128x1xi32>
    %c14_i32 = arith.constant 14 : i32
    %27 = vector.broadcast %c14_i32 : i32 to vector<128x1xi32>
    %28 = arith.cmpi sle, %24, %27 : vector<128x1xi32>
    %c7 = arith.constant 7 : index
    %c0_14 = arith.constant 0 : index
    %29 = vector.load %arg7[%c7, %c0_14] : memref<304x128xf32, #tpu.memory_space<vmem>>, vector<128x128xf32>
    %30 = arith.truncf %29 : vector<128x128xf32> to vector<128x128xbf16>
    %cst_15 = arith.constant 0.000000e+00 : f32
    %31 = arith.truncf %cst_15 : f32 to bf16
    %32 = vector.shape_cast %26 : vector<128x1xi1> to vector<128x1xi1>
    %33 = vector.broadcast %32 : vector<128x1xi1> to vector<128x128xi1>
    %34 = vector.broadcast %31 : bf16 to vector<128x128xbf16>
    %35 = arith.select %33, %30, %34 : vector<128x128xi1>, vector<128x128xbf16>
    %c0_16 = arith.constant 0 : index
    %c0_17 = arith.constant 0 : index
    %36 = vector.load %arg2[%c0_16, %c0_17] : memref<1152x128xbf16, #tpu.memory_space<vmem>>, vector<128x128xbf16>
    %cst_18 = arith.constant dense<0.000000e+00> : vector<128x128xf32>
    %37 = tpu.matmul %35, %36, %cst_18 {dimension_numbers = #tpu.dot_dimension_numbers<[1], [0], [0], [1], [0, 0, 1, 1], [], []>} : vector<128x128xbf16>, vector<128x128xbf16>, vector<128x128xf32> -> vector<128x128xf32>
    %c8 = arith.constant 8 : index
    %c0_19 = arith.constant 0 : index
    %38 = vector.load %arg7[%c8, %c0_19] : memref<304x128xf32, #tpu.memory_space<vmem>>, vector<128x128xf32>
    %39 = arith.truncf %38 : vector<128x128xf32> to vector<128x128xbf16>
    %c128 = arith.constant 128 : index
    %c0_20 = arith.constant 0 : index
    %40 = vector.load %arg2[%c128, %c0_20] : memref<1152x128xbf16, #tpu.memory_space<vmem>>, vector<128x128xbf16>
    %cst_21 = arith.constant dense<0.000000e+00> : vector<128x128xf32>
    %41 = tpu.matmul %39, %40, %cst_21 {dimension_numbers = #tpu.dot_dimension_numbers<[1], [0], [0], [1], [0, 0, 1, 1], [], []>} : vector<128x128xbf16>, vector<128x128xbf16>, vector<128x128xf32> -> vector<128x128xf32>
    %42 = arith.addf %37, %41 : vector<128x128xf32>
    %c9 = arith.constant 9 : index
    %c0_22 = arith.constant 0 : index
    %43 = vector.load %arg7[%c9, %c0_22] : memref<304x128xf32, #tpu.memory_space<vmem>>, vector<128x128xf32>
    %44 = arith.truncf %43 : vector<128x128xf32> to vector<128x128xbf16>
    %cst_23 = arith.constant 0.000000e+00 : f32
    %45 = arith.truncf %cst_23 : f32 to bf16
    %46 = vector.shape_cast %28 : vector<128x1xi1> to vector<128x1xi1>
    %47 = vector.broadcast %46 : vector<128x1xi1> to vector<128x128xi1>
    %48 = vector.broadcast %45 : bf16 to vector<128x128xbf16>
    %49 = arith.select %47, %44, %48 : vector<128x128xi1>, vector<128x128xbf16>
    %c256 = arith.constant 256 : index
    %c0_24 = arith.constant 0 : index
    %50 = vector.load %arg2[%c256, %c0_24] : memref<1152x128xbf16, #tpu.memory_space<vmem>>, vector<128x128xbf16>
    %cst_25 = arith.constant dense<0.000000e+00> : vector<128x128xf32>
    %51 = tpu.matmul %49, %50, %cst_25 {dimension_numbers = #tpu.dot_dimension_numbers<[1], [0], [0], [1], [0, 0, 1, 1], [], []>} : vector<128x128xbf16>, vector<128x128xbf16>, vector<128x128xf32> -> vector<128x128xf32>
    %52 = arith.addf %42, %51 : vector<128x128xf32>
    %c23 = arith.constant 23 : index
    %c0_26 = arith.constant 0 : index
    %53 = vector.load %arg7[%c23, %c0_26] : memref<304x128xf32, #tpu.memory_space<vmem>>, vector<128x128xf32>
    %54 = arith.truncf %53 : vector<128x128xf32> to vector<128x128xbf16>
    %cst_27 = arith.constant 0.000000e+00 : f32
    %55 = arith.truncf %cst_27 : f32 to bf16
    %56 = vector.shape_cast %26 : vector<128x1xi1> to vector<128x1xi1>
    %57 = vector.broadcast %56 : vector<128x1xi1> to vector<128x128xi1>
    %58 = vector.broadcast %55 : bf16 to vector<128x128xbf16>
    %59 = arith.select %57, %54, %58 : vector<128x128xi1>, vector<128x128xbf16>
    %c384 = arith.constant 384 : index
    %c0_28 = arith.constant 0 : index
    %60 = vector.load %arg2[%c384, %c0_28] : memref<1152x128xbf16, #tpu.memory_space<vmem>>, vector<128x128xbf16>
    %cst_29 = arith.constant dense<0.000000e+00> : vector<128x128xf32>
    %61 = tpu.matmul %59, %60, %cst_29 {dimension_numbers = #tpu.dot_dimension_numbers<[1], [0], [0], [1], [0, 0, 1, 1], [], []>} : vector<128x128xbf16>, vector<128x128xbf16>, vector<128x128xf32> -> vector<128x128xf32>
    %62 = arith.addf %52, %61 : vector<128x128xf32>
    %c24_30 = arith.constant 24 : index
    %c0_31 = arith.constant 0 : index
    %63 = vector.load %arg7[%c24_30, %c0_31] : memref<304x128xf32, #tpu.memory_space<vmem>>, vector<128x128xf32>
    %64 = arith.truncf %63 : vector<128x128xf32> to vector<128x128xbf16>
    %c512 = arith.constant 512 : index
    %c0_32 = arith.constant 0 : index
    %65 = vector.load %arg2[%c512, %c0_32] : memref<1152x128xbf16, #tpu.memory_space<vmem>>, vector<128x128xbf16>
    %cst_33 = arith.constant dense<0.000000e+00> : vector<128x128xf32>
    %66 = tpu.matmul %64, %65, %cst_33 {dimension_numbers = #tpu.dot_dimension_numbers<[1], [0], [0], [1], [0, 0, 1, 1], [], []>} : vector<128x128xbf16>, vector<128x128xbf16>, vector<128x128xf32> -> vector<128x128xf32>
    %67 = arith.addf %62, %66 : vector<128x128xf32>
    %c25 = arith.constant 25 : index
    %c0_34 = arith.constant 0 : index
    %68 = vector.load %arg7[%c25, %c0_34] : memref<304x128xf32, #tpu.memory_space<vmem>>, vector<128x128xf32>
    %69 = arith.truncf %68 : vector<128x128xf32> to vector<128x128xbf16>
    %cst_35 = arith.constant 0.000000e+00 : f32
    %70 = arith.truncf %cst_35 : f32 to bf16
    %71 = vector.shape_cast %28 : vector<128x1xi1> to vector<128x1xi1>
    %72 = vector.broadcast %71 : vector<128x1xi1> to vector<128x128xi1>
    %73 = vector.broadcast %70 : bf16 to vector<128x128xbf16>
    %74 = arith.select %72, %69, %73 : vector<128x128xi1>, vector<128x128xbf16>
    %c640 = arith.constant 640 : index
    %c0_36 = arith.constant 0 : index
    %75 = vector.load %arg2[%c640, %c0_36] : memref<1152x128xbf16, #tpu.memory_space<vmem>>, vector<128x128xbf16>
    %cst_37 = arith.constant dense<0.000000e+00> : vector<128x128xf32>
    %76 = tpu.matmul %74, %75, %cst_37 {dimension_numbers = #tpu.dot_dimension_numbers<[1], [0], [0], [1], [0, 0, 1, 1], [], []>} : vector<128x128xbf16>, vector<128x128xbf16>, vector<128x128xf32> -> vector<128x128xf32>
    %77 = arith.addf %67, %76 : vector<128x128xf32>
    %c39 = arith.constant 39 : index
    %c0_38 = arith.constant 0 : index
    %78 = vector.load %arg7[%c39, %c0_38] : memref<304x128xf32, #tpu.memory_space<vmem>>, vector<128x128xf32>
    %79 = arith.truncf %78 : vector<128x128xf32> to vector<128x128xbf16>
    %cst_39 = arith.constant 0.000000e+00 : f32
    %80 = arith.truncf %cst_39 : f32 to bf16
    %81 = vector.shape_cast %26 : vector<128x1xi1> to vector<128x1xi1>
    %82 = vector.broadcast %81 : vector<128x1xi1> to vector<128x128xi1>
    %83 = vector.broadcast %80 : bf16 to vector<128x128xbf16>
    %84 = arith.select %82, %79, %83 : vector<128x128xi1>, vector<128x128xbf16>
    %c768 = arith.constant 768 : index
    %c0_40 = arith.constant 0 : index
    %85 = vector.load %arg2[%c768, %c0_40] : memref<1152x128xbf16, #tpu.memory_space<vmem>>, vector<128x128xbf16>
    %cst_41 = arith.constant dense<0.000000e+00> : vector<128x128xf32>
    %86 = tpu.matmul %84, %85, %cst_41 {dimension_numbers = #tpu.dot_dimension_numbers<[1], [0], [0], [1], [0, 0, 1, 1], [], []>} : vector<128x128xbf16>, vector<128x128xbf16>, vector<128x128xf32> -> vector<128x128xf32>
    %87 = arith.addf %77, %86 : vector<128x128xf32>
    %c40 = arith.constant 40 : index
    %c0_42 = arith.constant 0 : index
    %88 = vector.load %arg7[%c40, %c0_42] : memref<304x128xf32, #tpu.memory_space<vmem>>, vector<128x128xf32>
    %89 = arith.truncf %88 : vector<128x128xf32> to vector<128x128xbf16>
    %c896 = arith.constant 896 : index
    %c0_43 = arith.constant 0 : index
    %90 = vector.load %arg2[%c896, %c0_43] : memref<1152x128xbf16, #tpu.memory_space<vmem>>, vector<128x128xbf16>
    %cst_44 = arith.constant dense<0.000000e+00> : vector<128x128xf32>
    %91 = tpu.matmul %89, %90, %cst_44 {dimension_numbers = #tpu.dot_dimension_numbers<[1], [0], [0], [1], [0, 0, 1, 1], [], []>} : vector<128x128xbf16>, vector<128x128xbf16>, vector<128x128xf32> -> vector<128x128xf32>
    %92 = arith.addf %87, %91 : vector<128x128xf32>
    %c41 = arith.constant 41 : index
    %c0_45 = arith.constant 0 : index
    %93 = vector.load %arg7[%c41, %c0_45] : memref<304x128xf32, #tpu.memory_space<vmem>>, vector<128x128xf32>
    %94 = arith.truncf %93 : vector<128x128xf32> to vector<128x128xbf16>
    %cst_46 = arith.constant 0.000000e+00 : f32
    %95 = arith.truncf %cst_46 : f32 to bf16
    %96 = vector.shape_cast %28 : vector<128x1xi1> to vector<128x1xi1>
    %97 = vector.broadcast %96 : vector<128x1xi1> to vector<128x128xi1>
    %98 = vector.broadcast %95 : bf16 to vector<128x128xbf16>
    %99 = arith.select %97, %94, %98 : vector<128x128xi1>, vector<128x128xbf16>
    %c1024 = arith.constant 1024 : index
    %c0_47 = arith.constant 0 : index
    %100 = vector.load %arg2[%c1024, %c0_47] : memref<1152x128xbf16, #tpu.memory_space<vmem>>, vector<128x128xbf16>
    %cst_48 = arith.constant dense<0.000000e+00> : vector<128x128xf32>
    %101 = tpu.matmul %99, %100, %cst_48 {dimension_numbers = #tpu.dot_dimension_numbers<[1], [0], [0], [1], [0, 0, 1, 1], [], []>} : vector<128x128xbf16>, vector<128x128xbf16>, vector<128x128xf32> -> vector<128x128xf32>
    %102 = arith.addf %92, %101 : vector<128x128xf32>
    %c0_49 = arith.constant 0 : index
    %c0_50 = arith.constant 0 : index
    %103 = vector.load %arg3[%c0_49, %c0_50] : memref<1x128xf32, #tpu.memory_space<vmem>>, vector<1x128xf32>
    %104 = vector.broadcast %103 : vector<1x128xf32> to vector<128x128xf32>
    %105 = arith.addf %102, %104 : vector<128x128xf32>
    %cst_51 = arith.constant 0.000000e+00 : f32
    %106 = vector.broadcast %cst_51 : f32 to vector<128x128xf32>
    %107 = arith.maximumf %105, %106 : vector<128x128xf32>
    %c24_52 = arith.constant 24 : index
    %c0_53 = arith.constant 0 : index
    %108 = vector.load %arg8[%c24_52, %c0_53] : memref<304x128xf32, #tpu.memory_space<vmem>>, vector<128x128xf32>
    tpu.vector_store %arg8[%c24_52, %c0_53], %107 {strides = array<i32>} : memref<304x128xf32, #tpu.memory_space<vmem>>, vector<128x128xf32>,
    %c135 = arith.constant 135 : index
    %c0_54 = arith.constant 0 : index
    %109 = vector.load %arg7[%c135, %c0_54] : memref<304x128xf32, #tpu.memory_space<vmem>>, vector<128x128xf32>
    %110 = arith.truncf %109 : vector<128x128xf32> to vector<128x128xbf16>
    %cst_55 = arith.constant 0.000000e+00 : f32
    %111 = arith.truncf %cst_55 : f32 to bf16
    %112 = vector.shape_cast %26 : vector<128x1xi1> to vector<128x1xi1>
    %113 = vector.broadcast %112 : vector<128x1xi1> to vector<128x128xi1>
    %114 = vector.broadcast %111 : bf16 to vector<128x128xbf16>
    %115 = arith.select %113, %110, %114 : vector<128x128xi1>, vector<128x128xbf16>
    %c0_56 = arith.constant 0 : index
    %c0_57 = arith.constant 0 : index
    %116 = vector.load %arg2[%c0_56, %c0_57] : memref<1152x128xbf16, #tpu.memory_space<vmem>>, vector<128x128xbf16>
    %cst_58 = arith.constant dense<0.000000e+00> : vector<128x128xf32>
    %117 = tpu.matmul %115, %116, %cst_58 {dimension_numbers = #tpu.dot_dimension_numbers<[1], [0], [0], [1], [0, 0, 1, 1], [], []>} : vector<128x128xbf16>, vector<128x128xbf16>, vector<128x128xf32> -> vector<128x128xf32>
    %c136 = arith.constant 136 : index
    %c0_59 = arith.constant 0 : index
    %118 = vector.load %arg7[%c136, %c0_59] : memref<304x128xf32, #tpu.memory_space<vmem>>, vector<128x128xf32>
    %119 = arith.truncf %118 : vector<128x128xf32> to vector<128x128xbf16>
    %c128_60 = arith.constant 128 : index
    %c0_61 = arith.constant 0 : index
    %120 = vector.load %arg2[%c128_60, %c0_61] : memref<1152x128xbf16, #tpu.memory_space<vmem>>, vector<128x128xbf16>
    %cst_62 = arith.constant dense<0.000000e+00> : vector<128x128xf32>
    %121 = tpu.matmul %119, %120, %cst_62 {dimension_numbers = #tpu.dot_dimension_numbers<[1], [0], [0], [1], [0, 0, 1, 1], [], []>} : vector<128x128xbf16>, vector<128x128xbf16>, vector<128x128xf32> -> vector<128x128xf32>
    %122 = arith.addf %117, %121 : vector<128x128xf32>
    %c137 = arith.constant 137 : index
    %c0_63 = arith.constant 0 : index
    %123 = vector.load %arg7[%c137, %c0_63] : memref<304x128xf32, #tpu.memory_space<vmem>>, vector<128x128xf32>
    %124 = arith.truncf %123 : vector<128x128xf32> to vector<128x128xbf16>
    %cst_64 = arith.constant 0.000000e+00 : f32
    %125 = arith.truncf %cst_64 : f32 to bf16
    %126 = vector.shape_cast %28 : vector<128x1xi1> to vector<128x1xi1>
    %127 = vector.broadcast %126 : vector<128x1xi1> to vector<128x128xi1>
    %128 = vector.broadcast %125 : bf16 to vector<128x128xbf16>
    %129 = arith.select %127, %124, %128 : vector<128x128xi1>, vector<128x128xbf16>
    %c256_65 = arith.constant 256 : index
    %c0_66 = arith.constant 0 : index
    %130 = vector.load %arg2[%c256_65, %c0_66] : memref<1152x128xbf16, #tpu.memory_space<vmem>>, vector<128x128xbf16>
    %cst_67 = arith.constant dense<0.000000e+00> : vector<128x128xf32>
    %131 = tpu.matmul %129, %130, %cst_67 {dimension_numbers = #tpu.dot_dimension_numbers<[1], [0], [0], [1], [0, 0, 1, 1], [], []>} : vector<128x128xbf16>, vector<128x128xbf16>, vector<128x128xf32> -> vector<128x128xf32>
    %132 = arith.addf %122, %131 : vector<128x128xf32>
    %c151 = arith.constant 151 : index
    %c0_68 = arith.constant 0 : index
    %133 = vector.load %arg7[%c151, %c0_68] : memref<304x128xf32, #tpu.memory_space<vmem>>, vector<128x128xf32>
    %134 = arith.truncf %133 : vector<128x128xf32> to vector<128x128xbf16>
    %cst_69 = arith.constant 0.000000e+00 : f32
    %135 = arith.truncf %cst_69 : f32 to bf16
    %136 = vector.shape_cast %26 : vector<128x1xi1> to vector<128x1xi1>
    %137 = vector.broadcast %136 : vector<128x1xi1> to vector<128x128xi1>
    %138 = vector.broadcast %135 : bf16 to vector<128x128xbf16>
    %139 = arith.select %137, %134, %138 : vector<128x128xi1>, vector<128x128xbf16>
    %c384_70 = arith.constant 384 : index
    %c0_71 = arith.constant 0 : index
    %140 = vector.load %arg2[%c384_70, %c0_71] : memref<1152x128xbf16, #tpu.memory_space<vmem>>, vector<128x128xbf16>
    %cst_72 = arith.constant dense<0.000000e+00> : vector<128x128xf32>
    %141 = tpu.matmul %139, %140, %cst_72 {dimension_numbers = #tpu.dot_dimension_numbers<[1], [0], [0], [1], [0, 0, 1, 1], [], []>} : vector<128x128xbf16>, vector<128x128xbf16>, vector<128x128xf32> -> vector<128x128xf32>
    %142 = arith.addf %132, %141 : vector<128x128xf32>
    %c152 = arith.constant 152 : index
    %c0_73 = arith.constant 0 : index
    %143 = vector.load %arg7[%c152, %c0_73] : memref<304x128xf32, #tpu.memory_space<vmem>>, vector<128x128xf32>
    %144 = arith.truncf %143 : vector<128x128xf32> to vector<128x128xbf16>
    %c512_74 = arith.constant 512 : index
    %c0_75 = arith.constant 0 : index
    %145 = vector.load %arg2[%c512_74, %c0_75] : memref<1152x128xbf16, #tpu.memory_space<vmem>>, vector<128x128xbf16>
    %cst_76 = arith.constant dense<0.000000e+00> : vector<128x128xf32>
    %146 = tpu.matmul %144, %145, %cst_76 {dimension_numbers = #tpu.dot_dimension_numbers<[1], [0], [0], [1], [0, 0, 1, 1], [], []>} : vector<128x128xbf16>, vector<128x128xbf16>, vector<128x128xf32> -> vector<128x128xf32>
    %147 = arith.addf %142, %146 : vector<128x128xf32>
    %c153 = arith.constant 153 : index
    %c0_77 = arith.constant 0 : index
    %148 = vector.load %arg7[%c153, %c0_77] : memref<304x128xf32, #tpu.memory_space<vmem>>, vector<128x128xf32>
    %149 = arith.truncf %148 : vector<128x128xf32> to vector<128x128xbf16>
    %cst_78 = arith.constant 0.000000e+00 : f32
    %150 = arith.truncf %cst_78 : f32 to bf16
    %151 = vector.shape_cast %28 : vector<128x1xi1> to vector<128x1xi1>
    %152 = vector.broadcast %151 : vector<128x1xi1> to vector<128x128xi1>
    %153 = vector.broadcast %150 : bf16 to vector<128x128xbf16>
    %154 = arith.select %152, %149, %153 : vector<128x128xi1>, vector<128x128xbf16>
    %c640_79 = arith.constant 640 : index
    %c0_80 = arith.constant 0 : index
    %155 = vector.load %arg2[%c640_79, %c0_80] : memref<1152x128xbf16, #tpu.memory_space<vmem>>, vector<128x128xbf16>
    %cst_81 = arith.constant dense<0.000000e+00> : vector<128x128xf32>
    %156 = tpu.matmul %154, %155, %cst_81 {dimension_numbers = #tpu.dot_dimension_numbers<[1], [0], [0], [1], [0, 0, 1, 1], [], []>} : vector<128x128xbf16>, vector<128x128xbf16>, vector<128x128xf32> -> vector<128x128xf32>
    %157 = arith.addf %147, %156 : vector<128x128xf32>
    %c167 = arith.constant 167 : index
    %c0_82 = arith.constant 0 : index
    %158 = vector.load %arg7[%c167, %c0_82] : memref<304x128xf32, #tpu.memory_space<vmem>>, vector<128x128xf32>
    %159 = arith.truncf %158 : vector<128x128xf32> to vector<128x128xbf16>
    %cst_83 = arith.constant 0.000000e+00 : f32
    %160 = arith.truncf %cst_83 : f32 to bf16
    %161 = vector.shape_cast %26 : vector<128x1xi1> to vector<128x1xi1>
    %162 = vector.broadcast %161 : vector<128x1xi1> to vector<128x128xi1>
    %163 = vector.broadcast %160 : bf16 to vector<128x128xbf16>
    %164 = arith.select %162, %159, %163 : vector<128x128xi1>, vector<128x128xbf16>
    %c768_84 = arith.constant 768 : index
    %c0_85 = arith.constant 0 : index
    %165 = vector.load %arg2[%c768_84, %c0_85] : memref<1152x128xbf16, #tpu.memory_space<vmem>>, vector<128x128xbf16>
    %cst_86 = arith.constant dense<0.000000e+00> : vector<128x128xf32>
    %166 = tpu.matmul %164, %165, %cst_86 {dimension_numbers = #tpu.dot_dimension_numbers<[1], [0], [0], [1], [0, 0, 1, 1], [], []>} : vector<128x128xbf16>, vector<128x128xbf16>, vector<128x128xf32> -> vector<128x128xf32>
    %167 = arith.addf %157, %166 : vector<128x128xf32>
    %c168 = arith.constant 168 : index
    %c0_87 = arith.constant 0 : index
    %168 = vector.load %arg7[%c168, %c0_87] : memref<304x128xf32, #tpu.memory_space<vmem>>, vector<128x128xf32>
    %169 = arith.truncf %168 : vector<128x128xf32> to vector<128x128xbf16>
    %c896_88 = arith.constant 896 : index
    %c0_89 = arith.constant 0 : index
    %170 = vector.load %arg2[%c896_88, %c0_89] : memref<1152x128xbf16, #tpu.memory_space<vmem>>, vector<128x128xbf16>
    %cst_90 = arith.constant dense<0.000000e+00> : vector<128x128xf32>
    %171 = tpu.matmul %169, %170, %cst_90 {dimension_numbers = #tpu.dot_dimension_numbers<[1], [0], [0], [1], [0, 0, 1, 1], [], []>} : vector<128x128xbf16>, vector<128x128xbf16>, vector<128x128xf32> -> vector<128x128xf32>
    %172 = arith.addf %167, %171 : vector<128x128xf32>
    %c169 = arith.constant 169 : index
    %c0_91 = arith.constant 0 : index
    %173 = vector.load %arg7[%c169, %c0_91] : memref<304x128xf32, #tpu.memory_space<vmem>>, vector<128x128xf32>
    %174 = arith.truncf %173 : vector<128x128xf32> to vector<128x128xbf16>
    %cst_92 = arith.constant 0.000000e+00 : f32
    %175 = arith.truncf %cst_92 : f32 to bf16
    %176 = vector.shape_cast %28 : vector<128x1xi1> to vector<128x1xi1>
    %177 = vector.broadcast %176 : vector<128x1xi1> to vector<128x128xi1>
    %178 = vector.broadcast %175 : bf16 to vector<128x128xbf16>
    %179 = arith.select %177, %174, %178 : vector<128x128xi1>, vector<128x128xbf16>
    %c1024_93 = arith.constant 1024 : index
    %c0_94 = arith.constant 0 : index
    %180 = vector.load %arg2[%c1024_93, %c0_94] : memref<1152x128xbf16, #tpu.memory_space<vmem>>, vector<128x128xbf16>
    %cst_95 = arith.constant dense<0.000000e+00> : vector<128x128xf32>
    %181 = tpu.matmul %179, %180, %cst_95 {dimension_numbers = #tpu.dot_dimension_numbers<[1], [0], [0], [1], [0, 0, 1, 1], [], []>} : vector<128x128xbf16>, vector<128x128xbf16>, vector<128x128xf32> -> vector<128x128xf32>
    %182 = arith.addf %172, %181 : vector<128x128xf32>
    %c0_96 = arith.constant 0 : index
    %c0_97 = arith.constant 0 : index
    %183 = vector.load %arg3[%c0_96, %c0_97] : memref<1x128xf32, #tpu.memory_space<vmem>>, vector<1x128xf32>
    %184 = vector.broadcast %183 : vector<1x128xf32> to vector<128x128xf32>
    %185 = arith.addf %182, %184 : vector<128x128xf32>
    %cst_98 = arith.constant 0.000000e+00 : f32
    %186 = vector.broadcast %cst_98 : f32 to vector<128x128xf32>
    %187 = arith.maximumf %185, %186 : vector<128x128xf32>
    %c152_99 = arith.constant 152 : index
    %c0_100 = arith.constant 0 : index
    %188 = vector.load %arg8[%c152_99, %c0_100] : memref<304x128xf32, #tpu.memory_space<vmem>>, vector<128x128xf32>
    tpu.vector_store %arg8[%c152_99, %c0_100], %187 {strides = array<i32>} : memref<304x128xf32, #tpu.memory_space<vmem>>, vector<128x128xf32>,
    %c7_101 = arith.constant 7 : index
    %c0_102 = arith.constant 0 : index
    %189 = vector.load %arg8[%c7_101, %c0_102] : memref<304x128xf32, #tpu.memory_space<vmem>>, vector<128x128xf32>
    %190 = arith.truncf %189 : vector<128x128xf32> to vector<128x128xbf16>
    %cst_103 = arith.constant 0.000000e+00 : f32
    %191 = arith.truncf %cst_103 : f32 to bf16
    %192 = vector.shape_cast %26 : vector<128x1xi1> to vector<128x1xi1>
    %193 = vector.broadcast %192 : vector<128x1xi1> to vector<128x128xi1>
    %194 = vector.broadcast %191 : bf16 to vector<128x128xbf16>
    %195 = arith.select %193, %190, %194 : vector<128x128xi1>, vector<128x128xbf16>
    %c0_104 = arith.constant 0 : index
    %c0_105 = arith.constant 0 : index
    %196 = vector.load %arg4[%c0_104, %c0_105] : memref<1152x128xbf16, #tpu.memory_space<vmem>>, vector<128x128xbf16>
    %cst_106 = arith.constant dense<0.000000e+00> : vector<128x128xf32>
    %197 = tpu.matmul %195, %196, %cst_106 {dimension_numbers = #tpu.dot_dimension_numbers<[1], [0], [0], [1], [0, 0, 1, 1], [], []>} : vector<128x128xbf16>, vector<128x128xbf16>, vector<128x128xf32> -> vector<128x128xf32>
    %c8_107 = arith.constant 8 : index
    %c0_108 = arith.constant 0 : index
    %198 = vector.load %arg8[%c8_107, %c0_108] : memref<304x128xf32, #tpu.memory_space<vmem>>, vector<128x128xf32>
    %199 = arith.truncf %198 : vector<128x128xf32> to vector<128x128xbf16>
    %c128_109 = arith.constant 128 : index
    %c0_110 = arith.constant 0 : index
    %200 = vector.load %arg4[%c128_109, %c0_110] : memref<1152x128xbf16, #tpu.memory_space<vmem>>, vector<128x128xbf16>
    %cst_111 = arith.constant dense<0.000000e+00> : vector<128x128xf32>
    %201 = tpu.matmul %199, %200, %cst_111 {dimension_numbers = #tpu.dot_dimension_numbers<[1], [0], [0], [1], [0, 0, 1, 1], [], []>} : vector<128x128xbf16>, vector<128x128xbf16>, vector<128x128xf32> -> vector<128x128xf32>
    %202 = arith.addf %197, %201 : vector<128x128xf32>
    %c9_112 = arith.constant 9 : index
    %c0_113 = arith.constant 0 : index
    %203 = vector.load %arg8[%c9_112, %c0_113] : memref<304x128xf32, #tpu.memory_space<vmem>>, vector<128x128xf32>
    %204 = arith.truncf %203 : vector<128x128xf32> to vector<128x128xbf16>
    %cst_114 = arith.constant 0.000000e+00 : f32
    %205 = arith.truncf %cst_114 : f32 to bf16
    %206 = vector.shape_cast %28 : vector<128x1xi1> to vector<128x1xi1>
    %207 = vector.broadcast %206 : vector<128x1xi1> to vector<128x128xi1>
    %208 = vector.broadcast %205 : bf16 to vector<128x128xbf16>
    %209 = arith.select %207, %204, %208 : vector<128x128xi1>, vector<128x128xbf16>
    %c256_115 = arith.constant 256 : index
    %c0_116 = arith.constant 0 : index
    %210 = vector.load %arg4[%c256_115, %c0_116] : memref<1152x128xbf16, #tpu.memory_space<vmem>>, vector<128x128xbf16>
    %cst_117 = arith.constant dense<0.000000e+00> : vector<128x128xf32>
    %211 = tpu.matmul %209, %210, %cst_117 {dimension_numbers = #tpu.dot_dimension_numbers<[1], [0], [0], [1], [0, 0, 1, 1], [], []>} : vector<128x128xbf16>, vector<128x128xbf16>, vector<128x128xf32> -> vector<128x128xf32>
    %212 = arith.addf %202, %211 : vector<128x128xf32>
    %c23_118 = arith.constant 23 : index
    %c0_119 = arith.constant 0 : index
    %213 = vector.load %arg8[%c23_118, %c0_119] : memref<304x128xf32, #tpu.memory_space<vmem>>, vector<128x128xf32>
    %214 = arith.truncf %213 : vector<128x128xf32> to vector<128x128xbf16>
    %cst_120 = arith.constant 0.000000e+00 : f32
    %215 = arith.truncf %cst_120 : f32 to bf16
    %216 = vector.shape_cast %26 : vector<128x1xi1> to vector<128x1xi1>
    %217 = vector.broadcast %216 : vector<128x1xi1> to vector<128x128xi1>
    %218 = vector.broadcast %215 : bf16 to vector<128x128xbf16>
    %219 = arith.select %217, %214, %218 : vector<128x128xi1>, vector<128x128xbf16>
    %c384_121 = arith.constant 384 : index
    %c0_122 = arith.constant 0 : index
    %220 = vector.load %arg4[%c384_121, %c0_122] : memref<1152x128xbf16, #tpu.memory_space<vmem>>, vector<128x128xbf16>
    %cst_123 = arith.constant dense<0.000000e+00> : vector<128x128xf32>
    %221 = tpu.matmul %219, %220, %cst_123 {dimension_numbers = #tpu.dot_dimension_numbers<[1], [0], [0], [1], [0, 0, 1, 1], [], []>} : vector<128x128xbf16>, vector<128x128xbf16>, vector<128x128xf32> -> vector<128x128xf32>
    %222 = arith.addf %212, %221 : vector<128x128xf32>
    %c24_124 = arith.constant 24 : index
    %c0_125 = arith.constant 0 : index
    %223 = vector.load %arg8[%c24_124, %c0_125] : memref<304x128xf32, #tpu.memory_space<vmem>>, vector<128x128xf32>
    %224 = arith.truncf %223 : vector<128x128xf32> to vector<128x128xbf16>
    %c512_126 = arith.constant 512 : index
    %c0_127 = arith.constant 0 : index
    %225 = vector.load %arg4[%c512_126, %c0_127] : memref<1152x128xbf16, #tpu.memory_space<vmem>>, vector<128x128xbf16>
    %cst_128 = arith.constant dense<0.000000e+00> : vector<128x128xf32>
    %226 = tpu.matmul %224, %225, %cst_128 {dimension_numbers = #tpu.dot_dimension_numbers<[1], [0], [0], [1], [0, 0, 1, 1], [], []>} : vector<128x128xbf16>, vector<128x128xbf16>, vector<128x128xf32> -> vector<128x128xf32>
    %227 = arith.addf %222, %226 : vector<128x128xf32>
    %c25_129 = arith.constant 25 : index
    %c0_130 = arith.constant 0 : index
    %228 = vector.load %arg8[%c25_129, %c0_130] : memref<304x128xf32, #tpu.memory_space<vmem>>, vector<128x128xf32>
    %229 = arith.truncf %228 : vector<128x128xf32> to vector<128x128xbf16>
    %cst_131 = arith.constant 0.000000e+00 : f32
    %230 = arith.truncf %cst_131 : f32 to bf16
    %231 = vector.shape_cast %28 : vector<128x1xi1> to vector<128x1xi1>
    %232 = vector.broadcast %231 : vector<128x1xi1> to vector<128x128xi1>
    %233 = vector.broadcast %230 : bf16 to vector<128x128xbf16>
    %234 = arith.select %232, %229, %233 : vector<128x128xi1>, vector<128x128xbf16>
    %c640_132 = arith.constant 640 : index
    %c0_133 = arith.constant 0 : index
    %235 = vector.load %arg4[%c640_132, %c0_133] : memref<1152x128xbf16, #tpu.memory_space<vmem>>, vector<128x128xbf16>
    %cst_134 = arith.constant dense<0.000000e+00> : vector<128x128xf32>
    %236 = tpu.matmul %234, %235, %cst_134 {dimension_numbers = #tpu.dot_dimension_numbers<[1], [0], [0], [1], [0, 0, 1, 1], [], []>} : vector<128x128xbf16>, vector<128x128xbf16>, vector<128x128xf32> -> vector<128x128xf32>
    %237 = arith.addf %227, %236 : vector<128x128xf32>
    %c39_135 = arith.constant 39 : index
    %c0_136 = arith.constant 0 : index
    %238 = vector.load %arg8[%c39_135, %c0_136] : memref<304x128xf32, #tpu.memory_space<vmem>>, vector<128x128xf32>
    %239 = arith.truncf %238 : vector<128x128xf32> to vector<128x128xbf16>
    %cst_137 = arith.constant 0.000000e+00 : f32
    %240 = arith.truncf %cst_137 : f32 to bf16
    %241 = vector.shape_cast %26 : vector<128x1xi1> to vector<128x1xi1>
    %242 = vector.broadcast %241 : vector<128x1xi1> to vector<128x128xi1>
    %243 = vector.broadcast %240 : bf16 to vector<128x128xbf16>
    %244 = arith.select %242, %239, %243 : vector<128x128xi1>, vector<128x128xbf16>
    %c768_138 = arith.constant 768 : index
    %c0_139 = arith.constant 0 : index
    %245 = vector.load %arg4[%c768_138, %c0_139] : memref<1152x128xbf16, #tpu.memory_space<vmem>>, vector<128x128xbf16>
    %cst_140 = arith.constant dense<0.000000e+00> : vector<128x128xf32>
    %246 = tpu.matmul %244, %245, %cst_140 {dimension_numbers = #tpu.dot_dimension_numbers<[1], [0], [0], [1], [0, 0, 1, 1], [], []>} : vector<128x128xbf16>, vector<128x128xbf16>, vector<128x128xf32> -> vector<128x128xf32>
    %247 = arith.addf %237, %246 : vector<128x128xf32>
    %c40_141 = arith.constant 40 : index
    %c0_142 = arith.constant 0 : index
    %248 = vector.load %arg8[%c40_141, %c0_142] : memref<304x128xf32, #tpu.memory_space<vmem>>, vector<128x128xf32>
    %249 = arith.truncf %248 : vector<128x128xf32> to vector<128x128xbf16>
    %c896_143 = arith.constant 896 : index
    %c0_144 = arith.constant 0 : index
    %250 = vector.load %arg4[%c896_143, %c0_144] : memref<1152x128xbf16, #tpu.memory_space<vmem>>, vector<128x128xbf16>
    %cst_145 = arith.constant dense<0.000000e+00> : vector<128x128xf32>
    %251 = tpu.matmul %249, %250, %cst_145 {dimension_numbers = #tpu.dot_dimension_numbers<[1], [0], [0], [1], [0, 0, 1, 1], [], []>} : vector<128x128xbf16>, vector<128x128xbf16>, vector<128x128xf32> -> vector<128x128xf32>
    %252 = arith.addf %247, %251 : vector<128x128xf32>
    %c41_146 = arith.constant 41 : index
    %c0_147 = arith.constant 0 : index
    %253 = vector.load %arg8[%c41_146, %c0_147] : memref<304x128xf32, #tpu.memory_space<vmem>>, vector<128x128xf32>
    %254 = arith.truncf %253 : vector<128x128xf32> to vector<128x128xbf16>
    %cst_148 = arith.constant 0.000000e+00 : f32
    %255 = arith.truncf %cst_148 : f32 to bf16
    %256 = vector.shape_cast %28 : vector<128x1xi1> to vector<128x1xi1>
    %257 = vector.broadcast %256 : vector<128x1xi1> to vector<128x128xi1>
    %258 = vector.broadcast %255 : bf16 to vector<128x128xbf16>
    %259 = arith.select %257, %254, %258 : vector<128x128xi1>, vector<128x128xbf16>
    %c1024_149 = arith.constant 1024 : index
    %c0_150 = arith.constant 0 : index
    %260 = vector.load %arg4[%c1024_149, %c0_150] : memref<1152x128xbf16, #tpu.memory_space<vmem>>, vector<128x128xbf16>
    %cst_151 = arith.constant dense<0.000000e+00> : vector<128x128xf32>
    %261 = tpu.matmul %259, %260, %cst_151 {dimension_numbers = #tpu.dot_dimension_numbers<[1], [0], [0], [1], [0, 0, 1, 1], [], []>} : vector<128x128xbf16>, vector<128x128xbf16>, vector<128x128xf32> -> vector<128x128xf32>
    %262 = arith.addf %252, %261 : vector<128x128xf32>
    %c0_152 = arith.constant 0 : index
    %c0_153 = arith.constant 0 : index
    %263 = vector.load %arg5[%c0_152, %c0_153] : memref<1x128xf32, #tpu.memory_space<vmem>>, vector<1x128xf32>
    %264 = vector.broadcast %263 : vector<1x128xf32> to vector<128x128xf32>
    %265 = arith.addf %262, %264 : vector<128x128xf32>
    %c24_154 = arith.constant 24 : index
    %c0_155 = arith.constant 0 : index
    %266 = vector.load %arg7[%c24_154, %c0_155] : memref<304x128xf32, #tpu.memory_space<vmem>>, vector<128x128xf32>
    %267 = arith.addf %265, %266 : vector<128x128xf32>
    %cst_156 = arith.constant 0.000000e+00 : f32
    %268 = vector.broadcast %cst_156 : f32 to vector<128x128xf32>
    %269 = arith.maximumf %267, %268 : vector<128x128xf32>
    %c0_157 = arith.constant 0 : index
    %c0_158 = arith.constant 0 : index
    %c0_159 = arith.constant 0 : index
    %270 = vector.load %arg6[%c0_157, %c0_158, %c0_159] : memref<1x256x128xf32, #tpu.memory_space<vmem>>, vector<1x128x128xf32>
    %271 = vector.shape_cast %270 : vector<1x128x128xf32> to vector<128x128xf32>
    %272 = vector.shape_cast %269 : vector<128x128xf32> to vector<1x128x128xf32>
    tpu.vector_store %arg6[%c0_157, %c0_158, %c0_159], %272 {strides = array<i32>} : memref<1x256x128xf32, #tpu.memory_space<vmem>>, vector<1x128x128xf32>,
    %c135_160 = arith.constant 135 : index
    %c0_161 = arith.constant 0 : index
    %273 = vector.load %arg8[%c135_160, %c0_161] : memref<304x128xf32, #tpu.memory_space<vmem>>, vector<128x128xf32>
    %274 = arith.truncf %273 : vector<128x128xf32> to vector<128x128xbf16>
    %cst_162 = arith.constant 0.000000e+00 : f32
    %275 = arith.truncf %cst_162 : f32 to bf16
    %276 = vector.shape_cast %26 : vector<128x1xi1> to vector<128x1xi1>
    %277 = vector.broadcast %276 : vector<128x1xi1> to vector<128x128xi1>
    %278 = vector.broadcast %275 : bf16 to vector<128x128xbf16>
    %279 = arith.select %277, %274, %278 : vector<128x128xi1>, vector<128x128xbf16>
    %c0_163 = arith.constant 0 : index
    %c0_164 = arith.constant 0 : index
    %280 = vector.load %arg4[%c0_163, %c0_164] : memref<1152x128xbf16, #tpu.memory_space<vmem>>, vector<128x128xbf16>
    %cst_165 = arith.constant dense<0.000000e+00> : vector<128x128xf32>
    %281 = tpu.matmul %279, %280, %cst_165 {dimension_numbers = #tpu.dot_dimension_numbers<[1], [0], [0], [1], [0, 0, 1, 1], [], []>} : vector<128x128xbf16>, vector<128x128xbf16>, vector<128x128xf32> -> vector<128x128xf32>
    %c136_166 = arith.constant 136 : index
    %c0_167 = arith.constant 0 : index
    %282 = vector.load %arg8[%c136_166, %c0_167] : memref<304x128xf32, #tpu.memory_space<vmem>>, vector<128x128xf32>
    %283 = arith.truncf %282 : vector<128x128xf32> to vector<128x128xbf16>
    %c128_168 = arith.constant 128 : index
    %c0_169 = arith.constant 0 : index
    %284 = vector.load %arg4[%c128_168, %c0_169] : memref<1152x128xbf16, #tpu.memory_space<vmem>>, vector<128x128xbf16>
    %cst_170 = arith.constant dense<0.000000e+00> : vector<128x128xf32>
    %285 = tpu.matmul %283, %284, %cst_170 {dimension_numbers = #tpu.dot_dimension_numbers<[1], [0], [0], [1], [0, 0, 1, 1], [], []>} : vector<128x128xbf16>, vector<128x128xbf16>, vector<128x128xf32> -> vector<128x128xf32>
    %286 = arith.addf %281, %285 : vector<128x128xf32>
    %c137_171 = arith.constant 137 : index
    %c0_172 = arith.constant 0 : index
    %287 = vector.load %arg8[%c137_171, %c0_172] : memref<304x128xf32, #tpu.memory_space<vmem>>, vector<128x128xf32>
    %288 = arith.truncf %287 : vector<128x128xf32> to vector<128x128xbf16>
    %cst_173 = arith.constant 0.000000e+00 : f32
    %289 = arith.truncf %cst_173 : f32 to bf16
    %290 = vector.shape_cast %28 : vector<128x1xi1> to vector<128x1xi1>
    %291 = vector.broadcast %290 : vector<128x1xi1> to vector<128x128xi1>
    %292 = vector.broadcast %289 : bf16 to vector<128x128xbf16>
    %293 = arith.select %291, %288, %292 : vector<128x128xi1>, vector<128x128xbf16>
    %c256_174 = arith.constant 256 : index
    %c0_175 = arith.constant 0 : index
    %294 = vector.load %arg4[%c256_174, %c0_175] : memref<1152x128xbf16, #tpu.memory_space<vmem>>, vector<128x128xbf16>
    %cst_176 = arith.constant dense<0.000000e+00> : vector<128x128xf32>
    %295 = tpu.matmul %293, %294, %cst_176 {dimension_numbers = #tpu.dot_dimension_numbers<[1], [0], [0], [1], [0, 0, 1, 1], [], []>} : vector<128x128xbf16>, vector<128x128xbf16>, vector<128x128xf32> -> vector<128x128xf32>
    %296 = arith.addf %286, %295 : vector<128x128xf32>
    %c151_177 = arith.constant 151 : index
    %c0_178 = arith.constant 0 : index
    %297 = vector.load %arg8[%c151_177, %c0_178] : memref<304x128xf32, #tpu.memory_space<vmem>>, vector<128x128xf32>
    %298 = arith.truncf %297 : vector<128x128xf32> to vector<128x128xbf16>
    %cst_179 = arith.constant 0.000000e+00 : f32
    %299 = arith.truncf %cst_179 : f32 to bf16
    %300 = vector.shape_cast %26 : vector<128x1xi1> to vector<128x1xi1>
    %301 = vector.broadcast %300 : vector<128x1xi1> to vector<128x128xi1>
    %302 = vector.broadcast %299 : bf16 to vector<128x128xbf16>
    %303 = arith.select %301, %298, %302 : vector<128x128xi1>, vector<128x128xbf16>
    %c384_180 = arith.constant 384 : index
    %c0_181 = arith.constant 0 : index
    %304 = vector.load %arg4[%c384_180, %c0_181] : memref<1152x128xbf16, #tpu.memory_space<vmem>>, vector<128x128xbf16>
    %cst_182 = arith.constant dense<0.000000e+00> : vector<128x128xf32>
    %305 = tpu.matmul %303, %304, %cst_182 {dimension_numbers = #tpu.dot_dimension_numbers<[1], [0], [0], [1], [0, 0, 1, 1], [], []>} : vector<128x128xbf16>, vector<128x128xbf16>, vector<128x128xf32> -> vector<128x128xf32>
    %306 = arith.addf %296, %305 : vector<128x128xf32>
    %c152_183 = arith.constant 152 : index
    %c0_184 = arith.constant 0 : index
    %307 = vector.load %arg8[%c152_183, %c0_184] : memref<304x128xf32, #tpu.memory_space<vmem>>, vector<128x128xf32>
    %308 = arith.truncf %307 : vector<128x128xf32> to vector<128x128xbf16>
    %c512_185 = arith.constant 512 : index
    %c0_186 = arith.constant 0 : index
    %309 = vector.load %arg4[%c512_185, %c0_186] : memref<1152x128xbf16, #tpu.memory_space<vmem>>, vector<128x128xbf16>
    %cst_187 = arith.constant dense<0.000000e+00> : vector<128x128xf32>
    %310 = tpu.matmul %308, %309, %cst_187 {dimension_numbers = #tpu.dot_dimension_numbers<[1], [0], [0], [1], [0, 0, 1, 1], [], []>} : vector<128x128xbf16>, vector<128x128xbf16>, vector<128x128xf32> -> vector<128x128xf32>
    %311 = arith.addf %306, %310 : vector<128x128xf32>
    %c153_188 = arith.constant 153 : index
    %c0_189 = arith.constant 0 : index
    %312 = vector.load %arg8[%c153_188, %c0_189] : memref<304x128xf32, #tpu.memory_space<vmem>>, vector<128x128xf32>
    %313 = arith.truncf %312 : vector<128x128xf32> to vector<128x128xbf16>
    %cst_190 = arith.constant 0.000000e+00 : f32
    %314 = arith.truncf %cst_190 : f32 to bf16
    %315 = vector.shape_cast %28 : vector<128x1xi1> to vector<128x1xi1>
    %316 = vector.broadcast %315 : vector<128x1xi1> to vector<128x128xi1>
    %317 = vector.broadcast %314 : bf16 to vector<128x128xbf16>
    %318 = arith.select %316, %313, %317 : vector<128x128xi1>, vector<128x128xbf16>
    %c640_191 = arith.constant 640 : index
    %c0_192 = arith.constant 0 : index
    %319 = vector.load %arg4[%c640_191, %c0_192] : memref<1152x128xbf16, #tpu.memory_space<vmem>>, vector<128x128xbf16>
    %cst_193 = arith.constant dense<0.000000e+00> : vector<128x128xf32>
    %320 = tpu.matmul %318, %319, %cst_193 {dimension_numbers = #tpu.dot_dimension_numbers<[1], [0], [0], [1], [0, 0, 1, 1], [], []>} : vector<128x128xbf16>, vector<128x128xbf16>, vector<128x128xf32> -> vector<128x128xf32>
    %321 = arith.addf %311, %320 : vector<128x128xf32>
    %c167_194 = arith.constant 167 : index
    %c0_195 = arith.constant 0 : index
    %322 = vector.load %arg8[%c167_194, %c0_195] : memref<304x128xf32, #tpu.memory_space<vmem>>, vector<128x128xf32>
    %323 = arith.truncf %322 : vector<128x128xf32> to vector<128x128xbf16>
    %cst_196 = arith.constant 0.000000e+00 : f32
    %324 = arith.truncf %cst_196 : f32 to bf16
    %325 = vector.shape_cast %26 : vector<128x1xi1> to vector<128x1xi1>
    %326 = vector.broadcast %325 : vector<128x1xi1> to vector<128x128xi1>
    %327 = vector.broadcast %324 : bf16 to vector<128x128xbf16>
    %328 = arith.select %326, %323, %327 : vector<128x128xi1>, vector<128x128xbf16>
    %c768_197 = arith.constant 768 : index
    %c0_198 = arith.constant 0 : index
    %329 = vector.load %arg4[%c768_197, %c0_198] : memref<1152x128xbf16, #tpu.memory_space<vmem>>, vector<128x128xbf16>
    %cst_199 = arith.constant dense<0.000000e+00> : vector<128x128xf32>
    %330 = tpu.matmul %328, %329, %cst_199 {dimension_numbers = #tpu.dot_dimension_numbers<[1], [0], [0], [1], [0, 0, 1, 1], [], []>} : vector<128x128xbf16>, vector<128x128xbf16>, vector<128x128xf32> -> vector<128x128xf32>
    %331 = arith.addf %321, %330 : vector<128x128xf32>
    %c168_200 = arith.constant 168 : index
    %c0_201 = arith.constant 0 : index
    %332 = vector.load %arg8[%c168_200, %c0_201] : memref<304x128xf32, #tpu.memory_space<vmem>>, vector<128x128xf32>
    %333 = arith.truncf %332 : vector<128x128xf32> to vector<128x128xbf16>
    %c896_202 = arith.constant 896 : index
    %c0_203 = arith.constant 0 : index
    %334 = vector.load %arg4[%c896_202, %c0_203] : memref<1152x128xbf16, #tpu.memory_space<vmem>>, vector<128x128xbf16>
    %cst_204 = arith.constant dense<0.000000e+00> : vector<128x128xf32>
    %335 = tpu.matmul %333, %334, %cst_204 {dimension_numbers = #tpu.dot_dimension_numbers<[1], [0], [0], [1], [0, 0, 1, 1], [], []>} : vector<128x128xbf16>, vector<128x128xbf16>, vector<128x128xf32> -> vector<128x128xf32>
    %336 = arith.addf %331, %335 : vector<128x128xf32>
    %c169_205 = arith.constant 169 : index
    %c0_206 = arith.constant 0 : index
    %337 = vector.load %arg8[%c169_205, %c0_206] : memref<304x128xf32, #tpu.memory_space<vmem>>, vector<128x128xf32>
    %338 = arith.truncf %337 : vector<128x128xf32> to vector<128x128xbf16>
    %cst_207 = arith.constant 0.000000e+00 : f32
    %339 = arith.truncf %cst_207 : f32 to bf16
    %340 = vector.shape_cast %28 : vector<128x1xi1> to vector<128x1xi1>
    %341 = vector.broadcast %340 : vector<128x1xi1> to vector<128x128xi1>
    %342 = vector.broadcast %339 : bf16 to vector<128x128xbf16>
    %343 = arith.select %341, %338, %342 : vector<128x128xi1>, vector<128x128xbf16>
    %c1024_208 = arith.constant 1024 : index
    %c0_209 = arith.constant 0 : index
    %344 = vector.load %arg4[%c1024_208, %c0_209] : memref<1152x128xbf16, #tpu.memory_space<vmem>>, vector<128x128xbf16>
    %cst_210 = arith.constant dense<0.000000e+00> : vector<128x128xf32>
    %345 = tpu.matmul %343, %344, %cst_210 {dimension_numbers = #tpu.dot_dimension_numbers<[1], [0], [0], [1], [0, 0, 1, 1], [], []>} : vector<128x128xbf16>, vector<128x128xbf16>, vector<128x128xf32> -> vector<128x128xf32>
    %346 = arith.addf %336, %345 : vector<128x128xf32>
    %c0_211 = arith.constant 0 : index
    %c0_212 = arith.constant 0 : index
    %347 = vector.load %arg5[%c0_211, %c0_212] : memref<1x128xf32, #tpu.memory_space<vmem>>, vector<1x128xf32>
    %348 = vector.broadcast %347 : vector<1x128xf32> to vector<128x128xf32>
    %349 = arith.addf %346, %348 : vector<128x128xf32>
    %c152_213 = arith.constant 152 : index
    %c0_214 = arith.constant 0 : index
    %350 = vector.load %arg7[%c152_213, %c0_214] : memref<304x128xf32, #tpu.memory_space<vmem>>, vector<128x128xf32>
    %351 = arith.addf %349, %350 : vector<128x128xf32>
    %cst_215 = arith.constant 0.000000e+00 : f32
    %352 = vector.broadcast %cst_215 : f32 to vector<128x128xf32>
    %353 = arith.maximumf %351, %352 : vector<128x128xf32>
    %c0_216 = arith.constant 0 : index
    %c128_217 = arith.constant 128 : index
    %c0_218 = arith.constant 0 : index
    %354 = vector.load %arg6[%c0_216, %c128_217, %c0_218] : memref<1x256x128xf32, #tpu.memory_space<vmem>>, vector<1x128x128xf32>
    %355 = vector.shape_cast %354 : vector<1x128x128xf32> to vector<128x128xf32>
    %356 = vector.shape_cast %353 : vector<128x128xf32> to vector<1x128x128xf32>
    tpu.vector_store %arg6[%c0_216, %c128_217, %c0_218], %356 {strides = array<i32>} : memref<1x256x128xf32, #tpu.memory_space<vmem>>, vector<1x128x128xf32>,
    return
  }
  func.func @transform_0(%arg0: i32) -> (i32, i32, i32) {
    %c0_i32 = arith.constant 0 : i32
    %c0_i32_0 = arith.constant 0 : i32
    %c0_i32_1 = arith.constant 0 : i32
    return %arg0, %c0_i32, %c0_i32_0 : i32, i32, i32
  }
  func.func @transform_1(%arg0: i32) -> (i32, i32) {
    %c0_i32 = arith.constant 0 : i32
    %c0_i32_0 = arith.constant 0 : i32
    %c0_i32_1 = arith.constant 0 : i32
    return %c0_i32, %c0_i32_0 : i32, i32
  }
  func.func @transform_2(%arg0: i32) -> (i32, i32) {
    %c0_i32 = arith.constant 0 : i32
    %c0_i32_0 = arith.constant 0 : i32
    %c0_i32_1 = arith.constant 0 : i32
    return %c0_i32, %c0_i32_0 : i32, i32
  }
  func.func @transform_3(%arg0: i32) -> (i32, i32) {
    %c0_i32 = arith.constant 0 : i32
    %c0_i32_0 = arith.constant 0 : i32
    %c0_i32_1 = arith.constant 0 : i32
    return %c0_i32, %c0_i32_0 : i32, i32
  }
  func.func @transform_4(%arg0: i32) -> (i32, i32) {
    %c0_i32 = arith.constant 0 : i32
    %c0_i32_0 = arith.constant 0 : i32
    %c0_i32_1 = arith.constant 0 : i32
    return %c0_i32, %c0_i32_0 : i32, i32
  }
  func.func @transform_5(%arg0: i32) -> (i32, i32, i32) {
    %c0_i32 = arith.constant 0 : i32
    %c0_i32_0 = arith.constant 0 : i32
    %c0_i32_1 = arith.constant 0 : i32
    return %arg0, %c0_i32, %c0_i32_0 : i32, i32, i32
  }
}

</mosaic_0001>

<llo_original>
// kernel: basic_block_nhwc.1
$region0: #{basic_block_nhwc.1}
  #allocation0 [shape = 'u32[]', space=smem, size = 0x4, offset = 0x4, fixed_abs, tag = 'smem constant byte address 0x4 - core index']
  #allocation1 [shape = 'u32[144,128]{1,0:T(1,128)}', space=vmem, size = 0x12000, scoped, tag = 'internal scratch']
  #allocation2 [shape = 'f32[304,128]{1,0:T(8,128)}', space=vmem, size = 0x26000, scoped, tag = 'scratch operand']
  #allocation3 [shape = 'f32[304,128]{1,0:T(8,128)}', space=vmem, size = 0x26000, scoped, tag = 'scratch operand']
  %s0 = inlined_call_operand.vmem [shape: f32[2,256,128], index: 0, kind: input, shape index: {}]
  %s1 = inlined_call_operand.vmem [shape: bf16[1152,128], index: 1, kind: input, shape index: {}]
  %s2 = inlined_call_operand.vmem [shape: f32[1,128], index: 2, kind: input, shape index: {}]
  %s3 = inlined_call_operand.vmem [shape: bf16[1152,128], index: 3, kind: input, shape index: {}]
  %s4 = inlined_call_operand.vmem [shape: f32[1,128], index: 4, kind: input, shape index: {}]
  %s5 = inlined_call_operand.hbm [shape: f32[2,256,128], index: 5, kind: output, shape index: {}]
  %s6 = sld [smem:[#allocation0]]
  $region53: #{basic_block_nhwc.1} parent=0
    _
  %s8 = ssub.s32 1, %s6
  %s9 = scalar_select 0, %s8, %s6
  $region1: #{basic_block_nhwc.1} parent=0
    #allocation4 [shape = 'u8[262144]{0}', space=vmem, size = 0x40000, scoped, tag = 'output window, operand 0']
    #allocation5 [shape = 's32[2]{0}', space=sflag, size = 0x8, scoped, tag = 'scoped memory for basic_block_nhwc.1']
    %10 = vsyncpa [#allocation5], 0
    %s11 = scalar_lea.sflag [#allocation5], 1
    %12 = vsyncpa %s11, 0
    loop: start=0, step=1, limit=4
    $region2: #{basic_block_nhwc.1} parent=1 // loop_pre_header
      _
    $region3: #{basic_block_nhwc.1} parent=1 // loop_header
      %s14 = sphi 0, %s18
      %p15 = scmp.ge.s32.totalorder %s14, 4
      %s24 = sphi 0, %s26
      %s27 = sphi 0, %s24
      %s28 = sphi 0, %s27
      %s44 = sphi 0, %s28
      %s48 = sphi 0, %s48
      %s50 = sphi 0, %s48
      %s51 = sphi 0, %s50
      %s65 = sphi 0, %s51
      %s69 = sphi 0, %s69
      %s71 = sphi 0, %s69
      %s72 = sphi 0, %s71
      %s86 = sphi 0, %s72
      %s90 = sphi 0, %s90
      %s92 = sphi 0, %s90
      %s93 = sphi 0, %s92
      %s107 = sphi 0, %s93
      %s111 = sphi 0, %s111
      %s113 = sphi 0, %s111
      %s114 = sphi 0, %s113
      %s128 = sphi 0, %s114
      %s134 = sphi 0, %s136
      %s137 = sphi 0, %s134
      %s138 = sphi 0, %s137
      %s154 = sphi 0, %s138
    $region4: #{basic_block_nhwc.1} parent=1 // loop_header_branch
      %17 = sbr.rel (%p15) target = $region8
    $region5: #{basic_block_nhwc.1} parent=1 // loop_body
      %s19 = ssub.s32 %s14, 1
      %s20 = ssub.s32 %s14, 2
      %s21 = sadd.s32 %s14, 1
      %s22 = ssub.s32 %s14, %s21
      %p23 = scmp.eq.s32.totalorder %s22, 0
      %s25 = sadd.s32 %s24, 1
      %s26 = scalar_select %p23, %s24, %s25
      %p29 = pneg %p23
      %p30 = scmp.eq.s32.totalorder %s14, 1
      %p31 = por %p29, %p30
      %p32 = scmp.ne.s32.totalorder %s24, %s27
      %p33 = scmp.eq.s32.totalorder %s14, 0
      %p34 = por %p32, %p33
      %p35 = scmp.ne.s32.totalorder %s24, %s27
      %p36 = scmp.eq.s32.totalorder %s19, 1
      %p37 = por %p35, %p36
      %p38 = scmp.ne.s32.totalorder %s27, %s28
      %p39 = scmp.eq.s32.totalorder %s19, 0
      %p40 = por %p38, %p39
      %p41 = scmp.ne.s32.totalorder %s27, %s28
      %p42 = scmp.eq.s32.totalorder %s20, 1
      %p43 = por %p41, %p42
      %p45 = scmp.ne.s32.totalorder %s28, %s44
      %p46 = scmp.eq.s32.totalorder %s20, 0
      %p47 = por %p45, %p46
      %s49 = sadd.s32 %s48, 1
      %p52 = scmp.eq.s32.totalorder %s14, 1
      %p53 = scmp.ne.s32.totalorder %s48, %s50
      %p54 = scmp.eq.s32.totalorder %s14, 0
      %p55 = por %p53, %p54
      %p56 = scmp.ne.s32.totalorder %s48, %s50
      %p57 = scmp.eq.s32.totalorder %s19, 1
      %p58 = por %p56, %p57
      %p59 = scmp.ne.s32.totalorder %s50, %s51
      %p60 = scmp.eq.s32.totalorder %s19, 0
      %p61 = por %p59, %p60
      %p62 = scmp.ne.s32.totalorder %s50, %s51
      %p63 = scmp.eq.s32.totalorder %s20, 1
      %p64 = por %p62, %p63
      %p66 = scmp.ne.s32.totalorder %s51, %s65
      %p67 = scmp.eq.s32.totalorder %s20, 0
      %p68 = por %p66, %p67
      %s70 = sadd.s32 %s69, 1
      %p73 = scmp.eq.s32.totalorder %s14, 1
      %p74 = scmp.ne.s32.totalorder %s69, %s71
      %p75 = scmp.eq.s32.totalorder %s14, 0
      %p76 = por %p74, %p75
      %p77 = scmp.ne.s32.totalorder %s69, %s71
      %p78 = scmp.eq.s32.totalorder %s19, 1
      %p79 = por %p77, %p78
      %p80 = scmp.ne.s32.totalorder %s71, %s72
      %p81 = scmp.eq.s32.totalorder %s19, 0
      %p82 = por %p80, %p81
      %p83 = scmp.ne.s32.totalorder %s71, %s72
      %p84 = scmp.eq.s32.totalorder %s20, 1
      %p85 = por %p83, %p84
      %p87 = scmp.ne.s32.totalorder %s72, %s86
      %p88 = scmp.eq.s32.totalorder %s20, 0
      %p89 = por %p87, %p88
      %s91 = sadd.s32 %s90, 1
      %p94 = scmp.eq.s32.totalorder %s14, 1
      %p95 = scmp.ne.s32.totalorder %s90, %s92
      %p96 = scmp.eq.s32.totalorder %s14, 0
      %p97 = por %p95, %p96
      %p98 = scmp.ne.s32.totalorder %s90, %s92
      %p99 = scmp.eq.s32.totalorder %s19, 1
      %p100 = por %p98, %p99
      %p101 = scmp.ne.s32.totalorder %s92, %s93
      %p102 = scmp.eq.s32.totalorder %s19, 0
      %p103 = por %p101, %p102
      %p104 = scmp.ne.s32.totalorder %s92, %s93
      %p105 = scmp.eq.s32.totalorder %s20, 1
      %p106 = por %p104, %p105
      %p108 = scmp.ne.s32.totalorder %s93, %s107
      %p109 = scmp.eq.s32.totalorder %s20, 0
      %p110 = por %p108, %p109
      %s112 = sadd.s32 %s111, 1
      %p115 = scmp.eq.s32.totalorder %s14, 1
      %p116 = scmp.ne.s32.totalorder %s111, %s113
      %p117 = scmp.eq.s32.totalorder %s14, 0
      %p118 = por %p116, %p117
      %p119 = scmp.ne.s32.totalorder %s111, %s113
      %p120 = scmp.eq.s32.totalorder %s19, 1
      %p121 = por %p119, %p120
      %p122 = scmp.ne.s32.totalorder %s113, %s114
      %p123 = scmp.eq.s32.totalorder %s19, 0
      %p124 = por %p122, %p123
      %p125 = scmp.ne.s32.totalorder %s113, %s114
      %p126 = scmp.eq.s32.totalorder %s20, 1
      %p127 = por %p125, %p126
      %p129 = scmp.ne.s32.totalorder %s114, %s128
      %p130 = scmp.eq.s32.totalorder %s20, 0
      %p131 = por %p129, %p130
      %s132 = ssub.s32 %s14, %s21
      %p133 = scmp.eq.s32.totalorder %s132, 0
      %s135 = sadd.s32 %s134, 1
      %s136 = scalar_select %p133, %s134, %s135
      %p139 = pneg %p133
      %p140 = scmp.eq.s32.totalorder %s14, 1
      %p141 = por %p139, %p140
      %p142 = scmp.ne.s32.totalorder %s134, %s137
      %p143 = scmp.eq.s32.totalorder %s14, 0
      %p144 = por %p142, %p143
      %p145 = scmp.ne.s32.totalorder %s134, %s137
      %p146 = scmp.eq.s32.totalorder %s19, 1
      %p147 = por %p145, %p146
      %p148 = scmp.ne.s32.totalorder %s137, %s138
      %p149 = scmp.eq.s32.totalorder %s19, 0
      %p150 = por %p148, %p149
      %p151 = scmp.ne.s32.totalorder %s137, %s138
      %p152 = scmp.eq.s32.totalorder %s20, 1
      %p153 = por %p151, %p152
      %p155 = scmp.ne.s32.totalorder %s138, %s154
      %p156 = scmp.eq.s32.totalorder %s20, 0
      %p157 = por %p155, %p156
      %p158 = scmp.le.s32.totalorder 1, %s14
      %p159 = scmp.lt.s32.totalorder %s14, 3
      %p160 = pnand %p158, %p159
      %p161 = pneg %p160
      // Predicated region
      $region9: #{basic_block_nhwc.1} parent=5 // pred_check
        _
      $region10: #{basic_block_nhwc.1} parent=5 // pred_check_branch
        %163 = sbr.rel (%p160) target = $region12
      $region11: #{basic_block_nhwc.1} parent=5 // pred_region
        %s164 = ssub.s32 %s14, 1
        // Predicated region
        $region13: #{basic_block_nhwc.1} parent=11 // pred_check
          %p165 = pneg %p61
        $region14: #{basic_block_nhwc.1} parent=11 // pred_check_branch
          %167 = sbr.rel (%p165) target = $region16
        $region15: #{basic_block_nhwc.1} parent=11 // pred_region
          _
        $region16: #{basic_block_nhwc.1} parent=11 // pred_fallthru
          _
        // Predicated region
        $region17: #{basic_block_nhwc.1} parent=11 // pred_check
          %p168 = pneg %p82
        $region18: #{basic_block_nhwc.1} parent=11 // pred_check_branch
          %170 = sbr.rel (%p168) target = $region20
        $region19: #{basic_block_nhwc.1} parent=11 // pred_region
          _
        $region20: #{basic_block_nhwc.1} parent=11 // pred_fallthru
          _
        // Predicated region
        $region21: #{basic_block_nhwc.1} parent=11 // pred_check
          %p171 = pneg %p103
        $region22: #{basic_block_nhwc.1} parent=11 // pred_check_branch
          %173 = sbr.rel (%p171) target = $region24
        $region23: #{basic_block_nhwc.1} parent=11 // pred_region
          _
        $region24: #{basic_block_nhwc.1} parent=11 // pred_fallthru
          _
        // Predicated region
        $region25: #{basic_block_nhwc.1} parent=11 // pred_check
          %p174 = pneg %p124
        $region26: #{basic_block_nhwc.1} parent=11 // pred_check_branch
          %176 = sbr.rel (%p174) target = $region28
        $region27: #{basic_block_nhwc.1} parent=11 // pred_region
          _
        $region28: #{basic_block_nhwc.1} parent=11 // pred_fallthru
          _
      $region12: #{basic_block_nhwc.1} parent=5 // pred_fallthru
        _
      %p177 = scmp.lt.s32.totalorder %s14, 2
      // Predicated region
      $region29: #{basic_block_nhwc.1} parent=5 // pred_check
        %p178 = pneg %p177
      $region30: #{basic_block_nhwc.1} parent=5 // pred_check_branch
        %180 = sbr.rel (%p178) target = $region32
      $region31: #{basic_block_nhwc.1} parent=5 // pred_region
        // Predicated region
        $region33: #{basic_block_nhwc.1} parent=31 // pred_check
          %p181 = pneg %p34
        $region34: #{basic_block_nhwc.1} parent=31 // pred_check_branch
          %183 = sbr.rel (%p181) target = $region36
        $region35: #{basic_block_nhwc.1} parent=31 // pred_region
          %p184 = scmp.lt.s32.totalorder %s14, 1
          %s185 = scalar_select %p184, %s14, 1
          %s186 = smul.addr %s185, 32
          %s187 = smul.addr %s186, 8
          %s188 = scalar_lea.vmem %s0, %s187
        $region36: #{basic_block_nhwc.1} parent=31 // pred_fallthru
          _
      $region32: #{basic_block_nhwc.1} parent=5 // pred_fallthru
        _
      %p189 = scmp.le.s32.totalorder 1, %s14
      %p190 = scmp.lt.s32.totalorder %s14, 3
      %p191 = pnand %p189, %p190
      %p192 = pneg %p191
      // Predicated region
      $region37: #{basic_block_nhwc.1} parent=5 // pred_check
        _
      $region38: #{basic_block_nhwc.1} parent=5 // pred_check_branch
        %194 = sbr.rel (%p191) target = $region40
      $region39: #{basic_block_nhwc.1} parent=5 // pred_region
        %s195 = ssub.s32 %s14, 1
        %p196 = scmp.lt.s32.totalorder %s19, 1
        %s197 = scalar_select %p196, %s19, 1
        %s198 = smul.addr %s197, 32
        %s199 = smul.addr %s198, 8
        %s200 = scalar_lea.vmem %s0, %s199
        %p201 = pneg %p40
        %p202 = pneg %p37
        %p203 = pneg %p61
        %p204 = pneg %p58
        %p205 = pneg %p82
        %p206 = pneg %p79
        %p207 = pneg %p103
        %p208 = pneg %p100
        %p209 = pneg %p124
        %p210 = pneg %p121
        %p211 = pneg %p150
        %p212 = pneg %p147
        %s213 = sand.u32 %s137, 1
        %s214 = scalar_lea.sflag [#allocation5], %s213
        %s215 = sand.u32 %s137, 1
        %s216 = smul.addr %s215, 256
        %s217 = scalar_lea.vmem [#allocation4], %s216
        %p218 = scmp.lt.s32.totalorder %s19, 1
        %s219 = scalar_select %p218, %s19, 1
        %s220 = smul.addr %s219, 32
        %s221 = smul.addr %s220, 8
        %s222 = scalar_lea.vmem %s0, %s221
        %226 = vst [vmem:[#allocation2] sm:$0xff] 0.0
        %227 = vst [vmem:[#allocation2 + $0x8] sm:$0xff] 0.0
        %228 = vst [vmem:[#allocation2 + $0x10] sm:$0xff] 0.0
        %229 = vst [vmem:[#allocation2 + $0x118] sm:$0xff] 0.0
        %230 = vst [vmem:[#allocation2 + $0x120] sm:$0xff] 0.0
        %231 = vst [vmem:[#allocation2 + $0x128] sm:$0xff] 0.0
        %232 = vst [vmem:[#allocation3] sm:$0xff] 0.0
        %233 = vst [vmem:[#allocation3 + $0x8] sm:$0xff] 0.0
        %234 = vst [vmem:[#allocation3 + $0x10] sm:$0xff] 0.0
        %235 = vst [vmem:[#allocation3 + $0x118] sm:$0xff] 0.0
        %236 = vst [vmem:[#allocation3 + $0x120] sm:$0xff] 0.0
        %237 = vst [vmem:[#allocation3 + $0x128] sm:$0xff] 0.0
        %v238 = vld [vmem:[%s222] sm:$0xff]
        %v239 = vld [vmem:[%s222 + $0x8] sm:$0xff]
        %v240 = vld [vmem:[%s222 + $0x10] sm:$0xff]
        %v241 = vld [vmem:[%s222 + $0x18] sm:$0xff]
        %v242 = vld [vmem:[%s222 + $0x20] sm:$0xff]
        %v243 = vld [vmem:[%s222 + $0x28] sm:$0xff]
        %v244 = vld [vmem:[%s222 + $0x30] sm:$0xff]
        %v245 = vld [vmem:[%s222 + $0x38] sm:$0xff]
        %v246 = vld [vmem:[%s222 + $0x40] sm:$0xff]
        %v247 = vld [vmem:[%s222 + $0x48] sm:$0xff]
        %v248 = vld [vmem:[%s222 + $0x50] sm:$0xff]
        %v249 = vld [vmem:[%s222 + $0x58] sm:$0xff]
        %v250 = vld [vmem:[%s222 + $0x60] sm:$0xff]
        %v251 = vld [vmem:[%s222 + $0x68] sm:$0xff]
        %v252 = vld [vmem:[%s222 + $0x70] sm:$0xff]
        %v253 = vld [vmem:[%s222 + $0x78] sm:$0xff]
        %v254 = vld [vmem:[%s222 + $0x80] sm:$0xff]
        %v255 = vld [vmem:[%s222 + $0x88] sm:$0xff]
        %v256 = vld [vmem:[%s222 + $0x90] sm:$0xff]
        %v257 = vld [vmem:[%s222 + $0x98] sm:$0xff]
        %v258 = vld [vmem:[%s222 + $0xa0] sm:$0xff]
        %v259 = vld [vmem:[%s222 + $0xa8] sm:$0xff]
        %v260 = vld [vmem:[%s222 + $0xb0] sm:$0xff]
        %v261 = vld [vmem:[%s222 + $0xb8] sm:$0xff]
        %v262 = vld [vmem:[%s222 + $0xc0] sm:$0xff]
        %v263 = vld [vmem:[%s222 + $0xc8] sm:$0xff]
        %v264 = vld [vmem:[%s222 + $0xd0] sm:$0xff]
        %v265 = vld [vmem:[%s222 + $0xd8] sm:$0xff]
        %v266 = vld [vmem:[%s222 + $0xe0] sm:$0xff]
        %v267 = vld [vmem:[%s222 + $0xe8] sm:$0xff]
        %v268 = vld [vmem:[%s222 + $0xf0] sm:$0xff]
        %v269 = vld [vmem:[%s222 + $0xf8] sm:$0xff]
        %270 = vst [vmem:[#allocation2 + $0x18] sm:$0xff] %v238
        %271 = vst [vmem:[#allocation2 + $0x20] sm:$0xff] %v239
        %272 = vst [vmem:[#allocation2 + $0x28] sm:$0xff] %v240
        %273 = vst [vmem:[#allocation2 + $0x30] sm:$0xff] %v241
        %274 = vst [vmem:[#allocation2 + $0x38] sm:$0xff] %v242
        %275 = vst [vmem:[#allocation2 + $0x40] sm:$0xff] %v243
        %276 = vst [vmem:[#allocation2 + $0x48] sm:$0xff] %v244
        %277 = vst [vmem:[#allocation2 + $0x50] sm:$0xff] %v245
        %278 = vst [vmem:[#allocation2 + $0x58] sm:$0xff] %v246
        %279 = vst [vmem:[#allocation2 + $0x60] sm:$0xff] %v247
        %280 = vst [vmem:[#allocation2 + $0x68] sm:$0xff] %v248
        %281 = vst [vmem:[#allocation2 + $0x70] sm:$0xff] %v249
        %282 = vst [vmem:[#allocation2 + $0x78] sm:$0xff] %v250
        %283 = vst [vmem:[#allocation2 + $0x80] sm:$0xff] %v251
        %284 = vst [vmem:[#allocation2 + $0x88] sm:$0xff] %v252
        %285 = vst [vmem:[#allocation2 + $0x90] sm:$0xff] %v253
        %286 = vst [vmem:[#allocation2 + $0x98] sm:$0xff] %v254
        %287 = vst [vmem:[#allocation2 + $0xa0] sm:$0xff] %v255
        %288 = vst [vmem:[#allocation2 + $0xa8] sm:$0xff] %v256
        %289 = vst [vmem:[#allocation2 + $0xb0] sm:$0xff] %v257
        %290 = vst [vmem:[#allocation2 + $0xb8] sm:$0xff] %v258
        %291 = vst [vmem:[#allocation2 + $0xc0] sm:$0xff] %v259
        %292 = vst [vmem:[#allocation2 + $0xc8] sm:$0xff] %v260
        %293 = vst [vmem:[#allocation2 + $0xd0] sm:$0xff] %v261
        %294 = vst [vmem:[#allocation2 + $0xd8] sm:$0xff] %v262
        %295 = vst [vmem:[#allocation2 + $0xe0] sm:$0xff] %v263
        %296 = vst [vmem:[#allocation2 + $0xe8] sm:$0xff] %v264
        %297 = vst [vmem:[#allocation2 + $0xf0] sm:$0xff] %v265
        %298 = vst [vmem:[#allocation2 + $0xf8] sm:$0xff] %v266
        %299 = vst [vmem:[#allocation2 + $0x100] sm:$0xff] %v267
        %300 = vst [vmem:[#allocation2 + $0x108] sm:$0xff] %v268
        %301 = vst [vmem:[#allocation2 + $0x110] sm:$0xff] %v269
        %v302 = vlaneseq
        %v303 = vshrl.u32 %v302, 7
        %v304 = vadd.s32 %v303, 8
        %v305 = vadd.s32 %v303, 16
        %v306 = vadd.s32 %v303, 24
        %v307 = vadd.s32 %v303, 32
        %v308 = vadd.s32 %v303, 40
        %v309 = vadd.s32 %v303, 48
        %v310 = vadd.s32 %v303, 56
        %v311 = vadd.s32 %v303, 64
        %v312 = vadd.s32 %v303, 72
        %v313 = vadd.s32 %v303, 80
        %v314 = vadd.s32 %v303, 88
        %v315 = vadd.s32 %v303, 96
        %v316 = vadd.s32 %v303, 104
        %v317 = vadd.s32 %v303, 112
        %v318 = vadd.s32 %v303, 120
        %vm319 = vcmp.lt.s32.totalorder %v303, 0
        %v320 = vsub.s32 0, %v303
        %v321 = vsel %vm319, %v320, %v303
        %v322 = vshrl.u32 %v321, 4
        %v323 = vand.u32 %v321, 15
        %v324 = vsub.s32 0, %v323
        %v325 = vsel %vm319, %v324, %v323
        %vm326 = vcmp.lt.s32.totalorder %v304, 0
        %v327 = vsub.s32 0, %v304
        %v328 = vsel %vm326, %v327, %v304
        %v329 = vshrl.u32 %v328, 4
        %v330 = vand.u32 %v328, 15
        %v331 = vsub.s32 0, %v330
        %v332 = vsel %vm326, %v331, %v330
        %vm333 = vcmp.lt.s32.totalorder %v305, 0
        %v334 = vsub.s32 0, %v305
        %v335 = vsel %vm333, %v334, %v305
        %v336 = vshrl.u32 %v335, 4
        %v337 = vand.u32 %v335, 15
        %v338 = vsub.s32 0, %v337
        %v339 = vsel %vm333, %v338, %v337
        %vm340 = vcmp.lt.s32.totalorder %v306, 0
        %v341 = vsub.s32 0, %v306
        %v342 = vsel %vm340, %v341, %v306
        %v343 = vshrl.u32 %v342, 4
        %v344 = vand.u32 %v342, 15
        %v345 = vsub.s32 0, %v344
        %v346 = vsel %vm340, %v345, %v344
        %vm347 = vcmp.lt.s32.totalorder %v307, 0
        %v348 = vsub.s32 0, %v307
        %v349 = vsel %vm347, %v348, %v307
        %v350 = vshrl.u32 %v349, 4
        %v351 = vand.u32 %v349, 15
        %v352 = vsub.s32 0, %v351
        %v353 = vsel %vm347, %v352, %v351
        %vm354 = vcmp.lt.s32.totalorder %v308, 0
        %v355 = vsub.s32 0, %v308
        %v356 = vsel %vm354, %v355, %v308
        %v357 = vshrl.u32 %v356, 4
        %v358 = vand.u32 %v356, 15
        %v359 = vsub.s32 0, %v358
        %v360 = vsel %vm354, %v359, %v358
        %vm361 = vcmp.lt.s32.totalorder %v309, 0
        %v362 = vsub.s32 0, %v309
        %v363 = vsel %vm361, %v362, %v309
        %v364 = vshrl.u32 %v363, 4
        %v365 = vand.u32 %v363, 15
        %v366 = vsub.s32 0, %v365
        %v367 = vsel %vm361, %v366, %v365
        %vm368 = vcmp.lt.s32.totalorder %v310, 0
        %v369 = vsub.s32 0, %v310
        %v370 = vsel %vm368, %v369, %v310
        %v371 = vshrl.u32 %v370, 4
        %v372 = vand.u32 %v370, 15
        %v373 = vsub.s32 0, %v372
        %v374 = vsel %vm368, %v373, %v372
        %vm375 = vcmp.lt.s32.totalorder %v311, 0
        %v376 = vsub.s32 0, %v311
        %v377 = vsel %vm375, %v376, %v311
        %v378 = vshrl.u32 %v377, 4
        %v379 = vand.u32 %v377, 15
        %v380 = vsub.s32 0, %v379
        %v381 = vsel %vm375, %v380, %v379
        %vm382 = vcmp.lt.s32.totalorder %v312, 0
        %v383 = vsub.s32 0, %v312
        %v384 = vsel %vm382, %v383, %v312
        %v385 = vshrl.u32 %v384, 4
        %v386 = vand.u32 %v384, 15
        %v387 = vsub.s32 0, %v386
        %v388 = vsel %vm382, %v387, %v386
        %vm389 = vcmp.lt.s32.totalorder %v313, 0
        %v390 = vsub.s32 0, %v313
        %v391 = vsel %vm389, %v390, %v313
        %v392 = vshrl.u32 %v391, 4
        %v393 = vand.u32 %v391, 15
        %v394 = vsub.s32 0, %v393
        %v395 = vsel %vm389, %v394, %v393
        %vm396 = vcmp.lt.s32.totalorder %v314, 0
        %v397 = vsub.s32 0, %v314
        %v398 = vsel %vm396, %v397, %v314
        %v399 = vshrl.u32 %v398, 4
        %v400 = vand.u32 %v398, 15
        %v401 = vsub.s32 0, %v400
        %v402 = vsel %vm396, %v401, %v400
        %vm403 = vcmp.lt.s32.totalorder %v315, 0
        %v404 = vsub.s32 0, %v315
        %v405 = vsel %vm403, %v404, %v315
        %v406 = vshrl.u32 %v405, 4
        %v407 = vand.u32 %v405, 15
        %v408 = vsub.s32 0, %v407
        %v409 = vsel %vm403, %v408, %v407
        %vm410 = vcmp.lt.s32.totalorder %v316, 0
        %v411 = vsub.s32 0, %v316
        %v412 = vsel %vm410, %v411, %v316
        %v413 = vshrl.u32 %v412, 4
        %v414 = vand.u32 %v412, 15
        %v415 = vsub.s32 0, %v414
        %v416 = vsel %vm410, %v415, %v414
        %vm417 = vcmp.lt.s32.totalorder %v317, 0
        %v418 = vsub.s32 0, %v317
        %v419 = vsel %vm417, %v418, %v317
        %v420 = vshrl.u32 %v419, 4
        %v421 = vand.u32 %v419, 15
        %v422 = vsub.s32 0, %v421
        %v423 = vsel %vm417, %v422, %v421
        %vm424 = vcmp.lt.s32.totalorder %v318, 0
        %v425 = vsub.s32 0, %v318
        %v426 = vsel %vm424, %v425, %v318
        %v427 = vshrl.u32 %v426, 4
        %v428 = vand.u32 %v426, 15
        %v429 = vsub.s32 0, %v428
        %v430 = vsel %vm424, %v429, %v428
        %vm431 = vcmp.ne.s32.totalorder %v325, 0
        %vm432 = vcmp.ne.s32.totalorder %v332, 0
        %vm433 = vcmp.ne.s32.totalorder %v339, 0
        %vm434 = vcmp.ne.s32.totalorder %v346, 0
        %vm435 = vcmp.ne.s32.totalorder %v353, 0
        %vm436 = vcmp.ne.s32.totalorder %v360, 0
        %vm437 = vcmp.ne.s32.totalorder %v367, 0
        %vm438 = vcmp.ne.s32.totalorder %v374, 0
        %vm439 = vcmp.ne.s32.totalorder %v381, 0
        %vm440 = vcmp.ne.s32.totalorder %v388, 0
        %vm441 = vcmp.ne.s32.totalorder %v395, 0
        %vm442 = vcmp.ne.s32.totalorder %v402, 0
        %vm443 = vcmp.ne.s32.totalorder %v409, 0
        %vm444 = vcmp.ne.s32.totalorder %v416, 0
        %vm445 = vcmp.ne.s32.totalorder %v423, 0
        %vm446 = vcmp.ne.s32.totalorder %v430, 0
        %vm447 = vcmp.lt.s32.totalorder %v325, 0
        %vm448 = vcmp.lt.s32.totalorder %v332, 0
        %vm449 = vcmp.lt.s32.totalorder %v339, 0
        %vm450 = vcmp.lt.s32.totalorder %v346, 0
        %vm451 = vcmp.lt.s32.totalorder %v353, 0
        %vm452 = vcmp.lt.s32.totalorder %v360, 0
        %vm453 = vcmp.lt.s32.totalorder %v367, 0
        %vm454 = vcmp.lt.s32.totalorder %v374, 0
        %vm455 = vcmp.lt.s32.totalorder %v381, 0
        %vm456 = vcmp.lt.s32.totalorder %v388, 0
        %vm457 = vcmp.lt.s32.totalorder %v395, 0
        %vm458 = vcmp.lt.s32.totalorder %v402, 0
        %vm459 = vcmp.lt.s32.totalorder %v409, 0
        %vm460 = vcmp.lt.s32.totalorder %v416, 0
        %vm461 = vcmp.lt.s32.totalorder %v423, 0
        %vm462 = vcmp.lt.s32.totalorder %v430, 0
        %vm463 = vmand %vm447, %vm431
        %vm464 = vmand %vm448, %vm432
        %vm465 = vmand %vm449, %vm433
        %vm466 = vmand %vm450, %vm434
        %vm467 = vmand %vm451, %vm435
        %vm468 = vmand %vm452, %vm436
        %vm469 = vmand %vm453, %vm437
        %vm470 = vmand %vm454, %vm438
        %vm471 = vmand %vm455, %vm439
        %vm472 = vmand %vm456, %vm440
        %vm473 = vmand %vm457, %vm441
        %vm474 = vmand %vm458, %vm442
        %vm475 = vmand %vm459, %vm443
        %vm476 = vmand %vm460, %vm444
        %vm477 = vmand %vm461, %vm445
        %vm478 = vmand %vm462, %vm446
        %v479 = vadd.s32 %v325, 16
        %v480 = vadd.s32 %v332, 16
        %v481 = vadd.s32 %v339, 16
        %v482 = vadd.s32 %v346, 16
        %v483 = vadd.s32 %v353, 16
        %v484 = vadd.s32 %v360, 16
        %v485 = vadd.s32 %v367, 16
        %v486 = vadd.s32 %v374, 16
        %v487 = vadd.s32 %v381, 16
        %v488 = vadd.s32 %v388, 16
        %v489 = vadd.s32 %v395, 16
        %v490 = vadd.s32 %v402, 16
        %v491 = vadd.s32 %v409, 16
        %v492 = vadd.s32 %v416, 16
        %v493 = vadd.s32 %v423, 16
        %v494 = vadd.s32 %v430, 16
        %v495 = vsel %vm463, %v479, %v325
        %v496 = vsel %vm464, %v480, %v332
        %v497 = vsel %vm465, %v481, %v339
        %v498 = vsel %vm466, %v482, %v346
        %v499 = vsel %vm467, %v483, %v353
        %v500 = vsel %vm468, %v484, %v360
        %v501 = vsel %vm469, %v485, %v367
        %v502 = vsel %vm470, %v486, %v374
        %v503 = vsel %vm471, %v487, %v381
        %v504 = vsel %vm472, %v488, %v388
        %v505 = vsel %vm473, %v489, %v395
        %v506 = vsel %vm474, %v490, %v402
        %v507 = vsel %vm475, %v491, %v409
        %v508 = vsel %vm476, %v492, %v416
        %v509 = vsel %vm477, %v493, %v423
        %v510 = vsel %vm478, %v494, %v430
        %vm511 = vcmp.ge.s32.totalorder %v495, 1
        %vm512 = vcmp.ge.s32.totalorder %v496, 1
        %vm513 = vcmp.ge.s32.totalorder %v497, 1
        %vm514 = vcmp.ge.s32.totalorder %v498, 1
        %vm515 = vcmp.ge.s32.totalorder %v499, 1
        %vm516 = vcmp.ge.s32.totalorder %v500, 1
        %vm517 = vcmp.ge.s32.totalorder %v501, 1
        %vm518 = vcmp.ge.s32.totalorder %v502, 1
        %vm519 = vcmp.ge.s32.totalorder %v503, 1
        %vm520 = vcmp.ge.s32.totalorder %v504, 1
        %vm521 = vcmp.ge.s32.totalorder %v505, 1
        %vm522 = vcmp.ge.s32.totalorder %v506, 1
        %vm523 = vcmp.ge.s32.totalorder %v507, 1
        %vm524 = vcmp.ge.s32.totalorder %v508, 1
        %vm525 = vcmp.ge.s32.totalorder %v509, 1
        %vm526 = vcmp.ge.s32.totalorder %v510, 1
        %vm527 = vcmp.le.s32.totalorder %v495, 14
        %vm528 = vcmp.le.s32.totalorder %v496, 14
        %vm529 = vcmp.le.s32.totalorder %v497, 14
        %vm530 = vcmp.le.s32.totalorder %v498, 14
        %vm531 = vcmp.le.s32.totalorder %v499, 14
        %vm532 = vcmp.le.s32.totalorder %v500, 14
        %vm533 = vcmp.le.s32.totalorder %v501, 14
        %vm534 = vcmp.le.s32.totalorder %v502, 14
        %vm535 = vcmp.le.s32.totalorder %v503, 14
        %vm536 = vcmp.le.s32.totalorder %v504, 14
        %vm537 = vcmp.le.s32.totalorder %v505, 14
        %vm538 = vcmp.le.s32.totalorder %v506, 14
        %vm539 = vcmp.le.s32.totalorder %v507, 14
        %vm540 = vcmp.le.s32.totalorder %v508, 14
        %vm541 = vcmp.le.s32.totalorder %v509, 14
        %vm542 = vcmp.le.s32.totalorder %v510, 14
        %v543 = vld [vmem:[#allocation2 + $0x7] sm:$0xff]
        %v544 = vld [vmem:[#allocation2 + $0xf] sm:$0xff]
        %v545 = vld [vmem:[#allocation2 + $0x17] sm:$0xff]
        %v546 = vld [vmem:[#allocation2 + $0x1f] sm:$0xff]
        %v547 = vld [vmem:[#allocation2 + $0x27] sm:$0xff]
        %v548 = vld [vmem:[#allocation2 + $0x2f] sm:$0xff]
        %v549 = vld [vmem:[#allocation2 + $0x37] sm:$0xff]
        %v550 = vld [vmem:[#allocation2 + $0x3f] sm:$0xff]
        %v551 = vld [vmem:[#allocation2 + $0x47] sm:$0xff]
        %v552 = vld [vmem:[#allocation2 + $0x4f] sm:$0xff]
        %v553 = vld [vmem:[#allocation2 + $0x57] sm:$0xff]
        %v554 = vld [vmem:[#allocation2 + $0x5f] sm:$0xff]
        %v555 = vld [vmem:[#allocation2 + $0x67] sm:$0xff]
        %v556 = vld [vmem:[#allocation2 + $0x6f] sm:$0xff]
        %v557 = vld [vmem:[#allocation2 + $0x77] sm:$0xff]
        %v558 = vld [vmem:[#allocation2 + $0x7f] sm:$0xff]
        %v559 = vpack.c.bf16 %v544, %v543
        %v560 = vpack.c.bf16 %v546, %v545
        %v561 = vpack.c.bf16 %v548, %v547
        %v562 = vpack.c.bf16 %v550, %v549
        %v563 = vpack.c.bf16 %v552, %v551
        %v564 = vpack.c.bf16 %v554, %v553
        %v565 = vpack.c.bf16 %v556, %v555
        %v566 = vpack.c.bf16 %v558, %v557
        %v567 = vsel %vm511, 1, 0
        %v568 = vsel %vm512, 1, 0
        %v569 = vsel %vm513, 1, 0
        %v570 = vsel %vm514, 1, 0
        %v571 = vsel %vm515, 1, 0
        %v572 = vsel %vm516, 1, 0
        %v573 = vsel %vm517, 1, 0
        %v574 = vsel %vm518, 1, 0
        %v575 = vsel %vm519, 1, 0
        %v576 = vsel %vm520, 1, 0
        %v577 = vsel %vm521, 1, 0
        %v578 = vsel %vm522, 1, 0
        %v579 = vsel %vm523, 1, 0
        %v580 = vsel %vm524, 1, 0
        %v581 = vsel %vm525, 1, 0
        %v582 = vsel %vm526, 1, 0
        %vm583 = vcmp.eq.s32.totalorder %v567, 1
        %vm584 = vcmp.eq.s32.totalorder %v568, 1
        %vm585 = vcmp.eq.s32.totalorder %v569, 1
        %vm586 = vcmp.eq.s32.totalorder %v570, 1
        %vm587 = vcmp.eq.s32.totalorder %v571, 1
        %vm588 = vcmp.eq.s32.totalorder %v572, 1
        %vm589 = vcmp.eq.s32.totalorder %v573, 1
        %vm590 = vcmp.eq.s32.totalorder %v574, 1
        %vm591 = vcmp.eq.s32.totalorder %v575, 1
        %vm592 = vcmp.eq.s32.totalorder %v576, 1
        %vm593 = vcmp.eq.s32.totalorder %v577, 1
        %vm594 = vcmp.eq.s32.totalorder %v578, 1
        %vm595 = vcmp.eq.s32.totalorder %v579, 1
        %vm596 = vcmp.eq.s32.totalorder %v580, 1
        %vm597 = vcmp.eq.s32.totalorder %v581, 1
        %vm598 = vcmp.eq.s32.totalorder %v582, 1
        %vm599 = vmpackc.low %vm583, %vm583
        %vm600 = vmpackc.low %vm584, %vm584
        %vm601 = vmpackc.low %vm585, %vm585
        %vm602 = vmpackc.low %vm586, %vm586
        %vm603 = vmpackc.low %vm587, %vm587
        %vm604 = vmpackc.low %vm588, %vm588
        %vm605 = vmpackc.low %vm589, %vm589
        %vm606 = vmpackc.low %vm590, %vm590
        %vm607 = vmpackc.low %vm591, %vm591
        %vm608 = vmpackc.low %vm592, %vm592
        %vm609 = vmpackc.low %vm593, %vm593
        %vm610 = vmpackc.low %vm594, %vm594
        %vm611 = vmpackc.low %vm595, %vm595
        %vm612 = vmpackc.low %vm596, %vm596
        %vm613 = vmpackc.low %vm597, %vm597
        %vm614 = vmpackc.low %vm598, %vm598
        %v615 = vsel %vm599, 65537, 0
        %v616 = vsel %vm600, 65537, 0
        %v617 = vsel %vm601, 65537, 0
        %v618 = vsel %vm602, 65537, 0
        %v619 = vsel %vm603, 65537, 0
        %v620 = vsel %vm604, 65537, 0
        %v621 = vsel %vm605, 65537, 0
        %v622 = vsel %vm606, 65537, 0
        %v623 = vsel %vm607, 65537, 0
        %v624 = vsel %vm608, 65537, 0
        %v625 = vsel %vm609, 65537, 0
        %v626 = vsel %vm610, 65537, 0
        %v627 = vsel %vm611, 65537, 0
        %v628 = vsel %vm612, 65537, 0
        %v629 = vsel %vm613, 65537, 0
        %v630 = vsel %vm614, 65537, 0
        %v631 = vunpack.c.l.b16 %v615
        %v632 = vunpack.c.l.b16 %v616
        %v633 = vunpack.c.l.b16 %v617
        %v634 = vunpack.c.l.b16 %v618
        %v635 = vunpack.c.l.b16 %v619
        %v636 = vunpack.c.l.b16 %v620
        %v637 = vunpack.c.l.b16 %v621
        %v638 = vunpack.c.l.b16 %v622
        %v639 = vunpack.c.l.b16 %v623
        %v640 = vunpack.c.l.b16 %v624
        %v641 = vunpack.c.l.b16 %v625
        %v642 = vunpack.c.l.b16 %v626
        %v643 = vunpack.c.l.b16 %v627
        %v644 = vunpack.c.l.b16 %v628
        %v645 = vunpack.c.l.b16 %v629
        %v646 = vunpack.c.l.b16 %v630
        %v647 = vpack.c.b16 %v632, %v631
        %v648 = vpack.c.b16 %v634, %v633
        %v649 = vpack.c.b16 %v636, %v635
        %v650 = vpack.c.b16 %v638, %v637
        %v651 = vpack.c.b16 %v640, %v639
        %v652 = vpack.c.b16 %v642, %v641
        %v653 = vpack.c.b16 %v644, %v643
        %v654 = vpack.c.b16 %v646, %v645
        %vm655 = vcmp.ne.s16.totalorder %v647, 0
        %vm656 = vcmp.ne.s16.totalorder %v648, 0
        %vm657 = vcmp.ne.s16.totalorder %v649, 0
        %vm658 = vcmp.ne.s16.totalorder %v650, 0
        %vm659 = vcmp.ne.s16.totalorder %v651, 0
        %vm660 = vcmp.ne.s16.totalorder %v652, 0
        %vm661 = vcmp.ne.s16.totalorder %v653, 0
        %vm662 = vcmp.ne.s16.totalorder %v654, 0
        %v663 = vsel %vm655, %v559, 0
        %v664 = vsel %vm656, %v560, 0
        %v665 = vsel %vm657, %v561, 0
        %v666 = vsel %vm658, %v562, 0
        %v667 = vsel %vm659, %v563, 0
        %v668 = vsel %vm660, %v564, 0
        %v669 = vsel %vm661, %v565, 0
        %v670 = vsel %vm662, %v566, 0
        %v671 = vld [vmem:[%s1] sm:$0xf]
        %v672 = vld [vmem:[%s1 + $0x4] sm:$0xf]
        %v673 = vld [vmem:[%s1 + $0x8] sm:$0xf]
        %v674 = vld [vmem:[%s1 + $0xc] sm:$0xf]
        %v675 = vld [vmem:[%s1 + $0x10] sm:$0xf]
        %v676 = vld [vmem:[%s1 + $0x14] sm:$0xf]
        %v677 = vld [vmem:[%s1 + $0x18] sm:$0xf]
        %v678 = vld [vmem:[%s1 + $0x1c] sm:$0xf]
        %v679 = vld [vmem:[%s1 + $0x20] sm:$0xf]
        %v680 = vld [vmem:[%s1 + $0x24] sm:$0xf]
        %v681 = vld [vmem:[%s1 + $0x28] sm:$0xf]
        %v682 = vld [vmem:[%s1 + $0x2c] sm:$0xf]
        %v683 = vld [vmem:[%s1 + $0x30] sm:$0xf]
        %v684 = vld [vmem:[%s1 + $0x34] sm:$0xf]
        %v685 = vld [vmem:[%s1 + $0x38] sm:$0xf]
        %v686 = vld [vmem:[%s1 + $0x3c] sm:$0xf]
        %v687 = vld [vmem:[#allocation2 + $0x8] sm:$0xff]
        %v688 = vld [vmem:[#allocation2 + $0x10] sm:$0xff]
        %v689 = vld [vmem:[#allocation2 + $0x18] sm:$0xff]
        %v690 = vld [vmem:[#allocation2 + $0x20] sm:$0xff]
        %v691 = vld [vmem:[#allocation2 + $0x28] sm:$0xff]
        %v692 = vld [vmem:[#allocation2 + $0x30] sm:$0xff]
        %v693 = vld [vmem:[#allocation2 + $0x38] sm:$0xff]
        %v694 = vld [vmem:[#allocation2 + $0x40] sm:$0xff]
        %v695 = vld [vmem:[#allocation2 + $0x48] sm:$0xff]
        %v696 = vld [vmem:[#allocation2 + $0x50] sm:$0xff]
        %v697 = vld [vmem:[#allocation2 + $0x58] sm:$0xff]
        %v698 = vld [vmem:[#allocation2 + $0x60] sm:$0xff]
        %v699 = vld [vmem:[#allocation2 + $0x68] sm:$0xff]
        %v700 = vld [vmem:[#allocation2 + $0x70] sm:$0xff]
        %v701 = vld [vmem:[#allocation2 + $0x78] sm:$0xff]
        %v702 = vld [vmem:[#allocation2 + $0x80] sm:$0xff]
        %v703 = vpack.c.bf16 %v688, %v687
        %v704 = vpack.c.bf16 %v690, %v689
        %v705 = vpack.c.bf16 %v692, %v691
        %v706 = vpack.c.bf16 %v694, %v693
        %v707 = vpack.c.bf16 %v696, %v695
        %v708 = vpack.c.bf16 %v698, %v697
        %v709 = vpack.c.bf16 %v700, %v699
        %v710 = vpack.c.bf16 %v702, %v701
        %v711 = vld [vmem:[%s1 + $0x40] sm:$0xf]
        %v712 = vld [vmem:[%s1 + $0x44] sm:$0xf]
        %v713 = vld [vmem:[%s1 + $0x48] sm:$0xf]
        %v714 = vld [vmem:[%s1 + $0x4c] sm:$0xf]
        %v715 = vld [vmem:[%s1 + $0x50] sm:$0xf]
        %v716 = vld [vmem:[%s1 + $0x54] sm:$0xf]
        %v717 = vld [vmem:[%s1 + $0x58] sm:$0xf]
        %v718 = vld [vmem:[%s1 + $0x5c] sm:$0xf]
        %v719 = vld [vmem:[%s1 + $0x60] sm:$0xf]
        %v720 = vld [vmem:[%s1 + $0x64] sm:$0xf]
        %v721 = vld [vmem:[%s1 + $0x68] sm:$0xf]
        %v722 = vld [vmem:[%s1 + $0x6c] sm:$0xf]
        %v723 = vld [vmem:[%s1 + $0x70] sm:$0xf]
        %v724 = vld [vmem:[%s1 + $0x74] sm:$0xf]
        %v725 = vld [vmem:[%s1 + $0x78] sm:$0xf]
        %v726 = vld [vmem:[%s1 + $0x7c] sm:$0xf]
        %v743 = vunpack.c.l.b16 %v711
        %v744 = vunpack.c.l.b16 %v712
        %v745 = vunpack.c.l.b16 %v713
        %v746 = vunpack.c.l.b16 %v714
        %v747 = vunpack.c.l.b16 %v715
        %v748 = vunpack.c.l.b16 %v716
        %v749 = vunpack.c.l.b16 %v717
        %v750 = vunpack.c.l.b16 %v718
        %v751 = vunpack.c.l.b16 %v719
        %v752 = vunpack.c.l.b16 %v720
        %v753 = vunpack.c.l.b16 %v721
        %v754 = vunpack.c.l.b16 %v722
        %v755 = vunpack.c.l.b16 %v723
        %v756 = vunpack.c.l.b16 %v724
        %v757 = vunpack.c.l.b16 %v725
        %v758 = vunpack.c.l.b16 %v726
        %v759 = vpack.c.b16 %v744, %v743
        %v760 = vpack.c.b16 %v746, %v745
        %v761 = vpack.c.b16 %v748, %v747
        %v762 = vpack.c.b16 %v750, %v749
        %v763 = vpack.c.b16 %v752, %v751
        %v764 = vpack.c.b16 %v754, %v753
        %v765 = vpack.c.b16 %v756, %v755
        %v766 = vpack.c.b16 %v758, %v757
        %775 = vmatprep.subr.bf16.mxu0 0
        %776 = vmatpush1.bf16.msra.mxu0 %v766
        %777 = vmatprep.subr.bf16.mxu0 0
        %778 = vmatpush1.bf16.msra.mxu0 %v765
        %779 = vmatprep.subr.bf16.mxu0 0
        %780 = vmatpush1.bf16.msra.mxu0 %v764
        %781 = vmatprep.subr.bf16.mxu0 0
        %782 = vmatpush1.bf16.msra.mxu0 %v763
        %783 = vmatprep.subr.bf16.mxu0 0
        %784 = vmatpush1.bf16.msra.mxu0 %v762
        %785 = vmatprep.subr.bf16.mxu0 0
        %786 = vmatpush1.bf16.msra.mxu0 %v761
        %787 = vmatprep.subr.bf16.mxu0 0
        %788 = vmatpush1.bf16.msra.mxu0 %v760
        %789 = vmatprep.subr.bf16.mxu0 0
        %790 = vmatpush1.bf16.msra.mxu0 %v759
        %791 = vmatprep.subr.bf16.mxu0 0
        %792 = vmatpush2.bf16.msra.mxu0 0
        %793 = vmatprep.subr.bf16.mxu0 0
        %794 = vmatpush2.bf16.msra.mxu0 0
        %795 = vmatprep.subr.bf16.mxu0 0
        %796 = vmatpush2.bf16.msra.mxu0 0
        %797 = vmatprep.subr.bf16.mxu0 0
        %798 = vmatpush2.bf16.msra.mxu0 0
        %799 = vmatprep.subr.bf16.mxu0 0
        %800 = vmatpush2.bf16.msra.mxu0 0
        %801 = vmatprep.subr.bf16.mxu0 0
        %802 = vmatpush2.bf16.msra.mxu0 0
        %803 = vmatprep.subr.bf16.mxu0 0
        %804 = vmatpush2.bf16.msra.mxu0 0
        %805 = vmatprep.subr.bf16.mxu0 0
        %806 = vmatpush2.bf16.msra.mxu0 0
        %807 = vmatprep.mubr.bf16.mxu0 0
        %808 = vmatmul.mubr.bf16.gmra.mxu0 %v703
        %v809 = vpop.f32.mrf.mxu0
        %v810 = vadd.f32 0.0, %v809
        %v811 = vpop.f32.mrf.mxu0
        %v812 = vpop.f32.mrf.mxu0
        %v813 = vadd.f32 0.0, %v812
        %v814 = vpop.f32.mrf.mxu0
        %815 = vmatprep.mubr.bf16.mxu0 0
        %816 = vmatmul.mubr.bf16.gmra.mxu0 %v704
        %v817 = vpop.f32.mrf.mxu0
        %v818 = vadd.f32 0.0, %v817
        %v819 = vpop.f32.mrf.mxu0
        %v820 = vpop.f32.mrf.mxu0
        %v821 = vadd.f32 0.0, %v820
        %v822 = vpop.f32.mrf.mxu0
        %823 = vmatprep.mubr.bf16.mxu0 0
        %824 = vmatmul.mubr.bf16.gmra.mxu0 %v705
        %v825 = vpop.f32.mrf.mxu0
        %v826 = vadd.f32 0.0, %v825
        %v827 = vpop.f32.mrf.mxu0
        %v828 = vpop.f32.mrf.mxu0
        %v829 = vadd.f32 0.0, %v828
        %v830 = vpop.f32.mrf.mxu0
        %831 = vmatprep.mubr.bf16.mxu0 0
        %832 = vmatmul.mubr.bf16.gmra.mxu0 %v706
        %v833 = vpop.f32.mrf.mxu0
        %v834 = vadd.f32 0.0, %v833
        %v835 = vpop.f32.mrf.mxu0
        %v836 = vpop.f32.mrf.mxu0
        %v837 = vadd.f32 0.0, %v836
        %v838 = vpop.f32.mrf.mxu0
        %839 = vmatprep.mubr.bf16.mxu0 0
        %840 = vmatmul.mubr.bf16.gmra.mxu0 %v707
        %v841 = vpop.f32.mrf.mxu0
        %v842 = vadd.f32 0.0, %v841
        %v843 = vpop.f32.mrf.mxu0
        %v844 = vpop.f32.mrf.mxu0
        %v845 = vadd.f32 0.0, %v844
        %v846 = vpop.f32.mrf.mxu0
        %847 = vmatprep.mubr.bf16.mxu0 0
        %848 = vmatmul.mubr.bf16.gmra.mxu0 %v708
        %v849 = vpop.f32.mrf.mxu0
        %v850 = vadd.f32 0.0, %v849
        %v851 = vpop.f32.mrf.mxu0
        %v852 = vpop.f32.mrf.mxu0
        %v853 = vadd.f32 0.0, %v852
        %v854 = vpop.f32.mrf.mxu0
        %855 = vmatprep.mubr.bf16.mxu0 0
        %856 = vmatmul.mubr.bf16.gmra.mxu0 %v709
        %v857 = vpop.f32.mrf.mxu0
        %v858 = vadd.f32 0.0, %v857
        %v859 = vpop.f32.mrf.mxu0
        %v860 = vpop.f32.mrf.mxu0
        %v861 = vadd.f32 0.0, %v860
        %v862 = vpop.f32.mrf.mxu0
        %863 = vmatprep.mubr.bf16.mxu0 0
        %864 = vmatmul.mubr.bf16.gmra.mxu0 %v710
        %v865 = vpop.f32.mrf.mxu0
        %v866 = vadd.f32 0.0, %v865
        %v867 = vpop.f32.mrf.mxu0
        %v868 = vpop.f32.mrf.mxu0
        %v869 = vadd.f32 0.0, %v868
        %v870 = vpop.f32.mrf.mxu0
        %871 = vdwg.mxu0
        %v888 = vunpack.c.l.b16 %v671
        %v889 = vunpack.c.l.b16 %v672
        %v890 = vunpack.c.l.b16 %v673
        %v891 = vunpack.c.l.b16 %v674
        %v892 = vunpack.c.l.b16 %v675
        %v893 = vunpack.c.l.b16 %v676
        %v894 = vunpack.c.l.b16 %v677
        %v895 = vunpack.c.l.b16 %v678
        %v896 = vunpack.c.l.b16 %v679
        %v897 = vunpack.c.l.b16 %v680
        %v898 = vunpack.c.l.b16 %v681
        %v899 = vunpack.c.l.b16 %v682
        %v900 = vunpack.c.l.b16 %v683
        %v901 = vunpack.c.l.b16 %v684
        %v902 = vunpack.c.l.b16 %v685
        %v903 = vunpack.c.l.b16 %v686
        %v904 = vpack.c.b16 %v889, %v888
        %v905 = vpack.c.b16 %v891, %v890
        %v906 = vpack.c.b16 %v893, %v892
        %v907 = vpack.c.b16 %v895, %v894
        %v908 = vpack.c.b16 %v897, %v896
        %v909 = vpack.c.b16 %v899, %v898
        %v910 = vpack.c.b16 %v901, %v900
        %v911 = vpack.c.b16 %v903, %v902
        %920 = vmatprep.subr.bf16.mxu0 0
        %921 = vmatpush1.bf16.msra.mxu0 %v911
        %922 = vmatprep.subr.bf16.mxu0 0
        %923 = vmatpush1.bf16.msra.mxu0 %v910
        %924 = vmatprep.subr.bf16.mxu0 0
        %925 = vmatpush1.bf16.msra.mxu0 %v909
        %926 = vmatprep.subr.bf16.mxu0 0
        %927 = vmatpush1.bf16.msra.mxu0 %v908
        %928 = vmatprep.subr.bf16.mxu0 0
        %929 = vmatpush1.bf16.msra.mxu0 %v907
        %930 = vmatprep.subr.bf16.mxu0 0
        %931 = vmatpush1.bf16.msra.mxu0 %v906
        %932 = vmatprep.subr.bf16.mxu0 0
        %933 = vmatpush1.bf16.msra.mxu0 %v905
        %934 = vmatprep.subr.bf16.mxu0 0
        %935 = vmatpush1.bf16.msra.mxu0 %v904
        %936 = vmatprep.subr.bf16.mxu0 0
        %937 = vmatpush2.bf16.msra.mxu0 0
        %938 = vmatprep.subr.bf16.mxu0 0
        %939 = vmatpush2.bf16.msra.mxu0 0
        %940 = vmatprep.subr.bf16.mxu0 0
        %941 = vmatpush2.bf16.msra.mxu0 0
        %942 = vmatprep.subr.bf16.mxu0 0
        %943 = vmatpush2.bf16.msra.mxu0 0
        %944 = vmatprep.subr.bf16.mxu0 0
        %945 = vmatpush2.bf16.msra.mxu0 0
        %946 = vmatprep.subr.bf16.mxu0 0
        %947 = vmatpush2.bf16.msra.mxu0 0
        %948 = vmatprep.subr.bf16.mxu0 0
        %949 = vmatpush2.bf16.msra.mxu0 0
        %950 = vmatprep.subr.bf16.mxu0 0
        %951 = vmatpush2.bf16.msra.mxu0 0
        %952 = vmatprep.mubr.bf16.mxu0 0
        %953 = vmatmul.mubr.bf16.gmra.mxu0 %v663
        %v954 = vpop.f32.mrf.mxu0
        %v955 = vadd.f32 %v810, %v954
        %v956 = vpop.f32.mrf.mxu0
        %v957 = vpop.f32.mrf.mxu0
        %v958 = vadd.f32 %v813, %v957
        %v959 = vpop.f32.mrf.mxu0
        %960 = vmatprep.mubr.bf16.mxu0 0
        %961 = vmatmul.mubr.bf16.gmra.mxu0 %v664
        %v962 = vpop.f32.mrf.mxu0
        %v963 = vadd.f32 %v818, %v962
        %v964 = vpop.f32.mrf.mxu0
        %v965 = vpop.f32.mrf.mxu0
        %v966 = vadd.f32 %v821, %v965
        %v967 = vpop.f32.mrf.mxu0
        %968 = vmatprep.mubr.bf16.mxu0 0
        %969 = vmatmul.mubr.bf16.gmra.mxu0 %v665
        %v970 = vpop.f32.mrf.mxu0
        %v971 = vadd.f32 %v826, %v970
        %v972 = vpop.f32.mrf.mxu0
        %v973 = vpop.f32.mrf.mxu0
        %v974 = vadd.f32 %v829, %v973
        %v975 = vpop.f32.mrf.mxu0
        %976 = vmatprep.mubr.bf16.mxu0 0
        %977 = vmatmul.mubr.bf16.gmra.mxu0 %v666
        %v978 = vpop.f32.mrf.mxu0
        %v979 = vadd.f32 %v834, %v978
        %v980 = vpop.f32.mrf.mxu0
        %v981 = vpop.f32.mrf.mxu0
        %v982 = vadd.f32 %v837, %v981
        %v983 = vpop.f32.mrf.mxu0
        %984 = vmatprep.mubr.bf16.mxu0 0
        %985 = vmatmul.mubr.bf16.gmra.mxu0 %v667
        %v986 = vpop.f32.mrf.mxu0
        %v987 = vadd.f32 %v842, %v986
        %v988 = vpop.f32.mrf.mxu0
        %v989 = vpop.f32.mrf.mxu0
        %v990 = vadd.f32 %v845, %v989
        %v991 = vpop.f32.mrf.mxu0
        %992 = vmatprep.mubr.bf16.mxu0 0
        %993 = vmatmul.mubr.bf16.gmra.mxu0 %v668
        %v994 = vpop.f32.mrf.mxu0
        %v995 = vadd.f32 %v850, %v994
        %v996 = vpop.f32.mrf.mxu0
        %v997 = vpop.f32.mrf.mxu0
        %v998 = vadd.f32 %v853, %v997
        %v999 = vpop.f32.mrf.mxu0
        %1000 = vmatprep.mubr.bf16.mxu0 0
        %1001 = vmatmul.mubr.bf16.gmra.mxu0 %v669
        %v1002 = vpop.f32.mrf.mxu0
        %v1003 = vadd.f32 %v858, %v1002
        %v1004 = vpop.f32.mrf.mxu0
        %v1005 = vpop.f32.mrf.mxu0
        %v1006 = vadd.f32 %v861, %v1005
        %v1007 = vpop.f32.mrf.mxu0
        %1008 = vmatprep.mubr.bf16.mxu0 0
        %1009 = vmatmul.mubr.bf16.gmra.mxu0 %v670
        %v1010 = vpop.f32.mrf.mxu0
        %v1011 = vadd.f32 %v866, %v1010
        %v1012 = vpop.f32.mrf.mxu0
        %v1013 = vpop.f32.mrf.mxu0
        %v1014 = vadd.f32 %v869, %v1013
        %v1015 = vpop.f32.mrf.mxu0
        %1016 = vdwg.mxu0
        %v1017 = vld [vmem:[#allocation2 + $0x9] sm:$0xff]
        %v1018 = vld [vmem:[#allocation2 + $0x11] sm:$0xff]
        %v1019 = vld [vmem:[#allocation2 + $0x19] sm:$0xff]
        %v1020 = vld [vmem:[#allocation2 + $0x21] sm:$0xff]
        %v1021 = vld [vmem:[#allocation2 + $0x29] sm:$0xff]
        %v1022 = vld [vmem:[#allocation2 + $0x31] sm:$0xff]
        %v1023 = vld [vmem:[#allocation2 + $0x39] sm:$0xff]
        %v1024 = vld [vmem:[#allocation2 + $0x41] sm:$0xff]
        %v1025 = vld [vmem:[#allocation2 + $0x49] sm:$0xff]
        %v1026 = vld [vmem:[#allocation2 + $0x51] sm:$0xff]
        %v1027 = vld [vmem:[#allocation2 + $0x59] sm:$0xff]
        %v1028 = vld [vmem:[#allocation2 + $0x61] sm:$0xff]
        %v1029 = vld [vmem:[#allocation2 + $0x69] sm:$0xff]
        %v1030 = vld [vmem:[#allocation2 + $0x71] sm:$0xff]
        %v1031 = vld [vmem:[#allocation2 + $0x79] sm:$0xff]
        %v1032 = vld [vmem:[#allocation2 + $0x81] sm:$0xff]
        %v1033 = vpack.c.bf16 %v1018, %v1017
        %v1034 = vpack.c.bf16 %v1020, %v1019
        %v1035 = vpack.c.bf16 %v1022, %v1021
        %v1036 = vpack.c.bf16 %v1024, %v1023
        %v1037 = vpack.c.bf16 %v1026, %v1025
        %v1038 = vpack.c.bf16 %v1028, %v1027
        %v1039 = vpack.c.bf16 %v1030, %v1029
        %v1040 = vpack.c.bf16 %v1032, %v1031
        %v1041 = vsel %vm527, 1, 0
        %v1042 = vsel %vm528, 1, 0
        %v1043 = vsel %vm529, 1, 0
        %v1044 = vsel %vm530, 1, 0
        %v1045 = vsel %vm531, 1, 0
        %v1046 = vsel %vm532, 1, 0
        %v1047 = vsel %vm533, 1, 0
        %v1048 = vsel %vm534, 1, 0
        %v1049 = vsel %vm535, 1, 0
        %v1050 = vsel %vm536, 1, 0
        %v1051 = vsel %vm537, 1, 0
        %v1052 = vsel %vm538, 1, 0
        %v1053 = vsel %vm539, 1, 0
        %v1054 = vsel %vm540, 1, 0
        %v1055 = vsel %vm541, 1, 0
        %v1056 = vsel %vm542, 1, 0
        %vm1057 = vcmp.eq.s32.totalorder %v1041, 1
        %vm1058 = vcmp.eq.s32.totalorder %v1042, 1
        %vm1059 = vcmp.eq.s32.totalorder %v1043, 1
        %vm1060 = vcmp.eq.s32.totalorder %v1044, 1
        %vm1061 = vcmp.eq.s32.totalorder %v1045, 1
        %vm1062 = vcmp.eq.s32.totalorder %v1046, 1
        %vm1063 = vcmp.eq.s32.totalorder %v1047, 1
        %vm1064 = vcmp.eq.s32.totalorder %v1048, 1
        %vm1065 = vcmp.eq.s32.totalorder %v1049, 1
        %vm1066 = vcmp.eq.s32.totalorder %v1050, 1
        %vm1067 = vcmp.eq.s32.totalorder %v1051, 1
        %vm1068 = vcmp.eq.s32.totalorder %v1052, 1
        %vm1069 = vcmp.eq.s32.totalorder %v1053, 1
        %vm1070 = vcmp.eq.s32.totalorder %v1054, 1
        %vm1071 = vcmp.eq.s32.totalorder %v1055, 1
        %vm1072 = vcmp.eq.s32.totalorder %v1056, 1
        %vm1073 = vmpackc.low %vm1057, %vm1057
        %vm1074 = vmpackc.low %vm1058, %vm1058
        %vm1075 = vmpackc.low %vm1059, %vm1059
        %vm1076 = vmpackc.low %vm1060, %vm1060
        %vm1077 = vmpackc.low %vm1061, %vm1061
        %vm1078 = vmpackc.low %vm1062, %vm1062
        %vm1079 = vmpackc.low %vm1063, %vm1063
        %vm1080 = vmpackc.low %vm1064, %vm1064
        %vm1081 = vmpackc.low %vm1065, %vm1065
        %vm1082 = vmpackc.low %vm1066, %vm1066
        %vm1083 = vmpackc.low %vm1067, %vm1067
        %vm1084 = vmpackc.low %vm1068, %vm1068
        %vm1085 = vmpackc.low %vm1069, %vm1069
        %vm1086 = vmpackc.low %vm1070, %vm1070
        %vm1087 = vmpackc.low %vm1071, %vm1071
        %vm1088 = vmpackc.low %vm1072, %vm1072
        %v1089 = vsel %vm1073, 65537, 0
        %v1090 = vsel %vm1074, 65537, 0
        %v1091 = vsel %vm1075, 65537, 0
        %v1092 = vsel %vm1076, 65537, 0
        %v1093 = vsel %vm1077, 65537, 0
        %v1094 = vsel %vm1078, 65537, 0
        %v1095 = vsel %vm1079, 65537, 0
        %v1096 = vsel %vm1080, 65537, 0
        %v1097 = vsel %vm1081, 65537, 0
        %v1098 = vsel %vm1082, 65537, 0
        %v1099 = vsel %vm1083, 65537, 0
        %v1100 = vsel %vm1084, 65537, 0
        %v1101 = vsel %vm1085, 65537, 0
        %v1102 = vsel %vm1086, 65537, 0
        %v1103 = vsel %vm1087, 65537, 0
        %v1104 = vsel %vm1088, 65537, 0
        %v1105 = vunpack.c.l.b16 %v1089
        %v1106 = vunpack.c.l.b16 %v1090
        %v1107 = vunpack.c.l.b16 %v1091
        %v1108 = vunpack.c.l.b16 %v1092
        %v1109 = vunpack.c.l.b16 %v1093
        %v1110 = vunpack.c.l.b16 %v1094
        %v1111 = vunpack.c.l.b16 %v1095
        %v1112 = vunpack.c.l.b16 %v1096
        %v1113 = vunpack.c.l.b16 %v1097
        %v1114 = vunpack.c.l.b16 %v1098
        %v1115 = vunpack.c.l.b16 %v1099
        %v1116 = vunpack.c.l.b16 %v1100
        %v1117 = vunpack.c.l.b16 %v1101
        %v1118 = vunpack.c.l.b16 %v1102
        %v1119 = vunpack.c.l.b16 %v1103
        %v1120 = vunpack.c.l.b16 %v1104
        %v1121 = vpack.c.b16 %v1106, %v1105
        %v1122 = vpack.c.b16 %v1108, %v1107
        %v1123 = vpack.c.b16 %v1110, %v1109
        %v1124 = vpack.c.b16 %v1112, %v1111
        %v1125 = vpack.c.b16 %v1114, %v1113
        %v1126 = vpack.c.b16 %v1116, %v1115
        %v1127 = vpack.c.b16 %v1118, %v1117
        %v1128 = vpack.c.b16 %v1120, %v1119
        %vm1129 = vcmp.ne.s16.totalorder %v1121, 0
        %vm1130 = vcmp.ne.s16.totalorder %v1122, 0
        %vm1131 = vcmp.ne.s16.totalorder %v1123, 0
        %vm1132 = vcmp.ne.s16.totalorder %v1124, 0
        %vm1133 = vcmp.ne.s16.totalorder %v1125, 0
        %vm1134 = vcmp.ne.s16.totalorder %v1126, 0
        %vm1135 = vcmp.ne.s16.totalorder %v1127, 0
        %vm1136 = vcmp.ne.s16.totalorder %v1128, 0
        %v1137 = vsel %vm1129, %v1033, 0
        %v1138 = vsel %vm1130, %v1034, 0
        %v1139 = vsel %vm1131, %v1035, 0
        %v1140 = vsel %vm1132, %v1036, 0
        %v1141 = vsel %vm1133, %v1037, 0
        %v1142 = vsel %vm1134, %v1038, 0
        %v1143 = vsel %vm1135, %v1039, 0
        %v1144 = vsel %vm1136, %v1040, 0
        %v1145 = vld [vmem:[%s1 + $0x80] sm:$0xf]
        %v1146 = vld [vmem:[%s1 + $0x84] sm:$0xf]
        %v1147 = vld [vmem:[%s1 + $0x88] sm:$0xf]
        %v1148 = vld [vmem:[%s1 + $0x8c] sm:$0xf]
        %v1149 = vld [vmem:[%s1 + $0x90] sm:$0xf]
        %v1150 = vld [vmem:[%s1 + $0x94] sm:$0xf]
        %v1151 = vld [vmem:[%s1 + $0x98] sm:$0xf]
        %v1152 = vld [vmem:[%s1 + $0x9c] sm:$0xf]
        %v1153 = vld [vmem:[%s1 + $0xa0] sm:$0xf]
        %v1154 = vld [vmem:[%s1 + $0xa4] sm:$0xf]
        %v1155 = vld [vmem:[%s1 + $0xa8] sm:$0xf]
        %v1156 = vld [vmem:[%s1 + $0xac] sm:$0xf]
        %v1157 = vld [vmem:[%s1 + $0xb0] sm:$0xf]
        %v1158 = vld [vmem:[%s1 + $0xb4] sm:$0xf]
        %v1159 = vld [vmem:[%s1 + $0xb8] sm:$0xf]
        %v1160 = vld [vmem:[%s1 + $0xbc] sm:$0xf]
        %v1177 = vunpack.c.l.b16 %v1145
        %v1178 = vunpack.c.l.b16 %v1146
        %v1179 = vunpack.c.l.b16 %v1147
        %v1180 = vunpack.c.l.b16 %v1148
        %v1181 = vunpack.c.l.b16 %v1149
        %v1182 = vunpack.c.l.b16 %v1150
        %v1183 = vunpack.c.l.b16 %v1151
        %v1184 = vunpack.c.l.b16 %v1152
        %v1185 = vunpack.c.l.b16 %v1153
        %v1186 = vunpack.c.l.b16 %v1154
        %v1187 = vunpack.c.l.b16 %v1155
        %v1188 = vunpack.c.l.b16 %v1156
        %v1189 = vunpack.c.l.b16 %v1157
        %v1190 = vunpack.c.l.b16 %v1158
        %v1191 = vunpack.c.l.b16 %v1159
        %v1192 = vunpack.c.l.b16 %v1160
        %v1193 = vpack.c.b16 %v1178, %v1177
        %v1194 = vpack.c.b16 %v1180, %v1179
        %v1195 = vpack.c.b16 %v1182, %v1181
        %v1196 = vpack.c.b16 %v1184, %v1183
        %v1197 = vpack.c.b16 %v1186, %v1185
        %v1198 = vpack.c.b16 %v1188, %v1187
        %v1199 = vpack.c.b16 %v1190, %v1189
        %v1200 = vpack.c.b16 %v1192, %v1191
        %1209 = vmatprep.subr.bf16.mxu0 0
        %1210 = vmatpush1.bf16.msra.mxu0 %v1200
        %1211 = vmatprep.subr.bf16.mxu0 0
        %1212 = vmatpush1.bf16.msra.mxu0 %v1199
        %1213 = vmatprep.subr.bf16.mxu0 0
        %1214 = vmatpush1.bf16.msra.mxu0 %v1198
        %1215 = vmatprep.subr.bf16.mxu0 0
        %1216 = vmatpush1.bf16.msra.mxu0 %v1197
        %1217 = vmatprep.subr.bf16.mxu0 0
        %1218 = vmatpush1.bf16.msra.mxu0 %v1196
        %1219 = vmatprep.subr.bf16.mxu0 0
        %1220 = vmatpush1.bf16.msra.mxu0 %v1195
        %1221 = vmatprep.subr.bf16.mxu0 0
        %1222 = vmatpush1.bf16.msra.mxu0 %v1194
        %1223 = vmatprep.subr.bf16.mxu0 0
        %1224 = vmatpush1.bf16.msra.mxu0 %v1193
        %1225 = vmatprep.subr.bf16.mxu0 0
        %1226 = vmatpush2.bf16.msra.mxu0 0
        %1227 = vmatprep.subr.bf16.mxu0 0
        %1228 = vmatpush2.bf16.msra.mxu0 0
        %1229 = vmatprep.subr.bf16.mxu0 0
        %1230 = vmatpush2.bf16.msra.mxu0 0
        %1231 = vmatprep.subr.bf16.mxu0 0
        %1232 = vmatpush2.bf16.msra.mxu0 0
        %1233 = vmatprep.subr.bf16.mxu0 0
        %1234 = vmatpush2.bf16.msra.mxu0 0
        %1235 = vmatprep.subr.bf16.mxu0 0
        %1236 = vmatpush2.bf16.msra.mxu0 0
        %1237 = vmatprep.subr.bf16.mxu0 0
        %1238 = vmatpush2.bf16.msra.mxu0 0
        %1239 = vmatprep.subr.bf16.mxu0 0
        %1240 = vmatpush2.bf16.msra.mxu0 0
        %1241 = vmatprep.mubr.bf16.mxu0 0
        %1242 = vmatmul.mubr.bf16.gmra.mxu0 %v1137
        %v1243 = vpop.f32.mrf.mxu0
        %v1244 = vadd.f32 0.0, %v1243
        %v1245 = vpop.f32.mrf.mxu0
        %v1246 = vpop.f32.mrf.mxu0
        %v1247 = vadd.f32 0.0, %v1246
        %v1248 = vpop.f32.mrf.mxu0
        %1249 = vmatprep.mubr.bf16.mxu0 0
        %1250 = vmatmul.mubr.bf16.gmra.mxu0 %v1138
        %v1251 = vpop.f32.mrf.mxu0
        %v1252 = vadd.f32 0.0, %v1251
        %v1253 = vpop.f32.mrf.mxu0
        %v1254 = vpop.f32.mrf.mxu0
        %v1255 = vadd.f32 0.0, %v1254
        %v1256 = vpop.f32.mrf.mxu0
        %1257 = vmatprep.mubr.bf16.mxu0 0
        %1258 = vmatmul.mubr.bf16.gmra.mxu0 %v1139
        %v1259 = vpop.f32.mrf.mxu0
        %v1260 = vadd.f32 0.0, %v1259
        %v1261 = vpop.f32.mrf.mxu0
        %v1262 = vpop.f32.mrf.mxu0
        %v1263 = vadd.f32 0.0, %v1262
        %v1264 = vpop.f32.mrf.mxu0
        %1265 = vmatprep.mubr.bf16.mxu0 0
        %1266 = vmatmul.mubr.bf16.gmra.mxu0 %v1140
        %v1267 = vpop.f32.mrf.mxu0
        %v1268 = vadd.f32 0.0, %v1267
        %v1269 = vpop.f32.mrf.mxu0
        %v1270 = vpop.f32.mrf.mxu0
        %v1271 = vadd.f32 0.0, %v1270
        %v1272 = vpop.f32.mrf.mxu0
        %1273 = vmatprep.mubr.bf16.mxu0 0
        %1274 = vmatmul.mubr.bf16.gmra.mxu0 %v1141
        %v1275 = vpop.f32.mrf.mxu0
        %v1276 = vadd.f32 0.0, %v1275
        %v1277 = vpop.f32.mrf.mxu0
        %v1278 = vpop.f32.mrf.mxu0
        %v1279 = vadd.f32 0.0, %v1278
        %v1280 = vpop.f32.mrf.mxu0
        %1281 = vmatprep.mubr.bf16.mxu0 0
        %1282 = vmatmul.mubr.bf16.gmra.mxu0 %v1142
        %v1283 = vpop.f32.mrf.mxu0
        %v1284 = vadd.f32 0.0, %v1283
        %v1285 = vpop.f32.mrf.mxu0
        %v1286 = vpop.f32.mrf.mxu0
        %v1287 = vadd.f32 0.0, %v1286
        %v1288 = vpop.f32.mrf.mxu0
        %1289 = vmatprep.mubr.bf16.mxu0 0
        %1290 = vmatmul.mubr.bf16.gmra.mxu0 %v1143
        %v1291 = vpop.f32.mrf.mxu0
        %v1292 = vadd.f32 0.0, %v1291
        %v1293 = vpop.f32.mrf.mxu0
        %v1294 = vpop.f32.mrf.mxu0
        %v1295 = vadd.f32 0.0, %v1294
        %v1296 = vpop.f32.mrf.mxu0
        %1297 = vmatprep.mubr.bf16.mxu0 0
        %1298 = vmatmul.mubr.bf16.gmra.mxu0 %v1144
        %v1299 = vpop.f32.mrf.mxu0
        %v1300 = vadd.f32 0.0, %v1299
        %v1301 = vpop.f32.mrf.mxu0
        %v1302 = vpop.f32.mrf.mxu0
        %v1303 = vadd.f32 0.0, %v1302
        %v1304 = vpop.f32.mrf.mxu0
        %1305 = vdwg.mxu0
        %v1306 = vadd.f32 %v955, %v1244
        %v1307 = vadd.f32 %v958, %v1247
        %v1308 = vadd.f32 %v963, %v1252
        %v1309 = vadd.f32 %v966, %v1255
        %v1310 = vadd.f32 %v971, %v1260
        %v1311 = vadd.f32 %v974, %v1263
        %v1312 = vadd.f32 %v979, %v1268
        %v1313 = vadd.f32 %v982, %v1271
        %v1314 = vadd.f32 %v987, %v1276
        %v1315 = vadd.f32 %v990, %v1279
        %v1316 = vadd.f32 %v995, %v1284
        %v1317 = vadd.f32 %v998, %v1287
        %v1318 = vadd.f32 %v1003, %v1292
        %v1319 = vadd.f32 %v1006, %v1295
        %v1320 = vadd.f32 %v1011, %v1300
        %v1321 = vadd.f32 %v1014, %v1303
        %v1322 = vld [vmem:[#allocation2 + $0x17] sm:$0xff]
        %v1323 = vld [vmem:[#allocation2 + $0x1f] sm:$0xff]
        %v1324 = vld [vmem:[#allocation2 + $0x27] sm:$0xff]
        %v1325 = vld [vmem:[#allocation2 + $0x2f] sm:$0xff]
        %v1326 = vld [vmem:[#allocation2 + $0x37] sm:$0xff]
        %v1327 = vld [vmem:[#allocation2 + $0x3f] sm:$0xff]
        %v1328 = vld [vmem:[#allocation2 + $0x47] sm:$0xff]
        %v1329 = vld [vmem:[#allocation2 + $0x4f] sm:$0xff]
        %v1330 = vld [vmem:[#allocation2 + $0x57] sm:$0xff]
        %v1331 = vld [vmem:[#allocation2 + $0x5f] sm:$0xff]
        %v1332 = vld [vmem:[#allocation2 + $0x67] sm:$0xff]
        %v1333 = vld [vmem:[#allocation2 + $0x6f] sm:$0xff]
        %v1334 = vld [vmem:[#allocation2 + $0x77] sm:$0xff]
        %v1335 = vld [vmem:[#allocation2 + $0x7f] sm:$0xff]
        %v1336 = vld [vmem:[#allocation2 + $0x87] sm:$0xff]
        %v1337 = vld [vmem:[#allocation2 + $0x8f] sm:$0xff]
        %v1338 = vpack.c.bf16 %v1323, %v1322
        %v1339 = vpack.c.bf16 %v1325, %v1324
        %v1340 = vpack.c.bf16 %v1327, %v1326
        %v1341 = vpack.c.bf16 %v1329, %v1328
        %v1342 = vpack.c.bf16 %v1331, %v1330
        %v1343 = vpack.c.bf16 %v1333, %v1332
        %v1344 = vpack.c.bf16 %v1335, %v1334
        %v1345 = vpack.c.bf16 %v1337, %v1336
        %v1346 = vsel %vm655, %v1338, 0
        %v1347 = vsel %vm656, %v1339, 0
        %v1348 = vsel %vm657, %v1340, 0
        %v1349 = vsel %vm658, %v1341, 0
        %v1350 = vsel %vm659, %v1342, 0
        %v1351 = vsel %vm660, %v1343, 0
        %v1352 = vsel %vm661, %v1344, 0
        %v1353 = vsel %vm662, %v1345, 0
        %v1354 = vld [vmem:[%s1 + $0xc0] sm:$0xf]
        %v1355 = vld [vmem:[%s1 + $0xc4] sm:$0xf]
        %v1356 = vld [vmem:[%s1 + $0xc8] sm:$0xf]
        %v1357 = vld [vmem:[%s1 + $0xcc] sm:$0xf]
        %v1358 = vld [vmem:[%s1 + $0xd0] sm:$0xf]
        %v1359 = vld [vmem:[%s1 + $0xd4] sm:$0xf]
        %v1360 = vld [vmem:[%s1 + $0xd8] sm:$0xf]
        %v1361 = vld [vmem:[%s1 + $0xdc] sm:$0xf]
        %v1362 = vld [vmem:[%s1 + $0xe0] sm:$0xf]
        %v1363 = vld [vmem:[%s1 + $0xe4] sm:$0xf]
        %v1364 = vld [vmem:[%s1 + $0xe8] sm:$0xf]
        %v1365 = vld [vmem:[%s1 + $0xec] sm:$0xf]
        %v1366 = vld [vmem:[%s1 + $0xf0] sm:$0xf]
        %v1367 = vld [vmem:[%s1 + $0xf4] sm:$0xf]
        %v1368 = vld [vmem:[%s1 + $0xf8] sm:$0xf]
        %v1369 = vld [vmem:[%s1 + $0xfc] sm:$0xf]
        %v1386 = vunpack.c.l.b16 %v1354
        %v1387 = vunpack.c.l.b16 %v1355
        %v1388 = vunpack.c.l.b16 %v1356
        %v1389 = vunpack.c.l.b16 %v1357
        %v1390 = vunpack.c.l.b16 %v1358
        %v1391 = vunpack.c.l.b16 %v1359
        %v1392 = vunpack.c.l.b16 %v1360
        %v1393 = vunpack.c.l.b16 %v1361
        %v1394 = vunpack.c.l.b16 %v1362
        %v1395 = vunpack.c.l.b16 %v1363
        %v1396 = vunpack.c.l.b16 %v1364
        %v1397 = vunpack.c.l.b16 %v1365
        %v1398 = vunpack.c.l.b16 %v1366
        %v1399 = vunpack.c.l.b16 %v1367
        %v1400 = vunpack.c.l.b16 %v1368
        %v1401 = vunpack.c.l.b16 %v1369
        %v1402 = vpack.c.b16 %v1387, %v1386
        %v1403 = vpack.c.b16 %v1389, %v1388
        %v1404 = vpack.c.b16 %v1391, %v1390
        %v1405 = vpack.c.b16 %v1393, %v1392
        %v1406 = vpack.c.b16 %v1395, %v1394
        %v1407 = vpack.c.b16 %v1397, %v1396
        %v1408 = vpack.c.b16 %v1399, %v1398
        %v1409 = vpack.c.b16 %v1401, %v1400
        %1418 = vmatprep.subr.bf16.mxu0 0
        %1419 = vmatpush1.bf16.msra.mxu0 %v1409
        %1420 = vmatprep.subr.bf16.mxu0 0
        %1421 = vmatpush1.bf16.msra.mxu0 %v1408
        %1422 = vmatprep.subr.bf16.mxu0 0
        %1423 = vmatpush1.bf16.msra.mxu0 %v1407
        %1424 = vmatprep.subr.bf16.mxu0 0
        %1425 = vmatpush1.bf16.msra.mxu0 %v1406
        %1426 = vmatprep.subr.bf16.mxu0 0
        %1427 = vmatpush1.bf16.msra.mxu0 %v1405
        %1428 = vmatprep.subr.bf16.mxu0 0
        %1429 = vmatpush1.bf16.msra.mxu0 %v1404
        %1430 = vmatprep.subr.bf16.mxu0 0
        %1431 = vmatpush1.bf16.msra.mxu0 %v1403
        %1432 = vmatprep.subr.bf16.mxu0 0
        %1433 = vmatpush1.bf16.msra.mxu0 %v1402
        %1434 = vmatprep.subr.bf16.mxu0 0
        %1435 = vmatpush2.bf16.msra.mxu0 0
        %1436 = vmatprep.subr.bf16.mxu0 0
        %1437 = vmatpush2.bf16.msra.mxu0 0
        %1438 = vmatprep.subr.bf16.mxu0 0
        %1439 = vmatpush2.bf16.msra.mxu0 0
        %1440 = vmatprep.subr.bf16.mxu0 0
        %1441 = vmatpush2.bf16.msra.mxu0 0
        %1442 = vmatprep.subr.bf16.mxu0 0
        %1443 = vmatpush2.bf16.msra.mxu0 0
        %1444 = vmatprep.subr.bf16.mxu0 0
        %1445 = vmatpush2.bf16.msra.mxu0 0
        %1446 = vmatprep.subr.bf16.mxu0 0
        %1447 = vmatpush2.bf16.msra.mxu0 0
        %1448 = vmatprep.subr.bf16.mxu0 0
        %1449 = vmatpush2.bf16.msra.mxu0 0
        %1450 = vmatprep.mubr.bf16.mxu0 0
        %1451 = vmatmul.mubr.bf16.gmra.mxu0 %v1346
        %v1452 = vpop.f32.mrf.mxu0
        %v1453 = vadd.f32 0.0, %v1452
        %v1454 = vpop.f32.mrf.mxu0
        %v1455 = vpop.f32.mrf.mxu0
        %v1456 = vadd.f32 0.0, %v1455
        %v1457 = vpop.f32.mrf.mxu0
        %1458 = vmatprep.mubr.bf16.mxu0 0
        %1459 = vmatmul.mubr.bf16.gmra.mxu0 %v1347
        %v1460 = vpop.f32.mrf.mxu0
        %v1461 = vadd.f32 0.0, %v1460
        %v1462 = vpop.f32.mrf.mxu0
        %v1463 = vpop.f32.mrf.mxu0
        %v1464 = vadd.f32 0.0, %v1463
        %v1465 = vpop.f32.mrf.mxu0
        %1466 = vmatprep.mubr.bf16.mxu0 0
        %1467 = vmatmul.mubr.bf16.gmra.mxu0 %v1348
        %v1468 = vpop.f32.mrf.mxu0
        %v1469 = vadd.f32 0.0, %v1468
        %v1470 = vpop.f32.mrf.mxu0
        %v1471 = vpop.f32.mrf.mxu0
        %v1472 = vadd.f32 0.0, %v1471
        %v1473 = vpop.f32.mrf.mxu0
        %1474 = vmatprep.mubr.bf16.mxu0 0
        %1475 = vmatmul.mubr.bf16.gmra.mxu0 %v1349
        %v1476 = vpop.f32.mrf.mxu0
        %v1477 = vadd.f32 0.0, %v1476
        %v1478 = vpop.f32.mrf.mxu0
        %v1479 = vpop.f32.mrf.mxu0
        %v1480 = vadd.f32 0.0, %v1479
        %v1481 = vpop.f32.mrf.mxu0
        %1482 = vmatprep.mubr.bf16.mxu0 0
        %1483 = vmatmul.mubr.bf16.gmra.mxu0 %v1350
        %v1484 = vpop.f32.mrf.mxu0
        %v1485 = vadd.f32 0.0, %v1484
        %v1486 = vpop.f32.mrf.mxu0
        %v1487 = vpop.f32.mrf.mxu0
        %v1488 = vadd.f32 0.0, %v1487
        %v1489 = vpop.f32.mrf.mxu0
        %1490 = vmatprep.mubr.bf16.mxu0 0
        %1491 = vmatmul.mubr.bf16.gmra.mxu0 %v1351
        %v1492 = vpop.f32.mrf.mxu0
        %v1493 = vadd.f32 0.0, %v1492
        %v1494 = vpop.f32.mrf.mxu0
        %v1495 = vpop.f32.mrf.mxu0
        %v1496 = vadd.f32 0.0, %v1495
        %v1497 = vpop.f32.mrf.mxu0
        %1498 = vmatprep.mubr.bf16.mxu0 0
        %1499 = vmatmul.mubr.bf16.gmra.mxu0 %v1352
        %v1500 = vpop.f32.mrf.mxu0
        %v1501 = vadd.f32 0.0, %v1500
        %v1502 = vpop.f32.mrf.mxu0
        %v1503 = vpop.f32.mrf.mxu0
        %v1504 = vadd.f32 0.0, %v1503
        %v1505 = vpop.f32.mrf.mxu0
        %1506 = vmatprep.mubr.bf16.mxu0 0
        %1507 = vmatmul.mubr.bf16.gmra.mxu0 %v1353
        %v1508 = vpop.f32.mrf.mxu0
        %v1509 = vadd.f32 0.0, %v1508
        %v1510 = vpop.f32.mrf.mxu0
        %v1511 = vpop.f32.mrf.mxu0
        %v1512 = vadd.f32 0.0, %v1511
        %v1513 = vpop.f32.mrf.mxu0
        %1514 = vdwg.mxu0
        %v1515 = vadd.f32 %v1306, %v1453
        %v1516 = vadd.f32 %v1307, %v1456
        %v1517 = vadd.f32 %v1308, %v1461
        %v1518 = vadd.f32 %v1309, %v1464
        %v1519 = vadd.f32 %v1310, %v1469
        %v1520 = vadd.f32 %v1311, %v1472
        %v1521 = vadd.f32 %v1312, %v1477
        %v1522 = vadd.f32 %v1313, %v1480
        %v1523 = vadd.f32 %v1314, %v1485
        %v1524 = vadd.f32 %v1315, %v1488
        %v1525 = vadd.f32 %v1316, %v1493
        %v1526 = vadd.f32 %v1317, %v1496
        %v1527 = vadd.f32 %v1318, %v1501
        %v1528 = vadd.f32 %v1319, %v1504
        %v1529 = vadd.f32 %v1320, %v1509
        %v1530 = vadd.f32 %v1321, %v1512
        %v1531 = vld [vmem:[#allocation2 + $0x18] sm:$0xff]
        %v1532 = vld [vmem:[#allocation2 + $0x20] sm:$0xff]
        %v1533 = vld [vmem:[#allocation2 + $0x28] sm:$0xff]
        %v1534 = vld [vmem:[#allocation2 + $0x30] sm:$0xff]
        %v1535 = vld [vmem:[#allocation2 + $0x38] sm:$0xff]
        %v1536 = vld [vmem:[#allocation2 + $0x40] sm:$0xff]
        %v1537 = vld [vmem:[#allocation2 + $0x48] sm:$0xff]
        %v1538 = vld [vmem:[#allocation2 + $0x50] sm:$0xff]
        %v1539 = vld [vmem:[#allocation2 + $0x58] sm:$0xff]
        %v1540 = vld [vmem:[#allocation2 + $0x60] sm:$0xff]
        %v1541 = vld [vmem:[#allocation2 + $0x68] sm:$0xff]
        %v1542 = vld [vmem:[#allocation2 + $0x70] sm:$0xff]
        %v1543 = vld [vmem:[#allocation2 + $0x78] sm:$0xff]
        %v1544 = vld [vmem:[#allocation2 + $0x80] sm:$0xff]
        %v1545 = vld [vmem:[#allocation2 + $0x88] sm:$0xff]
        %v1546 = vld [vmem:[#allocation2 + $0x90] sm:$0xff]
        %v1547 = vpack.c.bf16 %v1532, %v1531
        %v1548 = vpack.c.bf16 %v1534, %v1533
        %v1549 = vpack.c.bf16 %v1536, %v1535
        %v1550 = vpack.c.bf16 %v1538, %v1537
        %v1551 = vpack.c.bf16 %v1540, %v1539
        %v1552 = vpack.c.bf16 %v1542, %v1541
        %v1553 = vpack.c.bf16 %v1544, %v1543
        %v1554 = vpack.c.bf16 %v1546, %v1545
        %v1555 = vld [vmem:[%s1 + $0x100] sm:$0xf]
        %v1556 = vld [vmem:[%s1 + $0x104] sm:$0xf]
        %v1557 = vld [vmem:[%s1 + $0x108] sm:$0xf]
        %v1558 = vld [vmem:[%s1 + $0x10c] sm:$0xf]
        %v1559 = vld [vmem:[%s1 + $0x110] sm:$0xf]
        %v1560 = vld [vmem:[%s1 + $0x114] sm:$0xf]
        %v1561 = vld [vmem:[%s1 + $0x118] sm:$0xf]
        %v1562 = vld [vmem:[%s1 + $0x11c] sm:$0xf]
        %v1563 = vld [vmem:[%s1 + $0x120] sm:$0xf]
        %v1564 = vld [vmem:[%s1 + $0x124] sm:$0xf]
        %v1565 = vld [vmem:[%s1 + $0x128] sm:$0xf]
        %v1566 = vld [vmem:[%s1 + $0x12c] sm:$0xf]
        %v1567 = vld [vmem:[%s1 + $0x130] sm:$0xf]
        %v1568 = vld [vmem:[%s1 + $0x134] sm:$0xf]
        %v1569 = vld [vmem:[%s1 + $0x138] sm:$0xf]
        %v1570 = vld [vmem:[%s1 + $0x13c] sm:$0xf]
        %v1587 = vunpack.c.l.b16 %v1555
        %v1588 = vunpack.c.l.b16 %v1556
        %v1589 = vunpack.c.l.b16 %v1557
        %v1590 = vunpack.c.l.b16 %v1558
        %v1591 = vunpack.c.l.b16 %v1559
        %v1592 = vunpack.c.l.b16 %v1560
        %v1593 = vunpack.c.l.b16 %v1561
        %v1594 = vunpack.c.l.b16 %v1562
        %v1595 = vunpack.c.l.b16 %v1563
        %v1596 = vunpack.c.l.b16 %v1564
        %v1597 = vunpack.c.l.b16 %v1565
        %v1598 = vunpack.c.l.b16 %v1566
        %v1599 = vunpack.c.l.b16 %v1567
        %v1600 = vunpack.c.l.b16 %v1568
        %v1601 = vunpack.c.l.b16 %v1569
        %v1602 = vunpack.c.l.b16 %v1570
        %v1603 = vpack.c.b16 %v1588, %v1587
        %v1604 = vpack.c.b16 %v1590, %v1589
        %v1605 = vpack.c.b16 %v1592, %v1591
        %v1606 = vpack.c.b16 %v1594, %v1593
        %v1607 = vpack.c.b16 %v1596, %v1595
        %v1608 = vpack.c.b16 %v1598, %v1597
        %v1609 = vpack.c.b16 %v1600, %v1599
        %v1610 = vpack.c.b16 %v1602, %v1601
        %1619 = vmatprep.subr.bf16.mxu0 0
        %1620 = vmatpush1.bf16.msra.mxu0 %v1610
        %1621 = vmatprep.subr.bf16.mxu0 0
        %1622 = vmatpush1.bf16.msra.mxu0 %v1609
        %1623 = vmatprep.subr.bf16.mxu0 0
        %1624 = vmatpush1.bf16.msra.mxu0 %v1608
        %1625 = vmatprep.subr.bf16.mxu0 0
        %1626 = vmatpush1.bf16.msra.mxu0 %v1607
        %1627 = vmatprep.subr.bf16.mxu0 0
        %1628 = vmatpush1.bf16.msra.mxu0 %v1606
        %1629 = vmatprep.subr.bf16.mxu0 0
        %1630 = vmatpush1.bf16.msra.mxu0 %v1605
        %1631 = vmatprep.subr.bf16.mxu0 0
        %1632 = vmatpush1.bf16.msra.mxu0 %v1604
        %1633 = vmatprep.subr.bf16.mxu0 0
        %1634 = vmatpush1.bf16.msra.mxu0 %v1603
        %1635 = vmatprep.subr.bf16.mxu0 0
        %1636 = vmatpush2.bf16.msra.mxu0 0
        %1637 = vmatprep.subr.bf16.mxu0 0
        %1638 = vmatpush2.bf16.msra.mxu0 0
        %1639 = vmatprep.subr.bf16.mxu0 0
        %1640 = vmatpush2.bf16.msra.mxu0 0
        %1641 = vmatprep.subr.bf16.mxu0 0
        %1642 = vmatpush2.bf16.msra.mxu0 0
        %1643 = vmatprep.subr.bf16.mxu0 0
        %1644 = vmatpush2.bf16.msra.mxu0 0
        %1645 = vmatprep.subr.bf16.mxu0 0
        %1646 = vmatpush2.bf16.msra.mxu0 0
        %1647 = vmatprep.subr.bf16.mxu0 0
        %1648 = vmatpush2.bf16.msra.mxu0 0
        %1649 = vmatprep.subr.bf16.mxu0 0
        %1650 = vmatpush2.bf16.msra.mxu0 0
        %1651 = vmatprep.mubr.bf16.mxu0 0
        %1652 = vmatmul.mubr.bf16.gmra.mxu0 %v1547
        %v1653 = vpop.f32.mrf.mxu0
        %v1654 = vadd.f32 0.0, %v1653
        %v1655 = vpop.f32.mrf.mxu0
        %v1656 = vpop.f32.mrf.mxu0
        %v1657 = vadd.f32 0.0, %v1656
        %v1658 = vpop.f32.mrf.mxu0
        %1659 = vmatprep.mubr.bf16.mxu0 0
        %1660 = vmatmul.mubr.bf16.gmra.mxu0 %v1548
        %v1661 = vpop.f32.mrf.mxu0
        %v1662 = vadd.f32 0.0, %v1661
        %v1663 = vpop.f32.mrf.mxu0
        %v1664 = vpop.f32.mrf.mxu0
        %v1665 = vadd.f32 0.0, %v1664
        %v1666 = vpop.f32.mrf.mxu0
        %1667 = vmatprep.mubr.bf16.mxu0 0
        %1668 = vmatmul.mubr.bf16.gmra.mxu0 %v1549
        %v1669 = vpop.f32.mrf.mxu0
        %v1670 = vadd.f32 0.0, %v1669
        %v1671 = vpop.f32.mrf.mxu0
        %v1672 = vpop.f32.mrf.mxu0
        %v1673 = vadd.f32 0.0, %v1672
        %v1674 = vpop.f32.mrf.mxu0
        %1675 = vmatprep.mubr.bf16.mxu0 0
        %1676 = vmatmul.mubr.bf16.gmra.mxu0 %v1550
        %v1677 = vpop.f32.mrf.mxu0
        %v1678 = vadd.f32 0.0, %v1677
        %v1679 = vpop.f32.mrf.mxu0
        %v1680 = vpop.f32.mrf.mxu0
        %v1681 = vadd.f32 0.0, %v1680
        %v1682 = vpop.f32.mrf.mxu0
        %1683 = vmatprep.mubr.bf16.mxu0 0
        %1684 = vmatmul.mubr.bf16.gmra.mxu0 %v1551
        %v1685 = vpop.f32.mrf.mxu0
        %v1686 = vadd.f32 0.0, %v1685
        %v1687 = vpop.f32.mrf.mxu0
        %v1688 = vpop.f32.mrf.mxu0
        %v1689 = vadd.f32 0.0, %v1688
        %v1690 = vpop.f32.mrf.mxu0
        %1691 = vmatprep.mubr.bf16.mxu0 0
        %1692 = vmatmul.mubr.bf16.gmra.mxu0 %v1552
        %v1693 = vpop.f32.mrf.mxu0
        %v1694 = vadd.f32 0.0, %v1693
        %v1695 = vpop.f32.mrf.mxu0
        %v1696 = vpop.f32.mrf.mxu0
        %v1697 = vadd.f32 0.0, %v1696
        %v1698 = vpop.f32.mrf.mxu0
        %1699 = vmatprep.mubr.bf16.mxu0 0
        %1700 = vmatmul.mubr.bf16.gmra.mxu0 %v1553
        %v1701 = vpop.f32.mrf.mxu0
        %v1702 = vadd.f32 0.0, %v1701
        %v1703 = vpop.f32.mrf.mxu0
        %v1704 = vpop.f32.mrf.mxu0
        %v1705 = vadd.f32 0.0, %v1704
        %v1706 = vpop.f32.mrf.mxu0
        %1707 = vmatprep.mubr.bf16.mxu0 0
        %1708 = vmatmul.mubr.bf16.gmra.mxu0 %v1554
        %v1709 = vpop.f32.mrf.mxu0
        %v1710 = vadd.f32 0.0, %v1709
        %v1711 = vpop.f32.mrf.mxu0
        %v1712 = vpop.f32.mrf.mxu0
        %v1713 = vadd.f32 0.0, %v1712
        %v1714 = vpop.f32.mrf.mxu0
        %1715 = vdwg.mxu0
        %v1716 = vadd.f32 %v1515, %v1654
        %v1717 = vadd.f32 %v1516, %v1657
        %v1718 = vadd.f32 %v1517, %v1662
        %v1719 = vadd.f32 %v1518, %v1665
        %v1720 = vadd.f32 %v1519, %v1670
        %v1721 = vadd.f32 %v1520, %v1673
        %v1722 = vadd.f32 %v1521, %v1678
        %v1723 = vadd.f32 %v1522, %v1681
        %v1724 = vadd.f32 %v1523, %v1686
        %v1725 = vadd.f32 %v1524, %v1689
        %v1726 = vadd.f32 %v1525, %v1694
        %v1727 = vadd.f32 %v1526, %v1697
        %v1728 = vadd.f32 %v1527, %v1702
        %v1729 = vadd.f32 %v1528, %v1705
        %v1730 = vadd.f32 %v1529, %v1710
        %v1731 = vadd.f32 %v1530, %v1713
        %v1732 = vld [vmem:[#allocation2 + $0x19] sm:$0xff]
        %v1733 = vld [vmem:[#allocation2 + $0x21] sm:$0xff]
        %v1734 = vld [vmem:[#allocation2 + $0x29] sm:$0xff]
        %v1735 = vld [vmem:[#allocation2 + $0x31] sm:$0xff]
        %v1736 = vld [vmem:[#allocation2 + $0x39] sm:$0xff]
        %v1737 = vld [vmem:[#allocation2 + $0x41] sm:$0xff]
        %v1738 = vld [vmem:[#allocation2 + $0x49] sm:$0xff]
        %v1739 = vld [vmem:[#allocation2 + $0x51] sm:$0xff]
        %v1740 = vld [vmem:[#allocation2 + $0x59] sm:$0xff]
        %v1741 = vld [vmem:[#allocation2 + $0x61] sm:$0xff]
        %v1742 = vld [vmem:[#allocation2 + $0x69] sm:$0xff]
        %v1743 = vld [vmem:[#allocation2 + $0x71] sm:$0xff]
        %v1744 = vld [vmem:[#allocation2 + $0x79] sm:$0xff]
        %v1745 = vld [vmem:[#allocation2 + $0x81] sm:$0xff]
        %v1746 = vld [vmem:[#allocation2 + $0x89] sm:$0xff]
        %v1747 = vld [vmem:[#allocation2 + $0x91] sm:$0xff]
        %v1748 = vpack.c.bf16 %v1733, %v1732
        %v1749 = vpack.c.bf16 %v1735, %v1734
        %v1750 = vpack.c.bf16 %v1737, %v1736
        %v1751 = vpack.c.bf16 %v1739, %v1738
        %v1752 = vpack.c.bf16 %v1741, %v1740
        %v1753 = vpack.c.bf16 %v1743, %v1742
        %v1754 = vpack.c.bf16 %v1745, %v1744
        %v1755 = vpack.c.bf16 %v1747, %v1746
        %v1756 = vsel %vm1129, %v1748, 0
        %v1757 = vsel %vm1130, %v1749, 0
        %v1758 = vsel %vm1131, %v1750, 0
        %v1759 = vsel %vm1132, %v1751, 0
        %v1760 = vsel %vm1133, %v1752, 0
        %v1761 = vsel %vm1134, %v1753, 0
        %v1762 = vsel %vm1135, %v1754, 0
        %v1763 = vsel %vm1136, %v1755, 0
        %v1764 = vld [vmem:[%s1 + $0x140] sm:$0xf]
        %v1765 = vld [vmem:[%s1 + $0x144] sm:$0xf]
        %v1766 = vld [vmem:[%s1 + $0x148] sm:$0xf]
        %v1767 = vld [vmem:[%s1 + $0x14c] sm:$0xf]
        %v1768 = vld [vmem:[%s1 + $0x150] sm:$0xf]
        %v1769 = vld [vmem:[%s1 + $0x154] sm:$0xf]
        %v1770 = vld [vmem:[%s1 + $0x158] sm:$0xf]
        %v1771 = vld [vmem:[%s1 + $0x15c] sm:$0xf]
        %v1772 = vld [vmem:[%s1 + $0x160] sm:$0xf]
        %v1773 = vld [vmem:[%s1 + $0x164] sm:$0xf]
        %v1774 = vld [vmem:[%s1 + $0x168] sm:$0xf]
        %v1775 = vld [vmem:[%s1 + $0x16c] sm:$0xf]
        %v1776 = vld [vmem:[%s1 + $0x170] sm:$0xf]
        %v1777 = vld [vmem:[%s1 + $0x174] sm:$0xf]
        %v1778 = vld [vmem:[%s1 + $0x178] sm:$0xf]
        %v1779 = vld [vmem:[%s1 + $0x17c] sm:$0xf]
        %v1796 = vunpack.c.l.b16 %v1764
        %v1797 = vunpack.c.l.b16 %v1765
        %v1798 = vunpack.c.l.b16 %v1766
        %v1799 = vunpack.c.l.b16 %v1767
        %v1800 = vunpack.c.l.b16 %v1768
        %v1801 = vunpack.c.l.b16 %v1769
        %v1802 = vunpack.c.l.b16 %v1770
        %v1803 = vunpack.c.l.b16 %v1771
        %v1804 = vunpack.c.l.b16 %v1772
        %v1805 = vunpack.c.l.b16 %v1773
        %v1806 = vunpack.c.l.b16 %v1774
        %v1807 = vunpack.c.l.b16 %v1775
        %v1808 = vunpack.c.l.b16 %v1776
        %v1809 = vunpack.c.l.b16 %v1777
        %v1810 = vunpack.c.l.b16 %v1778
        %v1811 = vunpack.c.l.b16 %v1779
        %v1812 = vpack.c.b16 %v1797, %v1796
        %v1813 = vpack.c.b16 %v1799, %v1798
        %v1814 = vpack.c.b16 %v1801, %v1800
        %v1815 = vpack.c.b16 %v1803, %v1802
        %v1816 = vpack.c.b16 %v1805, %v1804
        %v1817 = vpack.c.b16 %v1807, %v1806
        %v1818 = vpack.c.b16 %v1809, %v1808
        %v1819 = vpack.c.b16 %v1811, %v1810
        %1828 = vmatprep.subr.bf16.mxu0 0
        %1829 = vmatpush1.bf16.msra.mxu0 %v1819
        %1830 = vmatprep.subr.bf16.mxu0 0
        %1831 = vmatpush1.bf16.msra.mxu0 %v1818
        %1832 = vmatprep.subr.bf16.mxu0 0
        %1833 = vmatpush1.bf16.msra.mxu0 %v1817
        %1834 = vmatprep.subr.bf16.mxu0 0
        %1835 = vmatpush1.bf16.msra.mxu0 %v1816
        %1836 = vmatprep.subr.bf16.mxu0 0
        %1837 = vmatpush1.bf16.msra.mxu0 %v1815
        %1838 = vmatprep.subr.bf16.mxu0 0
        %1839 = vmatpush1.bf16.msra.mxu0 %v1814
        %1840 = vmatprep.subr.bf16.mxu0 0
        %1841 = vmatpush1.bf16.msra.mxu0 %v1813
        %1842 = vmatprep.subr.bf16.mxu0 0
        %1843 = vmatpush1.bf16.msra.mxu0 %v1812
        %1844 = vmatprep.subr.bf16.mxu0 0
        %1845 = vmatpush2.bf16.msra.mxu0 0
        %1846 = vmatprep.subr.bf16.mxu0 0
        %1847 = vmatpush2.bf16.msra.mxu0 0
        %1848 = vmatprep.subr.bf16.mxu0 0
        %1849 = vmatpush2.bf16.msra.mxu0 0
        %1850 = vmatprep.subr.bf16.mxu0 0
        %1851 = vmatpush2.bf16.msra.mxu0 0
        %1852 = vmatprep.subr.bf16.mxu0 0
        %1853 = vmatpush2.bf16.msra.mxu0 0
        %1854 = vmatprep.subr.bf16.mxu0 0
        %1855 = vmatpush2.bf16.msra.mxu0 0
        %1856 = vmatprep.subr.bf16.mxu0 0
        %1857 = vmatpush2.bf16.msra.mxu0 0
        %1858 = vmatprep.subr.bf16.mxu0 0
        %1859 = vmatpush2.bf16.msra.mxu0 0
        %1860 = vmatprep.mubr.bf16.mxu0 0
        %1861 = vmatmul.mubr.bf16.gmra.mxu0 %v1756
        %v1862 = vpop.f32.mrf.mxu0
        %v1863 = vadd.f32 0.0, %v1862
        %v1864 = vpop.f32.mrf.mxu0
        %v1865 = vpop.f32.mrf.mxu0
        %v1866 = vadd.f32 0.0, %v1865
        %v1867 = vpop.f32.mrf.mxu0
        %1868 = vmatprep.mubr.bf16.mxu0 0
        %1869 = vmatmul.mubr.bf16.gmra.mxu0 %v1757
        %v1870 = vpop.f32.mrf.mxu0
        %v1871 = vadd.f32 0.0, %v1870
        %v1872 = vpop.f32.mrf.mxu0
        %v1873 = vpop.f32.mrf.mxu0
        %v1874 = vadd.f32 0.0, %v1873
        %v1875 = vpop.f32.mrf.mxu0
        %1876 = vmatprep.mubr.bf16.mxu0 0
        %1877 = vmatmul.mubr.bf16.gmra.mxu0 %v1758
        %v1878 = vpop.f32.mrf.mxu0
        %v1879 = vadd.f32 0.0, %v1878
        %v1880 = vpop.f32.mrf.mxu0
        %v1881 = vpop.f32.mrf.mxu0
        %v1882 = vadd.f32 0.0, %v1881
        %v1883 = vpop.f32.mrf.mxu0
        %1884 = vmatprep.mubr.bf16.mxu0 0
        %1885 = vmatmul.mubr.bf16.gmra.mxu0 %v1759
        %v1886 = vpop.f32.mrf.mxu0
        %v1887 = vadd.f32 0.0, %v1886
        %v1888 = vpop.f32.mrf.mxu0
        %v1889 = vpop.f32.mrf.mxu0
        %v1890 = vadd.f32 0.0, %v1889
        %v1891 = vpop.f32.mrf.mxu0
        %1892 = vmatprep.mubr.bf16.mxu0 0
        %1893 = vmatmul.mubr.bf16.gmra.mxu0 %v1760
        %v1894 = vpop.f32.mrf.mxu0
        %v1895 = vadd.f32 0.0, %v1894
        %v1896 = vpop.f32.mrf.mxu0
        %v1897 = vpop.f32.mrf.mxu0
        %v1898 = vadd.f32 0.0, %v1897
        %v1899 = vpop.f32.mrf.mxu0
        %1900 = vmatprep.mubr.bf16.mxu0 0
        %1901 = vmatmul.mubr.bf16.gmra.mxu0 %v1761
        %v1902 = vpop.f32.mrf.mxu0
        %v1903 = vadd.f32 0.0, %v1902
        %v1904 = vpop.f32.mrf.mxu0
        %v1905 = vpop.f32.mrf.mxu0
        %v1906 = vadd.f32 0.0, %v1905
        %v1907 = vpop.f32.mrf.mxu0
        %1908 = vmatprep.mubr.bf16.mxu0 0
        %1909 = vmatmul.mubr.bf16.gmra.mxu0 %v1762
        %v1910 = vpop.f32.mrf.mxu0
        %v1911 = vadd.f32 0.0, %v1910
        %v1912 = vpop.f32.mrf.mxu0
        %v1913 = vpop.f32.mrf.mxu0
        %v1914 = vadd.f32 0.0, %v1913
        %v1915 = vpop.f32.mrf.mxu0
        %1916 = vmatprep.mubr.bf16.mxu0 0
        %1917 = vmatmul.mubr.bf16.gmra.mxu0 %v1763
        %v1918 = vpop.f32.mrf.mxu0
        %v1919 = vadd.f32 0.0, %v1918
        %v1920 = vpop.f32.mrf.mxu0
        %v1921 = vpop.f32.mrf.mxu0
        %v1922 = vadd.f32 0.0, %v1921
        %v1923 = vpop.f32.mrf.mxu0
        %1924 = vdwg.mxu0
        %v1925 = vadd.f32 %v1716, %v1863
        %v1926 = vadd.f32 %v1717, %v1866
        %v1927 = vadd.f32 %v1718, %v1871
        %v1928 = vadd.f32 %v1719, %v1874
        %v1929 = vadd.f32 %v1720, %v1879
        %v1930 = vadd.f32 %v1721, %v1882
        %v1931 = vadd.f32 %v1722, %v1887
        %v1932 = vadd.f32 %v1723, %v1890
        %v1933 = vadd.f32 %v1724, %v1895
        %v1934 = vadd.f32 %v1725, %v1898
        %v1935 = vadd.f32 %v1726, %v1903
        %v1936 = vadd.f32 %v1727, %v1906
        %v1937 = vadd.f32 %v1728, %v1911
        %v1938 = vadd.f32 %v1729, %v1914
        %v1939 = vadd.f32 %v1730, %v1919
        %v1940 = vadd.f32 %v1731, %v1922
        %v1941 = vld [vmem:[#allocation2 + $0x27] sm:$0xff]
        %v1942 = vld [vmem:[#allocation2 + $0x2f] sm:$0xff]
        %v1943 = vld [vmem:[#allocation2 + $0x37] sm:$0xff]
        %v1944 = vld [vmem:[#allocation2 + $0x3f] sm:$0xff]
        %v1945 = vld [vmem:[#allocation2 + $0x47] sm:$0xff]
        %v1946 = vld [vmem:[#allocation2 + $0x4f] sm:$0xff]
        %v1947 = vld [vmem:[#allocation2 + $0x57] sm:$0xff]
        %v1948 = vld [vmem:[#allocation2 + $0x5f] sm:$0xff]
        %v1949 = vld [vmem:[#allocation2 + $0x67] sm:$0xff]
        %v1950 = vld [vmem:[#allocation2 + $0x6f] sm:$0xff]
        %v1951 = vld [vmem:[#allocation2 + $0x77] sm:$0xff]
        %v1952 = vld [vmem:[#allocation2 + $0x7f] sm:$0xff]
        %v1953 = vld [vmem:[#allocation2 + $0x87] sm:$0xff]
        %v1954 = vld [vmem:[#allocation2 + $0x8f] sm:$0xff]
        %v1955 = vld [vmem:[#allocation2 + $0x97] sm:$0xff]
        %v1956 = vld [vmem:[#allocation2 + $0x9f] sm:$0xff]
        %v1957 = vpack.c.bf16 %v1942, %v1941
        %v1958 = vpack.c.bf16 %v1944, %v1943
        %v1959 = vpack.c.bf16 %v1946, %v1945
        %v1960 = vpack.c.bf16 %v1948, %v1947
        %v1961 = vpack.c.bf16 %v1950, %v1949
        %v1962 = vpack.c.bf16 %v1952, %v1951
        %v1963 = vpack.c.bf16 %v1954, %v1953
        %v1964 = vpack.c.bf16 %v1956, %v1955
        %v1965 = vsel %vm655, %v1957, 0
        %v1966 = vsel %vm656, %v1958, 0
        %v1967 = vsel %vm657, %v1959, 0
        %v1968 = vsel %vm658, %v1960, 0
        %v1969 = vsel %vm659, %v1961, 0
        %v1970 = vsel %vm660, %v1962, 0
        %v1971 = vsel %vm661, %v1963, 0
        %v1972 = vsel %vm662, %v1964, 0
        %v1973 = vld [vmem:[%s1 + $0x180] sm:$0xf]
        %v1974 = vld [vmem:[%s1 + $0x184] sm:$0xf]
        %v1975 = vld [vmem:[%s1 + $0x188] sm:$0xf]
        %v1976 = vld [vmem:[%s1 + $0x18c] sm:$0xf]
        %v1977 = vld [vmem:[%s1 + $0x190] sm:$0xf]
        %v1978 = vld [vmem:[%s1 + $0x194] sm:$0xf]
        %v1979 = vld [vmem:[%s1 + $0x198] sm:$0xf]
        %v1980 = vld [vmem:[%s1 + $0x19c] sm:$0xf]
        %v1981 = vld [vmem:[%s1 + $0x1a0] sm:$0xf]
        %v1982 = vld [vmem:[%s1 + $0x1a4] sm:$0xf]
        %v1983 = vld [vmem:[%s1 + $0x1a8] sm:$0xf]
        %v1984 = vld [vmem:[%s1 + $0x1ac] sm:$0xf]
        %v1985 = vld [vmem:[%s1 + $0x1b0] sm:$0xf]
        %v1986 = vld [vmem:[%s1 + $0x1b4] sm:$0xf]
        %v1987 = vld [vmem:[%s1 + $0x1b8] sm:$0xf]
        %v1988 = vld [vmem:[%s1 + $0x1bc] sm:$0xf]
        %v2005 = vunpack.c.l.b16 %v1973
        %v2006 = vunpack.c.l.b16 %v1974
        %v2007 = vunpack.c.l.b16 %v1975
        %v2008 = vunpack.c.l.b16 %v1976
        %v2009 = vunpack.c.l.b16 %v1977
        %v2010 = vunpack.c.l.b16 %v1978
        %v2011 = vunpack.c.l.b16 %v1979
        %v2012 = vunpack.c.l.b16 %v1980
        %v2013 = vunpack.c.l.b16 %v1981
        %v2014 = vunpack.c.l.b16 %v1982
        %v2015 = vunpack.c.l.b16 %v1983
        %v2016 = vunpack.c.l.b16 %v1984
        %v2017 = vunpack.c.l.b16 %v1985
        %v2018 = vunpack.c.l.b16 %v1986
        %v2019 = vunpack.c.l.b16 %v1987
        %v2020 = vunpack.c.l.b16 %v1988
        %v2021 = vpack.c.b16 %v2006, %v2005
        %v2022 = vpack.c.b16 %v2008, %v2007
        %v2023 = vpack.c.b16 %v2010, %v2009
        %v2024 = vpack.c.b16 %v2012, %v2011
        %v2025 = vpack.c.b16 %v2014, %v2013
        %v2026 = vpack.c.b16 %v2016, %v2015
        %v2027 = vpack.c.b16 %v2018, %v2017
        %v2028 = vpack.c.b16 %v2020, %v2019
        %2037 = vmatprep.subr.bf16.mxu0 0
        %2038 = vmatpush1.bf16.msra.mxu0 %v2028
        %2039 = vmatprep.subr.bf16.mxu0 0
        %2040 = vmatpush1.bf16.msra.mxu0 %v2027
        %2041 = vmatprep.subr.bf16.mxu0 0
        %2042 = vmatpush1.bf16.msra.mxu0 %v2026
        %2043 = vmatprep.subr.bf16.mxu0 0
        %2044 = vmatpush1.bf16.msra.mxu0 %v2025
        %2045 = vmatprep.subr.bf16.mxu0 0
        %2046 = vmatpush1.bf16.msra.mxu0 %v2024
        %2047 = vmatprep.subr.bf16.mxu0 0
        %2048 = vmatpush1.bf16.msra.mxu0 %v2023
        %2049 = vmatprep.subr.bf16.mxu0 0
        %2050 = vmatpush1.bf16.msra.mxu0 %v2022
        %2051 = vmatprep.subr.bf16.mxu0 0
        %2052 = vmatpush1.bf16.msra.mxu0 %v2021
        %2053 = vmatprep.subr.bf16.mxu0 0
        %2054 = vmatpush2.bf16.msra.mxu0 0
        %2055 = vmatprep.subr.bf16.mxu0 0
        %2056 = vmatpush2.bf16.msra.mxu0 0
        %2057 = vmatprep.subr.bf16.mxu0 0
        %2058 = vmatpush2.bf16.msra.mxu0 0
        %2059 = vmatprep.subr.bf16.mxu0 0
        %2060 = vmatpush2.bf16.msra.mxu0 0
        %2061 = vmatprep.subr.bf16.mxu0 0
        %2062 = vmatpush2.bf16.msra.mxu0 0
        %2063 = vmatprep.subr.bf16.mxu0 0
        %2064 = vmatpush2.bf16.msra.mxu0 0
        %2065 = vmatprep.subr.bf16.mxu0 0
        %2066 = vmatpush2.bf16.msra.mxu0 0
        %2067 = vmatprep.subr.bf16.mxu0 0
        %2068 = vmatpush2.bf16.msra.mxu0 0
        %2069 = vmatprep.mubr.bf16.mxu0 0
        %2070 = vmatmul.mubr.bf16.gmra.mxu0 %v1965
        %v2071 = vpop.f32.mrf.mxu0
        %v2072 = vadd.f32 0.0, %v2071
        %v2073 = vpop.f32.mrf.mxu0
        %v2074 = vpop.f32.mrf.mxu0
        %v2075 = vadd.f32 0.0, %v2074
        %v2076 = vpop.f32.mrf.mxu0
        %2077 = vmatprep.mubr.bf16.mxu0 0
        %2078 = vmatmul.mubr.bf16.gmra.mxu0 %v1966
        %v2079 = vpop.f32.mrf.mxu0
        %v2080 = vadd.f32 0.0, %v2079
        %v2081 = vpop.f32.mrf.mxu0
        %v2082 = vpop.f32.mrf.mxu0
        %v2083 = vadd.f32 0.0, %v2082
        %v2084 = vpop.f32.mrf.mxu0
        %2085 = vmatprep.mubr.bf16.mxu0 0
        %2086 = vmatmul.mubr.bf16.gmra.mxu0 %v1967
        %v2087 = vpop.f32.mrf.mxu0
        %v2088 = vadd.f32 0.0, %v2087
        %v2089 = vpop.f32.mrf.mxu0
        %v2090 = vpop.f32.mrf.mxu0
        %v2091 = vadd.f32 0.0, %v2090
        %v2092 = vpop.f32.mrf.mxu0
        %2093 = vmatprep.mubr.bf16.mxu0 0
        %2094 = vmatmul.mubr.bf16.gmra.mxu0 %v1968
        %v2095 = vpop.f32.mrf.mxu0
        %v2096 = vadd.f32 0.0, %v2095
        %v2097 = vpop.f32.mrf.mxu0
        %v2098 = vpop.f32.mrf.mxu0
        %v2099 = vadd.f32 0.0, %v2098
        %v2100 = vpop.f32.mrf.mxu0
        %2101 = vmatprep.mubr.bf16.mxu0 0
        %2102 = vmatmul.mubr.bf16.gmra.mxu0 %v1969
        %v2103 = vpop.f32.mrf.mxu0
        %v2104 = vadd.f32 0.0, %v2103
        %v2105 = vpop.f32.mrf.mxu0
        %v2106 = vpop.f32.mrf.mxu0
        %v2107 = vadd.f32 0.0, %v2106
        %v2108 = vpop.f32.mrf.mxu0
        %2109 = vmatprep.mubr.bf16.mxu0 0
        %2110 = vmatmul.mubr.bf16.gmra.mxu0 %v1970
        %v2111 = vpop.f32.mrf.mxu0
        %v2112 = vadd.f32 0.0, %v2111
        %v2113 = vpop.f32.mrf.mxu0
        %v2114 = vpop.f32.mrf.mxu0
        %v2115 = vadd.f32 0.0, %v2114
        %v2116 = vpop.f32.mrf.mxu0
        %2117 = vmatprep.mubr.bf16.mxu0 0
        %2118 = vmatmul.mubr.bf16.gmra.mxu0 %v1971
        %v2119 = vpop.f32.mrf.mxu0
        %v2120 = vadd.f32 0.0, %v2119
        %v2121 = vpop.f32.mrf.mxu0
        %v2122 = vpop.f32.mrf.mxu0
        %v2123 = vadd.f32 0.0, %v2122
        %v2124 = vpop.f32.mrf.mxu0
        %2125 = vmatprep.mubr.bf16.mxu0 0
        %2126 = vmatmul.mubr.bf16.gmra.mxu0 %v1972
        %v2127 = vpop.f32.mrf.mxu0
        %v2128 = vadd.f32 0.0, %v2127
        %v2129 = vpop.f32.mrf.mxu0
        %v2130 = vpop.f32.mrf.mxu0
        %v2131 = vadd.f32 0.0, %v2130
        %v2132 = vpop.f32.mrf.mxu0
        %2133 = vdwg.mxu0
        %v2134 = vadd.f32 %v1925, %v2072
        %v2135 = vadd.f32 %v1926, %v2075
        %v2136 = vadd.f32 %v1927, %v2080
        %v2137 = vadd.f32 %v1928, %v2083
        %v2138 = vadd.f32 %v1929, %v2088
        %v2139 = vadd.f32 %v1930, %v2091
        %v2140 = vadd.f32 %v1931, %v2096
        %v2141 = vadd.f32 %v1932, %v2099
        %v2142 = vadd.f32 %v1933, %v2104
        %v2143 = vadd.f32 %v1934, %v2107
        %v2144 = vadd.f32 %v1935, %v2112
        %v2145 = vadd.f32 %v1936, %v2115
        %v2146 = vadd.f32 %v1937, %v2120
        %v2147 = vadd.f32 %v1938, %v2123
        %v2148 = vadd.f32 %v1939, %v2128
        %v2149 = vadd.f32 %v1940, %v2131
        %v2150 = vld [vmem:[#allocation2 + $0x28] sm:$0xff]
        %v2151 = vld [vmem:[#allocation2 + $0x30] sm:$0xff]
        %v2152 = vld [vmem:[#allocation2 + $0x38] sm:$0xff]
        %v2153 = vld [vmem:[#allocation2 + $0x40] sm:$0xff]
        %v2154 = vld [vmem:[#allocation2 + $0x48] sm:$0xff]
        %v2155 = vld [vmem:[#allocation2 + $0x50] sm:$0xff]
        %v2156 = vld [vmem:[#allocation2 + $0x58] sm:$0xff]
        %v2157 = vld [vmem:[#allocation2 + $0x60] sm:$0xff]
        %v2158 = vld [vmem:[#allocation2 + $0x68] sm:$0xff]
        %v2159 = vld [vmem:[#allocation2 + $0x70] sm:$0xff]
        %v2160 = vld [vmem:[#allocation2 + $0x78] sm:$0xff]
        %v2161 = vld [vmem:[#allocation2 + $0x80] sm:$0xff]
        %v2162 = vld [vmem:[#allocation2 + $0x88] sm:$0xff]
        %v2163 = vld [vmem:[#allocation2 + $0x90] sm:$0xff]
        %v2164 = vld [vmem:[#allocation2 + $0x98] sm:$0xff]
        %v2165 = vld [vmem:[#allocation2 + $0xa0] sm:$0xff]
        %v2166 = vpack.c.bf16 %v2151, %v2150
        %v2167 = vpack.c.bf16 %v2153, %v2152
        %v2168 = vpack.c.bf16 %v2155, %v2154
        %v2169 = vpack.c.bf16 %v2157, %v2156
        %v2170 = vpack.c.bf16 %v2159, %v2158
        %v2171 = vpack.c.bf16 %v2161, %v2160
        %v2172 = vpack.c.bf16 %v2163, %v2162
        %v2173 = vpack.c.bf16 %v2165, %v2164
        %v2174 = vld [vmem:[%s1 + $0x1c0] sm:$0xf]
        %v2175 = vld [vmem:[%s1 + $0x1c4] sm:$0xf]
        %v2176 = vld [vmem:[%s1 + $0x1c8] sm:$0xf]
        %v2177 = vld [vmem:[%s1 + $0x1cc] sm:$0xf]
        %v2178 = vld [vmem:[%s1 + $0x1d0] sm:$0xf]
        %v2179 = vld [vmem:[%s1 + $0x1d4] sm:$0xf]
        %v2180 = vld [vmem:[%s1 + $0x1d8] sm:$0xf]
        %v2181 = vld [vmem:[%s1 + $0x1dc] sm:$0xf]
        %v2182 = vld [vmem:[%s1 + $0x1e0] sm:$0xf]
        %v2183 = vld [vmem:[%s1 + $0x1e4] sm:$0xf]
        %v2184 = vld [vmem:[%s1 + $0x1e8] sm:$0xf]
        %v2185 = vld [vmem:[%s1 + $0x1ec] sm:$0xf]
        %v2186 = vld [vmem:[%s1 + $0x1f0] sm:$0xf]
        %v2187 = vld [vmem:[%s1 + $0x1f4] sm:$0xf]
        %v2188 = vld [vmem:[%s1 + $0x1f8] sm:$0xf]
        %v2189 = vld [vmem:[%s1 + $0x1fc] sm:$0xf]
        %v2206 = vunpack.c.l.b16 %v2174
        %v2207 = vunpack.c.l.b16 %v2175
        %v2208 = vunpack.c.l.b16 %v2176
        %v2209 = vunpack.c.l.b16 %v2177
        %v2210 = vunpack.c.l.b16 %v2178
        %v2211 = vunpack.c.l.b16 %v2179
        %v2212 = vunpack.c.l.b16 %v2180
        %v2213 = vunpack.c.l.b16 %v2181
        %v2214 = vunpack.c.l.b16 %v2182
        %v2215 = vunpack.c.l.b16 %v2183
        %v2216 = vunpack.c.l.b16 %v2184
        %v2217 = vunpack.c.l.b16 %v2185
        %v2218 = vunpack.c.l.b16 %v2186
        %v2219 = vunpack.c.l.b16 %v2187
        %v2220 = vunpack.c.l.b16 %v2188
        %v2221 = vunpack.c.l.b16 %v2189
        %v2222 = vpack.c.b16 %v2207, %v2206
        %v2223 = vpack.c.b16 %v2209, %v2208
        %v2224 = vpack.c.b16 %v2211, %v2210
        %v2225 = vpack.c.b16 %v2213, %v2212
        %v2226 = vpack.c.b16 %v2215, %v2214
        %v2227 = vpack.c.b16 %v2217, %v2216
        %v2228 = vpack.c.b16 %v2219, %v2218
        %v2229 = vpack.c.b16 %v2221, %v2220
        %2238 = vmatprep.subr.bf16.mxu0 0
        %2239 = vmatpush1.bf16.msra.mxu0 %v2229
        %2240 = vmatprep.subr.bf16.mxu0 0
        %2241 = vmatpush1.bf16.msra.mxu0 %v2228
        %2242 = vmatprep.subr.bf16.mxu0 0
        %2243 = vmatpush1.bf16.msra.mxu0 %v2227
        %2244 = vmatprep.subr.bf16.mxu0 0
        %2245 = vmatpush1.bf16.msra.mxu0 %v2226
        %2246 = vmatprep.subr.bf16.mxu0 0
        %2247 = vmatpush1.bf16.msra.mxu0 %v2225
        %2248 = vmatprep.subr.bf16.mxu0 0
        %2249 = vmatpush1.bf16.msra.mxu0 %v2224
        %2250 = vmatprep.subr.bf16.mxu0 0
        %2251 = vmatpush1.bf16.msra.mxu0 %v2223
        %2252 = vmatprep.subr.bf16.mxu0 0
        %2253 = vmatpush1.bf16.msra.mxu0 %v2222
        %2254 = vmatprep.subr.bf16.mxu0 0
        %2255 = vmatpush2.bf16.msra.mxu0 0
        %2256 = vmatprep.subr.bf16.mxu0 0
        %2257 = vmatpush2.bf16.msra.mxu0 0
        %2258 = vmatprep.subr.bf16.mxu0 0
        %2259 = vmatpush2.bf16.msra.mxu0 0
        %2260 = vmatprep.subr.bf16.mxu0 0
        %2261 = vmatpush2.bf16.msra.mxu0 0
        %2262 = vmatprep.subr.bf16.mxu0 0
        %2263 = vmatpush2.bf16.msra.mxu0 0
        %2264 = vmatprep.subr.bf16.mxu0 0
        %2265 = vmatpush2.bf16.msra.mxu0 0
        %2266 = vmatprep.subr.bf16.mxu0 0
        %2267 = vmatpush2.bf16.msra.mxu0 0
        %2268 = vmatprep.subr.bf16.mxu0 0
        %2269 = vmatpush2.bf16.msra.mxu0 0
        %2270 = vmatprep.mubr.bf16.mxu0 0
        %2271 = vmatmul.mubr.bf16.gmra.mxu0 %v2166
        %v2272 = vpop.f32.mrf.mxu0
        %v2273 = vadd.f32 0.0, %v2272
        %v2274 = vpop.f32.mrf.mxu0
        %v2275 = vpop.f32.mrf.mxu0
        %v2276 = vadd.f32 0.0, %v2275
        %v2277 = vpop.f32.mrf.mxu0
        %2278 = vmatprep.mubr.bf16.mxu0 0
        %2279 = vmatmul.mubr.bf16.gmra.mxu0 %v2167
        %v2280 = vpop.f32.mrf.mxu0
        %v2281 = vadd.f32 0.0, %v2280
        %v2282 = vpop.f32.mrf.mxu0
        %v2283 = vpop.f32.mrf.mxu0
        %v2284 = vadd.f32 0.0, %v2283
        %v2285 = vpop.f32.mrf.mxu0
        %2286 = vmatprep.mubr.bf16.mxu0 0
        %2287 = vmatmul.mubr.bf16.gmra.mxu0 %v2168
        %v2288 = vpop.f32.mrf.mxu0
        %v2289 = vadd.f32 0.0, %v2288
        %v2290 = vpop.f32.mrf.mxu0
        %v2291 = vpop.f32.mrf.mxu0
        %v2292 = vadd.f32 0.0, %v2291
        %v2293 = vpop.f32.mrf.mxu0
        %2294 = vmatprep.mubr.bf16.mxu0 0
        %2295 = vmatmul.mubr.bf16.gmra.mxu0 %v2169
        %v2296 = vpop.f32.mrf.mxu0
        %v2297 = vadd.f32 0.0, %v2296
        %v2298 = vpop.f32.mrf.mxu0
        %v2299 = vpop.f32.mrf.mxu0
        %v2300 = vadd.f32 0.0, %v2299
        %v2301 = vpop.f32.mrf.mxu0
        %2302 = vmatprep.mubr.bf16.mxu0 0
        %2303 = vmatmul.mubr.bf16.gmra.mxu0 %v2170
        %v2304 = vpop.f32.mrf.mxu0
        %v2305 = vadd.f32 0.0, %v2304
        %v2306 = vpop.f32.mrf.mxu0
        %v2307 = vpop.f32.mrf.mxu0
        %v2308 = vadd.f32 0.0, %v2307
        %v2309 = vpop.f32.mrf.mxu0
        %2310 = vmatprep.mubr.bf16.mxu0 0
        %2311 = vmatmul.mubr.bf16.gmra.mxu0 %v2171
        %v2312 = vpop.f32.mrf.mxu0
        %v2313 = vadd.f32 0.0, %v2312
        %v2314 = vpop.f32.mrf.mxu0
        %v2315 = vpop.f32.mrf.mxu0
        %v2316 = vadd.f32 0.0, %v2315
        %v2317 = vpop.f32.mrf.mxu0
        %2318 = vmatprep.mubr.bf16.mxu0 0
        %2319 = vmatmul.mubr.bf16.gmra.mxu0 %v2172
        %v2320 = vpop.f32.mrf.mxu0
        %v2321 = vadd.f32 0.0, %v2320
        %v2322 = vpop.f32.mrf.mxu0
        %v2323 = vpop.f32.mrf.mxu0
        %v2324 = vadd.f32 0.0, %v2323
        %v2325 = vpop.f32.mrf.mxu0
        %2326 = vmatprep.mubr.bf16.mxu0 0
        %2327 = vmatmul.mubr.bf16.gmra.mxu0 %v2173
        %v2328 = vpop.f32.mrf.mxu0
        %v2329 = vadd.f32 0.0, %v2328
        %v2330 = vpop.f32.mrf.mxu0
        %v2331 = vpop.f32.mrf.mxu0
        %v2332 = vadd.f32 0.0, %v2331
        %v2333 = vpop.f32.mrf.mxu0
        %2334 = vdwg.mxu0
        %v2335 = vadd.f32 %v2134, %v2273
        %v2336 = vadd.f32 %v2135, %v2276
        %v2337 = vadd.f32 %v2136, %v2281
        %v2338 = vadd.f32 %v2137, %v2284
        %v2339 = vadd.f32 %v2138, %v2289
        %v2340 = vadd.f32 %v2139, %v2292
        %v2341 = vadd.f32 %v2140, %v2297
        %v2342 = vadd.f32 %v2141, %v2300
        %v2343 = vadd.f32 %v2142, %v2305
        %v2344 = vadd.f32 %v2143, %v2308
        %v2345 = vadd.f32 %v2144, %v2313
        %v2346 = vadd.f32 %v2145, %v2316
        %v2347 = vadd.f32 %v2146, %v2321
        %v2348 = vadd.f32 %v2147, %v2324
        %v2349 = vadd.f32 %v2148, %v2329
        %v2350 = vadd.f32 %v2149, %v2332
        %v2351 = vld [vmem:[#allocation2 + $0x29] sm:$0xff]
        %v2352 = vld [vmem:[#allocation2 + $0x31] sm:$0xff]
        %v2353 = vld [vmem:[#allocation2 + $0x39] sm:$0xff]
        %v2354 = vld [vmem:[#allocation2 + $0x41] sm:$0xff]
        %v2355 = vld [vmem:[#allocation2 + $0x49] sm:$0xff]
        %v2356 = vld [vmem:[#allocation2 + $0x51] sm:$0xff]
        %v2357 = vld [vmem:[#allocation2 + $0x59] sm:$0xff]
        %v2358 = vld [vmem:[#allocation2 + $0x61] sm:$0xff]
        %v2359 = vld [vmem:[#allocation2 + $0x69] sm:$0xff]
        %v2360 = vld [vmem:[#allocation2 + $0x71] sm:$0xff]
        %v2361 = vld [vmem:[#allocation2 + $0x79] sm:$0xff]
        %v2362 = vld [vmem:[#allocation2 + $0x81] sm:$0xff]
        %v2363 = vld [vmem:[#allocation2 + $0x89] sm:$0xff]
        %v2364 = vld [vmem:[#allocation2 + $0x91] sm:$0xff]
        %v2365 = vld [vmem:[#allocation2 + $0x99] sm:$0xff]
        %v2366 = vld [vmem:[#allocation2 + $0xa1] sm:$0xff]
        %v2367 = vpack.c.bf16 %v2352, %v2351
        %v2368 = vpack.c.bf16 %v2354, %v2353
        %v2369 = vpack.c.bf16 %v2356, %v2355
        %v2370 = vpack.c.bf16 %v2358, %v2357
        %v2371 = vpack.c.bf16 %v2360, %v2359
        %v2372 = vpack.c.bf16 %v2362, %v2361
        %v2373 = vpack.c.bf16 %v2364, %v2363
        %v2374 = vpack.c.bf16 %v2366, %v2365
        %v2375 = vsel %vm1129, %v2367, 0
        %v2376 = vsel %vm1130, %v2368, 0
        %v2377 = vsel %vm1131, %v2369, 0
        %v2378 = vsel %vm1132, %v2370, 0
        %v2379 = vsel %vm1133, %v2371, 0
        %v2380 = vsel %vm1134, %v2372, 0
        %v2381 = vsel %vm1135, %v2373, 0
        %v2382 = vsel %vm1136, %v2374, 0
        %v2383 = vld [vmem:[%s1 + $0x200] sm:$0xf]
        %v2384 = vld [vmem:[%s1 + $0x204] sm:$0xf]
        %v2385 = vld [vmem:[%s1 + $0x208] sm:$0xf]
        %v2386 = vld [vmem:[%s1 + $0x20c] sm:$0xf]
        %v2387 = vld [vmem:[%s1 + $0x210] sm:$0xf]
        %v2388 = vld [vmem:[%s1 + $0x214] sm:$0xf]
        %v2389 = vld [vmem:[%s1 + $0x218] sm:$0xf]
        %v2390 = vld [vmem:[%s1 + $0x21c] sm:$0xf]
        %v2391 = vld [vmem:[%s1 + $0x220] sm:$0xf]
        %v2392 = vld [vmem:[%s1 + $0x224] sm:$0xf]
        %v2393 = vld [vmem:[%s1 + $0x228] sm:$0xf]
        %v2394 = vld [vmem:[%s1 + $0x22c] sm:$0xf]
        %v2395 = vld [vmem:[%s1 + $0x230] sm:$0xf]
        %v2396 = vld [vmem:[%s1 + $0x234] sm:$0xf]
        %v2397 = vld [vmem:[%s1 + $0x238] sm:$0xf]
        %v2398 = vld [vmem:[%s1 + $0x23c] sm:$0xf]
        %v2415 = vunpack.c.l.b16 %v2383
        %v2416 = vunpack.c.l.b16 %v2384
        %v2417 = vunpack.c.l.b16 %v2385
        %v2418 = vunpack.c.l.b16 %v2386
        %v2419 = vunpack.c.l.b16 %v2387
        %v2420 = vunpack.c.l.b16 %v2388
        %v2421 = vunpack.c.l.b16 %v2389
        %v2422 = vunpack.c.l.b16 %v2390
        %v2423 = vunpack.c.l.b16 %v2391
        %v2424 = vunpack.c.l.b16 %v2392
        %v2425 = vunpack.c.l.b16 %v2393
        %v2426 = vunpack.c.l.b16 %v2394
        %v2427 = vunpack.c.l.b16 %v2395
        %v2428 = vunpack.c.l.b16 %v2396
        %v2429 = vunpack.c.l.b16 %v2397
        %v2430 = vunpack.c.l.b16 %v2398
        %v2431 = vpack.c.b16 %v2416, %v2415
        %v2432 = vpack.c.b16 %v2418, %v2417
        %v2433 = vpack.c.b16 %v2420, %v2419
        %v2434 = vpack.c.b16 %v2422, %v2421
        %v2435 = vpack.c.b16 %v2424, %v2423
        %v2436 = vpack.c.b16 %v2426, %v2425
        %v2437 = vpack.c.b16 %v2428, %v2427
        %v2438 = vpack.c.b16 %v2430, %v2429
        %2447 = vmatprep.subr.bf16.mxu0 0
        %2448 = vmatpush1.bf16.msra.mxu0 %v2438
        %2449 = vmatprep.subr.bf16.mxu0 0
        %2450 = vmatpush1.bf16.msra.mxu0 %v2437
        %2451 = vmatprep.subr.bf16.mxu0 0
        %2452 = vmatpush1.bf16.msra.mxu0 %v2436
        %2453 = vmatprep.subr.bf16.mxu0 0
        %2454 = vmatpush1.bf16.msra.mxu0 %v2435
        %2455 = vmatprep.subr.bf16.mxu0 0
        %2456 = vmatpush1.bf16.msra.mxu0 %v2434
        %2457 = vmatprep.subr.bf16.mxu0 0
        %2458 = vmatpush1.bf16.msra.mxu0 %v2433
        %2459 = vmatprep.subr.bf16.mxu0 0
        %2460 = vmatpush1.bf16.msra.mxu0 %v2432
        %2461 = vmatprep.subr.bf16.mxu0 0
        %2462 = vmatpush1.bf16.msra.mxu0 %v2431
        %2463 = vmatprep.subr.bf16.mxu0 0
        %2464 = vmatpush2.bf16.msra.mxu0 0
        %2465 = vmatprep.subr.bf16.mxu0 0
        %2466 = vmatpush2.bf16.msra.mxu0 0
        %2467 = vmatprep.subr.bf16.mxu0 0
        %2468 = vmatpush2.bf16.msra.mxu0 0
        %2469 = vmatprep.subr.bf16.mxu0 0
        %2470 = vmatpush2.bf16.msra.mxu0 0
        %2471 = vmatprep.subr.bf16.mxu0 0
        %2472 = vmatpush2.bf16.msra.mxu0 0
        %2473 = vmatprep.subr.bf16.mxu0 0
        %2474 = vmatpush2.bf16.msra.mxu0 0
        %2475 = vmatprep.subr.bf16.mxu0 0
        %2476 = vmatpush2.bf16.msra.mxu0 0
        %2477 = vmatprep.subr.bf16.mxu0 0
        %2478 = vmatpush2.bf16.msra.mxu0 0
        %2479 = vmatprep.mubr.bf16.mxu0 0
        %2480 = vmatmul.mubr.bf16.gmra.mxu0 %v2375
        %v2481 = vpop.f32.mrf.mxu0
        %v2482 = vadd.f32 0.0, %v2481
        %v2483 = vpop.f32.mrf.mxu0
        %v2484 = vpop.f32.mrf.mxu0
        %v2485 = vadd.f32 0.0, %v2484
        %v2486 = vpop.f32.mrf.mxu0
        %2487 = vmatprep.mubr.bf16.mxu0 0
        %2488 = vmatmul.mubr.bf16.gmra.mxu0 %v2376
        %v2489 = vpop.f32.mrf.mxu0
        %v2490 = vadd.f32 0.0, %v2489
        %v2491 = vpop.f32.mrf.mxu0
        %v2492 = vpop.f32.mrf.mxu0
        %v2493 = vadd.f32 0.0, %v2492
        %v2494 = vpop.f32.mrf.mxu0
        %2495 = vmatprep.mubr.bf16.mxu0 0
        %2496 = vmatmul.mubr.bf16.gmra.mxu0 %v2377
        %v2497 = vpop.f32.mrf.mxu0
        %v2498 = vadd.f32 0.0, %v2497
        %v2499 = vpop.f32.mrf.mxu0
        %v2500 = vpop.f32.mrf.mxu0
        %v2501 = vadd.f32 0.0, %v2500
        %v2502 = vpop.f32.mrf.mxu0
        %2503 = vmatprep.mubr.bf16.mxu0 0
        %2504 = vmatmul.mubr.bf16.gmra.mxu0 %v2378
        %v2505 = vpop.f32.mrf.mxu0
        %v2506 = vadd.f32 0.0, %v2505
        %v2507 = vpop.f32.mrf.mxu0
        %v2508 = vpop.f32.mrf.mxu0
        %v2509 = vadd.f32 0.0, %v2508
        %v2510 = vpop.f32.mrf.mxu0
        %2511 = vmatprep.mubr.bf16.mxu0 0
        %2512 = vmatmul.mubr.bf16.gmra.mxu0 %v2379
        %v2513 = vpop.f32.mrf.mxu0
        %v2514 = vadd.f32 0.0, %v2513
        %v2515 = vpop.f32.mrf.mxu0
        %v2516 = vpop.f32.mrf.mxu0
        %v2517 = vadd.f32 0.0, %v2516
        %v2518 = vpop.f32.mrf.mxu0
        %2519 = vmatprep.mubr.bf16.mxu0 0
        %2520 = vmatmul.mubr.bf16.gmra.mxu0 %v2380
        %v2521 = vpop.f32.mrf.mxu0
        %v2522 = vadd.f32 0.0, %v2521
        %v2523 = vpop.f32.mrf.mxu0
        %v2524 = vpop.f32.mrf.mxu0
        %v2525 = vadd.f32 0.0, %v2524
        %v2526 = vpop.f32.mrf.mxu0
        %2527 = vmatprep.mubr.bf16.mxu0 0
        %2528 = vmatmul.mubr.bf16.gmra.mxu0 %v2381
        %v2529 = vpop.f32.mrf.mxu0
        %v2530 = vadd.f32 0.0, %v2529
        %v2531 = vpop.f32.mrf.mxu0
        %v2532 = vpop.f32.mrf.mxu0
        %v2533 = vadd.f32 0.0, %v2532
        %v2534 = vpop.f32.mrf.mxu0
        %2535 = vmatprep.mubr.bf16.mxu0 0
        %2536 = vmatmul.mubr.bf16.gmra.mxu0 %v2382
        %v2537 = vpop.f32.mrf.mxu0
        %v2538 = vadd.f32 0.0, %v2537
        %v2539 = vpop.f32.mrf.mxu0
        %v2540 = vpop.f32.mrf.mxu0
        %v2541 = vadd.f32 0.0, %v2540
        %v2542 = vpop.f32.mrf.mxu0
        %2543 = vdwg.mxu0
        %v2544 = vadd.f32 %v2335, %v2482
        %v2545 = vadd.f32 %v2336, %v2485
        %v2546 = vadd.f32 %v2337, %v2490
        %v2547 = vadd.f32 %v2338, %v2493
        %v2548 = vadd.f32 %v2339, %v2498
        %v2549 = vadd.f32 %v2340, %v2501
        %v2550 = vadd.f32 %v2341, %v2506
        %v2551 = vadd.f32 %v2342, %v2509
        %v2552 = vadd.f32 %v2343, %v2514
        %v2553 = vadd.f32 %v2344, %v2517
        %v2554 = vadd.f32 %v2345, %v2522
        %v2555 = vadd.f32 %v2346, %v2525
        %v2556 = vadd.f32 %v2347, %v2530
        %v2557 = vadd.f32 %v2348, %v2533
        %v2558 = vadd.f32 %v2349, %v2538
        %v2559 = vadd.f32 %v2350, %v2541
        %v2560 = vld [vmem:[%s2] sm:$0x1]
        %v2562 = vlaneseq
        %v2563 = vshrl.u32 %v2562, 7
        %v2564 = vsub.s32 0, %v2563
        %v2565 = vrot.slane %v2560, %v2564
        %v2567 = vadd.f32 %v2544, %v2565
        %v2568 = vadd.f32 %v2545, %v2565
        %v2569 = vadd.f32 %v2546, %v2565
        %v2570 = vadd.f32 %v2547, %v2565
        %v2571 = vadd.f32 %v2548, %v2565
        %v2572 = vadd.f32 %v2549, %v2565
        %v2573 = vadd.f32 %v2550, %v2565
        %v2574 = vadd.f32 %v2551, %v2565
        %v2575 = vadd.f32 %v2552, %v2565
        %v2576 = vadd.f32 %v2553, %v2565
        %v2577 = vadd.f32 %v2554, %v2565
        %v2578 = vadd.f32 %v2555, %v2565
        %v2579 = vadd.f32 %v2556, %v2565
        %v2580 = vadd.f32 %v2557, %v2565
        %v2581 = vadd.f32 %v2558, %v2565
        %v2582 = vadd.f32 %v2559, %v2565
        %v2583 = vmax.f32 %v2567, 0.0
        %v2584 = vmax.f32 %v2568, 0.0
        %v2585 = vmax.f32 %v2569, 0.0
        %v2586 = vmax.f32 %v2570, 0.0
        %v2587 = vmax.f32 %v2571, 0.0
        %v2588 = vmax.f32 %v2572, 0.0
        %v2589 = vmax.f32 %v2573, 0.0
        %v2590 = vmax.f32 %v2574, 0.0
        %v2591 = vmax.f32 %v2575, 0.0
        %v2592 = vmax.f32 %v2576, 0.0
        %v2593 = vmax.f32 %v2577, 0.0
        %v2594 = vmax.f32 %v2578, 0.0
        %v2595 = vmax.f32 %v2579, 0.0
        %v2596 = vmax.f32 %v2580, 0.0
        %v2597 = vmax.f32 %v2581, 0.0
        %v2598 = vmax.f32 %v2582, 0.0
        %2599 = vst [vmem:[#allocation3 + $0x18] sm:$0xff] %v2583
        %2600 = vst [vmem:[#allocation3 + $0x20] sm:$0xff] %v2584
        %2601 = vst [vmem:[#allocation3 + $0x28] sm:$0xff] %v2585
        %2602 = vst [vmem:[#allocation3 + $0x30] sm:$0xff] %v2586
        %2603 = vst [vmem:[#allocation3 + $0x38] sm:$0xff] %v2587
        %2604 = vst [vmem:[#allocation3 + $0x40] sm:$0xff] %v2588
        %2605 = vst [vmem:[#allocation3 + $0x48] sm:$0xff] %v2589
        %2606 = vst [vmem:[#allocation3 + $0x50] sm:$0xff] %v2590
        %2607 = vst [vmem:[#allocation3 + $0x58] sm:$0xff] %v2591
        %2608 = vst [vmem:[#allocation3 + $0x60] sm:$0xff] %v2592
        %2609 = vst [vmem:[#allocation3 + $0x68] sm:$0xff] %v2593
        %2610 = vst [vmem:[#allocation3 + $0x70] sm:$0xff] %v2594
        %2611 = vst [vmem:[#allocation3 + $0x78] sm:$0xff] %v2595
        %2612 = vst [vmem:[#allocation3 + $0x80] sm:$0xff] %v2596
        %2613 = vst [vmem:[#allocation3 + $0x88] sm:$0xff] %v2597
        %2614 = vst [vmem:[#allocation3 + $0x90] sm:$0xff] %v2598
        %v2615 = vld [vmem:[#allocation2 + $0x87] sm:$0xff]
        %v2616 = vld [vmem:[#allocation2 + $0x8f] sm:$0xff]
        %v2617 = vld [vmem:[#allocation2 + $0x97] sm:$0xff]
        %v2618 = vld [vmem:[#allocation2 + $0x9f] sm:$0xff]
        %v2619 = vld [vmem:[#allocation2 + $0xa7] sm:$0xff]
        %v2620 = vld [vmem:[#allocation2 + $0xaf] sm:$0xff]
        %v2621 = vld [vmem:[#allocation2 + $0xb7] sm:$0xff]
        %v2622 = vld [vmem:[#allocation2 + $0xbf] sm:$0xff]
        %v2623 = vld [vmem:[#allocation2 + $0xc7] sm:$0xff]
        %v2624 = vld [vmem:[#allocation2 + $0xcf] sm:$0xff]
        %v2625 = vld [vmem:[#allocation2 + $0xd7] sm:$0xff]
        %v2626 = vld [vmem:[#allocation2 + $0xdf] sm:$0xff]
        %v2627 = vld [vmem:[#allocation2 + $0xe7] sm:$0xff]
        %v2628 = vld [vmem:[#allocation2 + $0xef] sm:$0xff]
        %v2629 = vld [vmem:[#allocation2 + $0xf7] sm:$0xff]
        %v2630 = vld [vmem:[#allocation2 + $0xff] sm:$0xff]
        %v2631 = vpack.c.bf16 %v2616, %v2615
        %v2632 = vpack.c.bf16 %v2618, %v2617
        %v2633 = vpack.c.bf16 %v2620, %v2619
        %v2634 = vpack.c.bf16 %v2622, %v2621
        %v2635 = vpack.c.bf16 %v2624, %v2623
        %v2636 = vpack.c.bf16 %v2626, %v2625
        %v2637 = vpack.c.bf16 %v2628, %v2627
        %v2638 = vpack.c.bf16 %v2630, %v2629
        %v2639 = vsel %vm655, %v2631, 0
        %v2640 = vsel %vm656, %v2632, 0
        %v2641 = vsel %vm657, %v2633, 0
        %v2642 = vsel %vm658, %v2634, 0
        %v2643 = vsel %vm659, %v2635, 0
        %v2644 = vsel %vm660, %v2636, 0
        %v2645 = vsel %vm661, %v2637, 0
        %v2646 = vsel %vm662, %v2638, 0
        %v2647 = vld [vmem:[%s1] sm:$0xf]
        %v2648 = vld [vmem:[%s1 + $0x4] sm:$0xf]
        %v2649 = vld [vmem:[%s1 + $0x8] sm:$0xf]
        %v2650 = vld [vmem:[%s1 + $0xc] sm:$0xf]
        %v2651 = vld [vmem:[%s1 + $0x10] sm:$0xf]
        %v2652 = vld [vmem:[%s1 + $0x14] sm:$0xf]
        %v2653 = vld [vmem:[%s1 + $0x18] sm:$0xf]
        %v2654 = vld [vmem:[%s1 + $0x1c] sm:$0xf]
        %v2655 = vld [vmem:[%s1 + $0x20] sm:$0xf]
        %v2656 = vld [vmem:[%s1 + $0x24] sm:$0xf]
        %v2657 = vld [vmem:[%s1 + $0x28] sm:$0xf]
        %v2658 = vld [vmem:[%s1 + $0x2c] sm:$0xf]
        %v2659 = vld [vmem:[%s1 + $0x30] sm:$0xf]
        %v2660 = vld [vmem:[%s1 + $0x34] sm:$0xf]
        %v2661 = vld [vmem:[%s1 + $0x38] sm:$0xf]
        %v2662 = vld [vmem:[%s1 + $0x3c] sm:$0xf]
        %v2663 = vld [vmem:[#allocation2 + $0x88] sm:$0xff]
        %v2664 = vld [vmem:[#allocation2 + $0x90] sm:$0xff]
        %v2665 = vld [vmem:[#allocation2 + $0x98] sm:$0xff]
        %v2666 = vld [vmem:[#allocation2 + $0xa0] sm:$0xff]
        %v2667 = vld [vmem:[#allocation2 + $0xa8] sm:$0xff]
        %v2668 = vld [vmem:[#allocation2 + $0xb0] sm:$0xff]
        %v2669 = vld [vmem:[#allocation2 + $0xb8] sm:$0xff]
        %v2670 = vld [vmem:[#allocation2 + $0xc0] sm:$0xff]
        %v2671 = vld [vmem:[#allocation2 + $0xc8] sm:$0xff]
        %v2672 = vld [vmem:[#allocation2 + $0xd0] sm:$0xff]
        %v2673 = vld [vmem:[#allocation2 + $0xd8] sm:$0xff]
        %v2674 = vld [vmem:[#allocation2 + $0xe0] sm:$0xff]
        %v2675 = vld [vmem:[#allocation2 + $0xe8] sm:$0xff]
        %v2676 = vld [vmem:[#allocation2 + $0xf0] sm:$0xff]
        %v2677 = vld [vmem:[#allocation2 + $0xf8] sm:$0xff]
        %v2678 = vld [vmem:[#allocation2 + $0x100] sm:$0xff]
        %v2679 = vpack.c.bf16 %v2664, %v2663
        %v2680 = vpack.c.bf16 %v2666, %v2665
        %v2681 = vpack.c.bf16 %v2668, %v2667
        %v2682 = vpack.c.bf16 %v2670, %v2669
        %v2683 = vpack.c.bf16 %v2672, %v2671
        %v2684 = vpack.c.bf16 %v2674, %v2673
        %v2685 = vpack.c.bf16 %v2676, %v2675
        %v2686 = vpack.c.bf16 %v2678, %v2677
        %v2687 = vld [vmem:[%s1 + $0x40] sm:$0xf]
        %v2688 = vld [vmem:[%s1 + $0x44] sm:$0xf]
        %v2689 = vld [vmem:[%s1 + $0x48] sm:$0xf]
        %v2690 = vld [vmem:[%s1 + $0x4c] sm:$0xf]
        %v2691 = vld [vmem:[%s1 + $0x50] sm:$0xf]
        %v2692 = vld [vmem:[%s1 + $0x54] sm:$0xf]
        %v2693 = vld [vmem:[%s1 + $0x58] sm:$0xf]
        %v2694 = vld [vmem:[%s1 + $0x5c] sm:$0xf]
        %v2695 = vld [vmem:[%s1 + $0x60] sm:$0xf]
        %v2696 = vld [vmem:[%s1 + $0x64] sm:$0xf]
        %v2697 = vld [vmem:[%s1 + $0x68] sm:$0xf]
        %v2698 = vld [vmem:[%s1 + $0x6c] sm:$0xf]
        %v2699 = vld [vmem:[%s1 + $0x70] sm:$0xf]
        %v2700 = vld [vmem:[%s1 + $0x74] sm:$0xf]
        %v2701 = vld [vmem:[%s1 + $0x78] sm:$0xf]
        %v2702 = vld [vmem:[%s1 + $0x7c] sm:$0xf]
        %v2719 = vunpack.c.l.b16 %v2687
        %v2720 = vunpack.c.l.b16 %v2688
        %v2721 = vunpack.c.l.b16 %v2689
        %v2722 = vunpack.c.l.b16 %v2690
        %v2723 = vunpack.c.l.b16 %v2691
        %v2724 = vunpack.c.l.b16 %v2692
        %v2725 = vunpack.c.l.b16 %v2693
        %v2726 = vunpack.c.l.b16 %v2694
        %v2727 = vunpack.c.l.b16 %v2695
        %v2728 = vunpack.c.l.b16 %v2696
        %v2729 = vunpack.c.l.b16 %v2697
        %v2730 = vunpack.c.l.b16 %v2698
        %v2731 = vunpack.c.l.b16 %v2699
        %v2732 = vunpack.c.l.b16 %v2700
        %v2733 = vunpack.c.l.b16 %v2701
        %v2734 = vunpack.c.l.b16 %v2702
        %v2735 = vpack.c.b16 %v2720, %v2719
        %v2736 = vpack.c.b16 %v2722, %v2721
        %v2737 = vpack.c.b16 %v2724, %v2723
        %v2738 = vpack.c.b16 %v2726, %v2725
        %v2739 = vpack.c.b16 %v2728, %v2727
        %v2740 = vpack.c.b16 %v2730, %v2729
        %v2741 = vpack.c.b16 %v2732, %v2731
        %v2742 = vpack.c.b16 %v2734, %v2733
        %2751 = vmatprep.subr.bf16.mxu0 0
        %2752 = vmatpush1.bf16.msra.mxu0 %v2742
        %2753 = vmatprep.subr.bf16.mxu0 0
        %2754 = vmatpush1.bf16.msra.mxu0 %v2741
        %2755 = vmatprep.subr.bf16.mxu0 0
        %2756 = vmatpush1.bf16.msra.mxu0 %v2740
        %2757 = vmatprep.subr.bf16.mxu0 0
        %2758 = vmatpush1.bf16.msra.mxu0 %v2739
        %2759 = vmatprep.subr.bf16.mxu0 0
        %2760 = vmatpush1.bf16.msra.mxu0 %v2738
        %2761 = vmatprep.subr.bf16.mxu0 0
        %2762 = vmatpush1.bf16.msra.mxu0 %v2737
        %2763 = vmatprep.subr.bf16.mxu0 0
        %2764 = vmatpush1.bf16.msra.mxu0 %v2736
        %2765 = vmatprep.subr.bf16.mxu0 0
        %2766 = vmatpush1.bf16.msra.mxu0 %v2735
        %2767 = vmatprep.subr.bf16.mxu0 0
        %2768 = vmatpush2.bf16.msra.mxu0 0
        %2769 = vmatprep.subr.bf16.mxu0 0
        %2770 = vmatpush2.bf16.msra.mxu0 0
        %2771 = vmatprep.subr.bf16.mxu0 0
        %2772 = vmatpush2.bf16.msra.mxu0 0
        %2773 = vmatprep.subr.bf16.mxu0 0
        %2774 = vmatpush2.bf16.msra.mxu0 0
        %2775 = vmatprep.subr.bf16.mxu0 0
        %2776 = vmatpush2.bf16.msra.mxu0 0
        %2777 = vmatprep.subr.bf16.mxu0 0
        %2778 = vmatpush2.bf16.msra.mxu0 0
        %2779 = vmatprep.subr.bf16.mxu0 0
        %2780 = vmatpush2.bf16.msra.mxu0 0
        %2781 = vmatprep.subr.bf16.mxu0 0
        %2782 = vmatpush2.bf16.msra.mxu0 0
        %2783 = vmatprep.mubr.bf16.mxu0 0
        %2784 = vmatmul.mubr.bf16.gmra.mxu0 %v2679
        %v2785 = vpop.f32.mrf.mxu0
        %v2786 = vadd.f32 0.0, %v2785
        %v2787 = vpop.f32.mrf.mxu0
        %v2788 = vpop.f32.mrf.mxu0
        %v2789 = vadd.f32 0.0, %v2788
        %v2790 = vpop.f32.mrf.mxu0
        %2791 = vmatprep.mubr.bf16.mxu0 0
        %2792 = vmatmul.mubr.bf16.gmra.mxu0 %v2680
        %v2793 = vpop.f32.mrf.mxu0
        %v2794 = vadd.f32 0.0, %v2793
        %v2795 = vpop.f32.mrf.mxu0
        %v2796 = vpop.f32.mrf.mxu0
        %v2797 = vadd.f32 0.0, %v2796
        %v2798 = vpop.f32.mrf.mxu0
        %2799 = vmatprep.mubr.bf16.mxu0 0
        %2800 = vmatmul.mubr.bf16.gmra.mxu0 %v2681
        %v2801 = vpop.f32.mrf.mxu0
        %v2802 = vadd.f32 0.0, %v2801
        %v2803 = vpop.f32.mrf.mxu0
        %v2804 = vpop.f32.mrf.mxu0
        %v2805 = vadd.f32 0.0, %v2804
        %v2806 = vpop.f32.mrf.mxu0
        %2807 = vmatprep.mubr.bf16.mxu0 0
        %2808 = vmatmul.mubr.bf16.gmra.mxu0 %v2682
        %v2809 = vpop.f32.mrf.mxu0
        %v2810 = vadd.f32 0.0, %v2809
        %v2811 = vpop.f32.mrf.mxu0
        %v2812 = vpop.f32.mrf.mxu0
        %v2813 = vadd.f32 0.0, %v2812
        %v2814 = vpop.f32.mrf.mxu0
        %2815 = vmatprep.mubr.bf16.mxu0 0
        %2816 = vmatmul.mubr.bf16.gmra.mxu0 %v2683
        %v2817 = vpop.f32.mrf.mxu0
        %v2818 = vadd.f32 0.0, %v2817
        %v2819 = vpop.f32.mrf.mxu0
        %v2820 = vpop.f32.mrf.mxu0
        %v2821 = vadd.f32 0.0, %v2820
        %v2822 = vpop.f32.mrf.mxu0
        %2823 = vmatprep.mubr.bf16.mxu0 0
        %2824 = vmatmul.mubr.bf16.gmra.mxu0 %v2684
        %v2825 = vpop.f32.mrf.mxu0
        %v2826 = vadd.f32 0.0, %v2825
        %v2827 = vpop.f32.mrf.mxu0
        %v2828 = vpop.f32.mrf.mxu0
        %v2829 = vadd.f32 0.0, %v2828
        %v2830 = vpop.f32.mrf.mxu0
        %2831 = vmatprep.mubr.bf16.mxu0 0
        %2832 = vmatmul.mubr.bf16.gmra.mxu0 %v2685
        %v2833 = vpop.f32.mrf.mxu0
        %v2834 = vadd.f32 0.0, %v2833
        %v2835 = vpop.f32.mrf.mxu0
        %v2836 = vpop.f32.mrf.mxu0
        %v2837 = vadd.f32 0.0, %v2836
        %v2838 = vpop.f32.mrf.mxu0
        %2839 = vmatprep.mubr.bf16.mxu0 0
        %2840 = vmatmul.mubr.bf16.gmra.mxu0 %v2686
        %v2841 = vpop.f32.mrf.mxu0
        %v2842 = vadd.f32 0.0, %v2841
        %v2843 = vpop.f32.mrf.mxu0
        %v2844 = vpop.f32.mrf.mxu0
        %v2845 = vadd.f32 0.0, %v2844
        %v2846 = vpop.f32.mrf.mxu0
        %2847 = vdwg.mxu0
        %v2864 = vunpack.c.l.b16 %v2647
        %v2865 = vunpack.c.l.b16 %v2648
        %v2866 = vunpack.c.l.b16 %v2649
        %v2867 = vunpack.c.l.b16 %v2650
        %v2868 = vunpack.c.l.b16 %v2651
        %v2869 = vunpack.c.l.b16 %v2652
        %v2870 = vunpack.c.l.b16 %v2653
        %v2871 = vunpack.c.l.b16 %v2654
        %v2872 = vunpack.c.l.b16 %v2655
        %v2873 = vunpack.c.l.b16 %v2656
        %v2874 = vunpack.c.l.b16 %v2657
        %v2875 = vunpack.c.l.b16 %v2658
        %v2876 = vunpack.c.l.b16 %v2659
        %v2877 = vunpack.c.l.b16 %v2660
        %v2878 = vunpack.c.l.b16 %v2661
        %v2879 = vunpack.c.l.b16 %v2662
        %v2880 = vpack.c.b16 %v2865, %v2864
        %v2881 = vpack.c.b16 %v2867, %v2866
        %v2882 = vpack.c.b16 %v2869, %v2868
        %v2883 = vpack.c.b16 %v2871, %v2870
        %v2884 = vpack.c.b16 %v2873, %v2872
        %v2885 = vpack.c.b16 %v2875, %v2874
        %v2886 = vpack.c.b16 %v2877, %v2876
        %v2887 = vpack.c.b16 %v2879, %v2878
        %2896 = vmatprep.subr.bf16.mxu0 0
        %2897 = vmatpush1.bf16.msra.mxu0 %v2887
        %2898 = vmatprep.subr.bf16.mxu0 0
        %2899 = vmatpush1.bf16.msra.mxu0 %v2886
        %2900 = vmatprep.subr.bf16.mxu0 0
        %2901 = vmatpush1.bf16.msra.mxu0 %v2885
        %2902 = vmatprep.subr.bf16.mxu0 0
        %2903 = vmatpush1.bf16.msra.mxu0 %v2884
        %2904 = vmatprep.subr.bf16.mxu0 0
        %2905 = vmatpush1.bf16.msra.mxu0 %v2883
        %2906 = vmatprep.subr.bf16.mxu0 0
        %2907 = vmatpush1.bf16.msra.mxu0 %v2882
        %2908 = vmatprep.subr.bf16.mxu0 0
        %2909 = vmatpush1.bf16.msra.mxu0 %v2881
        %2910 = vmatprep.subr.bf16.mxu0 0
        %2911 = vmatpush1.bf16.msra.mxu0 %v2880
        %2912 = vmatprep.subr.bf16.mxu0 0
        %2913 = vmatpush2.bf16.msra.mxu0 0
        %2914 = vmatprep.subr.bf16.mxu0 0
        %2915 = vmatpush2.bf16.msra.mxu0 0
        %2916 = vmatprep.subr.bf16.mxu0 0
        %2917 = vmatpush2.bf16.msra.mxu0 0
        %2918 = vmatprep.subr.bf16.mxu0 0
        %2919 = vmatpush2.bf16.msra.mxu0 0
        %2920 = vmatprep.subr.bf16.mxu0 0
        %2921 = vmatpush2.bf16.msra.mxu0 0
        %2922 = vmatprep.subr.bf16.mxu0 0
        %2923 = vmatpush2.bf16.msra.mxu0 0
        %2924 = vmatprep.subr.bf16.mxu0 0
        %2925 = vmatpush2.bf16.msra.mxu0 0
        %2926 = vmatprep.subr.bf16.mxu0 0
        %2927 = vmatpush2.bf16.msra.mxu0 0
        %2928 = vmatprep.mubr.bf16.mxu0 0
        %2929 = vmatmul.mubr.bf16.gmra.mxu0 %v2639
        %v2930 = vpop.f32.mrf.mxu0
        %v2931 = vadd.f32 %v2786, %v2930
        %v2932 = vpop.f32.mrf.mxu0
        %v2933 = vpop.f32.mrf.mxu0
        %v2934 = vadd.f32 %v2789, %v2933
        %v2935 = vpop.f32.mrf.mxu0
        %2936 = vmatprep.mubr.bf16.mxu0 0
        %2937 = vmatmul.mubr.bf16.gmra.mxu0 %v2640
        %v2938 = vpop.f32.mrf.mxu0
        %v2939 = vadd.f32 %v2794, %v2938
        %v2940 = vpop.f32.mrf.mxu0
        %v2941 = vpop.f32.mrf.mxu0
        %v2942 = vadd.f32 %v2797, %v2941
        %v2943 = vpop.f32.mrf.mxu0
        %2944 = vmatprep.mubr.bf16.mxu0 0
        %2945 = vmatmul.mubr.bf16.gmra.mxu0 %v2641
        %v2946 = vpop.f32.mrf.mxu0
        %v2947 = vadd.f32 %v2802, %v2946
        %v2948 = vpop.f32.mrf.mxu0
        %v2949 = vpop.f32.mrf.mxu0
        %v2950 = vadd.f32 %v2805, %v2949
        %v2951 = vpop.f32.mrf.mxu0
        %2952 = vmatprep.mubr.bf16.mxu0 0
        %2953 = vmatmul.mubr.bf16.gmra.mxu0 %v2642
        %v2954 = vpop.f32.mrf.mxu0
        %v2955 = vadd.f32 %v2810, %v2954
        %v2956 = vpop.f32.mrf.mxu0
        %v2957 = vpop.f32.mrf.mxu0
        %v2958 = vadd.f32 %v2813, %v2957
        %v2959 = vpop.f32.mrf.mxu0
        %2960 = vmatprep.mubr.bf16.mxu0 0
        %2961 = vmatmul.mubr.bf16.gmra.mxu0 %v2643
        %v2962 = vpop.f32.mrf.mxu0
        %v2963 = vadd.f32 %v2818, %v2962
        %v2964 = vpop.f32.mrf.mxu0
        %v2965 = vpop.f32.mrf.mxu0
        %v2966 = vadd.f32 %v2821, %v2965
        %v2967 = vpop.f32.mrf.mxu0
        %2968 = vmatprep.mubr.bf16.mxu0 0
        %2969 = vmatmul.mubr.bf16.gmra.mxu0 %v2644
        %v2970 = vpop.f32.mrf.mxu0
        %v2971 = vadd.f32 %v2826, %v2970
        %v2972 = vpop.f32.mrf.mxu0
        %v2973 = vpop.f32.mrf.mxu0
        %v2974 = vadd.f32 %v2829, %v2973
        %v2975 = vpop.f32.mrf.mxu0
        %2976 = vmatprep.mubr.bf16.mxu0 0
        %2977 = vmatmul.mubr.bf16.gmra.mxu0 %v2645
        %v2978 = vpop.f32.mrf.mxu0
        %v2979 = vadd.f32 %v2834, %v2978
        %v2980 = vpop.f32.mrf.mxu0
        %v2981 = vpop.f32.mrf.mxu0
        %v2982 = vadd.f32 %v2837, %v2981
        %v2983 = vpop.f32.mrf.mxu0
        %2984 = vmatprep.mubr.bf16.mxu0 0
        %2985 = vmatmul.mubr.bf16.gmra.mxu0 %v2646
        %v2986 = vpop.f32.mrf.mxu0
        %v2987 = vadd.f32 %v2842, %v2986
        %v2988 = vpop.f32.mrf.mxu0
        %v2989 = vpop.f32.mrf.mxu0
        %v2990 = vadd.f32 %v2845, %v2989
        %v2991 = vpop.f32.mrf.mxu0
        %2992 = vdwg.mxu0
        %v2993 = vld [vmem:[#allocation2 + $0x89] sm:$0xff]
        %v2994 = vld [vmem:[#allocation2 + $0x91] sm:$0xff]
        %v2995 = vld [vmem:[#allocation2 + $0x99] sm:$0xff]
        %v2996 = vld [vmem:[#allocation2 + $0xa1] sm:$0xff]
        %v2997 = vld [vmem:[#allocation2 + $0xa9] sm:$0xff]
        %v2998 = vld [vmem:[#allocation2 + $0xb1] sm:$0xff]
        %v2999 = vld [vmem:[#allocation2 + $0xb9] sm:$0xff]
        %v3000 = vld [vmem:[#allocation2 + $0xc1] sm:$0xff]
        %v3001 = vld [vmem:[#allocation2 + $0xc9] sm:$0xff]
        %v3002 = vld [vmem:[#allocation2 + $0xd1] sm:$0xff]
        %v3003 = vld [vmem:[#allocation2 + $0xd9] sm:$0xff]
        %v3004 = vld [vmem:[#allocation2 + $0xe1] sm:$0xff]
        %v3005 = vld [vmem:[#allocation2 + $0xe9] sm:$0xff]
        %v3006 = vld [vmem:[#allocation2 + $0xf1] sm:$0xff]
        %v3007 = vld [vmem:[#allocation2 + $0xf9] sm:$0xff]
        %v3008 = vld [vmem:[#allocation2 + $0x101] sm:$0xff]
        %v3009 = vpack.c.bf16 %v2994, %v2993
        %v3010 = vpack.c.bf16 %v2996, %v2995
        %v3011 = vpack.c.bf16 %v2998, %v2997
        %v3012 = vpack.c.bf16 %v3000, %v2999
        %v3013 = vpack.c.bf16 %v3002, %v3001
        %v3014 = vpack.c.bf16 %v3004, %v3003
        %v3015 = vpack.c.bf16 %v3006, %v3005
        %v3016 = vpack.c.bf16 %v3008, %v3007
        %v3017 = vsel %vm1129, %v3009, 0
        %v3018 = vsel %vm1130, %v3010, 0
        %v3019 = vsel %vm1131, %v3011, 0
        %v3020 = vsel %vm1132, %v3012, 0
        %v3021 = vsel %vm1133, %v3013, 0
        %v3022 = vsel %vm1134, %v3014, 0
        %v3023 = vsel %vm1135, %v3015, 0
        %v3024 = vsel %vm1136, %v3016, 0
        %v3025 = vld [vmem:[%s1 + $0x80] sm:$0xf]
        %v3026 = vld [vmem:[%s1 + $0x84] sm:$0xf]
        %v3027 = vld [vmem:[%s1 + $0x88] sm:$0xf]
        %v3028 = vld [vmem:[%s1 + $0x8c] sm:$0xf]
        %v3029 = vld [vmem:[%s1 + $0x90] sm:$0xf]
        %v3030 = vld [vmem:[%s1 + $0x94] sm:$0xf]
        %v3031 = vld [vmem:[%s1 + $0x98] sm:$0xf]
        %v3032 = vld [vmem:[%s1 + $0x9c] sm:$0xf]
        %v3033 = vld [vmem:[%s1 + $0xa0] sm:$0xf]
        %v3034 = vld [vmem:[%s1 + $0xa4] sm:$0xf]
        %v3035 = vld [vmem:[%s1 + $0xa8] sm:$0xf]
        %v3036 = vld [vmem:[%s1 + $0xac] sm:$0xf]
        %v3037 = vld [vmem:[%s1 + $0xb0] sm:$0xf]
        %v3038 = vld [vmem:[%s1 + $0xb4] sm:$0xf]
        %v3039 = vld [vmem:[%s1 + $0xb8] sm:$0xf]
        %v3040 = vld [vmem:[%s1 + $0xbc] sm:$0xf]
        %v3057 = vunpack.c.l.b16 %v3025
        %v3058 = vunpack.c.l.b16 %v3026
        %v3059 = vunpack.c.l.b16 %v3027
        %v3060 = vunpack.c.l.b16 %v3028
        %v3061 = vunpack.c.l.b16 %v3029
        %v3062 = vunpack.c.l.b16 %v3030
        %v3063 = vunpack.c.l.b16 %v3031
        %v3064 = vunpack.c.l.b16 %v3032
        %v3065 = vunpack.c.l.b16 %v3033
        %v3066 = vunpack.c.l.b16 %v3034
        %v3067 = vunpack.c.l.b16 %v3035
        %v3068 = vunpack.c.l.b16 %v3036
        %v3069 = vunpack.c.l.b16 %v3037
        %v3070 = vunpack.c.l.b16 %v3038
        %v3071 = vunpack.c.l.b16 %v3039
        %v3072 = vunpack.c.l.b16 %v3040
        %v3073 = vpack.c.b16 %v3058, %v3057
        %v3074 = vpack.c.b16 %v3060, %v3059
        %v3075 = vpack.c.b16 %v3062, %v3061
        %v3076 = vpack.c.b16 %v3064, %v3063
        %v3077 = vpack.c.b16 %v3066, %v3065
        %v3078 = vpack.c.b16 %v3068, %v3067
        %v3079 = vpack.c.b16 %v3070, %v3069
        %v3080 = vpack.c.b16 %v3072, %v3071
        %3089 = vmatprep.subr.bf16.mxu0 0
        %3090 = vmatpush1.bf16.msra.mxu0 %v3080
        %3091 = vmatprep.subr.bf16.mxu0 0
        %3092 = vmatpush1.bf16.msra.mxu0 %v3079
        %3093 = vmatprep.subr.bf16.mxu0 0
        %3094 = vmatpush1.bf16.msra.mxu0 %v3078
        %3095 = vmatprep.subr.bf16.mxu0 0
        %3096 = vmatpush1.bf16.msra.mxu0 %v3077
        %3097 = vmatprep.subr.bf16.mxu0 0
        %3098 = vmatpush1.bf16.msra.mxu0 %v3076
        %3099 = vmatprep.subr.bf16.mxu0 0
        %3100 = vmatpush1.bf16.msra.mxu0 %v3075
        %3101 = vmatprep.subr.bf16.mxu0 0
        %3102 = vmatpush1.bf16.msra.mxu0 %v3074
        %3103 = vmatprep.subr.bf16.mxu0 0
        %3104 = vmatpush1.bf16.msra.mxu0 %v3073
        %3105 = vmatprep.subr.bf16.mxu0 0
        %3106 = vmatpush2.bf16.msra.mxu0 0
        %3107 = vmatprep.subr.bf16.mxu0 0
        %3108 = vmatpush2.bf16.msra.mxu0 0
        %3109 = vmatprep.subr.bf16.mxu0 0
        %3110 = vmatpush2.bf16.msra.mxu0 0
        %3111 = vmatprep.subr.bf16.mxu0 0
        %3112 = vmatpush2.bf16.msra.mxu0 0
        %3113 = vmatprep.subr.bf16.mxu0 0
        %3114 = vmatpush2.bf16.msra.mxu0 0
        %3115 = vmatprep.subr.bf16.mxu0 0
        %3116 = vmatpush2.bf16.msra.mxu0 0
        %3117 = vmatprep.subr.bf16.mxu0 0
        %3118 = vmatpush2.bf16.msra.mxu0 0
        %3119 = vmatprep.subr.bf16.mxu0 0
        %3120 = vmatpush2.bf16.msra.mxu0 0
        %3121 = vmatprep.mubr.bf16.mxu0 0
        %3122 = vmatmul.mubr.bf16.gmra.mxu0 %v3017
        %v3123 = vpop.f32.mrf.mxu0
        %v3124 = vadd.f32 0.0, %v3123
        %v3125 = vpop.f32.mrf.mxu0
        %v3126 = vpop.f32.mrf.mxu0
        %v3127 = vadd.f32 0.0, %v3126
        %v3128 = vpop.f32.mrf.mxu0
        %3129 = vmatprep.mubr.bf16.mxu0 0
        %3130 = vmatmul.mubr.bf16.gmra.mxu0 %v3018
        %v3131 = vpop.f32.mrf.mxu0
        %v3132 = vadd.f32 0.0, %v3131
        %v3133 = vpop.f32.mrf.mxu0
        %v3134 = vpop.f32.mrf.mxu0
        %v3135 = vadd.f32 0.0, %v3134
        %v3136 = vpop.f32.mrf.mxu0
        %3137 = vmatprep.mubr.bf16.mxu0 0
        %3138 = vmatmul.mubr.bf16.gmra.mxu0 %v3019
        %v3139 = vpop.f32.mrf.mxu0
        %v3140 = vadd.f32 0.0, %v3139
        %v3141 = vpop.f32.mrf.mxu0
        %v3142 = vpop.f32.mrf.mxu0
        %v3143 = vadd.f32 0.0, %v3142
        %v3144 = vpop.f32.mrf.mxu0
        %3145 = vmatprep.mubr.bf16.mxu0 0
        %3146 = vmatmul.mubr.bf16.gmra.mxu0 %v3020
        %v3147 = vpop.f32.mrf.mxu0
        %v3148 = vadd.f32 0.0, %v3147
        %v3149 = vpop.f32.mrf.mxu0
        %v3150 = vpop.f32.mrf.mxu0
        %v3151 = vadd.f32 0.0, %v3150
        %v3152 = vpop.f32.mrf.mxu0
        %3153 = vmatprep.mubr.bf16.mxu0 0
        %3154 = vmatmul.mubr.bf16.gmra.mxu0 %v3021
        %v3155 = vpop.f32.mrf.mxu0
        %v3156 = vadd.f32 0.0, %v3155
        %v3157 = vpop.f32.mrf.mxu0
        %v3158 = vpop.f32.mrf.mxu0
        %v3159 = vadd.f32 0.0, %v3158
        %v3160 = vpop.f32.mrf.mxu0
        %3161 = vmatprep.mubr.bf16.mxu0 0
        %3162 = vmatmul.mubr.bf16.gmra.mxu0 %v3022
        %v3163 = vpop.f32.mrf.mxu0
        %v3164 = vadd.f32 0.0, %v3163
        %v3165 = vpop.f32.mrf.mxu0
        %v3166 = vpop.f32.mrf.mxu0
        %v3167 = vadd.f32 0.0, %v3166
        %v3168 = vpop.f32.mrf.mxu0
        %3169 = vmatprep.mubr.bf16.mxu0 0
        %3170 = vmatmul.mubr.bf16.gmra.mxu0 %v3023
        %v3171 = vpop.f32.mrf.mxu0
        %v3172 = vadd.f32 0.0, %v3171
        %v3173 = vpop.f32.mrf.mxu0
        %v3174 = vpop.f32.mrf.mxu0
        %v3175 = vadd.f32 0.0, %v3174
        %v3176 = vpop.f32.mrf.mxu0
        %3177 = vmatprep.mubr.bf16.mxu0 0
        %3178 = vmatmul.mubr.bf16.gmra.mxu0 %v3024
        %v3179 = vpop.f32.mrf.mxu0
        %v3180 = vadd.f32 0.0, %v3179
        %v3181 = vpop.f32.mrf.mxu0
        %v3182 = vpop.f32.mrf.mxu0
        %v3183 = vadd.f32 0.0, %v3182
        %v3184 = vpop.f32.mrf.mxu0
        %3185 = vdwg.mxu0
        %v3186 = vadd.f32 %v2931, %v3124
        %v3187 = vadd.f32 %v2934, %v3127
        %v3188 = vadd.f32 %v2939, %v3132
        %v3189 = vadd.f32 %v2942, %v3135
        %v3190 = vadd.f32 %v2947, %v3140
        %v3191 = vadd.f32 %v2950, %v3143
        %v3192 = vadd.f32 %v2955, %v3148
        %v3193 = vadd.f32 %v2958, %v3151
        %v3194 = vadd.f32 %v2963, %v3156
        %v3195 = vadd.f32 %v2966, %v3159
        %v3196 = vadd.f32 %v2971, %v3164
        %v3197 = vadd.f32 %v2974, %v3167
        %v3198 = vadd.f32 %v2979, %v3172
        %v3199 = vadd.f32 %v2982, %v3175
        %v3200 = vadd.f32 %v2987, %v3180
        %v3201 = vadd.f32 %v2990, %v3183
        %v3202 = vld [vmem:[#allocation2 + $0x97] sm:$0xff]
        %v3203 = vld [vmem:[#allocation2 + $0x9f] sm:$0xff]
        %v3204 = vld [vmem:[#allocation2 + $0xa7] sm:$0xff]
        %v3205 = vld [vmem:[#allocation2 + $0xaf] sm:$0xff]
        %v3206 = vld [vmem:[#allocation2 + $0xb7] sm:$0xff]
        %v3207 = vld [vmem:[#allocation2 + $0xbf] sm:$0xff]
        %v3208 = vld [vmem:[#allocation2 + $0xc7] sm:$0xff]
        %v3209 = vld [vmem:[#allocation2 + $0xcf] sm:$0xff]
        %v3210 = vld [vmem:[#allocation2 + $0xd7] sm:$0xff]
        %v3211 = vld [vmem:[#allocation2 + $0xdf] sm:$0xff]
        %v3212 = vld [vmem:[#allocation2 + $0xe7] sm:$0xff]
        %v3213 = vld [vmem:[#allocation2 + $0xef] sm:$0xff]
        %v3214 = vld [vmem:[#allocation2 + $0xf7] sm:$0xff]
        %v3215 = vld [vmem:[#allocation2 + $0xff] sm:$0xff]
        %v3216 = vld [vmem:[#allocation2 + $0x107] sm:$0xff]
        %v3217 = vld [vmem:[#allocation2 + $0x10f] sm:$0xff]
        %v3218 = vpack.c.bf16 %v3203, %v3202
        %v3219 = vpack.c.bf16 %v3205, %v3204
        %v3220 = vpack.c.bf16 %v3207, %v3206
        %v3221 = vpack.c.bf16 %v3209, %v3208
        %v3222 = vpack.c.bf16 %v3211, %v3210
        %v3223 = vpack.c.bf16 %v3213, %v3212
        %v3224 = vpack.c.bf16 %v3215, %v3214
        %v3225 = vpack.c.bf16 %v3217, %v3216
        %v3226 = vsel %vm655, %v3218, 0
        %v3227 = vsel %vm656, %v3219, 0
        %v3228 = vsel %vm657, %v3220, 0
        %v3229 = vsel %vm658, %v3221, 0
        %v3230 = vsel %vm659, %v3222, 0
        %v3231 = vsel %vm660, %v3223, 0
        %v3232 = vsel %vm661, %v3224, 0
        %v3233 = vsel %vm662, %v3225, 0
        %v3234 = vld [vmem:[%s1 + $0xc0] sm:$0xf]
        %v3235 = vld [vmem:[%s1 + $0xc4] sm:$0xf]
        %v3236 = vld [vmem:[%s1 + $0xc8] sm:$0xf]
        %v3237 = vld [vmem:[%s1 + $0xcc] sm:$0xf]
        %v3238 = vld [vmem:[%s1 + $0xd0] sm:$0xf]
        %v3239 = vld [vmem:[%s1 + $0xd4] sm:$0xf]
        %v3240 = vld [vmem:[%s1 + $0xd8] sm:$0xf]
        %v3241 = vld [vmem:[%s1 + $0xdc] sm:$0xf]
        %v3242 = vld [vmem:[%s1 + $0xe0] sm:$0xf]
        %v3243 = vld [vmem:[%s1 + $0xe4] sm:$0xf]
        %v3244 = vld [vmem:[%s1 + $0xe8] sm:$0xf]
        %v3245 = vld [vmem:[%s1 + $0xec] sm:$0xf]
        %v3246 = vld [vmem:[%s1 + $0xf0] sm:$0xf]
        %v3247 = vld [vmem:[%s1 + $0xf4] sm:$0xf]
        %v3248 = vld [vmem:[%s1 + $0xf8] sm:$0xf]
        %v3249 = vld [vmem:[%s1 + $0xfc] sm:$0xf]
        %v3266 = vunpack.c.l.b16 %v3234
        %v3267 = vunpack.c.l.b16 %v3235
        %v3268 = vunpack.c.l.b16 %v3236
        %v3269 = vunpack.c.l.b16 %v3237
        %v3270 = vunpack.c.l.b16 %v3238
        %v3271 = vunpack.c.l.b16 %v3239
        %v3272 = vunpack.c.l.b16 %v3240
        %v3273 = vunpack.c.l.b16 %v3241
        %v3274 = vunpack.c.l.b16 %v3242
        %v3275 = vunpack.c.l.b16 %v3243
        %v3276 = vunpack.c.l.b16 %v3244
        %v3277 = vunpack.c.l.b16 %v3245
        %v3278 = vunpack.c.l.b16 %v3246
        %v3279 = vunpack.c.l.b16 %v3247
        %v3280 = vunpack.c.l.b16 %v3248
        %v3281 = vunpack.c.l.b16 %v3249
        %v3282 = vpack.c.b16 %v3267, %v3266
        %v3283 = vpack.c.b16 %v3269, %v3268
        %v3284 = vpack.c.b16 %v3271, %v3270
        %v3285 = vpack.c.b16 %v3273, %v3272
        %v3286 = vpack.c.b16 %v3275, %v3274
        %v3287 = vpack.c.b16 %v3277, %v3276
        %v3288 = vpack.c.b16 %v3279, %v3278
        %v3289 = vpack.c.b16 %v3281, %v3280
        %3298 = vmatprep.subr.bf16.mxu0 0
        %3299 = vmatpush1.bf16.msra.mxu0 %v3289
        %3300 = vmatprep.subr.bf16.mxu0 0
        %3301 = vmatpush1.bf16.msra.mxu0 %v3288
        %3302 = vmatprep.subr.bf16.mxu0 0
        %3303 = vmatpush1.bf16.msra.mxu0 %v3287
        %3304 = vmatprep.subr.bf16.mxu0 0
        %3305 = vmatpush1.bf16.msra.mxu0 %v3286
        %3306 = vmatprep.subr.bf16.mxu0 0
        %3307 = vmatpush1.bf16.msra.mxu0 %v3285
        %3308 = vmatprep.subr.bf16.mxu0 0
        %3309 = vmatpush1.bf16.msra.mxu0 %v3284
        %3310 = vmatprep.subr.bf16.mxu0 0
        %3311 = vmatpush1.bf16.msra.mxu0 %v3283
        %3312 = vmatprep.subr.bf16.mxu0 0
        %3313 = vmatpush1.bf16.msra.mxu0 %v3282
        %3314 = vmatprep.subr.bf16.mxu0 0
        %3315 = vmatpush2.bf16.msra.mxu0 0
        %3316 = vmatprep.subr.bf16.mxu0 0
        %3317 = vmatpush2.bf16.msra.mxu0 0
        %3318 = vmatprep.subr.bf16.mxu0 0
        %3319 = vmatpush2.bf16.msra.mxu0 0
        %3320 = vmatprep.subr.bf16.mxu0 0
        %3321 = vmatpush2.bf16.msra.mxu0 0
        %3322 = vmatprep.subr.bf16.mxu0 0
        %3323 = vmatpush2.bf16.msra.mxu0 0
        %3324 = vmatprep.subr.bf16.mxu0 0
        %3325 = vmatpush2.bf16.msra.mxu0 0
        %3326 = vmatprep.subr.bf16.mxu0 0
        %3327 = vmatpush2.bf16.msra.mxu0 0
        %3328 = vmatprep.subr.bf16.mxu0 0
        %3329 = vmatpush2.bf16.msra.mxu0 0
        %3330 = vmatprep.mubr.bf16.mxu0 0
        %3331 = vmatmul.mubr.bf16.gmra.mxu0 %v3226
        %v3332 = vpop.f32.mrf.mxu0
        %v3333 = vadd.f32 0.0, %v3332
        %v3334 = vpop.f32.mrf.mxu0
        %v3335 = vpop.f32.mrf.mxu0
        %v3336 = vadd.f32 0.0, %v3335
        %v3337 = vpop.f32.mrf.mxu0
        %3338 = vmatprep.mubr.bf16.mxu0 0
        %3339 = vmatmul.mubr.bf16.gmra.mxu0 %v3227
        %v3340 = vpop.f32.mrf.mxu0
        %v3341 = vadd.f32 0.0, %v3340
        %v3342 = vpop.f32.mrf.mxu0
        %v3343 = vpop.f32.mrf.mxu0
        %v3344 = vadd.f32 0.0, %v3343
        %v3345 = vpop.f32.mrf.mxu0
        %3346 = vmatprep.mubr.bf16.mxu0 0
        %3347 = vmatmul.mubr.bf16.gmra.mxu0 %v3228
        %v3348 = vpop.f32.mrf.mxu0
        %v3349 = vadd.f32 0.0, %v3348
        %v3350 = vpop.f32.mrf.mxu0
        %v3351 = vpop.f32.mrf.mxu0
        %v3352 = vadd.f32 0.0, %v3351
        %v3353 = vpop.f32.mrf.mxu0
        %3354 = vmatprep.mubr.bf16.mxu0 0
        %3355 = vmatmul.mubr.bf16.gmra.mxu0 %v3229
        %v3356 = vpop.f32.mrf.mxu0
        %v3357 = vadd.f32 0.0, %v3356
        %v3358 = vpop.f32.mrf.mxu0
        %v3359 = vpop.f32.mrf.mxu0
        %v3360 = vadd.f32 0.0, %v3359
        %v3361 = vpop.f32.mrf.mxu0
        %3362 = vmatprep.mubr.bf16.mxu0 0
        %3363 = vmatmul.mubr.bf16.gmra.mxu0 %v3230
        %v3364 = vpop.f32.mrf.mxu0
        %v3365 = vadd.f32 0.0, %v3364
        %v3366 = vpop.f32.mrf.mxu0
        %v3367 = vpop.f32.mrf.mxu0
        %v3368 = vadd.f32 0.0, %v3367
        %v3369 = vpop.f32.mrf.mxu0
        %3370 = vmatprep.mubr.bf16.mxu0 0
        %3371 = vmatmul.mubr.bf16.gmra.mxu0 %v3231
        %v3372 = vpop.f32.mrf.mxu0
        %v3373 = vadd.f32 0.0, %v3372
        %v3374 = vpop.f32.mrf.mxu0
        %v3375 = vpop.f32.mrf.mxu0
        %v3376 = vadd.f32 0.0, %v3375
        %v3377 = vpop.f32.mrf.mxu0
        %3378 = vmatprep.mubr.bf16.mxu0 0
        %3379 = vmatmul.mubr.bf16.gmra.mxu0 %v3232
        %v3380 = vpop.f32.mrf.mxu0
        %v3381 = vadd.f32 0.0, %v3380
        %v3382 = vpop.f32.mrf.mxu0
        %v3383 = vpop.f32.mrf.mxu0
        %v3384 = vadd.f32 0.0, %v3383
        %v3385 = vpop.f32.mrf.mxu0
        %3386 = vmatprep.mubr.bf16.mxu0 0
        %3387 = vmatmul.mubr.bf16.gmra.mxu0 %v3233
        %v3388 = vpop.f32.mrf.mxu0
        %v3389 = vadd.f32 0.0, %v3388
        %v3390 = vpop.f32.mrf.mxu0
        %v3391 = vpop.f32.mrf.mxu0
        %v3392 = vadd.f32 0.0, %v3391
        %v3393 = vpop.f32.mrf.mxu0
        %3394 = vdwg.mxu0
        %v3395 = vadd.f32 %v3186, %v3333
        %v3396 = vadd.f32 %v3187, %v3336
        %v3397 = vadd.f32 %v3188, %v3341
        %v3398 = vadd.f32 %v3189, %v3344
        %v3399 = vadd.f32 %v3190, %v3349
        %v3400 = vadd.f32 %v3191, %v3352
        %v3401 = vadd.f32 %v3192, %v3357
        %v3402 = vadd.f32 %v3193, %v3360
        %v3403 = vadd.f32 %v3194, %v3365
        %v3404 = vadd.f32 %v3195, %v3368
        %v3405 = vadd.f32 %v3196, %v3373
        %v3406 = vadd.f32 %v3197, %v3376
        %v3407 = vadd.f32 %v3198, %v3381
        %v3408 = vadd.f32 %v3199, %v3384
        %v3409 = vadd.f32 %v3200, %v3389
        %v3410 = vadd.f32 %v3201, %v3392
        %v3411 = vld [vmem:[#allocation2 + $0x98] sm:$0xff]
        %v3412 = vld [vmem:[#allocation2 + $0xa0] sm:$0xff]
        %v3413 = vld [vmem:[#allocation2 + $0xa8] sm:$0xff]
        %v3414 = vld [vmem:[#allocation2 + $0xb0] sm:$0xff]
        %v3415 = vld [vmem:[#allocation2 + $0xb8] sm:$0xff]
        %v3416 = vld [vmem:[#allocation2 + $0xc0] sm:$0xff]
        %v3417 = vld [vmem:[#allocation2 + $0xc8] sm:$0xff]
        %v3418 = vld [vmem:[#allocation2 + $0xd0] sm:$0xff]
        %v3419 = vld [vmem:[#allocation2 + $0xd8] sm:$0xff]
        %v3420 = vld [vmem:[#allocation2 + $0xe0] sm:$0xff]
        %v3421 = vld [vmem:[#allocation2 + $0xe8] sm:$0xff]
        %v3422 = vld [vmem:[#allocation2 + $0xf0] sm:$0xff]
        %v3423 = vld [vmem:[#allocation2 + $0xf8] sm:$0xff]
        %v3424 = vld [vmem:[#allocation2 + $0x100] sm:$0xff]
        %v3425 = vld [vmem:[#allocation2 + $0x108] sm:$0xff]
        %v3426 = vld [vmem:[#allocation2 + $0x110] sm:$0xff]
        %v3427 = vpack.c.bf16 %v3412, %v3411
        %v3428 = vpack.c.bf16 %v3414, %v3413
        %v3429 = vpack.c.bf16 %v3416, %v3415
        %v3430 = vpack.c.bf16 %v3418, %v3417
        %v3431 = vpack.c.bf16 %v3420, %v3419
        %v3432 = vpack.c.bf16 %v3422, %v3421
        %v3433 = vpack.c.bf16 %v3424, %v3423
        %v3434 = vpack.c.bf16 %v3426, %v3425
        %v3435 = vld [vmem:[%s1 + $0x100] sm:$0xf]
        %v3436 = vld [vmem:[%s1 + $0x104] sm:$0xf]
        %v3437 = vld [vmem:[%s1 + $0x108] sm:$0xf]
        %v3438 = vld [vmem:[%s1 + $0x10c] sm:$0xf]
        %v3439 = vld [vmem:[%s1 + $0x110] sm:$0xf]
        %v3440 = vld [vmem:[%s1 + $0x114] sm:$0xf]
        %v3441 = vld [vmem:[%s1 + $0x118] sm:$0xf]
        %v3442 = vld [vmem:[%s1 + $0x11c] sm:$0xf]
        %v3443 = vld [vmem:[%s1 + $0x120] sm:$0xf]
        %v3444 = vld [vmem:[%s1 + $0x124] sm:$0xf]
        %v3445 = vld [vmem:[%s1 + $0x128] sm:$0xf]
        %v3446 = vld [vmem:[%s1 + $0x12c] sm:$0xf]
        %v3447 = vld [vmem:[%s1 + $0x130] sm:$0xf]
        %v3448 = vld [vmem:[%s1 + $0x134] sm:$0xf]
        %v3449 = vld [vmem:[%s1 + $0x138] sm:$0xf]
        %v3450 = vld [vmem:[%s1 + $0x13c] sm:$0xf]
        %v3467 = vunpack.c.l.b16 %v3435
        %v3468 = vunpack.c.l.b16 %v3436
        %v3469 = vunpack.c.l.b16 %v3437
        %v3470 = vunpack.c.l.b16 %v3438
        %v3471 = vunpack.c.l.b16 %v3439
        %v3472 = vunpack.c.l.b16 %v3440
        %v3473 = vunpack.c.l.b16 %v3441
        %v3474 = vunpack.c.l.b16 %v3442
        %v3475 = vunpack.c.l.b16 %v3443
        %v3476 = vunpack.c.l.b16 %v3444
        %v3477 = vunpack.c.l.b16 %v3445
        %v3478 = vunpack.c.l.b16 %v3446
        %v3479 = vunpack.c.l.b16 %v3447
        %v3480 = vunpack.c.l.b16 %v3448
        %v3481 = vunpack.c.l.b16 %v3449
        %v3482 = vunpack.c.l.b16 %v3450
        %v3483 = vpack.c.b16 %v3468, %v3467
        %v3484 = vpack.c.b16 %v3470, %v3469
        %v3485 = vpack.c.b16 %v3472, %v3471
        %v3486 = vpack.c.b16 %v3474, %v3473
        %v3487 = vpack.c.b16 %v3476, %v3475
        %v3488 = vpack.c.b16 %v3478, %v3477
        %v3489 = vpack.c.b16 %v3480, %v3479
        %v3490 = vpack.c.b16 %v3482, %v3481
        %3499 = vmatprep.subr.bf16.mxu0 0
        %3500 = vmatpush1.bf16.msra.mxu0 %v3490
        %3501 = vmatprep.subr.bf16.mxu0 0
        %3502 = vmatpush1.bf16.msra.mxu0 %v3489
        %3503 = vmatprep.subr.bf16.mxu0 0
        %3504 = vmatpush1.bf16.msra.mxu0 %v3488
        %3505 = vmatprep.subr.bf16.mxu0 0
        %3506 = vmatpush1.bf16.msra.mxu0 %v3487
        %3507 = vmatprep.subr.bf16.mxu0 0
        %3508 = vmatpush1.bf16.msra.mxu0 %v3486
        %3509 = vmatprep.subr.bf16.mxu0 0
        %3510 = vmatpush1.bf16.msra.mxu0 %v3485
        %3511 = vmatprep.subr.bf16.mxu0 0
        %3512 = vmatpush1.bf16.msra.mxu0 %v3484
        %3513 = vmatprep.subr.bf16.mxu0 0
        %3514 = vmatpush1.bf16.msra.mxu0 %v3483
        %3515 = vmatprep.subr.bf16.mxu0 0
        %3516 = vmatpush2.bf16.msra.mxu0 0
        %3517 = vmatprep.subr.bf16.mxu0 0
        %3518 = vmatpush2.bf16.msra.mxu0 0
        %3519 = vmatprep.subr.bf16.mxu0 0
        %3520 = vmatpush2.bf16.msra.mxu0 0
        %3521 = vmatprep.subr.bf16.mxu0 0
        %3522 = vmatpush2.bf16.msra.mxu0 0
        %3523 = vmatprep.subr.bf16.mxu0 0
        %3524 = vmatpush2.bf16.msra.mxu0 0
        %3525 = vmatprep.subr.bf16.mxu0 0
        %3526 = vmatpush2.bf16.msra.mxu0 0
        %3527 = vmatprep.subr.bf16.mxu0 0
        %3528 = vmatpush2.bf16.msra.mxu0 0
        %3529 = vmatprep.subr.bf16.mxu0 0
        %3530 = vmatpush2.bf16.msra.mxu0 0
        %3531 = vmatprep.mubr.bf16.mxu0 0
        %3532 = vmatmul.mubr.bf16.gmra.mxu0 %v3427
        %v3533 = vpop.f32.mrf.mxu0
        %v3534 = vadd.f32 0.0, %v3533
        %v3535 = vpop.f32.mrf.mxu0
        %v3536 = vpop.f32.mrf.mxu0
        %v3537 = vadd.f32 0.0, %v3536
        %v3538 = vpop.f32.mrf.mxu0
        %3539 = vmatprep.mubr.bf16.mxu0 0
        %3540 = vmatmul.mubr.bf16.gmra.mxu0 %v3428
        %v3541 = vpop.f32.mrf.mxu0
        %v3542 = vadd.f32 0.0, %v3541
        %v3543 = vpop.f32.mrf.mxu0
        %v3544 = vpop.f32.mrf.mxu0
        %v3545 = vadd.f32 0.0, %v3544
        %v3546 = vpop.f32.mrf.mxu0
        %3547 = vmatprep.mubr.bf16.mxu0 0
        %3548 = vmatmul.mubr.bf16.gmra.mxu0 %v3429
        %v3549 = vpop.f32.mrf.mxu0
        %v3550 = vadd.f32 0.0, %v3549
        %v3551 = vpop.f32.mrf.mxu0
        %v3552 = vpop.f32.mrf.mxu0
        %v3553 = vadd.f32 0.0, %v3552
        %v3554 = vpop.f32.mrf.mxu0
        %3555 = vmatprep.mubr.bf16.mxu0 0
        %3556 = vmatmul.mubr.bf16.gmra.mxu0 %v3430
        %v3557 = vpop.f32.mrf.mxu0
        %v3558 = vadd.f32 0.0, %v3557
        %v3559 = vpop.f32.mrf.mxu0
        %v3560 = vpop.f32.mrf.mxu0
        %v3561 = vadd.f32 0.0, %v3560
        %v3562 = vpop.f32.mrf.mxu0
        %3563 = vmatprep.mubr.bf16.mxu0 0
        %3564 = vmatmul.mubr.bf16.gmra.mxu0 %v3431
        %v3565 = vpop.f32.mrf.mxu0
        %v3566 = vadd.f32 0.0, %v3565
        %v3567 = vpop.f32.mrf.mxu0
        %v3568 = vpop.f32.mrf.mxu0
        %v3569 = vadd.f32 0.0, %v3568
        %v3570 = vpop.f32.mrf.mxu0
        %3571 = vmatprep.mubr.bf16.mxu0 0
        %3572 = vmatmul.mubr.bf16.gmra.mxu0 %v3432
        %v3573 = vpop.f32.mrf.mxu0
        %v3574 = vadd.f32 0.0, %v3573
        %v3575 = vpop.f32.mrf.mxu0
        %v3576 = vpop.f32.mrf.mxu0
        %v3577 = vadd.f32 0.0, %v3576
        %v3578 = vpop.f32.mrf.mxu0
        %3579 = vmatprep.mubr.bf16.mxu0 0
        %3580 = vmatmul.mubr.bf16.gmra.mxu0 %v3433
        %v3581 = vpop.f32.mrf.mxu0
        %v3582 = vadd.f32 0.0, %v3581
        %v3583 = vpop.f32.mrf.mxu0
        %v3584 = vpop.f32.mrf.mxu0
        %v3585 = vadd.f32 0.0, %v3584
        %v3586 = vpop.f32.mrf.mxu0
        %3587 = vmatprep.mubr.bf16.mxu0 0
        %3588 = vmatmul.mubr.bf16.gmra.mxu0 %v3434
        %v3589 = vpop.f32.mrf.mxu0
        %v3590 = vadd.f32 0.0, %v3589
        %v3591 = vpop.f32.mrf.mxu0
        %v3592 = vpop.f32.mrf.mxu0
        %v3593 = vadd.f32 0.0, %v3592
        %v3594 = vpop.f32.mrf.mxu0
        %3595 = vdwg.mxu0
        %v3596 = vadd.f32 %v3395, %v3534
        %v3597 = vadd.f32 %v3396, %v3537
        %v3598 = vadd.f32 %v3397, %v3542
        %v3599 = vadd.f32 %v3398, %v3545
        %v3600 = vadd.f32 %v3399, %v3550
        %v3601 = vadd.f32 %v3400, %v3553
        %v3602 = vadd.f32 %v3401, %v3558
        %v3603 = vadd.f32 %v3402, %v3561
        %v3604 = vadd.f32 %v3403, %v3566
        %v3605 = vadd.f32 %v3404, %v3569
        %v3606 = vadd.f32 %v3405, %v3574
        %v3607 = vadd.f32 %v3406, %v3577
        %v3608 = vadd.f32 %v3407, %v3582
        %v3609 = vadd.f32 %v3408, %v3585
        %v3610 = vadd.f32 %v3409, %v3590
        %v3611 = vadd.f32 %v3410, %v3593
        %v3612 = vld [vmem:[#allocation2 + $0x99] sm:$0xff]
        %v3613 = vld [vmem:[#allocation2 + $0xa1] sm:$0xff]
        %v3614 = vld [vmem:[#allocation2 + $0xa9] sm:$0xff]
        %v3615 = vld [vmem:[#allocation2 + $0xb1] sm:$0xff]
        %v3616 = vld [vmem:[#allocation2 + $0xb9] sm:$0xff]
        %v3617 = vld [vmem:[#allocation2 + $0xc1] sm:$0xff]
        %v3618 = vld [vmem:[#allocation2 + $0xc9] sm:$0xff]
        %v3619 = vld [vmem:[#allocation2 + $0xd1] sm:$0xff]
        %v3620 = vld [vmem:[#allocation2 + $0xd9] sm:$0xff]
        %v3621 = vld [vmem:[#allocation2 + $0xe1] sm:$0xff]
        %v3622 = vld [vmem:[#allocation2 + $0xe9] sm:$0xff]
        %v3623 = vld [vmem:[#allocation2 + $0xf1] sm:$0xff]
        %v3624 = vld [vmem:[#allocation2 + $0xf9] sm:$0xff]
        %v3625 = vld [vmem:[#allocation2 + $0x101] sm:$0xff]
        %v3626 = vld [vmem:[#allocation2 + $0x109] sm:$0xff]
        %v3627 = vld [vmem:[#allocation2 + $0x111] sm:$0xff]
        %v3628 = vpack.c.bf16 %v3613, %v3612
        %v3629 = vpack.c.bf16 %v3615, %v3614
        %v3630 = vpack.c.bf16 %v3617, %v3616
        %v3631 = vpack.c.bf16 %v3619, %v3618
        %v3632 = vpack.c.bf16 %v3621, %v3620
        %v3633 = vpack.c.bf16 %v3623, %v3622
        %v3634 = vpack.c.bf16 %v3625, %v3624
        %v3635 = vpack.c.bf16 %v3627, %v3626
        %v3636 = vsel %vm1129, %v3628, 0
        %v3637 = vsel %vm1130, %v3629, 0
        %v3638 = vsel %vm1131, %v3630, 0
        %v3639 = vsel %vm1132, %v3631, 0
        %v3640 = vsel %vm1133, %v3632, 0
        %v3641 = vsel %vm1134, %v3633, 0
        %v3642 = vsel %vm1135, %v3634, 0
        %v3643 = vsel %vm1136, %v3635, 0
        %v3644 = vld [vmem:[%s1 + $0x140] sm:$0xf]
        %v3645 = vld [vmem:[%s1 + $0x144] sm:$0xf]
        %v3646 = vld [vmem:[%s1 + $0x148] sm:$0xf]
        %v3647 = vld [vmem:[%s1 + $0x14c] sm:$0xf]
        %v3648 = vld [vmem:[%s1 + $0x150] sm:$0xf]
        %v3649 = vld [vmem:[%s1 + $0x154] sm:$0xf]
        %v3650 = vld [vmem:[%s1 + $0x158] sm:$0xf]
        %v3651 = vld [vmem:[%s1 + $0x15c] sm:$0xf]
        %v3652 = vld [vmem:[%s1 + $0x160] sm:$0xf]
        %v3653 = vld [vmem:[%s1 + $0x164] sm:$0xf]
        %v3654 = vld [vmem:[%s1 + $0x168] sm:$0xf]
        %v3655 = vld [vmem:[%s1 + $0x16c] sm:$0xf]
        %v3656 = vld [vmem:[%s1 + $0x170] sm:$0xf]
        %v3657 = vld [vmem:[%s1 + $0x174] sm:$0xf]
        %v3658 = vld [vmem:[%s1 + $0x178] sm:$0xf]
        %v3659 = vld [vmem:[%s1 + $0x17c] sm:$0xf]
        %v3676 = vunpack.c.l.b16 %v3644
        %v3677 = vunpack.c.l.b16 %v3645
        %v3678 = vunpack.c.l.b16 %v3646
        %v3679 = vunpack.c.l.b16 %v3647
        %v3680 = vunpack.c.l.b16 %v3648
        %v3681 = vunpack.c.l.b16 %v3649
        %v3682 = vunpack.c.l.b16 %v3650
        %v3683 = vunpack.c.l.b16 %v3651
        %v3684 = vunpack.c.l.b16 %v3652
        %v3685 = vunpack.c.l.b16 %v3653
        %v3686 = vunpack.c.l.b16 %v3654
        %v3687 = vunpack.c.l.b16 %v3655
        %v3688 = vunpack.c.l.b16 %v3656
        %v3689 = vunpack.c.l.b16 %v3657
        %v3690 = vunpack.c.l.b16 %v3658
        %v3691 = vunpack.c.l.b16 %v3659
        %v3692 = vpack.c.b16 %v3677, %v3676
        %v3693 = vpack.c.b16 %v3679, %v3678
        %v3694 = vpack.c.b16 %v3681, %v3680
        %v3695 = vpack.c.b16 %v3683, %v3682
        %v3696 = vpack.c.b16 %v3685, %v3684
        %v3697 = vpack.c.b16 %v3687, %v3686
        %v3698 = vpack.c.b16 %v3689, %v3688
        %v3699 = vpack.c.b16 %v3691, %v3690
        %3708 = vmatprep.subr.bf16.mxu0 0
        %3709 = vmatpush1.bf16.msra.mxu0 %v3699
        %3710 = vmatprep.subr.bf16.mxu0 0
        %3711 = vmatpush1.bf16.msra.mxu0 %v3698
        %3712 = vmatprep.subr.bf16.mxu0 0
        %3713 = vmatpush1.bf16.msra.mxu0 %v3697
        %3714 = vmatprep.subr.bf16.mxu0 0
        %3715 = vmatpush1.bf16.msra.mxu0 %v3696
        %3716 = vmatprep.subr.bf16.mxu0 0
        %3717 = vmatpush1.bf16.msra.mxu0 %v3695
        %3718 = vmatprep.subr.bf16.mxu0 0
        %3719 = vmatpush1.bf16.msra.mxu0 %v3694
        %3720 = vmatprep.subr.bf16.mxu0 0
        %3721 = vmatpush1.bf16.msra.mxu0 %v3693
        %3722 = vmatprep.subr.bf16.mxu0 0
        %3723 = vmatpush1.bf16.msra.mxu0 %v3692
        %3724 = vmatprep.subr.bf16.mxu0 0
        %3725 = vmatpush2.bf16.msra.mxu0 0
        %3726 = vmatprep.subr.bf16.mxu0 0
        %3727 = vmatpush2.bf16.msra.mxu0 0
        %3728 = vmatprep.subr.bf16.mxu0 0
        %3729 = vmatpush2.bf16.msra.mxu0 0
        %3730 = vmatprep.subr.bf16.mxu0 0
        %3731 = vmatpush2.bf16.msra.mxu0 0
        %3732 = vmatprep.subr.bf16.mxu0 0
        %3733 = vmatpush2.bf16.msra.mxu0 0
        %3734 = vmatprep.subr.bf16.mxu0 0
        %3735 = vmatpush2.bf16.msra.mxu0 0
        %3736 = vmatprep.subr.bf16.mxu0 0
        %3737 = vmatpush2.bf16.msra.mxu0 0
        %3738 = vmatprep.subr.bf16.mxu0 0
        %3739 = vmatpush2.bf16.msra.mxu0 0
        %3740 = vmatprep.mubr.bf16.mxu0 0
        %3741 = vmatmul.mubr.bf16.gmra.mxu0 %v3636
        %v3742 = vpop.f32.mrf.mxu0
        %v3743 = vadd.f32 0.0, %v3742
        %v3744 = vpop.f32.mrf.mxu0
        %v3745 = vpop.f32.mrf.mxu0
        %v3746 = vadd.f32 0.0, %v3745
        %v3747 = vpop.f32.mrf.mxu0
        %3748 = vmatprep.mubr.bf16.mxu0 0
        %3749 = vmatmul.mubr.bf16.gmra.mxu0 %v3637
        %v3750 = vpop.f32.mrf.mxu0
        %v3751 = vadd.f32 0.0, %v3750
        %v3752 = vpop.f32.mrf.mxu0
        %v3753 = vpop.f32.mrf.mxu0
        %v3754 = vadd.f32 0.0, %v3753
        %v3755 = vpop.f32.mrf.mxu0
        %3756 = vmatprep.mubr.bf16.mxu0 0
        %3757 = vmatmul.mubr.bf16.gmra.mxu0 %v3638
        %v3758 = vpop.f32.mrf.mxu0
        %v3759 = vadd.f32 0.0, %v3758
        %v3760 = vpop.f32.mrf.mxu0
        %v3761 = vpop.f32.mrf.mxu0
        %v3762 = vadd.f32 0.0, %v3761
        %v3763 = vpop.f32.mrf.mxu0
        %3764 = vmatprep.mubr.bf16.mxu0 0
        %3765 = vmatmul.mubr.bf16.gmra.mxu0 %v3639
        %v3766 = vpop.f32.mrf.mxu0
        %v3767 = vadd.f32 0.0, %v3766
        %v3768 = vpop.f32.mrf.mxu0
        %v3769 = vpop.f32.mrf.mxu0
        %v3770 = vadd.f32 0.0, %v3769
        %v3771 = vpop.f32.mrf.mxu0
        %3772 = vmatprep.mubr.bf16.mxu0 0
        %3773 = vmatmul.mubr.bf16.gmra.mxu0 %v3640
        %v3774 = vpop.f32.mrf.mxu0
        %v3775 = vadd.f32 0.0, %v3774
        %v3776 = vpop.f32.mrf.mxu0
        %v3777 = vpop.f32.mrf.mxu0
        %v3778 = vadd.f32 0.0, %v3777
        %v3779 = vpop.f32.mrf.mxu0
        %3780 = vmatprep.mubr.bf16.mxu0 0
        %3781 = vmatmul.mubr.bf16.gmra.mxu0 %v3641
        %v3782 = vpop.f32.mrf.mxu0
        %v3783 = vadd.f32 0.0, %v3782
        %v3784 = vpop.f32.mrf.mxu0
        %v3785 = vpop.f32.mrf.mxu0
        %v3786 = vadd.f32 0.0, %v3785
        %v3787 = vpop.f32.mrf.mxu0
        %3788 = vmatprep.mubr.bf16.mxu0 0
        %3789 = vmatmul.mubr.bf16.gmra.mxu0 %v3642
        %v3790 = vpop.f32.mrf.mxu0
        %v3791 = vadd.f32 0.0, %v3790
        %v3792 = vpop.f32.mrf.mxu0
        %v3793 = vpop.f32.mrf.mxu0
        %v3794 = vadd.f32 0.0, %v3793
        %v3795 = vpop.f32.mrf.mxu0
        %3796 = vmatprep.mubr.bf16.mxu0 0
        %3797 = vmatmul.mubr.bf16.gmra.mxu0 %v3643
        %v3798 = vpop.f32.mrf.mxu0
        %v3799 = vadd.f32 0.0, %v3798
        %v3800 = vpop.f32.mrf.mxu0
        %v3801 = vpop.f32.mrf.mxu0
        %v3802 = vadd.f32 0.0, %v3801
        %v3803 = vpop.f32.mrf.mxu0
        %3804 = vdwg.mxu0
        %v3805 = vadd.f32 %v3596, %v3743
        %v3806 = vadd.f32 %v3597, %v3746
        %v3807 = vadd.f32 %v3598, %v3751
        %v3808 = vadd.f32 %v3599, %v3754
        %v3809 = vadd.f32 %v3600, %v3759
        %v3810 = vadd.f32 %v3601, %v3762
        %v3811 = vadd.f32 %v3602, %v3767
        %v3812 = vadd.f32 %v3603, %v3770
        %v3813 = vadd.f32 %v3604, %v3775
        %v3814 = vadd.f32 %v3605, %v3778
        %v3815 = vadd.f32 %v3606, %v3783
        %v3816 = vadd.f32 %v3607, %v3786
        %v3817 = vadd.f32 %v3608, %v3791
        %v3818 = vadd.f32 %v3609, %v3794
        %v3819 = vadd.f32 %v3610, %v3799
        %v3820 = vadd.f32 %v3611, %v3802
        %v3821 = vld [vmem:[#allocation2 + $0xa7] sm:$0xff]
        %v3822 = vld [vmem:[#allocation2 + $0xaf] sm:$0xff]
        %v3823 = vld [vmem:[#allocation2 + $0xb7] sm:$0xff]
        %v3824 = vld [vmem:[#allocation2 + $0xbf] sm:$0xff]
        %v3825 = vld [vmem:[#allocation2 + $0xc7] sm:$0xff]
        %v3826 = vld [vmem:[#allocation2 + $0xcf] sm:$0xff]
        %v3827 = vld [vmem:[#allocation2 + $0xd7] sm:$0xff]
        %v3828 = vld [vmem:[#allocation2 + $0xdf] sm:$0xff]
        %v3829 = vld [vmem:[#allocation2 + $0xe7] sm:$0xff]
        %v3830 = vld [vmem:[#allocation2 + $0xef] sm:$0xff]
        %v3831 = vld [vmem:[#allocation2 + $0xf7] sm:$0xff]
        %v3832 = vld [vmem:[#allocation2 + $0xff] sm:$0xff]
        %v3833 = vld [vmem:[#allocation2 + $0x107] sm:$0xff]
        %v3834 = vld [vmem:[#allocation2 + $0x10f] sm:$0xff]
        %v3835 = vld [vmem:[#allocation2 + $0x117] sm:$0xff]
        %v3836 = vld [vmem:[#allocation2 + $0x11f] sm:$0xff]
        %v3837 = vpack.c.bf16 %v3822, %v3821
        %v3838 = vpack.c.bf16 %v3824, %v3823
        %v3839 = vpack.c.bf16 %v3826, %v3825
        %v3840 = vpack.c.bf16 %v3828, %v3827
        %v3841 = vpack.c.bf16 %v3830, %v3829
        %v3842 = vpack.c.bf16 %v3832, %v3831
        %v3843 = vpack.c.bf16 %v3834, %v3833
        %v3844 = vpack.c.bf16 %v3836, %v3835
        %v3845 = vsel %vm655, %v3837, 0
        %v3846 = vsel %vm656, %v3838, 0
        %v3847 = vsel %vm657, %v3839, 0
        %v3848 = vsel %vm658, %v3840, 0
        %v3849 = vsel %vm659, %v3841, 0
        %v3850 = vsel %vm660, %v3842, 0
        %v3851 = vsel %vm661, %v3843, 0
        %v3852 = vsel %vm662, %v3844, 0
        %v3853 = vld [vmem:[%s1 + $0x180] sm:$0xf]
        %v3854 = vld [vmem:[%s1 + $0x184] sm:$0xf]
        %v3855 = vld [vmem:[%s1 + $0x188] sm:$0xf]
        %v3856 = vld [vmem:[%s1 + $0x18c] sm:$0xf]
        %v3857 = vld [vmem:[%s1 + $0x190] sm:$0xf]
        %v3858 = vld [vmem:[%s1 + $0x194] sm:$0xf]
        %v3859 = vld [vmem:[%s1 + $0x198] sm:$0xf]
        %v3860 = vld [vmem:[%s1 + $0x19c] sm:$0xf]
        %v3861 = vld [vmem:[%s1 + $0x1a0] sm:$0xf]
        %v3862 = vld [vmem:[%s1 + $0x1a4] sm:$0xf]
        %v3863 = vld [vmem:[%s1 + $0x1a8] sm:$0xf]
        %v3864 = vld [vmem:[%s1 + $0x1ac] sm:$0xf]
        %v3865 = vld [vmem:[%s1 + $0x1b0] sm:$0xf]
        %v3866 = vld [vmem:[%s1 + $0x1b4] sm:$0xf]
        %v3867 = vld [vmem:[%s1 + $0x1b8] sm:$0xf]
        %v3868 = vld [vmem:[%s1 + $0x1bc] sm:$0xf]
        %v3885 = vunpack.c.l.b16 %v3853
        %v3886 = vunpack.c.l.b16 %v3854
        %v3887 = vunpack.c.l.b16 %v3855
        %v3888 = vunpack.c.l.b16 %v3856
        %v3889 = vunpack.c.l.b16 %v3857
        %v3890 = vunpack.c.l.b16 %v3858
        %v3891 = vunpack.c.l.b16 %v3859
        %v3892 = vunpack.c.l.b16 %v3860
        %v3893 = vunpack.c.l.b16 %v3861
        %v3894 = vunpack.c.l.b16 %v3862
        %v3895 = vunpack.c.l.b16 %v3863
        %v3896 = vunpack.c.l.b16 %v3864
        %v3897 = vunpack.c.l.b16 %v3865
        %v3898 = vunpack.c.l.b16 %v3866
        %v3899 = vunpack.c.l.b16 %v3867
        %v3900 = vunpack.c.l.b16 %v3868
        %v3901 = vpack.c.b16 %v3886, %v3885
        %v3902 = vpack.c.b16 %v3888, %v3887
        %v3903 = vpack.c.b16 %v3890, %v3889
        %v3904 = vpack.c.b16 %v3892, %v3891
        %v3905 = vpack.c.b16 %v3894, %v3893
        %v3906 = vpack.c.b16 %v3896, %v3895
        %v3907 = vpack.c.b16 %v3898, %v3897
        %v3908 = vpack.c.b16 %v3900, %v3899
        %3917 = vmatprep.subr.bf16.mxu0 0
        %3918 = vmatpush1.bf16.msra.mxu0 %v3908
        %3919 = vmatprep.subr.bf16.mxu0 0
        %3920 = vmatpush1.bf16.msra.mxu0 %v3907
        %3921 = vmatprep.subr.bf16.mxu0 0
        %3922 = vmatpush1.bf16.msra.mxu0 %v3906
        %3923 = vmatprep.subr.bf16.mxu0 0
        %3924 = vmatpush1.bf16.msra.mxu0 %v3905
        %3925 = vmatprep.subr.bf16.mxu0 0
        %3926 = vmatpush1.bf16.msra.mxu0 %v3904
        %3927 = vmatprep.subr.bf16.mxu0 0
        %3928 = vmatpush1.bf16.msra.mxu0 %v3903
        %3929 = vmatprep.subr.bf16.mxu0 0
        %3930 = vmatpush1.bf16.msra.mxu0 %v3902
        %3931 = vmatprep.subr.bf16.mxu0 0
        %3932 = vmatpush1.bf16.msra.mxu0 %v3901
        %3933 = vmatprep.subr.bf16.mxu0 0
        %3934 = vmatpush2.bf16.msra.mxu0 0
        %3935 = vmatprep.subr.bf16.mxu0 0
        %3936 = vmatpush2.bf16.msra.mxu0 0
        %3937 = vmatprep.subr.bf16.mxu0 0
        %3938 = vmatpush2.bf16.msra.mxu0 0
        %3939 = vmatprep.subr.bf16.mxu0 0
        %3940 = vmatpush2.bf16.msra.mxu0 0
        %3941 = vmatprep.subr.bf16.mxu0 0
        %3942 = vmatpush2.bf16.msra.mxu0 0
        %3943 = vmatprep.subr.bf16.mxu0 0
        %3944 = vmatpush2.bf16.msra.mxu0 0
        %3945 = vmatprep.subr.bf16.mxu0 0
        %3946 = vmatpush2.bf16.msra.mxu0 0
        %3947 = vmatprep.subr.bf16.mxu0 0
        %3948 = vmatpush2.bf16.msra.mxu0 0
        %3949 = vmatprep.mubr.bf16.mxu0 0
        %3950 = vmatmul.mubr.bf16.gmra.mxu0 %v3845
        %v3951 = vpop.f32.mrf.mxu0
        %v3952 = vadd.f32 0.0, %v3951
        %v3953 = vpop.f32.mrf.mxu0
        %v3954 = vpop.f32.mrf.mxu0
        %v3955 = vadd.f32 0.0, %v3954
        %v3956 = vpop.f32.mrf.mxu0
        %3957 = vmatprep.mubr.bf16.mxu0 0
        %3958 = vmatmul.mubr.bf16.gmra.mxu0 %v3846
        %v3959 = vpop.f32.mrf.mxu0
        %v3960 = vadd.f32 0.0, %v3959
        %v3961 = vpop.f32.mrf.mxu0
        %v3962 = vpop.f32.mrf.mxu0
        %v3963 = vadd.f32 0.0, %v3962
        %v3964 = vpop.f32.mrf.mxu0
        %3965 = vmatprep.mubr.bf16.mxu0 0
        %3966 = vmatmul.mubr.bf16.gmra.mxu0 %v3847
        %v3967 = vpop.f32.mrf.mxu0
        %v3968 = vadd.f32 0.0, %v3967
        %v3969 = vpop.f32.mrf.mxu0
        %v3970 = vpop.f32.mrf.mxu0
        %v3971 = vadd.f32 0.0, %v3970
        %v3972 = vpop.f32.mrf.mxu0
        %3973 = vmatprep.mubr.bf16.mxu0 0
        %3974 = vmatmul.mubr.bf16.gmra.mxu0 %v3848
        %v3975 = vpop.f32.mrf.mxu0
        %v3976 = vadd.f32 0.0, %v3975
        %v3977 = vpop.f32.mrf.mxu0
        %v3978 = vpop.f32.mrf.mxu0
        %v3979 = vadd.f32 0.0, %v3978
        %v3980 = vpop.f32.mrf.mxu0
        %3981 = vmatprep.mubr.bf16.mxu0 0
        %3982 = vmatmul.mubr.bf16.gmra.mxu0 %v3849
        %v3983 = vpop.f32.mrf.mxu0
        %v3984 = vadd.f32 0.0, %v3983
        %v3985 = vpop.f32.mrf.mxu0
        %v3986 = vpop.f32.mrf.mxu0
        %v3987 = vadd.f32 0.0, %v3986
        %v3988 = vpop.f32.mrf.mxu0
        %3989 = vmatprep.mubr.bf16.mxu0 0
        %3990 = vmatmul.mubr.bf16.gmra.mxu0 %v3850
        %v3991 = vpop.f32.mrf.mxu0
        %v3992 = vadd.f32 0.0, %v3991
        %v3993 = vpop.f32.mrf.mxu0
        %v3994 = vpop.f32.mrf.mxu0
        %v3995 = vadd.f32 0.0, %v3994
        %v3996 = vpop.f32.mrf.mxu0
        %3997 = vmatprep.mubr.bf16.mxu0 0
        %3998 = vmatmul.mubr.bf16.gmra.mxu0 %v3851
        %v3999 = vpop.f32.mrf.mxu0
        %v4000 = vadd.f32 0.0, %v3999
        %v4001 = vpop.f32.mrf.mxu0
        %v4002 = vpop.f32.mrf.mxu0
        %v4003 = vadd.f32 0.0, %v4002
        %v4004 = vpop.f32.mrf.mxu0
        %4005 = vmatprep.mubr.bf16.mxu0 0
        %4006 = vmatmul.mubr.bf16.gmra.mxu0 %v3852
        %v4007 = vpop.f32.mrf.mxu0
        %v4008 = vadd.f32 0.0, %v4007
        %v4009 = vpop.f32.mrf.mxu0
        %v4010 = vpop.f32.mrf.mxu0
        %v4011 = vadd.f32 0.0, %v4010
        %v4012 = vpop.f32.mrf.mxu0
        %4013 = vdwg.mxu0
        %v4014 = vadd.f32 %v3805, %v3952
        %v4015 = vadd.f32 %v3806, %v3955
        %v4016 = vadd.f32 %v3807, %v3960
        %v4017 = vadd.f32 %v3808, %v3963
        %v4018 = vadd.f32 %v3809, %v3968
        %v4019 = vadd.f32 %v3810, %v3971
        %v4020 = vadd.f32 %v3811, %v3976
        %v4021 = vadd.f32 %v3812, %v3979
        %v4022 = vadd.f32 %v3813, %v3984
        %v4023 = vadd.f32 %v3814, %v3987
        %v4024 = vadd.f32 %v3815, %v3992
        %v4025 = vadd.f32 %v3816, %v3995
        %v4026 = vadd.f32 %v3817, %v4000
        %v4027 = vadd.f32 %v3818, %v4003
        %v4028 = vadd.f32 %v3819, %v4008
        %v4029 = vadd.f32 %v3820, %v4011
        %v4030 = vld [vmem:[#allocation2 + $0xa8] sm:$0xff]
        %v4031 = vld [vmem:[#allocation2 + $0xb0] sm:$0xff]
        %v4032 = vld [vmem:[#allocation2 + $0xb8] sm:$0xff]
        %v4033 = vld [vmem:[#allocation2 + $0xc0] sm:$0xff]
        %v4034 = vld [vmem:[#allocation2 + $0xc8] sm:$0xff]
        %v4035 = vld [vmem:[#allocation2 + $0xd0] sm:$0xff]
        %v4036 = vld [vmem:[#allocation2 + $0xd8] sm:$0xff]
        %v4037 = vld [vmem:[#allocation2 + $0xe0] sm:$0xff]
        %v4038 = vld [vmem:[#allocation2 + $0xe8] sm:$0xff]
        %v4039 = vld [vmem:[#allocation2 + $0xf0] sm:$0xff]
        %v4040 = vld [vmem:[#allocation2 + $0xf8] sm:$0xff]
        %v4041 = vld [vmem:[#allocation2 + $0x100] sm:$0xff]
        %v4042 = vld [vmem:[#allocation2 + $0x108] sm:$0xff]
        %v4043 = vld [vmem:[#allocation2 + $0x110] sm:$0xff]
        %v4044 = vld [vmem:[#allocation2 + $0x118] sm:$0xff]
        %v4045 = vld [vmem:[#allocation2 + $0x120] sm:$0xff]
        %v4046 = vpack.c.bf16 %v4031, %v4030
        %v4047 = vpack.c.bf16 %v4033, %v4032
        %v4048 = vpack.c.bf16 %v4035, %v4034
        %v4049 = vpack.c.bf16 %v4037, %v4036
        %v4050 = vpack.c.bf16 %v4039, %v4038
        %v4051 = vpack.c.bf16 %v4041, %v4040
        %v4052 = vpack.c.bf16 %v4043, %v4042
        %v4053 = vpack.c.bf16 %v4045, %v4044
        %v4054 = vld [vmem:[%s1 + $0x1c0] sm:$0xf]
        %v4055 = vld [vmem:[%s1 + $0x1c4] sm:$0xf]
        %v4056 = vld [vmem:[%s1 + $0x1c8] sm:$0xf]
        %v4057 = vld [vmem:[%s1 + $0x1cc] sm:$0xf]
        %v4058 = vld [vmem:[%s1 + $0x1d0] sm:$0xf]
        %v4059 = vld [vmem:[%s1 + $0x1d4] sm:$0xf]
        %v4060 = vld [vmem:[%s1 + $0x1d8] sm:$0xf]
        %v4061 = vld [vmem:[%s1 + $0x1dc] sm:$0xf]
        %v4062 = vld [vmem:[%s1 + $0x1e0] sm:$0xf]
        %v4063 = vld [vmem:[%s1 + $0x1e4] sm:$0xf]
        %v4064 = vld [vmem:[%s1 + $0x1e8] sm:$0xf]
        %v4065 = vld [vmem:[%s1 + $0x1ec] sm:$0xf]
        %v4066 = vld [vmem:[%s1 + $0x1f0] sm:$0xf]
        %v4067 = vld [vmem:[%s1 + $0x1f4] sm:$0xf]
        %v4068 = vld [vmem:[%s1 + $0x1f8] sm:$0xf]
        %v4069 = vld [vmem:[%s1 + $0x1fc] sm:$0xf]
        %v4086 = vunpack.c.l.b16 %v4054
        %v4087 = vunpack.c.l.b16 %v4055
        %v4088 = vunpack.c.l.b16 %v4056
        %v4089 = vunpack.c.l.b16 %v4057
        %v4090 = vunpack.c.l.b16 %v4058
        %v4091 = vunpack.c.l.b16 %v4059
        %v4092 = vunpack.c.l.b16 %v4060
        %v4093 = vunpack.c.l.b16 %v4061
        %v4094 = vunpack.c.l.b16 %v4062
        %v4095 = vunpack.c.l.b16 %v4063
        %v4096 = vunpack.c.l.b16 %v4064
        %v4097 = vunpack.c.l.b16 %v4065
        %v4098 = vunpack.c.l.b16 %v4066
        %v4099 = vunpack.c.l.b16 %v4067
        %v4100 = vunpack.c.l.b16 %v4068
        %v4101 = vunpack.c.l.b16 %v4069
        %v4102 = vpack.c.b16 %v4087, %v4086
        %v4103 = vpack.c.b16 %v4089, %v4088
        %v4104 = vpack.c.b16 %v4091, %v4090
        %v4105 = vpack.c.b16 %v4093, %v4092
        %v4106 = vpack.c.b16 %v4095, %v4094
        %v4107 = vpack.c.b16 %v4097, %v4096
        %v4108 = vpack.c.b16 %v4099, %v4098
        %v4109 = vpack.c.b16 %v4101, %v4100
        %4118 = vmatprep.subr.bf16.mxu0 0
        %4119 = vmatpush1.bf16.msra.mxu0 %v4109
        %4120 = vmatprep.subr.bf16.mxu0 0
        %4121 = vmatpush1.bf16.msra.mxu0 %v4108
        %4122 = vmatprep.subr.bf16.mxu0 0
        %4123 = vmatpush1.bf16.msra.mxu0 %v4107
        %4124 = vmatprep.subr.bf16.mxu0 0
        %4125 = vmatpush1.bf16.msra.mxu0 %v4106
        %4126 = vmatprep.subr.bf16.mxu0 0
        %4127 = vmatpush1.bf16.msra.mxu0 %v4105
        %4128 = vmatprep.subr.bf16.mxu0 0
        %4129 = vmatpush1.bf16.msra.mxu0 %v4104
        %4130 = vmatprep.subr.bf16.mxu0 0
        %4131 = vmatpush1.bf16.msra.mxu0 %v4103
        %4132 = vmatprep.subr.bf16.mxu0 0
        %4133 = vmatpush1.bf16.msra.mxu0 %v4102
        %4134 = vmatprep.subr.bf16.mxu0 0
        %4135 = vmatpush2.bf16.msra.mxu0 0
        %4136 = vmatprep.subr.bf16.mxu0 0
        %4137 = vmatpush2.bf16.msra.mxu0 0
        %4138 = vmatprep.subr.bf16.mxu0 0
        %4139 = vmatpush2.bf16.msra.mxu0 0
        %4140 = vmatprep.subr.bf16.mxu0 0
        %4141 = vmatpush2.bf16.msra.mxu0 0
        %4142 = vmatprep.subr.bf16.mxu0 0
        %4143 = vmatpush2.bf16.msra.mxu0 0
        %4144 = vmatprep.subr.bf16.mxu0 0
        %4145 = vmatpush2.bf16.msra.mxu0 0
        %4146 = vmatprep.subr.bf16.mxu0 0
        %4147 = vmatpush2.bf16.msra.mxu0 0
        %4148 = vmatprep.subr.bf16.mxu0 0
        %4149 = vmatpush2.bf16.msra.mxu0 0
        %4150 = vmatprep.mubr.bf16.mxu0 0
        %4151 = vmatmul.mubr.bf16.gmra.mxu0 %v4046
        %v4152 = vpop.f32.mrf.mxu0
        %v4153 = vadd.f32 0.0, %v4152
        %v4154 = vpop.f32.mrf.mxu0
        %v4155 = vpop.f32.mrf.mxu0
        %v4156 = vadd.f32 0.0, %v4155
        %v4157 = vpop.f32.mrf.mxu0
        %4158 = vmatprep.mubr.bf16.mxu0 0
        %4159 = vmatmul.mubr.bf16.gmra.mxu0 %v4047
        %v4160 = vpop.f32.mrf.mxu0
        %v4161 = vadd.f32 0.0, %v4160
        %v4162 = vpop.f32.mrf.mxu0
        %v4163 = vpop.f32.mrf.mxu0
        %v4164 = vadd.f32 0.0, %v4163
        %v4165 = vpop.f32.mrf.mxu0
        %4166 = vmatprep.mubr.bf16.mxu0 0
        %4167 = vmatmul.mubr.bf16.gmra.mxu0 %v4048
        %v4168 = vpop.f32.mrf.mxu0
        %v4169 = vadd.f32 0.0, %v4168
        %v4170 = vpop.f32.mrf.mxu0
        %v4171 = vpop.f32.mrf.mxu0
        %v4172 = vadd.f32 0.0, %v4171
        %v4173 = vpop.f32.mrf.mxu0
        %4174 = vmatprep.mubr.bf16.mxu0 0
        %4175 = vmatmul.mubr.bf16.gmra.mxu0 %v4049
        %v4176 = vpop.f32.mrf.mxu0
        %v4177 = vadd.f32 0.0, %v4176
        %v4178 = vpop.f32.mrf.mxu0
        %v4179 = vpop.f32.mrf.mxu0
        %v4180 = vadd.f32 0.0, %v4179
        %v4181 = vpop.f32.mrf.mxu0
        %4182 = vmatprep.mubr.bf16.mxu0 0
        %4183 = vmatmul.mubr.bf16.gmra.mxu0 %v4050
        %v4184 = vpop.f32.mrf.mxu0
        %v4185 = vadd.f32 0.0, %v4184
        %v4186 = vpop.f32.mrf.mxu0
        %v4187 = vpop.f32.mrf.mxu0
        %v4188 = vadd.f32 0.0, %v4187
        %v4189 = vpop.f32.mrf.mxu0
        %4190 = vmatprep.mubr.bf16.mxu0 0
        %4191 = vmatmul.mubr.bf16.gmra.mxu0 %v4051
        %v4192 = vpop.f32.mrf.mxu0
        %v4193 = vadd.f32 0.0, %v4192
        %v4194 = vpop.f32.mrf.mxu0
        %v4195 = vpop.f32.mrf.mxu0
        %v4196 = vadd.f32 0.0, %v4195
        %v4197 = vpop.f32.mrf.mxu0
        %4198 = vmatprep.mubr.bf16.mxu0 0
        %4199 = vmatmul.mubr.bf16.gmra.mxu0 %v4052
        %v4200 = vpop.f32.mrf.mxu0
        %v4201 = vadd.f32 0.0, %v4200
        %v4202 = vpop.f32.mrf.mxu0
        %v4203 = vpop.f32.mrf.mxu0
        %v4204 = vadd.f32 0.0, %v4203
        %v4205 = vpop.f32.mrf.mxu0
        %4206 = vmatprep.mubr.bf16.mxu0 0
        %4207 = vmatmul.mubr.bf16.gmra.mxu0 %v4053
        %v4208 = vpop.f32.mrf.mxu0
        %v4209 = vadd.f32 0.0, %v4208
        %v4210 = vpop.f32.mrf.mxu0
        %v4211 = vpop.f32.mrf.mxu0
        %v4212 = vadd.f32 0.0, %v4211
        %v4213 = vpop.f32.mrf.mxu0
        %4214 = vdwg.mxu0
        %v4215 = vadd.f32 %v4014, %v4153
        %v4216 = vadd.f32 %v4015, %v4156
        %v4217 = vadd.f32 %v4016, %v4161
        %v4218 = vadd.f32 %v4017, %v4164
        %v4219 = vadd.f32 %v4018, %v4169
        %v4220 = vadd.f32 %v4019, %v4172
        %v4221 = vadd.f32 %v4020, %v4177
        %v4222 = vadd.f32 %v4021, %v4180
        %v4223 = vadd.f32 %v4022, %v4185
        %v4224 = vadd.f32 %v4023, %v4188
        %v4225 = vadd.f32 %v4024, %v4193
        %v4226 = vadd.f32 %v4025, %v4196
        %v4227 = vadd.f32 %v4026, %v4201
        %v4228 = vadd.f32 %v4027, %v4204
        %v4229 = vadd.f32 %v4028, %v4209
        %v4230 = vadd.f32 %v4029, %v4212
        %v4231 = vld [vmem:[#allocation2 + $0xa9] sm:$0xff]
        %v4232 = vld [vmem:[#allocation2 + $0xb1] sm:$0xff]
        %v4233 = vld [vmem:[#allocation2 + $0xb9] sm:$0xff]
        %v4234 = vld [vmem:[#allocation2 + $0xc1] sm:$0xff]
        %v4235 = vld [vmem:[#allocation2 + $0xc9] sm:$0xff]
        %v4236 = vld [vmem:[#allocation2 + $0xd1] sm:$0xff]
        %v4237 = vld [vmem:[#allocation2 + $0xd9] sm:$0xff]
        %v4238 = vld [vmem:[#allocation2 + $0xe1] sm:$0xff]
        %v4239 = vld [vmem:[#allocation2 + $0xe9] sm:$0xff]
        %v4240 = vld [vmem:[#allocation2 + $0xf1] sm:$0xff]
        %v4241 = vld [vmem:[#allocation2 + $0xf9] sm:$0xff]
        %v4242 = vld [vmem:[#allocation2 + $0x101] sm:$0xff]
        %v4243 = vld [vmem:[#allocation2 + $0x109] sm:$0xff]
        %v4244 = vld [vmem:[#allocation2 + $0x111] sm:$0xff]
        %v4245 = vld [vmem:[#allocation2 + $0x119] sm:$0xff]
        %v4246 = vld [vmem:[#allocation2 + $0x121] sm:$0xff]
        %v4247 = vpack.c.bf16 %v4232, %v4231
        %v4248 = vpack.c.bf16 %v4234, %v4233
        %v4249 = vpack.c.bf16 %v4236, %v4235
        %v4250 = vpack.c.bf16 %v4238, %v4237
        %v4251 = vpack.c.bf16 %v4240, %v4239
        %v4252 = vpack.c.bf16 %v4242, %v4241
        %v4253 = vpack.c.bf16 %v4244, %v4243
        %v4254 = vpack.c.bf16 %v4246, %v4245
        %v4255 = vsel %vm1129, %v4247, 0
        %v4256 = vsel %vm1130, %v4248, 0
        %v4257 = vsel %vm1131, %v4249, 0
        %v4258 = vsel %vm1132, %v4250, 0
        %v4259 = vsel %vm1133, %v4251, 0
        %v4260 = vsel %vm1134, %v4252, 0
        %v4261 = vsel %vm1135, %v4253, 0
        %v4262 = vsel %vm1136, %v4254, 0
        %v4263 = vld [vmem:[%s1 + $0x200] sm:$0xf]
        %v4264 = vld [vmem:[%s1 + $0x204] sm:$0xf]
        %v4265 = vld [vmem:[%s1 + $0x208] sm:$0xf]
        %v4266 = vld [vmem:[%s1 + $0x20c] sm:$0xf]
        %v4267 = vld [vmem:[%s1 + $0x210] sm:$0xf]
        %v4268 = vld [vmem:[%s1 + $0x214] sm:$0xf]
        %v4269 = vld [vmem:[%s1 + $0x218] sm:$0xf]
        %v4270 = vld [vmem:[%s1 + $0x21c] sm:$0xf]
        %v4271 = vld [vmem:[%s1 + $0x220] sm:$0xf]
        %v4272 = vld [vmem:[%s1 + $0x224] sm:$0xf]
        %v4273 = vld [vmem:[%s1 + $0x228] sm:$0xf]
        %v4274 = vld [vmem:[%s1 + $0x22c] sm:$0xf]
        %v4275 = vld [vmem:[%s1 + $0x230] sm:$0xf]
        %v4276 = vld [vmem:[%s1 + $0x234] sm:$0xf]
        %v4277 = vld [vmem:[%s1 + $0x238] sm:$0xf]
        %v4278 = vld [vmem:[%s1 + $0x23c] sm:$0xf]
        %v4295 = vunpack.c.l.b16 %v4263
        %v4296 = vunpack.c.l.b16 %v4264
        %v4297 = vunpack.c.l.b16 %v4265
        %v4298 = vunpack.c.l.b16 %v4266
        %v4299 = vunpack.c.l.b16 %v4267
        %v4300 = vunpack.c.l.b16 %v4268
        %v4301 = vunpack.c.l.b16 %v4269
        %v4302 = vunpack.c.l.b16 %v4270
        %v4303 = vunpack.c.l.b16 %v4271
        %v4304 = vunpack.c.l.b16 %v4272
        %v4305 = vunpack.c.l.b16 %v4273
        %v4306 = vunpack.c.l.b16 %v4274
        %v4307 = vunpack.c.l.b16 %v4275
        %v4308 = vunpack.c.l.b16 %v4276
        %v4309 = vunpack.c.l.b16 %v4277
        %v4310 = vunpack.c.l.b16 %v4278
        %v4311 = vpack.c.b16 %v4296, %v4295
        %v4312 = vpack.c.b16 %v4298, %v4297
        %v4313 = vpack.c.b16 %v4300, %v4299
        %v4314 = vpack.c.b16 %v4302, %v4301
        %v4315 = vpack.c.b16 %v4304, %v4303
        %v4316 = vpack.c.b16 %v4306, %v4305
        %v4317 = vpack.c.b16 %v4308, %v4307
        %v4318 = vpack.c.b16 %v4310, %v4309
        %4327 = vmatprep.subr.bf16.mxu0 0
        %4328 = vmatpush1.bf16.msra.mxu0 %v4318
        %4329 = vmatprep.subr.bf16.mxu0 0
        %4330 = vmatpush1.bf16.msra.mxu0 %v4317
        %4331 = vmatprep.subr.bf16.mxu0 0
        %4332 = vmatpush1.bf16.msra.mxu0 %v4316
        %4333 = vmatprep.subr.bf16.mxu0 0
        %4334 = vmatpush1.bf16.msra.mxu0 %v4315
        %4335 = vmatprep.subr.bf16.mxu0 0
        %4336 = vmatpush1.bf16.msra.mxu0 %v4314
        %4337 = vmatprep.subr.bf16.mxu0 0
        %4338 = vmatpush1.bf16.msra.mxu0 %v4313
        %4339 = vmatprep.subr.bf16.mxu0 0
        %4340 = vmatpush1.bf16.msra.mxu0 %v4312
        %4341 = vmatprep.subr.bf16.mxu0 0
        %4342 = vmatpush1.bf16.msra.mxu0 %v4311
        %4343 = vmatprep.subr.bf16.mxu0 0
        %4344 = vmatpush2.bf16.msra.mxu0 0
        %4345 = vmatprep.subr.bf16.mxu0 0
        %4346 = vmatpush2.bf16.msra.mxu0 0
        %4347 = vmatprep.subr.bf16.mxu0 0
        %4348 = vmatpush2.bf16.msra.mxu0 0
        %4349 = vmatprep.subr.bf16.mxu0 0
        %4350 = vmatpush2.bf16.msra.mxu0 0
        %4351 = vmatprep.subr.bf16.mxu0 0
        %4352 = vmatpush2.bf16.msra.mxu0 0
        %4353 = vmatprep.subr.bf16.mxu0 0
        %4354 = vmatpush2.bf16.msra.mxu0 0
        %4355 = vmatprep.subr.bf16.mxu0 0
        %4356 = vmatpush2.bf16.msra.mxu0 0
        %4357 = vmatprep.subr.bf16.mxu0 0
        %4358 = vmatpush2.bf16.msra.mxu0 0
        %4359 = vmatprep.mubr.bf16.mxu0 0
        %4360 = vmatmul.mubr.bf16.gmra.mxu0 %v4255
        %v4361 = vpop.f32.mrf.mxu0
        %v4362 = vadd.f32 0.0, %v4361
        %v4363 = vpop.f32.mrf.mxu0
        %v4364 = vpop.f32.mrf.mxu0
        %v4365 = vadd.f32 0.0, %v4364
        %v4366 = vpop.f32.mrf.mxu0
        %4367 = vmatprep.mubr.bf16.mxu0 0
        %4368 = vmatmul.mubr.bf16.gmra.mxu0 %v4256
        %v4369 = vpop.f32.mrf.mxu0
        %v4370 = vadd.f32 0.0, %v4369
        %v4371 = vpop.f32.mrf.mxu0
        %v4372 = vpop.f32.mrf.mxu0
        %v4373 = vadd.f32 0.0, %v4372
        %v4374 = vpop.f32.mrf.mxu0
        %4375 = vmatprep.mubr.bf16.mxu0 0
        %4376 = vmatmul.mubr.bf16.gmra.mxu0 %v4257
        %v4377 = vpop.f32.mrf.mxu0
        %v4378 = vadd.f32 0.0, %v4377
        %v4379 = vpop.f32.mrf.mxu0
        %v4380 = vpop.f32.mrf.mxu0
        %v4381 = vadd.f32 0.0, %v4380
        %v4382 = vpop.f32.mrf.mxu0
        %4383 = vmatprep.mubr.bf16.mxu0 0
        %4384 = vmatmul.mubr.bf16.gmra.mxu0 %v4258
        %v4385 = vpop.f32.mrf.mxu0
        %v4386 = vadd.f32 0.0, %v4385
        %v4387 = vpop.f32.mrf.mxu0
        %v4388 = vpop.f32.mrf.mxu0
        %v4389 = vadd.f32 0.0, %v4388
        %v4390 = vpop.f32.mrf.mxu0
        %4391 = vmatprep.mubr.bf16.mxu0 0
        %4392 = vmatmul.mubr.bf16.gmra.mxu0 %v4259
        %v4393 = vpop.f32.mrf.mxu0
        %v4394 = vadd.f32 0.0, %v4393
        %v4395 = vpop.f32.mrf.mxu0
        %v4396 = vpop.f32.mrf.mxu0
        %v4397 = vadd.f32 0.0, %v4396
        %v4398 = vpop.f32.mrf.mxu0
        %4399 = vmatprep.mubr.bf16.mxu0 0
        %4400 = vmatmul.mubr.bf16.gmra.mxu0 %v4260
        %v4401 = vpop.f32.mrf.mxu0
        %v4402 = vadd.f32 0.0, %v4401
        %v4403 = vpop.f32.mrf.mxu0
        %v4404 = vpop.f32.mrf.mxu0
        %v4405 = vadd.f32 0.0, %v4404
        %v4406 = vpop.f32.mrf.mxu0
        %4407 = vmatprep.mubr.bf16.mxu0 0
        %4408 = vmatmul.mubr.bf16.gmra.mxu0 %v4261
        %v4409 = vpop.f32.mrf.mxu0
        %v4410 = vadd.f32 0.0, %v4409
        %v4411 = vpop.f32.mrf.mxu0
        %v4412 = vpop.f32.mrf.mxu0
        %v4413 = vadd.f32 0.0, %v4412
        %v4414 = vpop.f32.mrf.mxu0
        %4415 = vmatprep.mubr.bf16.mxu0 0
        %4416 = vmatmul.mubr.bf16.gmra.mxu0 %v4262
        %v4417 = vpop.f32.mrf.mxu0
        %v4418 = vadd.f32 0.0, %v4417
        %v4419 = vpop.f32.mrf.mxu0
        %v4420 = vpop.f32.mrf.mxu0
        %v4421 = vadd.f32 0.0, %v4420
        %v4422 = vpop.f32.mrf.mxu0
        %4423 = vdwg.mxu0
        %v4424 = vadd.f32 %v4215, %v4362
        %v4425 = vadd.f32 %v4216, %v4365
        %v4426 = vadd.f32 %v4217, %v4370
        %v4427 = vadd.f32 %v4218, %v4373
        %v4428 = vadd.f32 %v4219, %v4378
        %v4429 = vadd.f32 %v4220, %v4381
        %v4430 = vadd.f32 %v4221, %v4386
        %v4431 = vadd.f32 %v4222, %v4389
        %v4432 = vadd.f32 %v4223, %v4394
        %v4433 = vadd.f32 %v4224, %v4397
        %v4434 = vadd.f32 %v4225, %v4402
        %v4435 = vadd.f32 %v4226, %v4405
        %v4436 = vadd.f32 %v4227, %v4410
        %v4437 = vadd.f32 %v4228, %v4413
        %v4438 = vadd.f32 %v4229, %v4418
        %v4439 = vadd.f32 %v4230, %v4421
        %v4440 = vld [vmem:[%s2] sm:$0x1]
        %v4442 = vlaneseq
        %v4443 = vshrl.u32 %v4442, 7
        %v4444 = vsub.s32 0, %v4443
        %v4445 = vrot.slane %v4440, %v4444
        %v4447 = vadd.f32 %v4424, %v4445
        %v4448 = vadd.f32 %v4425, %v4445
        %v4449 = vadd.f32 %v4426, %v4445
        %v4450 = vadd.f32 %v4427, %v4445
        %v4451 = vadd.f32 %v4428, %v4445
        %v4452 = vadd.f32 %v4429, %v4445
        %v4453 = vadd.f32 %v4430, %v4445
        %v4454 = vadd.f32 %v4431, %v4445
        %v4455 = vadd.f32 %v4432, %v4445
        %v4456 = vadd.f32 %v4433, %v4445
        %v4457 = vadd.f32 %v4434, %v4445
        %v4458 = vadd.f32 %v4435, %v4445
        %v4459 = vadd.f32 %v4436, %v4445
        %v4460 = vadd.f32 %v4437, %v4445
        %v4461 = vadd.f32 %v4438, %v4445
        %v4462 = vadd.f32 %v4439, %v4445
        %v4463 = vmax.f32 %v4447, 0.0
        %v4464 = vmax.f32 %v4448, 0.0
        %v4465 = vmax.f32 %v4449, 0.0
        %v4466 = vmax.f32 %v4450, 0.0
        %v4467 = vmax.f32 %v4451, 0.0
        %v4468 = vmax.f32 %v4452, 0.0
        %v4469 = vmax.f32 %v4453, 0.0
        %v4470 = vmax.f32 %v4454, 0.0
        %v4471 = vmax.f32 %v4455, 0.0
        %v4472 = vmax.f32 %v4456, 0.0
        %v4473 = vmax.f32 %v4457, 0.0
        %v4474 = vmax.f32 %v4458, 0.0
        %v4475 = vmax.f32 %v4459, 0.0
        %v4476 = vmax.f32 %v4460, 0.0
        %v4477 = vmax.f32 %v4461, 0.0
        %v4478 = vmax.f32 %v4462, 0.0
        %4479 = vst [vmem:[#allocation3 + $0x98] sm:$0xff] %v4463
        %4480 = vst [vmem:[#allocation3 + $0xa0] sm:$0xff] %v4464
        %4481 = vst [vmem:[#allocation3 + $0xa8] sm:$0xff] %v4465
        %4482 = vst [vmem:[#allocation3 + $0xb0] sm:$0xff] %v4466
        %4483 = vst [vmem:[#allocation3 + $0xb8] sm:$0xff] %v4467
        %4484 = vst [vmem:[#allocation3 + $0xc0] sm:$0xff] %v4468
        %4485 = vst [vmem:[#allocation3 + $0xc8] sm:$0xff] %v4469
        %4486 = vst [vmem:[#allocation3 + $0xd0] sm:$0xff] %v4470
        %4487 = vst [vmem:[#allocation3 + $0xd8] sm:$0xff] %v4471
        %4488 = vst [vmem:[#allocation3 + $0xe0] sm:$0xff] %v4472
        %4489 = vst [vmem:[#allocation3 + $0xe8] sm:$0xff] %v4473
        %4490 = vst [vmem:[#allocation3 + $0xf0] sm:$0xff] %v4474
        %4491 = vst [vmem:[#allocation3 + $0xf8] sm:$0xff] %v4475
        %4492 = vst [vmem:[#allocation3 + $0x100] sm:$0xff] %v4476
        %4493 = vst [vmem:[#allocation3 + $0x108] sm:$0xff] %v4477
        %4494 = vst [vmem:[#allocation3 + $0x110] sm:$0xff] %v4478
        %v4495 = vld [vmem:[#allocation3 + $0x7] sm:$0xff]
        %v4496 = vld [vmem:[#allocation3 + $0xf] sm:$0xff]
        %v4497 = vld [vmem:[#allocation3 + $0x17] sm:$0xff]
        %v4498 = vld [vmem:[#allocation3 + $0x1f] sm:$0xff]
        %v4499 = vld [vmem:[#allocation3 + $0x27] sm:$0xff]
        %v4500 = vld [vmem:[#allocation3 + $0x2f] sm:$0xff]
        %v4501 = vld [vmem:[#allocation3 + $0x37] sm:$0xff]
        %v4502 = vld [vmem:[#allocation3 + $0x3f] sm:$0xff]
        %v4503 = vld [vmem:[#allocation3 + $0x47] sm:$0xff]
        %v4504 = vld [vmem:[#allocation3 + $0x4f] sm:$0xff]
        %v4505 = vld [vmem:[#allocation3 + $0x57] sm:$0xff]
        %v4506 = vld [vmem:[#allocation3 + $0x5f] sm:$0xff]
        %v4507 = vld [vmem:[#allocation3 + $0x67] sm:$0xff]
        %v4508 = vld [vmem:[#allocation3 + $0x6f] sm:$0xff]
        %v4509 = vld [vmem:[#allocation3 + $0x77] sm:$0xff]
        %v4510 = vld [vmem:[#allocation3 + $0x7f] sm:$0xff]
        %v4511 = vpack.c.bf16 %v4496, %v4495
        %v4512 = vpack.c.bf16 %v4498, %v4497
        %v4513 = vpack.c.bf16 %v4500, %v4499
        %v4514 = vpack.c.bf16 %v4502, %v4501
        %v4515 = vpack.c.bf16 %v4504, %v4503
        %v4516 = vpack.c.bf16 %v4506, %v4505
        %v4517 = vpack.c.bf16 %v4508, %v4507
        %v4518 = vpack.c.bf16 %v4510, %v4509
        %v4519 = vsel %vm655, %v4511, 0
        %v4520 = vsel %vm656, %v4512, 0
        %v4521 = vsel %vm657, %v4513, 0
        %v4522 = vsel %vm658, %v4514, 0
        %v4523 = vsel %vm659, %v4515, 0
        %v4524 = vsel %vm660, %v4516, 0
        %v4525 = vsel %vm661, %v4517, 0
        %v4526 = vsel %vm662, %v4518, 0
        %v4527 = vld [vmem:[%s3] sm:$0xf]
        %v4528 = vld [vmem:[%s3 + $0x4] sm:$0xf]
        %v4529 = vld [vmem:[%s3 + $0x8] sm:$0xf]
        %v4530 = vld [vmem:[%s3 + $0xc] sm:$0xf]
        %v4531 = vld [vmem:[%s3 + $0x10] sm:$0xf]
        %v4532 = vld [vmem:[%s3 + $0x14] sm:$0xf]
        %v4533 = vld [vmem:[%s3 + $0x18] sm:$0xf]
        %v4534 = vld [vmem:[%s3 + $0x1c] sm:$0xf]
        %v4535 = vld [vmem:[%s3 + $0x20] sm:$0xf]
        %v4536 = vld [vmem:[%s3 + $0x24] sm:$0xf]
        %v4537 = vld [vmem:[%s3 + $0x28] sm:$0xf]
        %v4538 = vld [vmem:[%s3 + $0x2c] sm:$0xf]
        %v4539 = vld [vmem:[%s3 + $0x30] sm:$0xf]
        %v4540 = vld [vmem:[%s3 + $0x34] sm:$0xf]
        %v4541 = vld [vmem:[%s3 + $0x38] sm:$0xf]
        %v4542 = vld [vmem:[%s3 + $0x3c] sm:$0xf]
        %v4543 = vld [vmem:[#allocation3 + $0x8] sm:$0xff]
        %v4544 = vld [vmem:[#allocation3 + $0x10] sm:$0xff]
        %v4545 = vld [vmem:[#allocation3 + $0x18] sm:$0xff]
        %v4546 = vld [vmem:[#allocation3 + $0x20] sm:$0xff]
        %v4547 = vld [vmem:[#allocation3 + $0x28] sm:$0xff]
        %v4548 = vld [vmem:[#allocation3 + $0x30] sm:$0xff]
        %v4549 = vld [vmem:[#allocation3 + $0x38] sm:$0xff]
        %v4550 = vld [vmem:[#allocation3 + $0x40] sm:$0xff]
        %v4551 = vld [vmem:[#allocation3 + $0x48] sm:$0xff]
        %v4552 = vld [vmem:[#allocation3 + $0x50] sm:$0xff]
        %v4553 = vld [vmem:[#allocation3 + $0x58] sm:$0xff]
        %v4554 = vld [vmem:[#allocation3 + $0x60] sm:$0xff]
        %v4555 = vld [vmem:[#allocation3 + $0x68] sm:$0xff]
        %v4556 = vld [vmem:[#allocation3 + $0x70] sm:$0xff]
        %v4557 = vld [vmem:[#allocation3 + $0x78] sm:$0xff]
        %v4558 = vld [vmem:[#allocation3 + $0x80] sm:$0xff]
        %v4559 = vpack.c.bf16 %v4544, %v4543
        %v4560 = vpack.c.bf16 %v4546, %v4545
        %v4561 = vpack.c.bf16 %v4548, %v4547
        %v4562 = vpack.c.bf16 %v4550, %v4549
        %v4563 = vpack.c.bf16 %v4552, %v4551
        %v4564 = vpack.c.bf16 %v4554, %v4553
        %v4565 = vpack.c.bf16 %v4556, %v4555
        %v4566 = vpack.c.bf16 %v4558, %v4557
        %v4567 = vld [vmem:[%s3 + $0x40] sm:$0xf]
        %v4568 = vld [vmem:[%s3 + $0x44] sm:$0xf]
        %v4569 = vld [vmem:[%s3 + $0x48] sm:$0xf]
        %v4570 = vld [vmem:[%s3 + $0x4c] sm:$0xf]
        %v4571 = vld [vmem:[%s3 + $0x50] sm:$0xf]
        %v4572 = vld [vmem:[%s3 + $0x54] sm:$0xf]
        %v4573 = vld [vmem:[%s3 + $0x58] sm:$0xf]
        %v4574 = vld [vmem:[%s3 + $0x5c] sm:$0xf]
        %v4575 = vld [vmem:[%s3 + $0x60] sm:$0xf]
        %v4576 = vld [vmem:[%s3 + $0x64] sm:$0xf]
        %v4577 = vld [vmem:[%s3 + $0x68] sm:$0xf]
        %v4578 = vld [vmem:[%s3 + $0x6c] sm:$0xf]
        %v4579 = vld [vmem:[%s3 + $0x70] sm:$0xf]
        %v4580 = vld [vmem:[%s3 + $0x74] sm:$0xf]
        %v4581 = vld [vmem:[%s3 + $0x78] sm:$0xf]
        %v4582 = vld [vmem:[%s3 + $0x7c] sm:$0xf]
        %v4599 = vunpack.c.l.b16 %v4567
        %v4600 = vunpack.c.l.b16 %v4568
        %v4601 = vunpack.c.l.b16 %v4569
        %v4602 = vunpack.c.l.b16 %v4570
        %v4603 = vunpack.c.l.b16 %v4571
        %v4604 = vunpack.c.l.b16 %v4572
        %v4605 = vunpack.c.l.b16 %v4573
        %v4606 = vunpack.c.l.b16 %v4574
        %v4607 = vunpack.c.l.b16 %v4575
        %v4608 = vunpack.c.l.b16 %v4576
        %v4609 = vunpack.c.l.b16 %v4577
        %v4610 = vunpack.c.l.b16 %v4578
        %v4611 = vunpack.c.l.b16 %v4579
        %v4612 = vunpack.c.l.b16 %v4580
        %v4613 = vunpack.c.l.b16 %v4581
        %v4614 = vunpack.c.l.b16 %v4582
        %v4615 = vpack.c.b16 %v4600, %v4599
        %v4616 = vpack.c.b16 %v4602, %v4601
        %v4617 = vpack.c.b16 %v4604, %v4603
        %v4618 = vpack.c.b16 %v4606, %v4605
        %v4619 = vpack.c.b16 %v4608, %v4607
        %v4620 = vpack.c.b16 %v4610, %v4609
        %v4621 = vpack.c.b16 %v4612, %v4611
        %v4622 = vpack.c.b16 %v4614, %v4613
        %4631 = vmatprep.subr.bf16.mxu0 0
        %4632 = vmatpush1.bf16.msra.mxu0 %v4622
        %4633 = vmatprep.subr.bf16.mxu0 0
        %4634 = vmatpush1.bf16.msra.mxu0 %v4621
        %4635 = vmatprep.subr.bf16.mxu0 0
        %4636 = vmatpush1.bf16.msra.mxu0 %v4620
        %4637 = vmatprep.subr.bf16.mxu0 0
        %4638 = vmatpush1.bf16.msra.mxu0 %v4619
        %4639 = vmatprep.subr.bf16.mxu0 0
        %4640 = vmatpush1.bf16.msra.mxu0 %v4618
        %4641 = vmatprep.subr.bf16.mxu0 0
        %4642 = vmatpush1.bf16.msra.mxu0 %v4617
        %4643 = vmatprep.subr.bf16.mxu0 0
        %4644 = vmatpush1.bf16.msra.mxu0 %v4616
        %4645 = vmatprep.subr.bf16.mxu0 0
        %4646 = vmatpush1.bf16.msra.mxu0 %v4615
        %4647 = vmatprep.subr.bf16.mxu0 0
        %4648 = vmatpush2.bf16.msra.mxu0 0
        %4649 = vmatprep.subr.bf16.mxu0 0
        %4650 = vmatpush2.bf16.msra.mxu0 0
        %4651 = vmatprep.subr.bf16.mxu0 0
        %4652 = vmatpush2.bf16.msra.mxu0 0
        %4653 = vmatprep.subr.bf16.mxu0 0
        %4654 = vmatpush2.bf16.msra.mxu0 0
        %4655 = vmatprep.subr.bf16.mxu0 0
        %4656 = vmatpush2.bf16.msra.mxu0 0
        %4657 = vmatprep.subr.bf16.mxu0 0
        %4658 = vmatpush2.bf16.msra.mxu0 0
        %4659 = vmatprep.subr.bf16.mxu0 0
        %4660 = vmatpush2.bf16.msra.mxu0 0
        %4661 = vmatprep.subr.bf16.mxu0 0
        %4662 = vmatpush2.bf16.msra.mxu0 0
        %4663 = vmatprep.mubr.bf16.mxu0 0
        %4664 = vmatmul.mubr.bf16.gmra.mxu0 %v4559
        %v4665 = vpop.f32.mrf.mxu0
        %v4666 = vadd.f32 0.0, %v4665
        %v4667 = vpop.f32.mrf.mxu0
        %v4668 = vpop.f32.mrf.mxu0
        %v4669 = vadd.f32 0.0, %v4668
        %v4670 = vpop.f32.mrf.mxu0
        %4671 = vmatprep.mubr.bf16.mxu0 0
        %4672 = vmatmul.mubr.bf16.gmra.mxu0 %v4560
        %v4673 = vpop.f32.mrf.mxu0
        %v4674 = vadd.f32 0.0, %v4673
        %v4675 = vpop.f32.mrf.mxu0
        %v4676 = vpop.f32.mrf.mxu0
        %v4677 = vadd.f32 0.0, %v4676
        %v4678 = vpop.f32.mrf.mxu0
        %4679 = vmatprep.mubr.bf16.mxu0 0
        %4680 = vmatmul.mubr.bf16.gmra.mxu0 %v4561
        %v4681 = vpop.f32.mrf.mxu0
        %v4682 = vadd.f32 0.0, %v4681
        %v4683 = vpop.f32.mrf.mxu0
        %v4684 = vpop.f32.mrf.mxu0
        %v4685 = vadd.f32 0.0, %v4684
        %v4686 = vpop.f32.mrf.mxu0
        %4687 = vmatprep.mubr.bf16.mxu0 0
        %4688 = vmatmul.mubr.bf16.gmra.mxu0 %v4562
        %v4689 = vpop.f32.mrf.mxu0
        %v4690 = vadd.f32 0.0, %v4689
        %v4691 = vpop.f32.mrf.mxu0
        %v4692 = vpop.f32.mrf.mxu0
        %v4693 = vadd.f32 0.0, %v4692
        %v4694 = vpop.f32.mrf.mxu0
        %4695 = vmatprep.mubr.bf16.mxu0 0
        %4696 = vmatmul.mubr.bf16.gmra.mxu0 %v4563
        %v4697 = vpop.f32.mrf.mxu0
        %v4698 = vadd.f32 0.0, %v4697
        %v4699 = vpop.f32.mrf.mxu0
        %v4700 = vpop.f32.mrf.mxu0
        %v4701 = vadd.f32 0.0, %v4700
        %v4702 = vpop.f32.mrf.mxu0
        %4703 = vmatprep.mubr.bf16.mxu0 0
        %4704 = vmatmul.mubr.bf16.gmra.mxu0 %v4564
        %v4705 = vpop.f32.mrf.mxu0
        %v4706 = vadd.f32 0.0, %v4705
        %v4707 = vpop.f32.mrf.mxu0
        %v4708 = vpop.f32.mrf.mxu0
        %v4709 = vadd.f32 0.0, %v4708
        %v4710 = vpop.f32.mrf.mxu0
        %4711 = vmatprep.mubr.bf16.mxu0 0
        %4712 = vmatmul.mubr.bf16.gmra.mxu0 %v4565
        %v4713 = vpop.f32.mrf.mxu0
        %v4714 = vadd.f32 0.0, %v4713
        %v4715 = vpop.f32.mrf.mxu0
        %v4716 = vpop.f32.mrf.mxu0
        %v4717 = vadd.f32 0.0, %v4716
        %v4718 = vpop.f32.mrf.mxu0
        %4719 = vmatprep.mubr.bf16.mxu0 0
        %4720 = vmatmul.mubr.bf16.gmra.mxu0 %v4566
        %v4721 = vpop.f32.mrf.mxu0
        %v4722 = vadd.f32 0.0, %v4721
        %v4723 = vpop.f32.mrf.mxu0
        %v4724 = vpop.f32.mrf.mxu0
        %v4725 = vadd.f32 0.0, %v4724
        %v4726 = vpop.f32.mrf.mxu0
        %4727 = vdwg.mxu0
        %v4744 = vunpack.c.l.b16 %v4527
        %v4745 = vunpack.c.l.b16 %v4528
        %v4746 = vunpack.c.l.b16 %v4529
        %v4747 = vunpack.c.l.b16 %v4530
        %v4748 = vunpack.c.l.b16 %v4531
        %v4749 = vunpack.c.l.b16 %v4532
        %v4750 = vunpack.c.l.b16 %v4533
        %v4751 = vunpack.c.l.b16 %v4534
        %v4752 = vunpack.c.l.b16 %v4535
        %v4753 = vunpack.c.l.b16 %v4536
        %v4754 = vunpack.c.l.b16 %v4537
        %v4755 = vunpack.c.l.b16 %v4538
        %v4756 = vunpack.c.l.b16 %v4539
        %v4757 = vunpack.c.l.b16 %v4540
        %v4758 = vunpack.c.l.b16 %v4541
        %v4759 = vunpack.c.l.b16 %v4542
        %v4760 = vpack.c.b16 %v4745, %v4744
        %v4761 = vpack.c.b16 %v4747, %v4746
        %v4762 = vpack.c.b16 %v4749, %v4748
        %v4763 = vpack.c.b16 %v4751, %v4750
        %v4764 = vpack.c.b16 %v4753, %v4752
        %v4765 = vpack.c.b16 %v4755, %v4754
        %v4766 = vpack.c.b16 %v4757, %v4756
        %v4767 = vpack.c.b16 %v4759, %v4758
        %4776 = vmatprep.subr.bf16.mxu0 0
        %4777 = vmatpush1.bf16.msra.mxu0 %v4767
        %4778 = vmatprep.subr.bf16.mxu0 0
        %4779 = vmatpush1.bf16.msra.mxu0 %v4766
        %4780 = vmatprep.subr.bf16.mxu0 0
        %4781 = vmatpush1.bf16.msra.mxu0 %v4765
        %4782 = vmatprep.subr.bf16.mxu0 0
        %4783 = vmatpush1.bf16.msra.mxu0 %v4764
        %4784 = vmatprep.subr.bf16.mxu0 0
        %4785 = vmatpush1.bf16.msra.mxu0 %v4763
        %4786 = vmatprep.subr.bf16.mxu0 0
        %4787 = vmatpush1.bf16.msra.mxu0 %v4762
        %4788 = vmatprep.subr.bf16.mxu0 0
        %4789 = vmatpush1.bf16.msra.mxu0 %v4761
        %4790 = vmatprep.subr.bf16.mxu0 0
        %4791 = vmatpush1.bf16.msra.mxu0 %v4760
        %4792 = vmatprep.subr.bf16.mxu0 0
        %4793 = vmatpush2.bf16.msra.mxu0 0
        %4794 = vmatprep.subr.bf16.mxu0 0
        %4795 = vmatpush2.bf16.msra.mxu0 0
        %4796 = vmatprep.subr.bf16.mxu0 0
        %4797 = vmatpush2.bf16.msra.mxu0 0
        %4798 = vmatprep.subr.bf16.mxu0 0
        %4799 = vmatpush2.bf16.msra.mxu0 0
        %4800 = vmatprep.subr.bf16.mxu0 0
        %4801 = vmatpush2.bf16.msra.mxu0 0
        %4802 = vmatprep.subr.bf16.mxu0 0
        %4803 = vmatpush2.bf16.msra.mxu0 0
        %4804 = vmatprep.subr.bf16.mxu0 0
        %4805 = vmatpush2.bf16.msra.mxu0 0
        %4806 = vmatprep.subr.bf16.mxu0 0
        %4807 = vmatpush2.bf16.msra.mxu0 0
        %4808 = vmatprep.mubr.bf16.mxu0 0
        %4809 = vmatmul.mubr.bf16.gmra.mxu0 %v4519
        %v4810 = vpop.f32.mrf.mxu0
        %v4811 = vadd.f32 %v4666, %v4810
        %v4812 = vpop.f32.mrf.mxu0
        %v4813 = vpop.f32.mrf.mxu0
        %v4814 = vadd.f32 %v4669, %v4813
        %v4815 = vpop.f32.mrf.mxu0
        %4816 = vmatprep.mubr.bf16.mxu0 0
        %4817 = vmatmul.mubr.bf16.gmra.mxu0 %v4520
        %v4818 = vpop.f32.mrf.mxu0
        %v4819 = vadd.f32 %v4674, %v4818
        %v4820 = vpop.f32.mrf.mxu0
        %v4821 = vpop.f32.mrf.mxu0
        %v4822 = vadd.f32 %v4677, %v4821
        %v4823 = vpop.f32.mrf.mxu0
        %4824 = vmatprep.mubr.bf16.mxu0 0
        %4825 = vmatmul.mubr.bf16.gmra.mxu0 %v4521
        %v4826 = vpop.f32.mrf.mxu0
        %v4827 = vadd.f32 %v4682, %v4826
        %v4828 = vpop.f32.mrf.mxu0
        %v4829 = vpop.f32.mrf.mxu0
        %v4830 = vadd.f32 %v4685, %v4829
        %v4831 = vpop.f32.mrf.mxu0
        %4832 = vmatprep.mubr.bf16.mxu0 0
        %4833 = vmatmul.mubr.bf16.gmra.mxu0 %v4522
        %v4834 = vpop.f32.mrf.mxu0
        %v4835 = vadd.f32 %v4690, %v4834
        %v4836 = vpop.f32.mrf.mxu0
        %v4837 = vpop.f32.mrf.mxu0
        %v4838 = vadd.f32 %v4693, %v4837
        %v4839 = vpop.f32.mrf.mxu0
        %4840 = vmatprep.mubr.bf16.mxu0 0
        %4841 = vmatmul.mubr.bf16.gmra.mxu0 %v4523
        %v4842 = vpop.f32.mrf.mxu0
        %v4843 = vadd.f32 %v4698, %v4842
        %v4844 = vpop.f32.mrf.mxu0
        %v4845 = vpop.f32.mrf.mxu0
        %v4846 = vadd.f32 %v4701, %v4845
        %v4847 = vpop.f32.mrf.mxu0
        %4848 = vmatprep.mubr.bf16.mxu0 0
        %4849 = vmatmul.mubr.bf16.gmra.mxu0 %v4524
        %v4850 = vpop.f32.mrf.mxu0
        %v4851 = vadd.f32 %v4706, %v4850
        %v4852 = vpop.f32.mrf.mxu0
        %v4853 = vpop.f32.mrf.mxu0
        %v4854 = vadd.f32 %v4709, %v4853
        %v4855 = vpop.f32.mrf.mxu0
        %4856 = vmatprep.mubr.bf16.mxu0 0
        %4857 = vmatmul.mubr.bf16.gmra.mxu0 %v4525
        %v4858 = vpop.f32.mrf.mxu0
        %v4859 = vadd.f32 %v4714, %v4858
        %v4860 = vpop.f32.mrf.mxu0
        %v4861 = vpop.f32.mrf.mxu0
        %v4862 = vadd.f32 %v4717, %v4861
        %v4863 = vpop.f32.mrf.mxu0
        %4864 = vmatprep.mubr.bf16.mxu0 0
        %4865 = vmatmul.mubr.bf16.gmra.mxu0 %v4526
        %v4866 = vpop.f32.mrf.mxu0
        %v4867 = vadd.f32 %v4722, %v4866
        %v4868 = vpop.f32.mrf.mxu0
        %v4869 = vpop.f32.mrf.mxu0
        %v4870 = vadd.f32 %v4725, %v4869
        %v4871 = vpop.f32.mrf.mxu0
        %4872 = vdwg.mxu0
        %v4873 = vld [vmem:[#allocation3 + $0x9] sm:$0xff]
        %v4874 = vld [vmem:[#allocation3 + $0x11] sm:$0xff]
        %v4875 = vld [vmem:[#allocation3 + $0x19] sm:$0xff]
        %v4876 = vld [vmem:[#allocation3 + $0x21] sm:$0xff]
        %v4877 = vld [vmem:[#allocation3 + $0x29] sm:$0xff]
        %v4878 = vld [vmem:[#allocation3 + $0x31] sm:$0xff]
        %v4879 = vld [vmem:[#allocation3 + $0x39] sm:$0xff]
        %v4880 = vld [vmem:[#allocation3 + $0x41] sm:$0xff]
        %v4881 = vld [vmem:[#allocation3 + $0x49] sm:$0xff]
        %v4882 = vld [vmem:[#allocation3 + $0x51] sm:$0xff]
        %v4883 = vld [vmem:[#allocation3 + $0x59] sm:$0xff]
        %v4884 = vld [vmem:[#allocation3 + $0x61] sm:$0xff]
        %v4885 = vld [vmem:[#allocation3 + $0x69] sm:$0xff]
        %v4886 = vld [vmem:[#allocation3 + $0x71] sm:$0xff]
        %v4887 = vld [vmem:[#allocation3 + $0x79] sm:$0xff]
        %v4888 = vld [vmem:[#allocation3 + $0x81] sm:$0xff]
        %v4889 = vpack.c.bf16 %v4874, %v4873
        %v4890 = vpack.c.bf16 %v4876, %v4875
        %v4891 = vpack.c.bf16 %v4878, %v4877
        %v4892 = vpack.c.bf16 %v4880, %v4879
        %v4893 = vpack.c.bf16 %v4882, %v4881
        %v4894 = vpack.c.bf16 %v4884, %v4883
        %v4895 = vpack.c.bf16 %v4886, %v4885
        %v4896 = vpack.c.bf16 %v4888, %v4887
        %v4897 = vsel %vm1129, %v4889, 0
        %v4898 = vsel %vm1130, %v4890, 0
        %v4899 = vsel %vm1131, %v4891, 0
        %v4900 = vsel %vm1132, %v4892, 0
        %v4901 = vsel %vm1133, %v4893, 0
        %v4902 = vsel %vm1134, %v4894, 0
        %v4903 = vsel %vm1135, %v4895, 0
        %v4904 = vsel %vm1136, %v4896, 0
        %v4905 = vld [vmem:[%s3 + $0x80] sm:$0xf]
        %v4906 = vld [vmem:[%s3 + $0x84] sm:$0xf]
        %v4907 = vld [vmem:[%s3 + $0x88] sm:$0xf]
        %v4908 = vld [vmem:[%s3 + $0x8c] sm:$0xf]
        %v4909 = vld [vmem:[%s3 + $0x90] sm:$0xf]
        %v4910 = vld [vmem:[%s3 + $0x94] sm:$0xf]
        %v4911 = vld [vmem:[%s3 + $0x98] sm:$0xf]
        %v4912 = vld [vmem:[%s3 + $0x9c] sm:$0xf]
        %v4913 = vld [vmem:[%s3 + $0xa0] sm:$0xf]
        %v4914 = vld [vmem:[%s3 + $0xa4] sm:$0xf]
        %v4915 = vld [vmem:[%s3 + $0xa8] sm:$0xf]
        %v4916 = vld [vmem:[%s3 + $0xac] sm:$0xf]
        %v4917 = vld [vmem:[%s3 + $0xb0] sm:$0xf]
        %v4918 = vld [vmem:[%s3 + $0xb4] sm:$0xf]
        %v4919 = vld [vmem:[%s3 + $0xb8] sm:$0xf]
        %v4920 = vld [vmem:[%s3 + $0xbc] sm:$0xf]
        %v4937 = vunpack.c.l.b16 %v4905
        %v4938 = vunpack.c.l.b16 %v4906
        %v4939 = vunpack.c.l.b16 %v4907
        %v4940 = vunpack.c.l.b16 %v4908
        %v4941 = vunpack.c.l.b16 %v4909
        %v4942 = vunpack.c.l.b16 %v4910
        %v4943 = vunpack.c.l.b16 %v4911
        %v4944 = vunpack.c.l.b16 %v4912
        %v4945 = vunpack.c.l.b16 %v4913
        %v4946 = vunpack.c.l.b16 %v4914
        %v4947 = vunpack.c.l.b16 %v4915
        %v4948 = vunpack.c.l.b16 %v4916
        %v4949 = vunpack.c.l.b16 %v4917
        %v4950 = vunpack.c.l.b16 %v4918
        %v4951 = vunpack.c.l.b16 %v4919
        %v4952 = vunpack.c.l.b16 %v4920
        %v4953 = vpack.c.b16 %v4938, %v4937
        %v4954 = vpack.c.b16 %v4940, %v4939
        %v4955 = vpack.c.b16 %v4942, %v4941
        %v4956 = vpack.c.b16 %v4944, %v4943
        %v4957 = vpack.c.b16 %v4946, %v4945
        %v4958 = vpack.c.b16 %v4948, %v4947
        %v4959 = vpack.c.b16 %v4950, %v4949
        %v4960 = vpack.c.b16 %v4952, %v4951
        %4969 = vmatprep.subr.bf16.mxu0 0
        %4970 = vmatpush1.bf16.msra.mxu0 %v4960
        %4971 = vmatprep.subr.bf16.mxu0 0
        %4972 = vmatpush1.bf16.msra.mxu0 %v4959
        %4973 = vmatprep.subr.bf16.mxu0 0
        %4974 = vmatpush1.bf16.msra.mxu0 %v4958
        %4975 = vmatprep.subr.bf16.mxu0 0
        %4976 = vmatpush1.bf16.msra.mxu0 %v4957
        %4977 = vmatprep.subr.bf16.mxu0 0
        %4978 = vmatpush1.bf16.msra.mxu0 %v4956
        %4979 = vmatprep.subr.bf16.mxu0 0
        %4980 = vmatpush1.bf16.msra.mxu0 %v4955
        %4981 = vmatprep.subr.bf16.mxu0 0
        %4982 = vmatpush1.bf16.msra.mxu0 %v4954
        %4983 = vmatprep.subr.bf16.mxu0 0
        %4984 = vmatpush1.bf16.msra.mxu0 %v4953
        %4985 = vmatprep.subr.bf16.mxu0 0
        %4986 = vmatpush2.bf16.msra.mxu0 0
        %4987 = vmatprep.subr.bf16.mxu0 0
        %4988 = vmatpush2.bf16.msra.mxu0 0
        %4989 = vmatprep.subr.bf16.mxu0 0
        %4990 = vmatpush2.bf16.msra.mxu0 0
        %4991 = vmatprep.subr.bf16.mxu0 0
        %4992 = vmatpush2.bf16.msra.mxu0 0
        %4993 = vmatprep.subr.bf16.mxu0 0
        %4994 = vmatpush2.bf16.msra.mxu0 0
        %4995 = vmatprep.subr.bf16.mxu0 0
        %4996 = vmatpush2.bf16.msra.mxu0 0
        %4997 = vmatprep.subr.bf16.mxu0 0
        %4998 = vmatpush2.bf16.msra.mxu0 0
        %4999 = vmatprep.subr.bf16.mxu0 0
        %5000 = vmatpush2.bf16.msra.mxu0 0
        %5001 = vmatprep.mubr.bf16.mxu0 0
        %5002 = vmatmul.mubr.bf16.gmra.mxu0 %v4897
        %v5003 = vpop.f32.mrf.mxu0
        %v5004 = vadd.f32 0.0, %v5003
        %v5005 = vpop.f32.mrf.mxu0
        %v5006 = vpop.f32.mrf.mxu0
        %v5007 = vadd.f32 0.0, %v5006
        %v5008 = vpop.f32.mrf.mxu0
        %5009 = vmatprep.mubr.bf16.mxu0 0
        %5010 = vmatmul.mubr.bf16.gmra.mxu0 %v4898
        %v5011 = vpop.f32.mrf.mxu0
        %v5012 = vadd.f32 0.0, %v5011
        %v5013 = vpop.f32.mrf.mxu0
        %v5014 = vpop.f32.mrf.mxu0
        %v5015 = vadd.f32 0.0, %v5014
        %v5016 = vpop.f32.mrf.mxu0
        %5017 = vmatprep.mubr.bf16.mxu0 0
        %5018 = vmatmul.mubr.bf16.gmra.mxu0 %v4899
        %v5019 = vpop.f32.mrf.mxu0
        %v5020 = vadd.f32 0.0, %v5019
        %v5021 = vpop.f32.mrf.mxu0
        %v5022 = vpop.f32.mrf.mxu0
        %v5023 = vadd.f32 0.0, %v5022
        %v5024 = vpop.f32.mrf.mxu0
        %5025 = vmatprep.mubr.bf16.mxu0 0
        %5026 = vmatmul.mubr.bf16.gmra.mxu0 %v4900
        %v5027 = vpop.f32.mrf.mxu0
        %v5028 = vadd.f32 0.0, %v5027
        %v5029 = vpop.f32.mrf.mxu0
        %v5030 = vpop.f32.mrf.mxu0
        %v5031 = vadd.f32 0.0, %v5030
        %v5032 = vpop.f32.mrf.mxu0
        %5033 = vmatprep.mubr.bf16.mxu0 0
        %5034 = vmatmul.mubr.bf16.gmra.mxu0 %v4901
        %v5035 = vpop.f32.mrf.mxu0
        %v5036 = vadd.f32 0.0, %v5035
        %v5037 = vpop.f32.mrf.mxu0
        %v5038 = vpop.f32.mrf.mxu0
        %v5039 = vadd.f32 0.0, %v5038
        %v5040 = vpop.f32.mrf.mxu0
        %5041 = vmatprep.mubr.bf16.mxu0 0
        %5042 = vmatmul.mubr.bf16.gmra.mxu0 %v4902
        %v5043 = vpop.f32.mrf.mxu0
        %v5044 = vadd.f32 0.0, %v5043
        %v5045 = vpop.f32.mrf.mxu0
        %v5046 = vpop.f32.mrf.mxu0
        %v5047 = vadd.f32 0.0, %v5046
        %v5048 = vpop.f32.mrf.mxu0
        %5049 = vmatprep.mubr.bf16.mxu0 0
        %5050 = vmatmul.mubr.bf16.gmra.mxu0 %v4903
        %v5051 = vpop.f32.mrf.mxu0
        %v5052 = vadd.f32 0.0, %v5051
        %v5053 = vpop.f32.mrf.mxu0
        %v5054 = vpop.f32.mrf.mxu0
        %v5055 = vadd.f32 0.0, %v5054
        %v5056 = vpop.f32.mrf.mxu0
        %5057 = vmatprep.mubr.bf16.mxu0 0
        %5058 = vmatmul.mubr.bf16.gmra.mxu0 %v4904
        %v5059 = vpop.f32.mrf.mxu0
        %v5060 = vadd.f32 0.0, %v5059
        %v5061 = vpop.f32.mrf.mxu0
        %v5062 = vpop.f32.mrf.mxu0
        %v5063 = vadd.f32 0.0, %v5062
        %v5064 = vpop.f32.mrf.mxu0
        %5065 = vdwg.mxu0
        %v5066 = vadd.f32 %v4811, %v5004
        %v5067 = vadd.f32 %v4814, %v5007
        %v5068 = vadd.f32 %v4819, %v5012
        %v5069 = vadd.f32 %v4822, %v5015
        %v5070 = vadd.f32 %v4827, %v5020
        %v5071 = vadd.f32 %v4830, %v5023
        %v5072 = vadd.f32 %v4835, %v5028
        %v5073 = vadd.f32 %v4838, %v5031
        %v5074 = vadd.f32 %v4843, %v5036
        %v5075 = vadd.f32 %v4846, %v5039
        %v5076 = vadd.f32 %v4851, %v5044
        %v5077 = vadd.f32 %v4854, %v5047
        %v5078 = vadd.f32 %v4859, %v5052
        %v5079 = vadd.f32 %v4862, %v5055
        %v5080 = vadd.f32 %v4867, %v5060
        %v5081 = vadd.f32 %v4870, %v5063
        %v5082 = vld [vmem:[#allocation3 + $0x17] sm:$0xff]
        %v5083 = vld [vmem:[#allocation3 + $0x1f] sm:$0xff]
        %v5084 = vld [vmem:[#allocation3 + $0x27] sm:$0xff]
        %v5085 = vld [vmem:[#allocation3 + $0x2f] sm:$0xff]
        %v5086 = vld [vmem:[#allocation3 + $0x37] sm:$0xff]
        %v5087 = vld [vmem:[#allocation3 + $0x3f] sm:$0xff]
        %v5088 = vld [vmem:[#allocation3 + $0x47] sm:$0xff]
        %v5089 = vld [vmem:[#allocation3 + $0x4f] sm:$0xff]
        %v5090 = vld [vmem:[#allocation3 + $0x57] sm:$0xff]
        %v5091 = vld [vmem:[#allocation3 + $0x5f] sm:$0xff]
        %v5092 = vld [vmem:[#allocation3 + $0x67] sm:$0xff]
        %v5093 = vld [vmem:[#allocation3 + $0x6f] sm:$0xff]
        %v5094 = vld [vmem:[#allocation3 + $0x77] sm:$0xff]
        %v5095 = vld [vmem:[#allocation3 + $0x7f] sm:$0xff]
        %v5096 = vld [vmem:[#allocation3 + $0x87] sm:$0xff]
        %v5097 = vld [vmem:[#allocation3 + $0x8f] sm:$0xff]
        %v5098 = vpack.c.bf16 %v5083, %v5082
        %v5099 = vpack.c.bf16 %v5085, %v5084
        %v5100 = vpack.c.bf16 %v5087, %v5086
        %v5101 = vpack.c.bf16 %v5089, %v5088
        %v5102 = vpack.c.bf16 %v5091, %v5090
        %v5103 = vpack.c.bf16 %v5093, %v5092
        %v5104 = vpack.c.bf16 %v5095, %v5094
        %v5105 = vpack.c.bf16 %v5097, %v5096
        %v5106 = vsel %vm655, %v5098, 0
        %v5107 = vsel %vm656, %v5099, 0
        %v5108 = vsel %vm657, %v5100, 0
        %v5109 = vsel %vm658, %v5101, 0
        %v5110 = vsel %vm659, %v5102, 0
        %v5111 = vsel %vm660, %v5103, 0
        %v5112 = vsel %vm661, %v5104, 0
        %v5113 = vsel %vm662, %v5105, 0
        %v5114 = vld [vmem:[%s3 + $0xc0] sm:$0xf]
        %v5115 = vld [vmem:[%s3 + $0xc4] sm:$0xf]
        %v5116 = vld [vmem:[%s3 + $0xc8] sm:$0xf]
        %v5117 = vld [vmem:[%s3 + $0xcc] sm:$0xf]
        %v5118 = vld [vmem:[%s3 + $0xd0] sm:$0xf]
        %v5119 = vld [vmem:[%s3 + $0xd4] sm:$0xf]
        %v5120 = vld [vmem:[%s3 + $0xd8] sm:$0xf]
        %v5121 = vld [vmem:[%s3 + $0xdc] sm:$0xf]
        %v5122 = vld [vmem:[%s3 + $0xe0] sm:$0xf]
        %v5123 = vld [vmem:[%s3 + $0xe4] sm:$0xf]
        %v5124 = vld [vmem:[%s3 + $0xe8] sm:$0xf]
        %v5125 = vld [vmem:[%s3 + $0xec] sm:$0xf]
        %v5126 = vld [vmem:[%s3 + $0xf0] sm:$0xf]
        %v5127 = vld [vmem:[%s3 + $0xf4] sm:$0xf]
        %v5128 = vld [vmem:[%s3 + $0xf8] sm:$0xf]
        %v5129 = vld [vmem:[%s3 + $0xfc] sm:$0xf]
        %v5146 = vunpack.c.l.b16 %v5114
        %v5147 = vunpack.c.l.b16 %v5115
        %v5148 = vunpack.c.l.b16 %v5116
        %v5149 = vunpack.c.l.b16 %v5117
        %v5150 = vunpack.c.l.b16 %v5118
        %v5151 = vunpack.c.l.b16 %v5119
        %v5152 = vunpack.c.l.b16 %v5120
        %v5153 = vunpack.c.l.b16 %v5121
        %v5154 = vunpack.c.l.b16 %v5122
        %v5155 = vunpack.c.l.b16 %v5123
        %v5156 = vunpack.c.l.b16 %v5124
        %v5157 = vunpack.c.l.b16 %v5125
        %v5158 = vunpack.c.l.b16 %v5126
        %v5159 = vunpack.c.l.b16 %v5127
        %v5160 = vunpack.c.l.b16 %v5128
        %v5161 = vunpack.c.l.b16 %v5129
        %v5162 = vpack.c.b16 %v5147, %v5146
        %v5163 = vpack.c.b16 %v5149, %v5148
        %v5164 = vpack.c.b16 %v5151, %v5150
        %v5165 = vpack.c.b16 %v5153, %v5152
        %v5166 = vpack.c.b16 %v5155, %v5154
        %v5167 = vpack.c.b16 %v5157, %v5156
        %v5168 = vpack.c.b16 %v5159, %v5158
        %v5169 = vpack.c.b16 %v5161, %v5160
        %5178 = vmatprep.subr.bf16.mxu0 0
        %5179 = vmatpush1.bf16.msra.mxu0 %v5169
        %5180 = vmatprep.subr.bf16.mxu0 0
        %5181 = vmatpush1.bf16.msra.mxu0 %v5168
        %5182 = vmatprep.subr.bf16.mxu0 0
        %5183 = vmatpush1.bf16.msra.mxu0 %v5167
        %5184 = vmatprep.subr.bf16.mxu0 0
        %5185 = vmatpush1.bf16.msra.mxu0 %v5166
        %5186 = vmatprep.subr.bf16.mxu0 0
        %5187 = vmatpush1.bf16.msra.mxu0 %v5165
        %5188 = vmatprep.subr.bf16.mxu0 0
        %5189 = vmatpush1.bf16.msra.mxu0 %v5164
        %5190 = vmatprep.subr.bf16.mxu0 0
        %5191 = vmatpush1.bf16.msra.mxu0 %v5163
        %5192 = vmatprep.subr.bf16.mxu0 0
        %5193 = vmatpush1.bf16.msra.mxu0 %v5162
        %5194 = vmatprep.subr.bf16.mxu0 0
        %5195 = vmatpush2.bf16.msra.mxu0 0
        %5196 = vmatprep.subr.bf16.mxu0 0
        %5197 = vmatpush2.bf16.msra.mxu0 0
        %5198 = vmatprep.subr.bf16.mxu0 0
        %5199 = vmatpush2.bf16.msra.mxu0 0
        %5200 = vmatprep.subr.bf16.mxu0 0
        %5201 = vmatpush2.bf16.msra.mxu0 0
        %5202 = vmatprep.subr.bf16.mxu0 0
        %5203 = vmatpush2.bf16.msra.mxu0 0
        %5204 = vmatprep.subr.bf16.mxu0 0
        %5205 = vmatpush2.bf16.msra.mxu0 0
        %5206 = vmatprep.subr.bf16.mxu0 0
        %5207 = vmatpush2.bf16.msra.mxu0 0
        %5208 = vmatprep.subr.bf16.mxu0 0
        %5209 = vmatpush2.bf16.msra.mxu0 0
        %5210 = vmatprep.mubr.bf16.mxu0 0
        %5211 = vmatmul.mubr.bf16.gmra.mxu0 %v5106
        %v5212 = vpop.f32.mrf.mxu0
        %v5213 = vadd.f32 0.0, %v5212
        %v5214 = vpop.f32.mrf.mxu0
        %v5215 = vpop.f32.mrf.mxu0
        %v5216 = vadd.f32 0.0, %v5215
        %v5217 = vpop.f32.mrf.mxu0
        %5218 = vmatprep.mubr.bf16.mxu0 0
        %5219 = vmatmul.mubr.bf16.gmra.mxu0 %v5107
        %v5220 = vpop.f32.mrf.mxu0
        %v5221 = vadd.f32 0.0, %v5220
        %v5222 = vpop.f32.mrf.mxu0
        %v5223 = vpop.f32.mrf.mxu0
        %v5224 = vadd.f32 0.0, %v5223
        %v5225 = vpop.f32.mrf.mxu0
        %5226 = vmatprep.mubr.bf16.mxu0 0
        %5227 = vmatmul.mubr.bf16.gmra.mxu0 %v5108
        %v5228 = vpop.f32.mrf.mxu0
        %v5229 = vadd.f32 0.0, %v5228
        %v5230 = vpop.f32.mrf.mxu0
        %v5231 = vpop.f32.mrf.mxu0
        %v5232 = vadd.f32 0.0, %v5231
        %v5233 = vpop.f32.mrf.mxu0
        %5234 = vmatprep.mubr.bf16.mxu0 0
        %5235 = vmatmul.mubr.bf16.gmra.mxu0 %v5109
        %v5236 = vpop.f32.mrf.mxu0
        %v5237 = vadd.f32 0.0, %v5236
        %v5238 = vpop.f32.mrf.mxu0
        %v5239 = vpop.f32.mrf.mxu0
        %v5240 = vadd.f32 0.0, %v5239
        %v5241 = vpop.f32.mrf.mxu0
        %5242 = vmatprep.mubr.bf16.mxu0 0
        %5243 = vmatmul.mubr.bf16.gmra.mxu0 %v5110
        %v5244 = vpop.f32.mrf.mxu0
        %v5245 = vadd.f32 0.0, %v5244
        %v5246 = vpop.f32.mrf.mxu0
        %v5247 = vpop.f32.mrf.mxu0
        %v5248 = vadd.f32 0.0, %v5247
        %v5249 = vpop.f32.mrf.mxu0
        %5250 = vmatprep.mubr.bf16.mxu0 0
        %5251 = vmatmul.mubr.bf16.gmra.mxu0 %v5111
        %v5252 = vpop.f32.mrf.mxu0
        %v5253 = vadd.f32 0.0, %v5252
        %v5254 = vpop.f32.mrf.mxu0
        %v5255 = vpop.f32.mrf.mxu0
        %v5256 = vadd.f32 0.0, %v5255
        %v5257 = vpop.f32.mrf.mxu0
        %5258 = vmatprep.mubr.bf16.mxu0 0
        %5259 = vmatmul.mubr.bf16.gmra.mxu0 %v5112
        %v5260 = vpop.f32.mrf.mxu0
        %v5261 = vadd.f32 0.0, %v5260
        %v5262 = vpop.f32.mrf.mxu0
        %v5263 = vpop.f32.mrf.mxu0
        %v5264 = vadd.f32 0.0, %v5263
        %v5265 = vpop.f32.mrf.mxu0
        %5266 = vmatprep.mubr.bf16.mxu0 0
        %5267 = vmatmul.mubr.bf16.gmra.mxu0 %v5113
        %v5268 = vpop.f32.mrf.mxu0
        %v5269 = vadd.f32 0.0, %v5268
        %v5270 = vpop.f32.mrf.mxu0
        %v5271 = vpop.f32.mrf.mxu0
        %v5272 = vadd.f32 0.0, %v5271
        %v5273 = vpop.f32.mrf.mxu0
        %5274 = vdwg.mxu0
        %v5275 = vadd.f32 %v5066, %v5213
        %v5276 = vadd.f32 %v5067, %v5216
        %v5277 = vadd.f32 %v5068, %v5221
        %v5278 = vadd.f32 %v5069, %v5224
        %v5279 = vadd.f32 %v5070, %v5229
        %v5280 = vadd.f32 %v5071, %v5232
        %v5281 = vadd.f32 %v5072, %v5237
        %v5282 = vadd.f32 %v5073, %v5240
        %v5283 = vadd.f32 %v5074, %v5245
        %v5284 = vadd.f32 %v5075, %v5248
        %v5285 = vadd.f32 %v5076, %v5253
        %v5286 = vadd.f32 %v5077, %v5256
        %v5287 = vadd.f32 %v5078, %v5261
        %v5288 = vadd.f32 %v5079, %v5264
        %v5289 = vadd.f32 %v5080, %v5269
        %v5290 = vadd.f32 %v5081, %v5272
        %v5291 = vld [vmem:[#allocation3 + $0x18] sm:$0xff]
        %v5292 = vld [vmem:[#allocation3 + $0x20] sm:$0xff]
        %v5293 = vld [vmem:[#allocation3 + $0x28] sm:$0xff]
        %v5294 = vld [vmem:[#allocation3 + $0x30] sm:$0xff]
        %v5295 = vld [vmem:[#allocation3 + $0x38] sm:$0xff]
        %v5296 = vld [vmem:[#allocation3 + $0x40] sm:$0xff]
        %v5297 = vld [vmem:[#allocation3 + $0x48] sm:$0xff]
        %v5298 = vld [vmem:[#allocation3 + $0x50] sm:$0xff]
        %v5299 = vld [vmem:[#allocation3 + $0x58] sm:$0xff]
        %v5300 = vld [vmem:[#allocation3 + $0x60] sm:$0xff]
        %v5301 = vld [vmem:[#allocation3 + $0x68] sm:$0xff]
        %v5302 = vld [vmem:[#allocation3 + $0x70] sm:$0xff]
        %v5303 = vld [vmem:[#allocation3 + $0x78] sm:$0xff]
        %v5304 = vld [vmem:[#allocation3 + $0x80] sm:$0xff]
        %v5305 = vld [vmem:[#allocation3 + $0x88] sm:$0xff]
        %v5306 = vld [vmem:[#allocation3 + $0x90] sm:$0xff]
        %v5307 = vpack.c.bf16 %v5292, %v5291
        %v5308 = vpack.c.bf16 %v5294, %v5293
        %v5309 = vpack.c.bf16 %v5296, %v5295
        %v5310 = vpack.c.bf16 %v5298, %v5297
        %v5311 = vpack.c.bf16 %v5300, %v5299
        %v5312 = vpack.c.bf16 %v5302, %v5301
        %v5313 = vpack.c.bf16 %v5304, %v5303
        %v5314 = vpack.c.bf16 %v5306, %v5305
        %v5315 = vld [vmem:[%s3 + $0x100] sm:$0xf]
        %v5316 = vld [vmem:[%s3 + $0x104] sm:$0xf]
        %v5317 = vld [vmem:[%s3 + $0x108] sm:$0xf]
        %v5318 = vld [vmem:[%s3 + $0x10c] sm:$0xf]
        %v5319 = vld [vmem:[%s3 + $0x110] sm:$0xf]
        %v5320 = vld [vmem:[%s3 + $0x114] sm:$0xf]
        %v5321 = vld [vmem:[%s3 + $0x118] sm:$0xf]
        %v5322 = vld [vmem:[%s3 + $0x11c] sm:$0xf]
        %v5323 = vld [vmem:[%s3 + $0x120] sm:$0xf]
        %v5324 = vld [vmem:[%s3 + $0x124] sm:$0xf]
        %v5325 = vld [vmem:[%s3 + $0x128] sm:$0xf]
        %v5326 = vld [vmem:[%s3 + $0x12c] sm:$0xf]
        %v5327 = vld [vmem:[%s3 + $0x130] sm:$0xf]
        %v5328 = vld [vmem:[%s3 + $0x134] sm:$0xf]
        %v5329 = vld [vmem:[%s3 + $0x138] sm:$0xf]
        %v5330 = vld [vmem:[%s3 + $0x13c] sm:$0xf]
        %v5347 = vunpack.c.l.b16 %v5315
        %v5348 = vunpack.c.l.b16 %v5316
        %v5349 = vunpack.c.l.b16 %v5317
        %v5350 = vunpack.c.l.b16 %v5318
        %v5351 = vunpack.c.l.b16 %v5319
        %v5352 = vunpack.c.l.b16 %v5320
        %v5353 = vunpack.c.l.b16 %v5321
        %v5354 = vunpack.c.l.b16 %v5322
        %v5355 = vunpack.c.l.b16 %v5323
        %v5356 = vunpack.c.l.b16 %v5324
        %v5357 = vunpack.c.l.b16 %v5325
        %v5358 = vunpack.c.l.b16 %v5326
        %v5359 = vunpack.c.l.b16 %v5327
        %v5360 = vunpack.c.l.b16 %v5328
        %v5361 = vunpack.c.l.b16 %v5329
        %v5362 = vunpack.c.l.b16 %v5330
        %v5363 = vpack.c.b16 %v5348, %v5347
        %v5364 = vpack.c.b16 %v5350, %v5349
        %v5365 = vpack.c.b16 %v5352, %v5351
        %v5366 = vpack.c.b16 %v5354, %v5353
        %v5367 = vpack.c.b16 %v5356, %v5355
        %v5368 = vpack.c.b16 %v5358, %v5357
        %v5369 = vpack.c.b16 %v5360, %v5359
        %v5370 = vpack.c.b16 %v5362, %v5361
        %5379 = vmatprep.subr.bf16.mxu0 0
        %5380 = vmatpush1.bf16.msra.mxu0 %v5370
        %5381 = vmatprep.subr.bf16.mxu0 0
        %5382 = vmatpush1.bf16.msra.mxu0 %v5369
        %5383 = vmatprep.subr.bf16.mxu0 0
        %5384 = vmatpush1.bf16.msra.mxu0 %v5368
        %5385 = vmatprep.subr.bf16.mxu0 0
        %5386 = vmatpush1.bf16.msra.mxu0 %v5367
        %5387 = vmatprep.subr.bf16.mxu0 0
        %5388 = vmatpush1.bf16.msra.mxu0 %v5366
        %5389 = vmatprep.subr.bf16.mxu0 0
        %5390 = vmatpush1.bf16.msra.mxu0 %v5365
        %5391 = vmatprep.subr.bf16.mxu0 0
        %5392 = vmatpush1.bf16.msra.mxu0 %v5364
        %5393 = vmatprep.subr.bf16.mxu0 0
        %5394 = vmatpush1.bf16.msra.mxu0 %v5363
        %5395 = vmatprep.subr.bf16.mxu0 0
        %5396 = vmatpush2.bf16.msra.mxu0 0
        %5397 = vmatprep.subr.bf16.mxu0 0
        %5398 = vmatpush2.bf16.msra.mxu0 0
        %5399 = vmatprep.subr.bf16.mxu0 0
        %5400 = vmatpush2.bf16.msra.mxu0 0
        %5401 = vmatprep.subr.bf16.mxu0 0
        %5402 = vmatpush2.bf16.msra.mxu0 0
        %5403 = vmatprep.subr.bf16.mxu0 0
        %5404 = vmatpush2.bf16.msra.mxu0 0
        %5405 = vmatprep.subr.bf16.mxu0 0
        %5406 = vmatpush2.bf16.msra.mxu0 0
        %5407 = vmatprep.subr.bf16.mxu0 0
        %5408 = vmatpush2.bf16.msra.mxu0 0
        %5409 = vmatprep.subr.bf16.mxu0 0
        %5410 = vmatpush2.bf16.msra.mxu0 0
        %5411 = vmatprep.mubr.bf16.mxu0 0
        %5412 = vmatmul.mubr.bf16.gmra.mxu0 %v5307
        %v5413 = vpop.f32.mrf.mxu0
        %v5414 = vadd.f32 0.0, %v5413
        %v5415 = vpop.f32.mrf.mxu0
        %v5416 = vpop.f32.mrf.mxu0
        %v5417 = vadd.f32 0.0, %v5416
        %v5418 = vpop.f32.mrf.mxu0
        %5419 = vmatprep.mubr.bf16.mxu0 0
        %5420 = vmatmul.mubr.bf16.gmra.mxu0 %v5308
        %v5421 = vpop.f32.mrf.mxu0
        %v5422 = vadd.f32 0.0, %v5421
        %v5423 = vpop.f32.mrf.mxu0
        %v5424 = vpop.f32.mrf.mxu0
        %v5425 = vadd.f32 0.0, %v5424
        %v5426 = vpop.f32.mrf.mxu0
        %5427 = vmatprep.mubr.bf16.mxu0 0
        %5428 = vmatmul.mubr.bf16.gmra.mxu0 %v5309
        %v5429 = vpop.f32.mrf.mxu0
        %v5430 = vadd.f32 0.0, %v5429
        %v5431 = vpop.f32.mrf.mxu0
        %v5432 = vpop.f32.mrf.mxu0
        %v5433 = vadd.f32 0.0, %v5432
        %v5434 = vpop.f32.mrf.mxu0
        %5435 = vmatprep.mubr.bf16.mxu0 0
        %5436 = vmatmul.mubr.bf16.gmra.mxu0 %v5310
        %v5437 = vpop.f32.mrf.mxu0
        %v5438 = vadd.f32 0.0, %v5437
        %v5439 = vpop.f32.mrf.mxu0
        %v5440 = vpop.f32.mrf.mxu0
        %v5441 = vadd.f32 0.0, %v5440
        %v5442 = vpop.f32.mrf.mxu0
        %5443 = vmatprep.mubr.bf16.mxu0 0
        %5444 = vmatmul.mubr.bf16.gmra.mxu0 %v5311
        %v5445 = vpop.f32.mrf.mxu0
        %v5446 = vadd.f32 0.0, %v5445
        %v5447 = vpop.f32.mrf.mxu0
        %v5448 = vpop.f32.mrf.mxu0
        %v5449 = vadd.f32 0.0, %v5448
        %v5450 = vpop.f32.mrf.mxu0
        %5451 = vmatprep.mubr.bf16.mxu0 0
        %5452 = vmatmul.mubr.bf16.gmra.mxu0 %v5312
        %v5453 = vpop.f32.mrf.mxu0
        %v5454 = vadd.f32 0.0, %v5453
        %v5455 = vpop.f32.mrf.mxu0
        %v5456 = vpop.f32.mrf.mxu0
        %v5457 = vadd.f32 0.0, %v5456
        %v5458 = vpop.f32.mrf.mxu0
        %5459 = vmatprep.mubr.bf16.mxu0 0
        %5460 = vmatmul.mubr.bf16.gmra.mxu0 %v5313
        %v5461 = vpop.f32.mrf.mxu0
        %v5462 = vadd.f32 0.0, %v5461
        %v5463 = vpop.f32.mrf.mxu0
        %v5464 = vpop.f32.mrf.mxu0
        %v5465 = vadd.f32 0.0, %v5464
        %v5466 = vpop.f32.mrf.mxu0
        %5467 = vmatprep.mubr.bf16.mxu0 0
        %5468 = vmatmul.mubr.bf16.gmra.mxu0 %v5314
        %v5469 = vpop.f32.mrf.mxu0
        %v5470 = vadd.f32 0.0, %v5469
        %v5471 = vpop.f32.mrf.mxu0
        %v5472 = vpop.f32.mrf.mxu0
        %v5473 = vadd.f32 0.0, %v5472
        %v5474 = vpop.f32.mrf.mxu0
        %5475 = vdwg.mxu0
        %v5476 = vadd.f32 %v5275, %v5414
        %v5477 = vadd.f32 %v5276, %v5417
        %v5478 = vadd.f32 %v5277, %v5422
        %v5479 = vadd.f32 %v5278, %v5425
        %v5480 = vadd.f32 %v5279, %v5430
        %v5481 = vadd.f32 %v5280, %v5433
        %v5482 = vadd.f32 %v5281, %v5438
        %v5483 = vadd.f32 %v5282, %v5441
        %v5484 = vadd.f32 %v5283, %v5446
        %v5485 = vadd.f32 %v5284, %v5449
        %v5486 = vadd.f32 %v5285, %v5454
        %v5487 = vadd.f32 %v5286, %v5457
        %v5488 = vadd.f32 %v5287, %v5462
        %v5489 = vadd.f32 %v5288, %v5465
        %v5490 = vadd.f32 %v5289, %v5470
        %v5491 = vadd.f32 %v5290, %v5473
        %v5492 = vld [vmem:[#allocation3 + $0x19] sm:$0xff]
        %v5493 = vld [vmem:[#allocation3 + $0x21] sm:$0xff]
        %v5494 = vld [vmem:[#allocation3 + $0x29] sm:$0xff]
        %v5495 = vld [vmem:[#allocation3 + $0x31] sm:$0xff]
        %v5496 = vld [vmem:[#allocation3 + $0x39] sm:$0xff]
        %v5497 = vld [vmem:[#allocation3 + $0x41] sm:$0xff]
        %v5498 = vld [vmem:[#allocation3 + $0x49] sm:$0xff]
        %v5499 = vld [vmem:[#allocation3 + $0x51] sm:$0xff]
        %v5500 = vld [vmem:[#allocation3 + $0x59] sm:$0xff]
        %v5501 = vld [vmem:[#allocation3 + $0x61] sm:$0xff]
        %v5502 = vld [vmem:[#allocation3 + $0x69] sm:$0xff]
        %v5503 = vld [vmem:[#allocation3 + $0x71] sm:$0xff]
        %v5504 = vld [vmem:[#allocation3 + $0x79] sm:$0xff]
        %v5505 = vld [vmem:[#allocation3 + $0x81] sm:$0xff]
        %v5506 = vld [vmem:[#allocation3 + $0x89] sm:$0xff]
        %v5507 = vld [vmem:[#allocation3 + $0x91] sm:$0xff]
        %v5508 = vpack.c.bf16 %v5493, %v5492
        %v5509 = vpack.c.bf16 %v5495, %v5494
        %v5510 = vpack.c.bf16 %v5497, %v5496
        %v5511 = vpack.c.bf16 %v5499, %v5498
        %v5512 = vpack.c.bf16 %v5501, %v5500
        %v5513 = vpack.c.bf16 %v5503, %v5502
        %v5514 = vpack.c.bf16 %v5505, %v5504
        %v5515 = vpack.c.bf16 %v5507, %v5506
        %v5516 = vsel %vm1129, %v5508, 0
        %v5517 = vsel %vm1130, %v5509, 0
        %v5518 = vsel %vm1131, %v5510, 0
        %v5519 = vsel %vm1132, %v5511, 0
        %v5520 = vsel %vm1133, %v5512, 0
        %v5521 = vsel %vm1134, %v5513, 0
        %v5522 = vsel %vm1135, %v5514, 0
        %v5523 = vsel %vm1136, %v5515, 0
        %v5524 = vld [vmem:[%s3 + $0x140] sm:$0xf]
        %v5525 = vld [vmem:[%s3 + $0x144] sm:$0xf]
        %v5526 = vld [vmem:[%s3 + $0x148] sm:$0xf]
        %v5527 = vld [vmem:[%s3 + $0x14c] sm:$0xf]
        %v5528 = vld [vmem:[%s3 + $0x150] sm:$0xf]
        %v5529 = vld [vmem:[%s3 + $0x154] sm:$0xf]
        %v5530 = vld [vmem:[%s3 + $0x158] sm:$0xf]
        %v5531 = vld [vmem:[%s3 + $0x15c] sm:$0xf]
        %v5532 = vld [vmem:[%s3 + $0x160] sm:$0xf]
        %v5533 = vld [vmem:[%s3 + $0x164] sm:$0xf]
        %v5534 = vld [vmem:[%s3 + $0x168] sm:$0xf]
        %v5535 = vld [vmem:[%s3 + $0x16c] sm:$0xf]
        %v5536 = vld [vmem:[%s3 + $0x170] sm:$0xf]
        %v5537 = vld [vmem:[%s3 + $0x174] sm:$0xf]
        %v5538 = vld [vmem:[%s3 + $0x178] sm:$0xf]
        %v5539 = vld [vmem:[%s3 + $0x17c] sm:$0xf]
        %v5556 = vunpack.c.l.b16 %v5524
        %v5557 = vunpack.c.l.b16 %v5525
        %v5558 = vunpack.c.l.b16 %v5526
        %v5559 = vunpack.c.l.b16 %v5527
        %v5560 = vunpack.c.l.b16 %v5528
        %v5561 = vunpack.c.l.b16 %v5529
        %v5562 = vunpack.c.l.b16 %v5530
        %v5563 = vunpack.c.l.b16 %v5531
        %v5564 = vunpack.c.l.b16 %v5532
        %v5565 = vunpack.c.l.b16 %v5533
        %v5566 = vunpack.c.l.b16 %v5534
        %v5567 = vunpack.c.l.b16 %v5535
        %v5568 = vunpack.c.l.b16 %v5536
        %v5569 = vunpack.c.l.b16 %v5537
        %v5570 = vunpack.c.l.b16 %v5538
        %v5571 = vunpack.c.l.b16 %v5539
        %v5572 = vpack.c.b16 %v5557, %v5556
        %v5573 = vpack.c.b16 %v5559, %v5558
        %v5574 = vpack.c.b16 %v5561, %v5560
        %v5575 = vpack.c.b16 %v5563, %v5562
        %v5576 = vpack.c.b16 %v5565, %v5564
        %v5577 = vpack.c.b16 %v5567, %v5566
        %v5578 = vpack.c.b16 %v5569, %v5568
        %v5579 = vpack.c.b16 %v5571, %v5570
        %5588 = vmatprep.subr.bf16.mxu0 0
        %5589 = vmatpush1.bf16.msra.mxu0 %v5579
        %5590 = vmatprep.subr.bf16.mxu0 0
        %5591 = vmatpush1.bf16.msra.mxu0 %v5578
        %5592 = vmatprep.subr.bf16.mxu0 0
        %5593 = vmatpush1.bf16.msra.mxu0 %v5577
        %5594 = vmatprep.subr.bf16.mxu0 0
        %5595 = vmatpush1.bf16.msra.mxu0 %v5576
        %5596 = vmatprep.subr.bf16.mxu0 0
        %5597 = vmatpush1.bf16.msra.mxu0 %v5575
        %5598 = vmatprep.subr.bf16.mxu0 0
        %5599 = vmatpush1.bf16.msra.mxu0 %v5574
        %5600 = vmatprep.subr.bf16.mxu0 0
        %5601 = vmatpush1.bf16.msra.mxu0 %v5573
        %5602 = vmatprep.subr.bf16.mxu0 0
        %5603 = vmatpush1.bf16.msra.mxu0 %v5572
        %5604 = vmatprep.subr.bf16.mxu0 0
        %5605 = vmatpush2.bf16.msra.mxu0 0
        %5606 = vmatprep.subr.bf16.mxu0 0
        %5607 = vmatpush2.bf16.msra.mxu0 0
        %5608 = vmatprep.subr.bf16.mxu0 0
        %5609 = vmatpush2.bf16.msra.mxu0 0
        %5610 = vmatprep.subr.bf16.mxu0 0
        %5611 = vmatpush2.bf16.msra.mxu0 0
        %5612 = vmatprep.subr.bf16.mxu0 0
        %5613 = vmatpush2.bf16.msra.mxu0 0
        %5614 = vmatprep.subr.bf16.mxu0 0
        %5615 = vmatpush2.bf16.msra.mxu0 0
        %5616 = vmatprep.subr.bf16.mxu0 0
        %5617 = vmatpush2.bf16.msra.mxu0 0
        %5618 = vmatprep.subr.bf16.mxu0 0
        %5619 = vmatpush2.bf16.msra.mxu0 0
        %5620 = vmatprep.mubr.bf16.mxu0 0
        %5621 = vmatmul.mubr.bf16.gmra.mxu0 %v5516
        %v5622 = vpop.f32.mrf.mxu0
        %v5623 = vadd.f32 0.0, %v5622
        %v5624 = vpop.f32.mrf.mxu0
        %v5625 = vpop.f32.mrf.mxu0
        %v5626 = vadd.f32 0.0, %v5625
        %v5627 = vpop.f32.mrf.mxu0
        %5628 = vmatprep.mubr.bf16.mxu0 0
        %5629 = vmatmul.mubr.bf16.gmra.mxu0 %v5517
        %v5630 = vpop.f32.mrf.mxu0
        %v5631 = vadd.f32 0.0, %v5630
        %v5632 = vpop.f32.mrf.mxu0
        %v5633 = vpop.f32.mrf.mxu0
        %v5634 = vadd.f32 0.0, %v5633
        %v5635 = vpop.f32.mrf.mxu0
        %5636 = vmatprep.mubr.bf16.mxu0 0
        %5637 = vmatmul.mubr.bf16.gmra.mxu0 %v5518
        %v5638 = vpop.f32.mrf.mxu0
        %v5639 = vadd.f32 0.0, %v5638
        %v5640 = vpop.f32.mrf.mxu0
        %v5641 = vpop.f32.mrf.mxu0
        %v5642 = vadd.f32 0.0, %v5641
        %v5643 = vpop.f32.mrf.mxu0
        %5644 = vmatprep.mubr.bf16.mxu0 0
        %5645 = vmatmul.mubr.bf16.gmra.mxu0 %v5519
        %v5646 = vpop.f32.mrf.mxu0
        %v5647 = vadd.f32 0.0, %v5646
        %v5648 = vpop.f32.mrf.mxu0
        %v5649 = vpop.f32.mrf.mxu0
        %v5650 = vadd.f32 0.0, %v5649
        %v5651 = vpop.f32.mrf.mxu0
        %5652 = vmatprep.mubr.bf16.mxu0 0
        %5653 = vmatmul.mubr.bf16.gmra.mxu0 %v5520
        %v5654 = vpop.f32.mrf.mxu0
        %v5655 = vadd.f32 0.0, %v5654
        %v5656 = vpop.f32.mrf.mxu0
        %v5657 = vpop.f32.mrf.mxu0
        %v5658 = vadd.f32 0.0, %v5657
        %v5659 = vpop.f32.mrf.mxu0
        %5660 = vmatprep.mubr.bf16.mxu0 0
        %5661 = vmatmul.mubr.bf16.gmra.mxu0 %v5521
        %v5662 = vpop.f32.mrf.mxu0
        %v5663 = vadd.f32 0.0, %v5662
        %v5664 = vpop.f32.mrf.mxu0
        %v5665 = vpop.f32.mrf.mxu0
        %v5666 = vadd.f32 0.0, %v5665
        %v5667 = vpop.f32.mrf.mxu0
        %5668 = vmatprep.mubr.bf16.mxu0 0
        %5669 = vmatmul.mubr.bf16.gmra.mxu0 %v5522
        %v5670 = vpop.f32.mrf.mxu0
        %v5671 = vadd.f32 0.0, %v5670
        %v5672 = vpop.f32.mrf.mxu0
        %v5673 = vpop.f32.mrf.mxu0
        %v5674 = vadd.f32 0.0, %v5673
        %v5675 = vpop.f32.mrf.mxu0
        %5676 = vmatprep.mubr.bf16.mxu0 0
        %5677 = vmatmul.mubr.bf16.gmra.mxu0 %v5523
        %v5678 = vpop.f32.mrf.mxu0
        %v5679 = vadd.f32 0.0, %v5678
        %v5680 = vpop.f32.mrf.mxu0
        %v5681 = vpop.f32.mrf.mxu0
        %v5682 = vadd.f32 0.0, %v5681
        %v5683 = vpop.f32.mrf.mxu0
        %5684 = vdwg.mxu0
        %v5685 = vadd.f32 %v5476, %v5623
        %v5686 = vadd.f32 %v5477, %v5626
        %v5687 = vadd.f32 %v5478, %v5631
        %v5688 = vadd.f32 %v5479, %v5634
        %v5689 = vadd.f32 %v5480, %v5639
        %v5690 = vadd.f32 %v5481, %v5642
        %v5691 = vadd.f32 %v5482, %v5647
        %v5692 = vadd.f32 %v5483, %v5650
        %v5693 = vadd.f32 %v5484, %v5655
        %v5694 = vadd.f32 %v5485, %v5658
        %v5695 = vadd.f32 %v5486, %v5663
        %v5696 = vadd.f32 %v5487, %v5666
        %v5697 = vadd.f32 %v5488, %v5671
        %v5698 = vadd.f32 %v5489, %v5674
        %v5699 = vadd.f32 %v5490, %v5679
        %v5700 = vadd.f32 %v5491, %v5682
        %v5701 = vld [vmem:[#allocation3 + $0x27] sm:$0xff]
        %v5702 = vld [vmem:[#allocation3 + $0x2f] sm:$0xff]
        %v5703 = vld [vmem:[#allocation3 + $0x37] sm:$0xff]
        %v5704 = vld [vmem:[#allocation3 + $0x3f] sm:$0xff]
        %v5705 = vld [vmem:[#allocation3 + $0x47] sm:$0xff]
        %v5706 = vld [vmem:[#allocation3 + $0x4f] sm:$0xff]
        %v5707 = vld [vmem:[#allocation3 + $0x57] sm:$0xff]
        %v5708 = vld [vmem:[#allocation3 + $0x5f] sm:$0xff]
        %v5709 = vld [vmem:[#allocation3 + $0x67] sm:$0xff]
        %v5710 = vld [vmem:[#allocation3 + $0x6f] sm:$0xff]
        %v5711 = vld [vmem:[#allocation3 + $0x77] sm:$0xff]
        %v5712 = vld [vmem:[#allocation3 + $0x7f] sm:$0xff]
        %v5713 = vld [vmem:[#allocation3 + $0x87] sm:$0xff]
        %v5714 = vld [vmem:[#allocation3 + $0x8f] sm:$0xff]
        %v5715 = vld [vmem:[#allocation3 + $0x97] sm:$0xff]
        %v5716 = vld [vmem:[#allocation3 + $0x9f] sm:$0xff]
        %v5717 = vpack.c.bf16 %v5702, %v5701
        %v5718 = vpack.c.bf16 %v5704, %v5703
        %v5719 = vpack.c.bf16 %v5706, %v5705
        %v5720 = vpack.c.bf16 %v5708, %v5707
        %v5721 = vpack.c.bf16 %v5710, %v5709
        %v5722 = vpack.c.bf16 %v5712, %v5711
        %v5723 = vpack.c.bf16 %v5714, %v5713
        %v5724 = vpack.c.bf16 %v5716, %v5715
        %v5725 = vsel %vm655, %v5717, 0
        %v5726 = vsel %vm656, %v5718, 0
        %v5727 = vsel %vm657, %v5719, 0
        %v5728 = vsel %vm658, %v5720, 0
        %v5729 = vsel %vm659, %v5721, 0
        %v5730 = vsel %vm660, %v5722, 0
        %v5731 = vsel %vm661, %v5723, 0
        %v5732 = vsel %vm662, %v5724, 0
        %v5733 = vld [vmem:[%s3 + $0x180] sm:$0xf]
        %v5734 = vld [vmem:[%s3 + $0x184] sm:$0xf]
        %v5735 = vld [vmem:[%s3 + $0x188] sm:$0xf]
        %v5736 = vld [vmem:[%s3 + $0x18c] sm:$0xf]
        %v5737 = vld [vmem:[%s3 + $0x190] sm:$0xf]
        %v5738 = vld [vmem:[%s3 + $0x194] sm:$0xf]
        %v5739 = vld [vmem:[%s3 + $0x198] sm:$0xf]
        %v5740 = vld [vmem:[%s3 + $0x19c] sm:$0xf]
        %v5741 = vld [vmem:[%s3 + $0x1a0] sm:$0xf]
        %v5742 = vld [vmem:[%s3 + $0x1a4] sm:$0xf]
        %v5743 = vld [vmem:[%s3 + $0x1a8] sm:$0xf]
        %v5744 = vld [vmem:[%s3 + $0x1ac] sm:$0xf]
        %v5745 = vld [vmem:[%s3 + $0x1b0] sm:$0xf]
        %v5746 = vld [vmem:[%s3 + $0x1b4] sm:$0xf]
        %v5747 = vld [vmem:[%s3 + $0x1b8] sm:$0xf]
        %v5748 = vld [vmem:[%s3 + $0x1bc] sm:$0xf]
        %v5765 = vunpack.c.l.b16 %v5733
        %v5766 = vunpack.c.l.b16 %v5734
        %v5767 = vunpack.c.l.b16 %v5735
        %v5768 = vunpack.c.l.b16 %v5736
        %v5769 = vunpack.c.l.b16 %v5737
        %v5770 = vunpack.c.l.b16 %v5738
        %v5771 = vunpack.c.l.b16 %v5739
        %v5772 = vunpack.c.l.b16 %v5740
        %v5773 = vunpack.c.l.b16 %v5741
        %v5774 = vunpack.c.l.b16 %v5742
        %v5775 = vunpack.c.l.b16 %v5743
        %v5776 = vunpack.c.l.b16 %v5744
        %v5777 = vunpack.c.l.b16 %v5745
        %v5778 = vunpack.c.l.b16 %v5746
        %v5779 = vunpack.c.l.b16 %v5747
        %v5780 = vunpack.c.l.b16 %v5748
        %v5781 = vpack.c.b16 %v5766, %v5765
        %v5782 = vpack.c.b16 %v5768, %v5767
        %v5783 = vpack.c.b16 %v5770, %v5769
        %v5784 = vpack.c.b16 %v5772, %v5771
        %v5785 = vpack.c.b16 %v5774, %v5773
        %v5786 = vpack.c.b16 %v5776, %v5775
        %v5787 = vpack.c.b16 %v5778, %v5777
        %v5788 = vpack.c.b16 %v5780, %v5779
        %5797 = vmatprep.subr.bf16.mxu0 0
        %5798 = vmatpush1.bf16.msra.mxu0 %v5788
        %5799 = vmatprep.subr.bf16.mxu0 0
        %5800 = vmatpush1.bf16.msra.mxu0 %v5787
        %5801 = vmatprep.subr.bf16.mxu0 0
        %5802 = vmatpush1.bf16.msra.mxu0 %v5786
        %5803 = vmatprep.subr.bf16.mxu0 0
        %5804 = vmatpush1.bf16.msra.mxu0 %v5785
        %5805 = vmatprep.subr.bf16.mxu0 0
        %5806 = vmatpush1.bf16.msra.mxu0 %v5784
        %5807 = vmatprep.subr.bf16.mxu0 0
        %5808 = vmatpush1.bf16.msra.mxu0 %v5783
        %5809 = vmatprep.subr.bf16.mxu0 0
        %5810 = vmatpush1.bf16.msra.mxu0 %v5782
        %5811 = vmatprep.subr.bf16.mxu0 0
        %5812 = vmatpush1.bf16.msra.mxu0 %v5781
        %5813 = vmatprep.subr.bf16.mxu0 0
        %5814 = vmatpush2.bf16.msra.mxu0 0
        %5815 = vmatprep.subr.bf16.mxu0 0
        %5816 = vmatpush2.bf16.msra.mxu0 0
        %5817 = vmatprep.subr.bf16.mxu0 0
        %5818 = vmatpush2.bf16.msra.mxu0 0
        %5819 = vmatprep.subr.bf16.mxu0 0
        %5820 = vmatpush2.bf16.msra.mxu0 0
        %5821 = vmatprep.subr.bf16.mxu0 0
        %5822 = vmatpush2.bf16.msra.mxu0 0
        %5823 = vmatprep.subr.bf16.mxu0 0
        %5824 = vmatpush2.bf16.msra.mxu0 0
        %5825 = vmatprep.subr.bf16.mxu0 0
        %5826 = vmatpush2.bf16.msra.mxu0 0
        %5827 = vmatprep.subr.bf16.mxu0 0
        %5828 = vmatpush2.bf16.msra.mxu0 0
        %5829 = vmatprep.mubr.bf16.mxu0 0
        %5830 = vmatmul.mubr.bf16.gmra.mxu0 %v5725
        %v5831 = vpop.f32.mrf.mxu0
        %v5832 = vadd.f32 0.0, %v5831
        %v5833 = vpop.f32.mrf.mxu0
        %v5834 = vpop.f32.mrf.mxu0
        %v5835 = vadd.f32 0.0, %v5834
        %v5836 = vpop.f32.mrf.mxu0
        %5837 = vmatprep.mubr.bf16.mxu0 0
        %5838 = vmatmul.mubr.bf16.gmra.mxu0 %v5726
        %v5839 = vpop.f32.mrf.mxu0
        %v5840 = vadd.f32 0.0, %v5839
        %v5841 = vpop.f32.mrf.mxu0
        %v5842 = vpop.f32.mrf.mxu0
        %v5843 = vadd.f32 0.0, %v5842
        %v5844 = vpop.f32.mrf.mxu0
        %5845 = vmatprep.mubr.bf16.mxu0 0
        %5846 = vmatmul.mubr.bf16.gmra.mxu0 %v5727
        %v5847 = vpop.f32.mrf.mxu0
        %v5848 = vadd.f32 0.0, %v5847
        %v5849 = vpop.f32.mrf.mxu0
        %v5850 = vpop.f32.mrf.mxu0
        %v5851 = vadd.f32 0.0, %v5850
        %v5852 = vpop.f32.mrf.mxu0
        %5853 = vmatprep.mubr.bf16.mxu0 0
        %5854 = vmatmul.mubr.bf16.gmra.mxu0 %v5728
        %v5855 = vpop.f32.mrf.mxu0
        %v5856 = vadd.f32 0.0, %v5855
        %v5857 = vpop.f32.mrf.mxu0
        %v5858 = vpop.f32.mrf.mxu0
        %v5859 = vadd.f32 0.0, %v5858
        %v5860 = vpop.f32.mrf.mxu0
        %5861 = vmatprep.mubr.bf16.mxu0 0
        %5862 = vmatmul.mubr.bf16.gmra.mxu0 %v5729
        %v5863 = vpop.f32.mrf.mxu0
        %v5864 = vadd.f32 0.0, %v5863
        %v5865 = vpop.f32.mrf.mxu0
        %v5866 = vpop.f32.mrf.mxu0
        %v5867 = vadd.f32 0.0, %v5866
        %v5868 = vpop.f32.mrf.mxu0
        %5869 = vmatprep.mubr.bf16.mxu0 0
        %5870 = vmatmul.mubr.bf16.gmra.mxu0 %v5730
        %v5871 = vpop.f32.mrf.mxu0
        %v5872 = vadd.f32 0.0, %v5871
        %v5873 = vpop.f32.mrf.mxu0
        %v5874 = vpop.f32.mrf.mxu0
        %v5875 = vadd.f32 0.0, %v5874
        %v5876 = vpop.f32.mrf.mxu0
        %5877 = vmatprep.mubr.bf16.mxu0 0
        %5878 = vmatmul.mubr.bf16.gmra.mxu0 %v5731
        %v5879 = vpop.f32.mrf.mxu0
        %v5880 = vadd.f32 0.0, %v5879
        %v5881 = vpop.f32.mrf.mxu0
        %v5882 = vpop.f32.mrf.mxu0
        %v5883 = vadd.f32 0.0, %v5882
        %v5884 = vpop.f32.mrf.mxu0
        %5885 = vmatprep.mubr.bf16.mxu0 0
        %5886 = vmatmul.mubr.bf16.gmra.mxu0 %v5732
        %v5887 = vpop.f32.mrf.mxu0
        %v5888 = vadd.f32 0.0, %v5887
        %v5889 = vpop.f32.mrf.mxu0
        %v5890 = vpop.f32.mrf.mxu0
        %v5891 = vadd.f32 0.0, %v5890
        %v5892 = vpop.f32.mrf.mxu0
        %5893 = vdwg.mxu0
        %v5894 = vadd.f32 %v5685, %v5832
        %v5895 = vadd.f32 %v5686, %v5835
        %v5896 = vadd.f32 %v5687, %v5840
        %v5897 = vadd.f32 %v5688, %v5843
        %v5898 = vadd.f32 %v5689, %v5848
        %v5899 = vadd.f32 %v5690, %v5851
        %v5900 = vadd.f32 %v5691, %v5856
        %v5901 = vadd.f32 %v5692, %v5859
        %v5902 = vadd.f32 %v5693, %v5864
        %v5903 = vadd.f32 %v5694, %v5867
        %v5904 = vadd.f32 %v5695, %v5872
        %v5905 = vadd.f32 %v5696, %v5875
        %v5906 = vadd.f32 %v5697, %v5880
        %v5907 = vadd.f32 %v5698, %v5883
        %v5908 = vadd.f32 %v5699, %v5888
        %v5909 = vadd.f32 %v5700, %v5891
        %v5910 = vld [vmem:[#allocation3 + $0x28] sm:$0xff]
        %v5911 = vld [vmem:[#allocation3 + $0x30] sm:$0xff]
        %v5912 = vld [vmem:[#allocation3 + $0x38] sm:$0xff]
        %v5913 = vld [vmem:[#allocation3 + $0x40] sm:$0xff]
        %v5914 = vld [vmem:[#allocation3 + $0x48] sm:$0xff]
        %v5915 = vld [vmem:[#allocation3 + $0x50] sm:$0xff]
        %v5916 = vld [vmem:[#allocation3 + $0x58] sm:$0xff]
        %v5917 = vld [vmem:[#allocation3 + $0x60] sm:$0xff]
        %v5918 = vld [vmem:[#allocation3 + $0x68] sm:$0xff]
        %v5919 = vld [vmem:[#allocation3 + $0x70] sm:$0xff]
        %v5920 = vld [vmem:[#allocation3 + $0x78] sm:$0xff]
        %v5921 = vld [vmem:[#allocation3 + $0x80] sm:$0xff]
        %v5922 = vld [vmem:[#allocation3 + $0x88] sm:$0xff]
        %v5923 = vld [vmem:[#allocation3 + $0x90] sm:$0xff]
        %v5924 = vld [vmem:[#allocation3 + $0x98] sm:$0xff]
        %v5925 = vld [vmem:[#allocation3 + $0xa0] sm:$0xff]
        %v5926 = vpack.c.bf16 %v5911, %v5910
        %v5927 = vpack.c.bf16 %v5913, %v5912
        %v5928 = vpack.c.bf16 %v5915, %v5914
        %v5929 = vpack.c.bf16 %v5917, %v5916
        %v5930 = vpack.c.bf16 %v5919, %v5918
        %v5931 = vpack.c.bf16 %v5921, %v5920
        %v5932 = vpack.c.bf16 %v5923, %v5922
        %v5933 = vpack.c.bf16 %v5925, %v5924
        %v5934 = vld [vmem:[%s3 + $0x1c0] sm:$0xf]
        %v5935 = vld [vmem:[%s3 + $0x1c4] sm:$0xf]
        %v5936 = vld [vmem:[%s3 + $0x1c8] sm:$0xf]
        %v5937 = vld [vmem:[%s3 + $0x1cc] sm:$0xf]
        %v5938 = vld [vmem:[%s3 + $0x1d0] sm:$0xf]
        %v5939 = vld [vmem:[%s3 + $0x1d4] sm:$0xf]
        %v5940 = vld [vmem:[%s3 + $0x1d8] sm:$0xf]
        %v5941 = vld [vmem:[%s3 + $0x1dc] sm:$0xf]
        %v5942 = vld [vmem:[%s3 + $0x1e0] sm:$0xf]
        %v5943 = vld [vmem:[%s3 + $0x1e4] sm:$0xf]
        %v5944 = vld [vmem:[%s3 + $0x1e8] sm:$0xf]
        %v5945 = vld [vmem:[%s3 + $0x1ec] sm:$0xf]
        %v5946 = vld [vmem:[%s3 + $0x1f0] sm:$0xf]
        %v5947 = vld [vmem:[%s3 + $0x1f4] sm:$0xf]
        %v5948 = vld [vmem:[%s3 + $0x1f8] sm:$0xf]
        %v5949 = vld [vmem:[%s3 + $0x1fc] sm:$0xf]
        %v5966 = vunpack.c.l.b16 %v5934
        %v5967 = vunpack.c.l.b16 %v5935
        %v5968 = vunpack.c.l.b16 %v5936
        %v5969 = vunpack.c.l.b16 %v5937
        %v5970 = vunpack.c.l.b16 %v5938
        %v5971 = vunpack.c.l.b16 %v5939
        %v5972 = vunpack.c.l.b16 %v5940
        %v5973 = vunpack.c.l.b16 %v5941
        %v5974 = vunpack.c.l.b16 %v5942
        %v5975 = vunpack.c.l.b16 %v5943
        %v5976 = vunpack.c.l.b16 %v5944
        %v5977 = vunpack.c.l.b16 %v5945
        %v5978 = vunpack.c.l.b16 %v5946
        %v5979 = vunpack.c.l.b16 %v5947
        %v5980 = vunpack.c.l.b16 %v5948
        %v5981 = vunpack.c.l.b16 %v5949
        %v5982 = vpack.c.b16 %v5967, %v5966
        %v5983 = vpack.c.b16 %v5969, %v5968
        %v5984 = vpack.c.b16 %v5971, %v5970
        %v5985 = vpack.c.b16 %v5973, %v5972
        %v5986 = vpack.c.b16 %v5975, %v5974
        %v5987 = vpack.c.b16 %v5977, %v5976
        %v5988 = vpack.c.b16 %v5979, %v5978
        %v5989 = vpack.c.b16 %v5981, %v5980
        %5998 = vmatprep.subr.bf16.mxu0 0
        %5999 = vmatpush1.bf16.msra.mxu0 %v5989
        %6000 = vmatprep.subr.bf16.mxu0 0
        %6001 = vmatpush1.bf16.msra.mxu0 %v5988
        %6002 = vmatprep.subr.bf16.mxu0 0
        %6003 = vmatpush1.bf16.msra.mxu0 %v5987
        %6004 = vmatprep.subr.bf16.mxu0 0
        %6005 = vmatpush1.bf16.msra.mxu0 %v5986
        %6006 = vmatprep.subr.bf16.mxu0 0
        %6007 = vmatpush1.bf16.msra.mxu0 %v5985
        %6008 = vmatprep.subr.bf16.mxu0 0
        %6009 = vmatpush1.bf16.msra.mxu0 %v5984
        %6010 = vmatprep.subr.bf16.mxu0 0
        %6011 = vmatpush1.bf16.msra.mxu0 %v5983
        %6012 = vmatprep.subr.bf16.mxu0 0
        %6013 = vmatpush1.bf16.msra.mxu0 %v5982
        %6014 = vmatprep.subr.bf16.mxu0 0
        %6015 = vmatpush2.bf16.msra.mxu0 0
        %6016 = vmatprep.subr.bf16.mxu0 0
        %6017 = vmatpush2.bf16.msra.mxu0 0
        %6018 = vmatprep.subr.bf16.mxu0 0
        %6019 = vmatpush2.bf16.msra.mxu0 0
        %6020 = vmatprep.subr.bf16.mxu0 0
        %6021 = vmatpush2.bf16.msra.mxu0 0
        %6022 = vmatprep.subr.bf16.mxu0 0
        %6023 = vmatpush2.bf16.msra.mxu0 0
        %6024 = vmatprep.subr.bf16.mxu0 0
        %6025 = vmatpush2.bf16.msra.mxu0 0
        %6026 = vmatprep.subr.bf16.mxu0 0
        %6027 = vmatpush2.bf16.msra.mxu0 0
        %6028 = vmatprep.subr.bf16.mxu0 0
        %6029 = vmatpush2.bf16.msra.mxu0 0
        %6030 = vmatprep.mubr.bf16.mxu0 0
        %6031 = vmatmul.mubr.bf16.gmra.mxu0 %v5926
        %v6032 = vpop.f32.mrf.mxu0
        %v6033 = vadd.f32 0.0, %v6032
        %v6034 = vpop.f32.mrf.mxu0
        %v6035 = vpop.f32.mrf.mxu0
        %v6036 = vadd.f32 0.0, %v6035
        %v6037 = vpop.f32.mrf.mxu0
        %6038 = vmatprep.mubr.bf16.mxu0 0
        %6039 = vmatmul.mubr.bf16.gmra.mxu0 %v5927
        %v6040 = vpop.f32.mrf.mxu0
        %v6041 = vadd.f32 0.0, %v6040
        %v6042 = vpop.f32.mrf.mxu0
        %v6043 = vpop.f32.mrf.mxu0
        %v6044 = vadd.f32 0.0, %v6043
        %v6045 = vpop.f32.mrf.mxu0
        %6046 = vmatprep.mubr.bf16.mxu0 0
        %6047 = vmatmul.mubr.bf16.gmra.mxu0 %v5928
        %v6048 = vpop.f32.mrf.mxu0
        %v6049 = vadd.f32 0.0, %v6048
        %v6050 = vpop.f32.mrf.mxu0
        %v6051 = vpop.f32.mrf.mxu0
        %v6052 = vadd.f32 0.0, %v6051
        %v6053 = vpop.f32.mrf.mxu0
        %6054 = vmatprep.mubr.bf16.mxu0 0
        %6055 = vmatmul.mubr.bf16.gmra.mxu0 %v5929
        %v6056 = vpop.f32.mrf.mxu0
        %v6057 = vadd.f32 0.0, %v6056
        %v6058 = vpop.f32.mrf.mxu0
        %v6059 = vpop.f32.mrf.mxu0
        %v6060 = vadd.f32 0.0, %v6059
        %v6061 = vpop.f32.mrf.mxu0
        %6062 = vmatprep.mubr.bf16.mxu0 0
        %6063 = vmatmul.mubr.bf16.gmra.mxu0 %v5930
        %v6064 = vpop.f32.mrf.mxu0
        %v6065 = vadd.f32 0.0, %v6064
        %v6066 = vpop.f32.mrf.mxu0
        %v6067 = vpop.f32.mrf.mxu0
        %v6068 = vadd.f32 0.0, %v6067
        %v6069 = vpop.f32.mrf.mxu0
        %6070 = vmatprep.mubr.bf16.mxu0 0
        %6071 = vmatmul.mubr.bf16.gmra.mxu0 %v5931
        %v6072 = vpop.f32.mrf.mxu0
        %v6073 = vadd.f32 0.0, %v6072
        %v6074 = vpop.f32.mrf.mxu0
        %v6075 = vpop.f32.mrf.mxu0
        %v6076 = vadd.f32 0.0, %v6075
        %v6077 = vpop.f32.mrf.mxu0
        %6078 = vmatprep.mubr.bf16.mxu0 0
        %6079 = vmatmul.mubr.bf16.gmra.mxu0 %v5932
        %v6080 = vpop.f32.mrf.mxu0
        %v6081 = vadd.f32 0.0, %v6080
        %v6082 = vpop.f32.mrf.mxu0
        %v6083 = vpop.f32.mrf.mxu0
        %v6084 = vadd.f32 0.0, %v6083
        %v6085 = vpop.f32.mrf.mxu0
        %6086 = vmatprep.mubr.bf16.mxu0 0
        %6087 = vmatmul.mubr.bf16.gmra.mxu0 %v5933
        %v6088 = vpop.f32.mrf.mxu0
        %v6089 = vadd.f32 0.0, %v6088
        %v6090 = vpop.f32.mrf.mxu0
        %v6091 = vpop.f32.mrf.mxu0
        %v6092 = vadd.f32 0.0, %v6091
        %v6093 = vpop.f32.mrf.mxu0
        %6094 = vdwg.mxu0
        %v6095 = vadd.f32 %v5894, %v6033
        %v6096 = vadd.f32 %v5895, %v6036
        %v6097 = vadd.f32 %v5896, %v6041
        %v6098 = vadd.f32 %v5897, %v6044
        %v6099 = vadd.f32 %v5898, %v6049
        %v6100 = vadd.f32 %v5899, %v6052
        %v6101 = vadd.f32 %v5900, %v6057
        %v6102 = vadd.f32 %v5901, %v6060
        %v6103 = vadd.f32 %v5902, %v6065
        %v6104 = vadd.f32 %v5903, %v6068
        %v6105 = vadd.f32 %v5904, %v6073
        %v6106 = vadd.f32 %v5905, %v6076
        %v6107 = vadd.f32 %v5906, %v6081
        %v6108 = vadd.f32 %v5907, %v6084
        %v6109 = vadd.f32 %v5908, %v6089
        %v6110 = vadd.f32 %v5909, %v6092
        %v6111 = vld [vmem:[#allocation3 + $0x29] sm:$0xff]
        %v6112 = vld [vmem:[#allocation3 + $0x31] sm:$0xff]
        %v6113 = vld [vmem:[#allocation3 + $0x39] sm:$0xff]
        %v6114 = vld [vmem:[#allocation3 + $0x41] sm:$0xff]
        %v6115 = vld [vmem:[#allocation3 + $0x49] sm:$0xff]
        %v6116 = vld [vmem:[#allocation3 + $0x51] sm:$0xff]
        %v6117 = vld [vmem:[#allocation3 + $0x59] sm:$0xff]
        %v6118 = vld [vmem:[#allocation3 + $0x61] sm:$0xff]
        %v6119 = vld [vmem:[#allocation3 + $0x69] sm:$0xff]
        %v6120 = vld [vmem:[#allocation3 + $0x71] sm:$0xff]
        %v6121 = vld [vmem:[#allocation3 + $0x79] sm:$0xff]
        %v6122 = vld [vmem:[#allocation3 + $0x81] sm:$0xff]
        %v6123 = vld [vmem:[#allocation3 + $0x89] sm:$0xff]
        %v6124 = vld [vmem:[#allocation3 + $0x91] sm:$0xff]
        %v6125 = vld [vmem:[#allocation3 + $0x99] sm:$0xff]
        %v6126 = vld [vmem:[#allocation3 + $0xa1] sm:$0xff]
        %v6127 = vpack.c.bf16 %v6112, %v6111
        %v6128 = vpack.c.bf16 %v6114, %v6113
        %v6129 = vpack.c.bf16 %v6116, %v6115
        %v6130 = vpack.c.bf16 %v6118, %v6117
        %v6131 = vpack.c.bf16 %v6120, %v6119
        %v6132 = vpack.c.bf16 %v6122, %v6121
        %v6133 = vpack.c.bf16 %v6124, %v6123
        %v6134 = vpack.c.bf16 %v6126, %v6125
        %v6135 = vsel %vm1129, %v6127, 0
        %v6136 = vsel %vm1130, %v6128, 0
        %v6137 = vsel %vm1131, %v6129, 0
        %v6138 = vsel %vm1132, %v6130, 0
        %v6139 = vsel %vm1133, %v6131, 0
        %v6140 = vsel %vm1134, %v6132, 0
        %v6141 = vsel %vm1135, %v6133, 0
        %v6142 = vsel %vm1136, %v6134, 0
        %v6143 = vld [vmem:[%s3 + $0x200] sm:$0xf]
        %v6144 = vld [vmem:[%s3 + $0x204] sm:$0xf]
        %v6145 = vld [vmem:[%s3 + $0x208] sm:$0xf]
        %v6146 = vld [vmem:[%s3 + $0x20c] sm:$0xf]
        %v6147 = vld [vmem:[%s3 + $0x210] sm:$0xf]
        %v6148 = vld [vmem:[%s3 + $0x214] sm:$0xf]
        %v6149 = vld [vmem:[%s3 + $0x218] sm:$0xf]
        %v6150 = vld [vmem:[%s3 + $0x21c] sm:$0xf]
        %v6151 = vld [vmem:[%s3 + $0x220] sm:$0xf]
        %v6152 = vld [vmem:[%s3 + $0x224] sm:$0xf]
        %v6153 = vld [vmem:[%s3 + $0x228] sm:$0xf]
        %v6154 = vld [vmem:[%s3 + $0x22c] sm:$0xf]
        %v6155 = vld [vmem:[%s3 + $0x230] sm:$0xf]
        %v6156 = vld [vmem:[%s3 + $0x234] sm:$0xf]
        %v6157 = vld [vmem:[%s3 + $0x238] sm:$0xf]
        %v6158 = vld [vmem:[%s3 + $0x23c] sm:$0xf]
        %v6175 = vunpack.c.l.b16 %v6143
        %v6176 = vunpack.c.l.b16 %v6144
        %v6177 = vunpack.c.l.b16 %v6145
        %v6178 = vunpack.c.l.b16 %v6146
        %v6179 = vunpack.c.l.b16 %v6147
        %v6180 = vunpack.c.l.b16 %v6148
        %v6181 = vunpack.c.l.b16 %v6149
        %v6182 = vunpack.c.l.b16 %v6150
        %v6183 = vunpack.c.l.b16 %v6151
        %v6184 = vunpack.c.l.b16 %v6152
        %v6185 = vunpack.c.l.b16 %v6153
        %v6186 = vunpack.c.l.b16 %v6154
        %v6187 = vunpack.c.l.b16 %v6155
        %v6188 = vunpack.c.l.b16 %v6156
        %v6189 = vunpack.c.l.b16 %v6157
        %v6190 = vunpack.c.l.b16 %v6158
        %v6191 = vpack.c.b16 %v6176, %v6175
        %v6192 = vpack.c.b16 %v6178, %v6177
        %v6193 = vpack.c.b16 %v6180, %v6179
        %v6194 = vpack.c.b16 %v6182, %v6181
        %v6195 = vpack.c.b16 %v6184, %v6183
        %v6196 = vpack.c.b16 %v6186, %v6185
        %v6197 = vpack.c.b16 %v6188, %v6187
        %v6198 = vpack.c.b16 %v6190, %v6189
        %6207 = vmatprep.subr.bf16.mxu0 0
        %6208 = vmatpush1.bf16.msra.mxu0 %v6198
        %6209 = vmatprep.subr.bf16.mxu0 0
        %6210 = vmatpush1.bf16.msra.mxu0 %v6197
        %6211 = vmatprep.subr.bf16.mxu0 0
        %6212 = vmatpush1.bf16.msra.mxu0 %v6196
        %6213 = vmatprep.subr.bf16.mxu0 0
        %6214 = vmatpush1.bf16.msra.mxu0 %v6195
        %6215 = vmatprep.subr.bf16.mxu0 0
        %6216 = vmatpush1.bf16.msra.mxu0 %v6194
        %6217 = vmatprep.subr.bf16.mxu0 0
        %6218 = vmatpush1.bf16.msra.mxu0 %v6193
        %6219 = vmatprep.subr.bf16.mxu0 0
        %6220 = vmatpush1.bf16.msra.mxu0 %v6192
        %6221 = vmatprep.subr.bf16.mxu0 0
        %6222 = vmatpush1.bf16.msra.mxu0 %v6191
        %6223 = vmatprep.subr.bf16.mxu0 0
        %6224 = vmatpush2.bf16.msra.mxu0 0
        %6225 = vmatprep.subr.bf16.mxu0 0
        %6226 = vmatpush2.bf16.msra.mxu0 0
        %6227 = vmatprep.subr.bf16.mxu0 0
        %6228 = vmatpush2.bf16.msra.mxu0 0
        %6229 = vmatprep.subr.bf16.mxu0 0
        %6230 = vmatpush2.bf16.msra.mxu0 0
        %6231 = vmatprep.subr.bf16.mxu0 0
        %6232 = vmatpush2.bf16.msra.mxu0 0
        %6233 = vmatprep.subr.bf16.mxu0 0
        %6234 = vmatpush2.bf16.msra.mxu0 0
        %6235 = vmatprep.subr.bf16.mxu0 0
        %6236 = vmatpush2.bf16.msra.mxu0 0
        %6237 = vmatprep.subr.bf16.mxu0 0
        %6238 = vmatpush2.bf16.msra.mxu0 0
        %6239 = vmatprep.mubr.bf16.mxu0 0
        %6240 = vmatmul.mubr.bf16.gmra.mxu0 %v6135
        %v6241 = vpop.f32.mrf.mxu0
        %v6242 = vadd.f32 0.0, %v6241
        %v6243 = vpop.f32.mrf.mxu0
        %v6244 = vpop.f32.mrf.mxu0
        %v6245 = vadd.f32 0.0, %v6244
        %v6246 = vpop.f32.mrf.mxu0
        %6247 = vmatprep.mubr.bf16.mxu0 0
        %6248 = vmatmul.mubr.bf16.gmra.mxu0 %v6136
        %v6249 = vpop.f32.mrf.mxu0
        %v6250 = vadd.f32 0.0, %v6249
        %v6251 = vpop.f32.mrf.mxu0
        %v6252 = vpop.f32.mrf.mxu0
        %v6253 = vadd.f32 0.0, %v6252
        %v6254 = vpop.f32.mrf.mxu0
        %6255 = vmatprep.mubr.bf16.mxu0 0
        %6256 = vmatmul.mubr.bf16.gmra.mxu0 %v6137
        %v6257 = vpop.f32.mrf.mxu0
        %v6258 = vadd.f32 0.0, %v6257
        %v6259 = vpop.f32.mrf.mxu0
        %v6260 = vpop.f32.mrf.mxu0
        %v6261 = vadd.f32 0.0, %v6260
        %v6262 = vpop.f32.mrf.mxu0
        %6263 = vmatprep.mubr.bf16.mxu0 0
        %6264 = vmatmul.mubr.bf16.gmra.mxu0 %v6138
        %v6265 = vpop.f32.mrf.mxu0
        %v6266 = vadd.f32 0.0, %v6265
        %v6267 = vpop.f32.mrf.mxu0
        %v6268 = vpop.f32.mrf.mxu0
        %v6269 = vadd.f32 0.0, %v6268
        %v6270 = vpop.f32.mrf.mxu0
        %6271 = vmatprep.mubr.bf16.mxu0 0
        %6272 = vmatmul.mubr.bf16.gmra.mxu0 %v6139
        %v6273 = vpop.f32.mrf.mxu0
        %v6274 = vadd.f32 0.0, %v6273
        %v6275 = vpop.f32.mrf.mxu0
        %v6276 = vpop.f32.mrf.mxu0
        %v6277 = vadd.f32 0.0, %v6276
        %v6278 = vpop.f32.mrf.mxu0
        %6279 = vmatprep.mubr.bf16.mxu0 0
        %6280 = vmatmul.mubr.bf16.gmra.mxu0 %v6140
        %v6281 = vpop.f32.mrf.mxu0
        %v6282 = vadd.f32 0.0, %v6281
        %v6283 = vpop.f32.mrf.mxu0
        %v6284 = vpop.f32.mrf.mxu0
        %v6285 = vadd.f32 0.0, %v6284
        %v6286 = vpop.f32.mrf.mxu0
        %6287 = vmatprep.mubr.bf16.mxu0 0
        %6288 = vmatmul.mubr.bf16.gmra.mxu0 %v6141
        %v6289 = vpop.f32.mrf.mxu0
        %v6290 = vadd.f32 0.0, %v6289
        %v6291 = vpop.f32.mrf.mxu0
        %v6292 = vpop.f32.mrf.mxu0
        %v6293 = vadd.f32 0.0, %v6292
        %v6294 = vpop.f32.mrf.mxu0
        %6295 = vmatprep.mubr.bf16.mxu0 0
        %6296 = vmatmul.mubr.bf16.gmra.mxu0 %v6142
        %v6297 = vpop.f32.mrf.mxu0
        %v6298 = vadd.f32 0.0, %v6297
        %v6299 = vpop.f32.mrf.mxu0
        %v6300 = vpop.f32.mrf.mxu0
        %v6301 = vadd.f32 0.0, %v6300
        %v6302 = vpop.f32.mrf.mxu0
        %6303 = vdwg.mxu0
        %v6304 = vadd.f32 %v6095, %v6242
        %v6305 = vadd.f32 %v6096, %v6245
        %v6306 = vadd.f32 %v6097, %v6250
        %v6307 = vadd.f32 %v6098, %v6253
        %v6308 = vadd.f32 %v6099, %v6258
        %v6309 = vadd.f32 %v6100, %v6261
        %v6310 = vadd.f32 %v6101, %v6266
        %v6311 = vadd.f32 %v6102, %v6269
        %v6312 = vadd.f32 %v6103, %v6274
        %v6313 = vadd.f32 %v6104, %v6277
        %v6314 = vadd.f32 %v6105, %v6282
        %v6315 = vadd.f32 %v6106, %v6285
        %v6316 = vadd.f32 %v6107, %v6290
        %v6317 = vadd.f32 %v6108, %v6293
        %v6318 = vadd.f32 %v6109, %v6298
        %v6319 = vadd.f32 %v6110, %v6301
        %v6320 = vld [vmem:[%s4] sm:$0x1]
        %v6322 = vlaneseq
        %v6323 = vshrl.u32 %v6322, 7
        %v6324 = vsub.s32 0, %v6323
        %v6325 = vrot.slane %v6320, %v6324
        %v6327 = vadd.f32 %v6304, %v6325
        %v6328 = vadd.f32 %v6305, %v6325
        %v6329 = vadd.f32 %v6306, %v6325
        %v6330 = vadd.f32 %v6307, %v6325
        %v6331 = vadd.f32 %v6308, %v6325
        %v6332 = vadd.f32 %v6309, %v6325
        %v6333 = vadd.f32 %v6310, %v6325
        %v6334 = vadd.f32 %v6311, %v6325
        %v6335 = vadd.f32 %v6312, %v6325
        %v6336 = vadd.f32 %v6313, %v6325
        %v6337 = vadd.f32 %v6314, %v6325
        %v6338 = vadd.f32 %v6315, %v6325
        %v6339 = vadd.f32 %v6316, %v6325
        %v6340 = vadd.f32 %v6317, %v6325
        %v6341 = vadd.f32 %v6318, %v6325
        %v6342 = vadd.f32 %v6319, %v6325
        %v6343 = vld [vmem:[#allocation2 + $0x18] sm:$0xff]
        %v6344 = vld [vmem:[#allocation2 + $0x20] sm:$0xff]
        %v6345 = vld [vmem:[#allocation2 + $0x28] sm:$0xff]
        %v6346 = vld [vmem:[#allocation2 + $0x30] sm:$0xff]
        %v6347 = vld [vmem:[#allocation2 + $0x38] sm:$0xff]
        %v6348 = vld [vmem:[#allocation2 + $0x40] sm:$0xff]
        %v6349 = vld [vmem:[#allocation2 + $0x48] sm:$0xff]
        %v6350 = vld [vmem:[#allocation2 + $0x50] sm:$0xff]
        %v6351 = vld [vmem:[#allocation2 + $0x58] sm:$0xff]
        %v6352 = vld [vmem:[#allocation2 + $0x60] sm:$0xff]
        %v6353 = vld [vmem:[#allocation2 + $0x68] sm:$0xff]
        %v6354 = vld [vmem:[#allocation2 + $0x70] sm:$0xff]
        %v6355 = vld [vmem:[#allocation2 + $0x78] sm:$0xff]
        %v6356 = vld [vmem:[#allocation2 + $0x80] sm:$0xff]
        %v6357 = vld [vmem:[#allocation2 + $0x88] sm:$0xff]
        %v6358 = vld [vmem:[#allocation2 + $0x90] sm:$0xff]
        %v6359 = vadd.f32 %v6327, %v6343
        %v6360 = vadd.f32 %v6328, %v6344
        %v6361 = vadd.f32 %v6329, %v6345
        %v6362 = vadd.f32 %v6330, %v6346
        %v6363 = vadd.f32 %v6331, %v6347
        %v6364 = vadd.f32 %v6332, %v6348
        %v6365 = vadd.f32 %v6333, %v6349
        %v6366 = vadd.f32 %v6334, %v6350
        %v6367 = vadd.f32 %v6335, %v6351
        %v6368 = vadd.f32 %v6336, %v6352
        %v6369 = vadd.f32 %v6337, %v6353
        %v6370 = vadd.f32 %v6338, %v6354
        %v6371 = vadd.f32 %v6339, %v6355
        %v6372 = vadd.f32 %v6340, %v6356
        %v6373 = vadd.f32 %v6341, %v6357
        %v6374 = vadd.f32 %v6342, %v6358
        %v6375 = vmax.f32 %v6359, 0.0
        %v6376 = vmax.f32 %v6360, 0.0
        %v6377 = vmax.f32 %v6361, 0.0
        %v6378 = vmax.f32 %v6362, 0.0
        %v6379 = vmax.f32 %v6363, 0.0
        %v6380 = vmax.f32 %v6364, 0.0
        %v6381 = vmax.f32 %v6365, 0.0
        %v6382 = vmax.f32 %v6366, 0.0
        %v6383 = vmax.f32 %v6367, 0.0
        %v6384 = vmax.f32 %v6368, 0.0
        %v6385 = vmax.f32 %v6369, 0.0
        %v6386 = vmax.f32 %v6370, 0.0
        %v6387 = vmax.f32 %v6371, 0.0
        %v6388 = vmax.f32 %v6372, 0.0
        %v6389 = vmax.f32 %v6373, 0.0
        %v6390 = vmax.f32 %v6374, 0.0
        %6391 = vst [vmem:[%s217] sm:$0xff] %v6375
        %6392 = vst [vmem:[%s217 + $0x8] sm:$0xff] %v6376
        %6393 = vst [vmem:[%s217 + $0x10] sm:$0xff] %v6377
        %6394 = vst [vmem:[%s217 + $0x18] sm:$0xff] %v6378
        %6395 = vst [vmem:[%s217 + $0x20] sm:$0xff] %v6379
        %6396 = vst [vmem:[%s217 + $0x28] sm:$0xff] %v6380
        %6397 = vst [vmem:[%s217 + $0x30] sm:$0xff] %v6381
        %6398 = vst [vmem:[%s217 + $0x38] sm:$0xff] %v6382
        %6399 = vst [vmem:[%s217 + $0x40] sm:$0xff] %v6383
        %6400 = vst [vmem:[%s217 + $0x48] sm:$0xff] %v6384
        %6401 = vst [vmem:[%s217 + $0x50] sm:$0xff] %v6385
        %6402 = vst [vmem:[%s217 + $0x58] sm:$0xff] %v6386
        %6403 = vst [vmem:[%s217 + $0x60] sm:$0xff] %v6387
        %6404 = vst [vmem:[%s217 + $0x68] sm:$0xff] %v6388
        %6405 = vst [vmem:[%s217 + $0x70] sm:$0xff] %v6389
        %6406 = vst [vmem:[%s217 + $0x78] sm:$0xff] %v6390
        %v6407 = vld [vmem:[#allocation3 + $0x87] sm:$0xff]
        %v6408 = vld [vmem:[#allocation3 + $0x8f] sm:$0xff]
        %v6409 = vld [vmem:[#allocation3 + $0x97] sm:$0xff]
        %v6410 = vld [vmem:[#allocation3 + $0x9f] sm:$0xff]
        %v6411 = vld [vmem:[#allocation3 + $0xa7] sm:$0xff]
        %v6412 = vld [vmem:[#allocation3 + $0xaf] sm:$0xff]
        %v6413 = vld [vmem:[#allocation3 + $0xb7] sm:$0xff]
        %v6414 = vld [vmem:[#allocation3 + $0xbf] sm:$0xff]
        %v6415 = vld [vmem:[#allocation3 + $0xc7] sm:$0xff]
        %v6416 = vld [vmem:[#allocation3 + $0xcf] sm:$0xff]
        %v6417 = vld [vmem:[#allocation3 + $0xd7] sm:$0xff]
        %v6418 = vld [vmem:[#allocation3 + $0xdf] sm:$0xff]
        %v6419 = vld [vmem:[#allocation3 + $0xe7] sm:$0xff]
        %v6420 = vld [vmem:[#allocation3 + $0xef] sm:$0xff]
        %v6421 = vld [vmem:[#allocation3 + $0xf7] sm:$0xff]
        %v6422 = vld [vmem:[#allocation3 + $0xff] sm:$0xff]
        %v6423 = vpack.c.bf16 %v6408, %v6407
        %v6424 = vpack.c.bf16 %v6410, %v6409
        %v6425 = vpack.c.bf16 %v6412, %v6411
        %v6426 = vpack.c.bf16 %v6414, %v6413
        %v6427 = vpack.c.bf16 %v6416, %v6415
        %v6428 = vpack.c.bf16 %v6418, %v6417
        %v6429 = vpack.c.bf16 %v6420, %v6419
        %v6430 = vpack.c.bf16 %v6422, %v6421
        %v6431 = vsel %vm655, %v6423, 0
        %v6432 = vsel %vm656, %v6424, 0
        %v6433 = vsel %vm657, %v6425, 0
        %v6434 = vsel %vm658, %v6426, 0
        %v6435 = vsel %vm659, %v6427, 0
        %v6436 = vsel %vm660, %v6428, 0
        %v6437 = vsel %vm661, %v6429, 0
        %v6438 = vsel %vm662, %v6430, 0
        %v6439 = vld [vmem:[%s3] sm:$0xf]
        %v6440 = vld [vmem:[%s3 + $0x4] sm:$0xf]
        %v6441 = vld [vmem:[%s3 + $0x8] sm:$0xf]
        %v6442 = vld [vmem:[%s3 + $0xc] sm:$0xf]
        %v6443 = vld [vmem:[%s3 + $0x10] sm:$0xf]
        %v6444 = vld [vmem:[%s3 + $0x14] sm:$0xf]
        %v6445 = vld [vmem:[%s3 + $0x18] sm:$0xf]
        %v6446 = vld [vmem:[%s3 + $0x1c] sm:$0xf]
        %v6447 = vld [vmem:[%s3 + $0x20] sm:$0xf]
        %v6448 = vld [vmem:[%s3 + $0x24] sm:$0xf]
        %v6449 = vld [vmem:[%s3 + $0x28] sm:$0xf]
        %v6450 = vld [vmem:[%s3 + $0x2c] sm:$0xf]
        %v6451 = vld [vmem:[%s3 + $0x30] sm:$0xf]
        %v6452 = vld [vmem:[%s3 + $0x34] sm:$0xf]
        %v6453 = vld [vmem:[%s3 + $0x38] sm:$0xf]
        %v6454 = vld [vmem:[%s3 + $0x3c] sm:$0xf]
        %v6455 = vld [vmem:[#allocation3 + $0x88] sm:$0xff]
        %v6456 = vld [vmem:[#allocation3 + $0x90] sm:$0xff]
        %v6457 = vld [vmem:[#allocation3 + $0x98] sm:$0xff]
        %v6458 = vld [vmem:[#allocation3 + $0xa0] sm:$0xff]
        %v6459 = vld [vmem:[#allocation3 + $0xa8] sm:$0xff]
        %v6460 = vld [vmem:[#allocation3 + $0xb0] sm:$0xff]
        %v6461 = vld [vmem:[#allocation3 + $0xb8] sm:$0xff]
        %v6462 = vld [vmem:[#allocation3 + $0xc0] sm:$0xff]
        %v6463 = vld [vmem:[#allocation3 + $0xc8] sm:$0xff]
        %v6464 = vld [vmem:[#allocation3 + $0xd0] sm:$0xff]
        %v6465 = vld [vmem:[#allocation3 + $0xd8] sm:$0xff]
        %v6466 = vld [vmem:[#allocation3 + $0xe0] sm:$0xff]
        %v6467 = vld [vmem:[#allocation3 + $0xe8] sm:$0xff]
        %v6468 = vld [vmem:[#allocation3 + $0xf0] sm:$0xff]
        %v6469 = vld [vmem:[#allocation3 + $0xf8] sm:$0xff]
        %v6470 = vld [vmem:[#allocation3 + $0x100] sm:$0xff]
        %v6471 = vpack.c.bf16 %v6456, %v6455
        %v6472 = vpack.c.bf16 %v6458, %v6457
        %v6473 = vpack.c.bf16 %v6460, %v6459
        %v6474 = vpack.c.bf16 %v6462, %v6461
        %v6475 = vpack.c.bf16 %v6464, %v6463
        %v6476 = vpack.c.bf16 %v6466, %v6465
        %v6477 = vpack.c.bf16 %v6468, %v6467
        %v6478 = vpack.c.bf16 %v6470, %v6469
        %v6479 = vld [vmem:[%s3 + $0x40] sm:$0xf]
        %v6480 = vld [vmem:[%s3 + $0x44] sm:$0xf]
        %v6481 = vld [vmem:[%s3 + $0x48] sm:$0xf]
        %v6482 = vld [vmem:[%s3 + $0x4c] sm:$0xf]
        %v6483 = vld [vmem:[%s3 + $0x50] sm:$0xf]
        %v6484 = vld [vmem:[%s3 + $0x54] sm:$0xf]
        %v6485 = vld [vmem:[%s3 + $0x58] sm:$0xf]
        %v6486 = vld [vmem:[%s3 + $0x5c] sm:$0xf]
        %v6487 = vld [vmem:[%s3 + $0x60] sm:$0xf]
        %v6488 = vld [vmem:[%s3 + $0x64] sm:$0xf]
        %v6489 = vld [vmem:[%s3 + $0x68] sm:$0xf]
        %v6490 = vld [vmem:[%s3 + $0x6c] sm:$0xf]
        %v6491 = vld [vmem:[%s3 + $0x70] sm:$0xf]
        %v6492 = vld [vmem:[%s3 + $0x74] sm:$0xf]
        %v6493 = vld [vmem:[%s3 + $0x78] sm:$0xf]
        %v6494 = vld [vmem:[%s3 + $0x7c] sm:$0xf]
        %v6511 = vunpack.c.l.b16 %v6479
        %v6512 = vunpack.c.l.b16 %v6480
        %v6513 = vunpack.c.l.b16 %v6481
        %v6514 = vunpack.c.l.b16 %v6482
        %v6515 = vunpack.c.l.b16 %v6483
        %v6516 = vunpack.c.l.b16 %v6484
        %v6517 = vunpack.c.l.b16 %v6485
        %v6518 = vunpack.c.l.b16 %v6486
        %v6519 = vunpack.c.l.b16 %v6487
        %v6520 = vunpack.c.l.b16 %v6488
        %v6521 = vunpack.c.l.b16 %v6489
        %v6522 = vunpack.c.l.b16 %v6490
        %v6523 = vunpack.c.l.b16 %v6491
        %v6524 = vunpack.c.l.b16 %v6492
        %v6525 = vunpack.c.l.b16 %v6493
        %v6526 = vunpack.c.l.b16 %v6494
        %v6527 = vpack.c.b16 %v6512, %v6511
        %v6528 = vpack.c.b16 %v6514, %v6513
        %v6529 = vpack.c.b16 %v6516, %v6515
        %v6530 = vpack.c.b16 %v6518, %v6517
        %v6531 = vpack.c.b16 %v6520, %v6519
        %v6532 = vpack.c.b16 %v6522, %v6521
        %v6533 = vpack.c.b16 %v6524, %v6523
        %v6534 = vpack.c.b16 %v6526, %v6525
        %6543 = vmatprep.subr.bf16.mxu0 0
        %6544 = vmatpush1.bf16.msra.mxu0 %v6534
        %6545 = vmatprep.subr.bf16.mxu0 0
        %6546 = vmatpush1.bf16.msra.mxu0 %v6533
        %6547 = vmatprep.subr.bf16.mxu0 0
        %6548 = vmatpush1.bf16.msra.mxu0 %v6532
        %6549 = vmatprep.subr.bf16.mxu0 0
        %6550 = vmatpush1.bf16.msra.mxu0 %v6531
        %6551 = vmatprep.subr.bf16.mxu0 0
        %6552 = vmatpush1.bf16.msra.mxu0 %v6530
        %6553 = vmatprep.subr.bf16.mxu0 0
        %6554 = vmatpush1.bf16.msra.mxu0 %v6529
        %6555 = vmatprep.subr.bf16.mxu0 0
        %6556 = vmatpush1.bf16.msra.mxu0 %v6528
        %6557 = vmatprep.subr.bf16.mxu0 0
        %6558 = vmatpush1.bf16.msra.mxu0 %v6527
        %6559 = vmatprep.subr.bf16.mxu0 0
        %6560 = vmatpush2.bf16.msra.mxu0 0
        %6561 = vmatprep.subr.bf16.mxu0 0
        %6562 = vmatpush2.bf16.msra.mxu0 0
        %6563 = vmatprep.subr.bf16.mxu0 0
        %6564 = vmatpush2.bf16.msra.mxu0 0
        %6565 = vmatprep.subr.bf16.mxu0 0
        %6566 = vmatpush2.bf16.msra.mxu0 0
        %6567 = vmatprep.subr.bf16.mxu0 0
        %6568 = vmatpush2.bf16.msra.mxu0 0
        %6569 = vmatprep.subr.bf16.mxu0 0
        %6570 = vmatpush2.bf16.msra.mxu0 0
        %6571 = vmatprep.subr.bf16.mxu0 0
        %6572 = vmatpush2.bf16.msra.mxu0 0
        %6573 = vmatprep.subr.bf16.mxu0 0
        %6574 = vmatpush2.bf16.msra.mxu0 0
        %6575 = vmatprep.mubr.bf16.mxu0 0
        %6576 = vmatmul.mubr.bf16.gmra.mxu0 %v6471
        %v6577 = vpop.f32.mrf.mxu0
        %v6578 = vadd.f32 0.0, %v6577
        %v6579 = vpop.f32.mrf.mxu0
        %v6580 = vpop.f32.mrf.mxu0
        %v6581 = vadd.f32 0.0, %v6580
        %v6582 = vpop.f32.mrf.mxu0
        %6583 = vmatprep.mubr.bf16.mxu0 0
        %6584 = vmatmul.mubr.bf16.gmra.mxu0 %v6472
        %v6585 = vpop.f32.mrf.mxu0
        %v6586 = vadd.f32 0.0, %v6585
        %v6587 = vpop.f32.mrf.mxu0
        %v6588 = vpop.f32.mrf.mxu0
        %v6589 = vadd.f32 0.0, %v6588
        %v6590 = vpop.f32.mrf.mxu0
        %6591 = vmatprep.mubr.bf16.mxu0 0
        %6592 = vmatmul.mubr.bf16.gmra.mxu0 %v6473
        %v6593 = vpop.f32.mrf.mxu0
        %v6594 = vadd.f32 0.0, %v6593
        %v6595 = vpop.f32.mrf.mxu0
        %v6596 = vpop.f32.mrf.mxu0
        %v6597 = vadd.f32 0.0, %v6596
        %v6598 = vpop.f32.mrf.mxu0
        %6599 = vmatprep.mubr.bf16.mxu0 0
        %6600 = vmatmul.mubr.bf16.gmra.mxu0 %v6474
        %v6601 = vpop.f32.mrf.mxu0
        %v6602 = vadd.f32 0.0, %v6601
        %v6603 = vpop.f32.mrf.mxu0
        %v6604 = vpop.f32.mrf.mxu0
        %v6605 = vadd.f32 0.0, %v6604
        %v6606 = vpop.f32.mrf.mxu0
        %6607 = vmatprep.mubr.bf16.mxu0 0
        %6608 = vmatmul.mubr.bf16.gmra.mxu0 %v6475
        %v6609 = vpop.f32.mrf.mxu0
        %v6610 = vadd.f32 0.0, %v6609
        %v6611 = vpop.f32.mrf.mxu0
        %v6612 = vpop.f32.mrf.mxu0
        %v6613 = vadd.f32 0.0, %v6612
        %v6614 = vpop.f32.mrf.mxu0
        %6615 = vmatprep.mubr.bf16.mxu0 0
        %6616 = vmatmul.mubr.bf16.gmra.mxu0 %v6476
        %v6617 = vpop.f32.mrf.mxu0
        %v6618 = vadd.f32 0.0, %v6617
        %v6619 = vpop.f32.mrf.mxu0
        %v6620 = vpop.f32.mrf.mxu0
        %v6621 = vadd.f32 0.0, %v6620
        %v6622 = vpop.f32.mrf.mxu0
        %6623 = vmatprep.mubr.bf16.mxu0 0
        %6624 = vmatmul.mubr.bf16.gmra.mxu0 %v6477
        %v6625 = vpop.f32.mrf.mxu0
        %v6626 = vadd.f32 0.0, %v6625
        %v6627 = vpop.f32.mrf.mxu0
        %v6628 = vpop.f32.mrf.mxu0
        %v6629 = vadd.f32 0.0, %v6628
        %v6630 = vpop.f32.mrf.mxu0
        %6631 = vmatprep.mubr.bf16.mxu0 0
        %6632 = vmatmul.mubr.bf16.gmra.mxu0 %v6478
        %v6633 = vpop.f32.mrf.mxu0
        %v6634 = vadd.f32 0.0, %v6633
        %v6635 = vpop.f32.mrf.mxu0
        %v6636 = vpop.f32.mrf.mxu0
        %v6637 = vadd.f32 0.0, %v6636
        %v6638 = vpop.f32.mrf.mxu0
        %6639 = vdwg.mxu0
        %v6656 = vunpack.c.l.b16 %v6439
        %v6657 = vunpack.c.l.b16 %v6440
        %v6658 = vunpack.c.l.b16 %v6441
        %v6659 = vunpack.c.l.b16 %v6442
        %v6660 = vunpack.c.l.b16 %v6443
        %v6661 = vunpack.c.l.b16 %v6444
        %v6662 = vunpack.c.l.b16 %v6445
        %v6663 = vunpack.c.l.b16 %v6446
        %v6664 = vunpack.c.l.b16 %v6447
        %v6665 = vunpack.c.l.b16 %v6448
        %v6666 = vunpack.c.l.b16 %v6449
        %v6667 = vunpack.c.l.b16 %v6450
        %v6668 = vunpack.c.l.b16 %v6451
        %v6669 = vunpack.c.l.b16 %v6452
        %v6670 = vunpack.c.l.b16 %v6453
        %v6671 = vunpack.c.l.b16 %v6454
        %v6672 = vpack.c.b16 %v6657, %v6656
        %v6673 = vpack.c.b16 %v6659, %v6658
        %v6674 = vpack.c.b16 %v6661, %v6660
        %v6675 = vpack.c.b16 %v6663, %v6662
        %v6676 = vpack.c.b16 %v6665, %v6664
        %v6677 = vpack.c.b16 %v6667, %v6666
        %v6678 = vpack.c.b16 %v6669, %v6668
        %v6679 = vpack.c.b16 %v6671, %v6670
        %6688 = vmatprep.subr.bf16.mxu0 0
        %6689 = vmatpush1.bf16.msra.mxu0 %v6679
        %6690 = vmatprep.subr.bf16.mxu0 0
        %6691 = vmatpush1.bf16.msra.mxu0 %v6678
        %6692 = vmatprep.subr.bf16.mxu0 0
        %6693 = vmatpush1.bf16.msra.mxu0 %v6677
        %6694 = vmatprep.subr.bf16.mxu0 0
        %6695 = vmatpush1.bf16.msra.mxu0 %v6676
        %6696 = vmatprep.subr.bf16.mxu0 0
        %6697 = vmatpush1.bf16.msra.mxu0 %v6675
        %6698 = vmatprep.subr.bf16.mxu0 0
        %6699 = vmatpush1.bf16.msra.mxu0 %v6674
        %6700 = vmatprep.subr.bf16.mxu0 0
        %6701 = vmatpush1.bf16.msra.mxu0 %v6673
        %6702 = vmatprep.subr.bf16.mxu0 0
        %6703 = vmatpush1.bf16.msra.mxu0 %v6672
        %6704 = vmatprep.subr.bf16.mxu0 0
        %6705 = vmatpush2.bf16.msra.mxu0 0
        %6706 = vmatprep.subr.bf16.mxu0 0
        %6707 = vmatpush2.bf16.msra.mxu0 0
        %6708 = vmatprep.subr.bf16.mxu0 0
        %6709 = vmatpush2.bf16.msra.mxu0 0
        %6710 = vmatprep.subr.bf16.mxu0 0
        %6711 = vmatpush2.bf16.msra.mxu0 0
        %6712 = vmatprep.subr.bf16.mxu0 0
        %6713 = vmatpush2.bf16.msra.mxu0 0
        %6714 = vmatprep.subr.bf16.mxu0 0
        %6715 = vmatpush2.bf16.msra.mxu0 0
        %6716 = vmatprep.subr.bf16.mxu0 0
        %6717 = vmatpush2.bf16.msra.mxu0 0
        %6718 = vmatprep.subr.bf16.mxu0 0
        %6719 = vmatpush2.bf16.msra.mxu0 0
        %6720 = vmatprep.mubr.bf16.mxu0 0
        %6721 = vmatmul.mubr.bf16.gmra.mxu0 %v6431
        %v6722 = vpop.f32.mrf.mxu0
        %v6723 = vadd.f32 %v6578, %v6722
        %v6724 = vpop.f32.mrf.mxu0
        %v6725 = vpop.f32.mrf.mxu0
        %v6726 = vadd.f32 %v6581, %v6725
        %v6727 = vpop.f32.mrf.mxu0
        %6728 = vmatprep.mubr.bf16.mxu0 0
        %6729 = vmatmul.mubr.bf16.gmra.mxu0 %v6432
        %v6730 = vpop.f32.mrf.mxu0
        %v6731 = vadd.f32 %v6586, %v6730
        %v6732 = vpop.f32.mrf.mxu0
        %v6733 = vpop.f32.mrf.mxu0
        %v6734 = vadd.f32 %v6589, %v6733
        %v6735 = vpop.f32.mrf.mxu0
        %6736 = vmatprep.mubr.bf16.mxu0 0
        %6737 = vmatmul.mubr.bf16.gmra.mxu0 %v6433
        %v6738 = vpop.f32.mrf.mxu0
        %v6739 = vadd.f32 %v6594, %v6738
        %v6740 = vpop.f32.mrf.mxu0
        %v6741 = vpop.f32.mrf.mxu0
        %v6742 = vadd.f32 %v6597, %v6741
        %v6743 = vpop.f32.mrf.mxu0
        %6744 = vmatprep.mubr.bf16.mxu0 0
        %6745 = vmatmul.mubr.bf16.gmra.mxu0 %v6434
        %v6746 = vpop.f32.mrf.mxu0
        %v6747 = vadd.f32 %v6602, %v6746
        %v6748 = vpop.f32.mrf.mxu0
        %v6749 = vpop.f32.mrf.mxu0
        %v6750 = vadd.f32 %v6605, %v6749
        %v6751 = vpop.f32.mrf.mxu0
        %6752 = vmatprep.mubr.bf16.mxu0 0
        %6753 = vmatmul.mubr.bf16.gmra.mxu0 %v6435
        %v6754 = vpop.f32.mrf.mxu0
        %v6755 = vadd.f32 %v6610, %v6754
        %v6756 = vpop.f32.mrf.mxu0
        %v6757 = vpop.f32.mrf.mxu0
        %v6758 = vadd.f32 %v6613, %v6757
        %v6759 = vpop.f32.mrf.mxu0
        %6760 = vmatprep.mubr.bf16.mxu0 0
        %6761 = vmatmul.mubr.bf16.gmra.mxu0 %v6436
        %v6762 = vpop.f32.mrf.mxu0
        %v6763 = vadd.f32 %v6618, %v6762
        %v6764 = vpop.f32.mrf.mxu0
        %v6765 = vpop.f32.mrf.mxu0
        %v6766 = vadd.f32 %v6621, %v6765
        %v6767 = vpop.f32.mrf.mxu0
        %6768 = vmatprep.mubr.bf16.mxu0 0
        %6769 = vmatmul.mubr.bf16.gmra.mxu0 %v6437
        %v6770 = vpop.f32.mrf.mxu0
        %v6771 = vadd.f32 %v6626, %v6770
        %v6772 = vpop.f32.mrf.mxu0
        %v6773 = vpop.f32.mrf.mxu0
        %v6774 = vadd.f32 %v6629, %v6773
        %v6775 = vpop.f32.mrf.mxu0
        %6776 = vmatprep.mubr.bf16.mxu0 0
        %6777 = vmatmul.mubr.bf16.gmra.mxu0 %v6438
        %v6778 = vpop.f32.mrf.mxu0
        %v6779 = vadd.f32 %v6634, %v6778
        %v6780 = vpop.f32.mrf.mxu0
        %v6781 = vpop.f32.mrf.mxu0
        %v6782 = vadd.f32 %v6637, %v6781
        %v6783 = vpop.f32.mrf.mxu0
        %6784 = vdwg.mxu0
        %v6785 = vld [vmem:[#allocation3 + $0x89] sm:$0xff]
        %v6786 = vld [vmem:[#allocation3 + $0x91] sm:$0xff]
        %v6787 = vld [vmem:[#allocation3 + $0x99] sm:$0xff]
        %v6788 = vld [vmem:[#allocation3 + $0xa1] sm:$0xff]
        %v6789 = vld [vmem:[#allocation3 + $0xa9] sm:$0xff]
        %v6790 = vld [vmem:[#allocation3 + $0xb1] sm:$0xff]
        %v6791 = vld [vmem:[#allocation3 + $0xb9] sm:$0xff]
        %v6792 = vld [vmem:[#allocation3 + $0xc1] sm:$0xff]
        %v6793 = vld [vmem:[#allocation3 + $0xc9] sm:$0xff]
        %v6794 = vld [vmem:[#allocation3 + $0xd1] sm:$0xff]
        %v6795 = vld [vmem:[#allocation3 + $0xd9] sm:$0xff]
        %v6796 = vld [vmem:[#allocation3 + $0xe1] sm:$0xff]
        %v6797 = vld [vmem:[#allocation3 + $0xe9] sm:$0xff]
        %v6798 = vld [vmem:[#allocation3 + $0xf1] sm:$0xff]
        %v6799 = vld [vmem:[#allocation3 + $0xf9] sm:$0xff]
        %v6800 = vld [vmem:[#allocation3 + $0x101] sm:$0xff]
        %v6801 = vpack.c.bf16 %v6786, %v6785
        %v6802 = vpack.c.bf16 %v6788, %v6787
        %v6803 = vpack.c.bf16 %v6790, %v6789
        %v6804 = vpack.c.bf16 %v6792, %v6791
        %v6805 = vpack.c.bf16 %v6794, %v6793
        %v6806 = vpack.c.bf16 %v6796, %v6795
        %v6807 = vpack.c.bf16 %v6798, %v6797
        %v6808 = vpack.c.bf16 %v6800, %v6799
        %v6809 = vsel %vm1129, %v6801, 0
        %v6810 = vsel %vm1130, %v6802, 0
        %v6811 = vsel %vm1131, %v6803, 0
        %v6812 = vsel %vm1132, %v6804, 0
        %v6813 = vsel %vm1133, %v6805, 0
        %v6814 = vsel %vm1134, %v6806, 0
        %v6815 = vsel %vm1135, %v6807, 0
        %v6816 = vsel %vm1136, %v6808, 0
        %v6817 = vld [vmem:[%s3 + $0x80] sm:$0xf]
        %v6818 = vld [vmem:[%s3 + $0x84] sm:$0xf]
        %v6819 = vld [vmem:[%s3 + $0x88] sm:$0xf]
        %v6820 = vld [vmem:[%s3 + $0x8c] sm:$0xf]
        %v6821 = vld [vmem:[%s3 + $0x90] sm:$0xf]
        %v6822 = vld [vmem:[%s3 + $0x94] sm:$0xf]
        %v6823 = vld [vmem:[%s3 + $0x98] sm:$0xf]
        %v6824 = vld [vmem:[%s3 + $0x9c] sm:$0xf]
        %v6825 = vld [vmem:[%s3 + $0xa0] sm:$0xf]
        %v6826 = vld [vmem:[%s3 + $0xa4] sm:$0xf]
        %v6827 = vld [vmem:[%s3 + $0xa8] sm:$0xf]
        %v6828 = vld [vmem:[%s3 + $0xac] sm:$0xf]
        %v6829 = vld [vmem:[%s3 + $0xb0] sm:$0xf]
        %v6830 = vld [vmem:[%s3 + $0xb4] sm:$0xf]
        %v6831 = vld [vmem:[%s3 + $0xb8] sm:$0xf]
        %v6832 = vld [vmem:[%s3 + $0xbc] sm:$0xf]
        %v6849 = vunpack.c.l.b16 %v6817
        %v6850 = vunpack.c.l.b16 %v6818
        %v6851 = vunpack.c.l.b16 %v6819
        %v6852 = vunpack.c.l.b16 %v6820
        %v6853 = vunpack.c.l.b16 %v6821
        %v6854 = vunpack.c.l.b16 %v6822
        %v6855 = vunpack.c.l.b16 %v6823
        %v6856 = vunpack.c.l.b16 %v6824
        %v6857 = vunpack.c.l.b16 %v6825
        %v6858 = vunpack.c.l.b16 %v6826
        %v6859 = vunpack.c.l.b16 %v6827
        %v6860 = vunpack.c.l.b16 %v6828
        %v6861 = vunpack.c.l.b16 %v6829
        %v6862 = vunpack.c.l.b16 %v6830
        %v6863 = vunpack.c.l.b16 %v6831
        %v6864 = vunpack.c.l.b16 %v6832
        %v6865 = vpack.c.b16 %v6850, %v6849
        %v6866 = vpack.c.b16 %v6852, %v6851
        %v6867 = vpack.c.b16 %v6854, %v6853
        %v6868 = vpack.c.b16 %v6856, %v6855
        %v6869 = vpack.c.b16 %v6858, %v6857
        %v6870 = vpack.c.b16 %v6860, %v6859
        %v6871 = vpack.c.b16 %v6862, %v6861
        %v6872 = vpack.c.b16 %v6864, %v6863
        %6881 = vmatprep.subr.bf16.mxu0 0
        %6882 = vmatpush1.bf16.msra.mxu0 %v6872
        %6883 = vmatprep.subr.bf16.mxu0 0
        %6884 = vmatpush1.bf16.msra.mxu0 %v6871
        %6885 = vmatprep.subr.bf16.mxu0 0
        %6886 = vmatpush1.bf16.msra.mxu0 %v6870
        %6887 = vmatprep.subr.bf16.mxu0 0
        %6888 = vmatpush1.bf16.msra.mxu0 %v6869
        %6889 = vmatprep.subr.bf16.mxu0 0
        %6890 = vmatpush1.bf16.msra.mxu0 %v6868
        %6891 = vmatprep.subr.bf16.mxu0 0
        %6892 = vmatpush1.bf16.msra.mxu0 %v6867
        %6893 = vmatprep.subr.bf16.mxu0 0
        %6894 = vmatpush1.bf16.msra.mxu0 %v6866
        %6895 = vmatprep.subr.bf16.mxu0 0
        %6896 = vmatpush1.bf16.msra.mxu0 %v6865
        %6897 = vmatprep.subr.bf16.mxu0 0
        %6898 = vmatpush2.bf16.msra.mxu0 0
        %6899 = vmatprep.subr.bf16.mxu0 0
        %6900 = vmatpush2.bf16.msra.mxu0 0
        %6901 = vmatprep.subr.bf16.mxu0 0
        %6902 = vmatpush2.bf16.msra.mxu0 0
        %6903 = vmatprep.subr.bf16.mxu0 0
        %6904 = vmatpush2.bf16.msra.mxu0 0
        %6905 = vmatprep.subr.bf16.mxu0 0
        %6906 = vmatpush2.bf16.msra.mxu0 0
        %6907 = vmatprep.subr.bf16.mxu0 0
        %6908 = vmatpush2.bf16.msra.mxu0 0
        %6909 = vmatprep.subr.bf16.mxu0 0
        %6910 = vmatpush2.bf16.msra.mxu0 0
        %6911 = vmatprep.subr.bf16.mxu0 0
        %6912 = vmatpush2.bf16.msra.mxu0 0
        %6913 = vmatprep.mubr.bf16.mxu0 0
        %6914 = vmatmul.mubr.bf16.gmra.mxu0 %v6809
        %v6915 = vpop.f32.mrf.mxu0
        %v6916 = vadd.f32 0.0, %v6915
        %v6917 = vpop.f32.mrf.mxu0
        %v6918 = vpop.f32.mrf.mxu0
        %v6919 = vadd.f32 0.0, %v6918
        %v6920 = vpop.f32.mrf.mxu0
        %6921 = vmatprep.mubr.bf16.mxu0 0
        %6922 = vmatmul.mubr.bf16.gmra.mxu0 %v6810
        %v6923 = vpop.f32.mrf.mxu0
        %v6924 = vadd.f32 0.0, %v6923
        %v6925 = vpop.f32.mrf.mxu0
        %v6926 = vpop.f32.mrf.mxu0
        %v6927 = vadd.f32 0.0, %v6926
        %v6928 = vpop.f32.mrf.mxu0
        %6929 = vmatprep.mubr.bf16.mxu0 0
        %6930 = vmatmul.mubr.bf16.gmra.mxu0 %v6811
        %v6931 = vpop.f32.mrf.mxu0
        %v6932 = vadd.f32 0.0, %v6931
        %v6933 = vpop.f32.mrf.mxu0
        %v6934 = vpop.f32.mrf.mxu0
        %v6935 = vadd.f32 0.0, %v6934
        %v6936 = vpop.f32.mrf.mxu0
        %6937 = vmatprep.mubr.bf16.mxu0 0
        %6938 = vmatmul.mubr.bf16.gmra.mxu0 %v6812
        %v6939 = vpop.f32.mrf.mxu0
        %v6940 = vadd.f32 0.0, %v6939
        %v6941 = vpop.f32.mrf.mxu0
        %v6942 = vpop.f32.mrf.mxu0
        %v6943 = vadd.f32 0.0, %v6942
        %v6944 = vpop.f32.mrf.mxu0
        %6945 = vmatprep.mubr.bf16.mxu0 0
        %6946 = vmatmul.mubr.bf16.gmra.mxu0 %v6813
        %v6947 = vpop.f32.mrf.mxu0
        %v6948 = vadd.f32 0.0, %v6947
        %v6949 = vpop.f32.mrf.mxu0
        %v6950 = vpop.f32.mrf.mxu0
        %v6951 = vadd.f32 0.0, %v6950
        %v6952 = vpop.f32.mrf.mxu0
        %6953 = vmatprep.mubr.bf16.mxu0 0
        %6954 = vmatmul.mubr.bf16.gmra.mxu0 %v6814
        %v6955 = vpop.f32.mrf.mxu0
        %v6956 = vadd.f32 0.0, %v6955
        %v6957 = vpop.f32.mrf.mxu0
        %v6958 = vpop.f32.mrf.mxu0
        %v6959 = vadd.f32 0.0, %v6958
        %v6960 = vpop.f32.mrf.mxu0
        %6961 = vmatprep.mubr.bf16.mxu0 0
        %6962 = vmatmul.mubr.bf16.gmra.mxu0 %v6815
        %v6963 = vpop.f32.mrf.mxu0
        %v6964 = vadd.f32 0.0, %v6963
        %v6965 = vpop.f32.mrf.mxu0
        %v6966 = vpop.f32.mrf.mxu0
        %v6967 = vadd.f32 0.0, %v6966
        %v6968 = vpop.f32.mrf.mxu0
        %6969 = vmatprep.mubr.bf16.mxu0 0
        %6970 = vmatmul.mubr.bf16.gmra.mxu0 %v6816
        %v6971 = vpop.f32.mrf.mxu0
        %v6972 = vadd.f32 0.0, %v6971
        %v6973 = vpop.f32.mrf.mxu0
        %v6974 = vpop.f32.mrf.mxu0
        %v6975 = vadd.f32 0.0, %v6974
        %v6976 = vpop.f32.mrf.mxu0
        %6977 = vdwg.mxu0
        %v6978 = vadd.f32 %v6723, %v6916
        %v6979 = vadd.f32 %v6726, %v6919
        %v6980 = vadd.f32 %v6731, %v6924
        %v6981 = vadd.f32 %v6734, %v6927
        %v6982 = vadd.f32 %v6739, %v6932
        %v6983 = vadd.f32 %v6742, %v6935
        %v6984 = vadd.f32 %v6747, %v6940
        %v6985 = vadd.f32 %v6750, %v6943
        %v6986 = vadd.f32 %v6755, %v6948
        %v6987 = vadd.f32 %v6758, %v6951
        %v6988 = vadd.f32 %v6763, %v6956
        %v6989 = vadd.f32 %v6766, %v6959
        %v6990 = vadd.f32 %v6771, %v6964
        %v6991 = vadd.f32 %v6774, %v6967
        %v6992 = vadd.f32 %v6779, %v6972
        %v6993 = vadd.f32 %v6782, %v6975
        %v6994 = vld [vmem:[#allocation3 + $0x97] sm:$0xff]
        %v6995 = vld [vmem:[#allocation3 + $0x9f] sm:$0xff]
        %v6996 = vld [vmem:[#allocation3 + $0xa7] sm:$0xff]
        %v6997 = vld [vmem:[#allocation3 + $0xaf] sm:$0xff]
        %v6998 = vld [vmem:[#allocation3 + $0xb7] sm:$0xff]
        %v6999 = vld [vmem:[#allocation3 + $0xbf] sm:$0xff]
        %v7000 = vld [vmem:[#allocation3 + $0xc7] sm:$0xff]
        %v7001 = vld [vmem:[#allocation3 + $0xcf] sm:$0xff]
        %v7002 = vld [vmem:[#allocation3 + $0xd7] sm:$0xff]
        %v7003 = vld [vmem:[#allocation3 + $0xdf] sm:$0xff]
        %v7004 = vld [vmem:[#allocation3 + $0xe7] sm:$0xff]
        %v7005 = vld [vmem:[#allocation3 + $0xef] sm:$0xff]
        %v7006 = vld [vmem:[#allocation3 + $0xf7] sm:$0xff]
        %v7007 = vld [vmem:[#allocation3 + $0xff] sm:$0xff]
        %v7008 = vld [vmem:[#allocation3 + $0x107] sm:$0xff]
        %v7009 = vld [vmem:[#allocation3 + $0x10f] sm:$0xff]
        %v7010 = vpack.c.bf16 %v6995, %v6994
        %v7011 = vpack.c.bf16 %v6997, %v6996
        %v7012 = vpack.c.bf16 %v6999, %v6998
        %v7013 = vpack.c.bf16 %v7001, %v7000
        %v7014 = vpack.c.bf16 %v7003, %v7002
        %v7015 = vpack.c.bf16 %v7005, %v7004
        %v7016 = vpack.c.bf16 %v7007, %v7006
        %v7017 = vpack.c.bf16 %v7009, %v7008
        %v7018 = vsel %vm655, %v7010, 0
        %v7019 = vsel %vm656, %v7011, 0
        %v7020 = vsel %vm657, %v7012, 0
        %v7021 = vsel %vm658, %v7013, 0
        %v7022 = vsel %vm659, %v7014, 0
        %v7023 = vsel %vm660, %v7015, 0
        %v7024 = vsel %vm661, %v7016, 0
        %v7025 = vsel %vm662, %v7017, 0
        %v7026 = vld [vmem:[%s3 + $0xc0] sm:$0xf]
        %v7027 = vld [vmem:[%s3 + $0xc4] sm:$0xf]
        %v7028 = vld [vmem:[%s3 + $0xc8] sm:$0xf]
        %v7029 = vld [vmem:[%s3 + $0xcc] sm:$0xf]
        %v7030 = vld [vmem:[%s3 + $0xd0] sm:$0xf]
        %v7031 = vld [vmem:[%s3 + $0xd4] sm:$0xf]
        %v7032 = vld [vmem:[%s3 + $0xd8] sm:$0xf]
        %v7033 = vld [vmem:[%s3 + $0xdc] sm:$0xf]
        %v7034 = vld [vmem:[%s3 + $0xe0] sm:$0xf]
        %v7035 = vld [vmem:[%s3 + $0xe4] sm:$0xf]
        %v7036 = vld [vmem:[%s3 + $0xe8] sm:$0xf]
        %v7037 = vld [vmem:[%s3 + $0xec] sm:$0xf]
        %v7038 = vld [vmem:[%s3 + $0xf0] sm:$0xf]
        %v7039 = vld [vmem:[%s3 + $0xf4] sm:$0xf]
        %v7040 = vld [vmem:[%s3 + $0xf8] sm:$0xf]
        %v7041 = vld [vmem:[%s3 + $0xfc] sm:$0xf]
        %v7058 = vunpack.c.l.b16 %v7026
        %v7059 = vunpack.c.l.b16 %v7027
        %v7060 = vunpack.c.l.b16 %v7028
        %v7061 = vunpack.c.l.b16 %v7029
        %v7062 = vunpack.c.l.b16 %v7030
        %v7063 = vunpack.c.l.b16 %v7031
        %v7064 = vunpack.c.l.b16 %v7032
        %v7065 = vunpack.c.l.b16 %v7033
        %v7066 = vunpack.c.l.b16 %v7034
        %v7067 = vunpack.c.l.b16 %v7035
        %v7068 = vunpack.c.l.b16 %v7036
        %v7069 = vunpack.c.l.b16 %v7037
        %v7070 = vunpack.c.l.b16 %v7038
        %v7071 = vunpack.c.l.b16 %v7039
        %v7072 = vunpack.c.l.b16 %v7040
        %v7073 = vunpack.c.l.b16 %v7041
        %v7074 = vpack.c.b16 %v7059, %v7058
        %v7075 = vpack.c.b16 %v7061, %v7060
        %v7076 = vpack.c.b16 %v7063, %v7062
        %v7077 = vpack.c.b16 %v7065, %v7064
        %v7078 = vpack.c.b16 %v7067, %v7066
        %v7079 = vpack.c.b16 %v7069, %v7068
        %v7080 = vpack.c.b16 %v7071, %v7070
        %v7081 = vpack.c.b16 %v7073, %v7072
        %7090 = vmatprep.subr.bf16.mxu0 0
        %7091 = vmatpush1.bf16.msra.mxu0 %v7081
        %7092 = vmatprep.subr.bf16.mxu0 0
        %7093 = vmatpush1.bf16.msra.mxu0 %v7080
        %7094 = vmatprep.subr.bf16.mxu0 0
        %7095 = vmatpush1.bf16.msra.mxu0 %v7079
        %7096 = vmatprep.subr.bf16.mxu0 0
        %7097 = vmatpush1.bf16.msra.mxu0 %v7078
        %7098 = vmatprep.subr.bf16.mxu0 0
        %7099 = vmatpush1.bf16.msra.mxu0 %v7077
        %7100 = vmatprep.subr.bf16.mxu0 0
        %7101 = vmatpush1.bf16.msra.mxu0 %v7076
        %7102 = vmatprep.subr.bf16.mxu0 0
        %7103 = vmatpush1.bf16.msra.mxu0 %v7075
        %7104 = vmatprep.subr.bf16.mxu0 0
        %7105 = vmatpush1.bf16.msra.mxu0 %v7074
        %7106 = vmatprep.subr.bf16.mxu0 0
        %7107 = vmatpush2.bf16.msra.mxu0 0
        %7108 = vmatprep.subr.bf16.mxu0 0
        %7109 = vmatpush2.bf16.msra.mxu0 0
        %7110 = vmatprep.subr.bf16.mxu0 0
        %7111 = vmatpush2.bf16.msra.mxu0 0
        %7112 = vmatprep.subr.bf16.mxu0 0
        %7113 = vmatpush2.bf16.msra.mxu0 0
        %7114 = vmatprep.subr.bf16.mxu0 0
        %7115 = vmatpush2.bf16.msra.mxu0 0
        %7116 = vmatprep.subr.bf16.mxu0 0
        %7117 = vmatpush2.bf16.msra.mxu0 0
        %7118 = vmatprep.subr.bf16.mxu0 0
        %7119 = vmatpush2.bf16.msra.mxu0 0
        %7120 = vmatprep.subr.bf16.mxu0 0
        %7121 = vmatpush2.bf16.msra.mxu0 0
        %7122 = vmatprep.mubr.bf16.mxu0 0
        %7123 = vmatmul.mubr.bf16.gmra.mxu0 %v7018
        %v7124 = vpop.f32.mrf.mxu0
        %v7125 = vadd.f32 0.0, %v7124
        %v7126 = vpop.f32.mrf.mxu0
        %v7127 = vpop.f32.mrf.mxu0
        %v7128 = vadd.f32 0.0, %v7127
        %v7129 = vpop.f32.mrf.mxu0
        %7130 = vmatprep.mubr.bf16.mxu0 0
        %7131 = vmatmul.mubr.bf16.gmra.mxu0 %v7019
        %v7132 = vpop.f32.mrf.mxu0
        %v7133 = vadd.f32 0.0, %v7132
        %v7134 = vpop.f32.mrf.mxu0
        %v7135 = vpop.f32.mrf.mxu0
        %v7136 = vadd.f32 0.0, %v7135
        %v7137 = vpop.f32.mrf.mxu0
        %7138 = vmatprep.mubr.bf16.mxu0 0
        %7139 = vmatmul.mubr.bf16.gmra.mxu0 %v7020
        %v7140 = vpop.f32.mrf.mxu0
        %v7141 = vadd.f32 0.0, %v7140
        %v7142 = vpop.f32.mrf.mxu0
        %v7143 = vpop.f32.mrf.mxu0
        %v7144 = vadd.f32 0.0, %v7143
        %v7145 = vpop.f32.mrf.mxu0
        %7146 = vmatprep.mubr.bf16.mxu0 0
        %7147 = vmatmul.mubr.bf16.gmra.mxu0 %v7021
        %v7148 = vpop.f32.mrf.mxu0
        %v7149 = vadd.f32 0.0, %v7148
        %v7150 = vpop.f32.mrf.mxu0
        %v7151 = vpop.f32.mrf.mxu0
        %v7152 = vadd.f32 0.0, %v7151
        %v7153 = vpop.f32.mrf.mxu0
        %7154 = vmatprep.mubr.bf16.mxu0 0
        %7155 = vmatmul.mubr.bf16.gmra.mxu0 %v7022
        %v7156 = vpop.f32.mrf.mxu0
        %v7157 = vadd.f32 0.0, %v7156
        %v7158 = vpop.f32.mrf.mxu0
        %v7159 = vpop.f32.mrf.mxu0
        %v7160 = vadd.f32 0.0, %v7159
        %v7161 = vpop.f32.mrf.mxu0
        %7162 = vmatprep.mubr.bf16.mxu0 0
        %7163 = vmatmul.mubr.bf16.gmra.mxu0 %v7023
        %v7164 = vpop.f32.mrf.mxu0
        %v7165 = vadd.f32 0.0, %v7164
        %v7166 = vpop.f32.mrf.mxu0
        %v7167 = vpop.f32.mrf.mxu0
        %v7168 = vadd.f32 0.0, %v7167
        %v7169 = vpop.f32.mrf.mxu0
        %7170 = vmatprep.mubr.bf16.mxu0 0
        %7171 = vmatmul.mubr.bf16.gmra.mxu0 %v7024
        %v7172 = vpop.f32.mrf.mxu0
        %v7173 = vadd.f32 0.0, %v7172
        %v7174 = vpop.f32.mrf.mxu0
        %v7175 = vpop.f32.mrf.mxu0
        %v7176 = vadd.f32 0.0, %v7175
        %v7177 = vpop.f32.mrf.mxu0
        %7178 = vmatprep.mubr.bf16.mxu0 0
        %7179 = vmatmul.mubr.bf16.gmra.mxu0 %v7025
        %v7180 = vpop.f32.mrf.mxu0
        %v7181 = vadd.f32 0.0, %v7180
        %v7182 = vpop.f32.mrf.mxu0
        %v7183 = vpop.f32.mrf.mxu0
        %v7184 = vadd.f32 0.0, %v7183
        %v7185 = vpop.f32.mrf.mxu0
        %7186 = vdwg.mxu0
        %v7187 = vadd.f32 %v6978, %v7125
        %v7188 = vadd.f32 %v6979, %v7128
        %v7189 = vadd.f32 %v6980, %v7133
        %v7190 = vadd.f32 %v6981, %v7136
        %v7191 = vadd.f32 %v6982, %v7141
        %v7192 = vadd.f32 %v6983, %v7144
        %v7193 = vadd.f32 %v6984, %v7149
        %v7194 = vadd.f32 %v6985, %v7152
        %v7195 = vadd.f32 %v6986, %v7157
        %v7196 = vadd.f32 %v6987, %v7160
        %v7197 = vadd.f32 %v6988, %v7165
        %v7198 = vadd.f32 %v6989, %v7168
        %v7199 = vadd.f32 %v6990, %v7173
        %v7200 = vadd.f32 %v6991, %v7176
        %v7201 = vadd.f32 %v6992, %v7181
        %v7202 = vadd.f32 %v6993, %v7184
        %v7203 = vld [vmem:[#allocation3 + $0x98] sm:$0xff]
        %v7204 = vld [vmem:[#allocation3 + $0xa0] sm:$0xff]
        %v7205 = vld [vmem:[#allocation3 + $0xa8] sm:$0xff]
        %v7206 = vld [vmem:[#allocation3 + $0xb0] sm:$0xff]
        %v7207 = vld [vmem:[#allocation3 + $0xb8] sm:$0xff]
        %v7208 = vld [vmem:[#allocation3 + $0xc0] sm:$0xff]
        %v7209 = vld [vmem:[#allocation3 + $0xc8] sm:$0xff]
        %v7210 = vld [vmem:[#allocation3 + $0xd0] sm:$0xff]
        %v7211 = vld [vmem:[#allocation3 + $0xd8] sm:$0xff]
        %v7212 = vld [vmem:[#allocation3 + $0xe0] sm:$0xff]
        %v7213 = vld [vmem:[#allocation3 + $0xe8] sm:$0xff]
        %v7214 = vld [vmem:[#allocation3 + $0xf0] sm:$0xff]
        %v7215 = vld [vmem:[#allocation3 + $0xf8] sm:$0xff]
        %v7216 = vld [vmem:[#allocation3 + $0x100] sm:$0xff]
        %v7217 = vld [vmem:[#allocation3 + $0x108] sm:$0xff]
        %v7218 = vld [vmem:[#allocation3 + $0x110] sm:$0xff]
        %v7219 = vpack.c.bf16 %v7204, %v7203
        %v7220 = vpack.c.bf16 %v7206, %v7205
        %v7221 = vpack.c.bf16 %v7208, %v7207
        %v7222 = vpack.c.bf16 %v7210, %v7209
        %v7223 = vpack.c.bf16 %v7212, %v7211
        %v7224 = vpack.c.bf16 %v7214, %v7213
        %v7225 = vpack.c.bf16 %v7216, %v7215
        %v7226 = vpack.c.bf16 %v7218, %v7217
        %v7227 = vld [vmem:[%s3 + $0x100] sm:$0xf]
        %v7228 = vld [vmem:[%s3 + $0x104] sm:$0xf]
        %v7229 = vld [vmem:[%s3 + $0x108] sm:$0xf]
        %v7230 = vld [vmem:[%s3 + $0x10c] sm:$0xf]
        %v7231 = vld [vmem:[%s3 + $0x110] sm:$0xf]
        %v7232 = vld [vmem:[%s3 + $0x114] sm:$0xf]
        %v7233 = vld [vmem:[%s3 + $0x118] sm:$0xf]
        %v7234 = vld [vmem:[%s3 + $0x11c] sm:$0xf]
        %v7235 = vld [vmem:[%s3 + $0x120] sm:$0xf]
        %v7236 = vld [vmem:[%s3 + $0x124] sm:$0xf]
        %v7237 = vld [vmem:[%s3 + $0x128] sm:$0xf]
        %v7238 = vld [vmem:[%s3 + $0x12c] sm:$0xf]
        %v7239 = vld [vmem:[%s3 + $0x130] sm:$0xf]
        %v7240 = vld [vmem:[%s3 + $0x134] sm:$0xf]
        %v7241 = vld [vmem:[%s3 + $0x138] sm:$0xf]
        %v7242 = vld [vmem:[%s3 + $0x13c] sm:$0xf]
        %v7259 = vunpack.c.l.b16 %v7227
        %v7260 = vunpack.c.l.b16 %v7228
        %v7261 = vunpack.c.l.b16 %v7229
        %v7262 = vunpack.c.l.b16 %v7230
        %v7263 = vunpack.c.l.b16 %v7231
        %v7264 = vunpack.c.l.b16 %v7232
        %v7265 = vunpack.c.l.b16 %v7233
        %v7266 = vunpack.c.l.b16 %v7234
        %v7267 = vunpack.c.l.b16 %v7235
        %v7268 = vunpack.c.l.b16 %v7236
        %v7269 = vunpack.c.l.b16 %v7237
        %v7270 = vunpack.c.l.b16 %v7238
        %v7271 = vunpack.c.l.b16 %v7239
        %v7272 = vunpack.c.l.b16 %v7240
        %v7273 = vunpack.c.l.b16 %v7241
        %v7274 = vunpack.c.l.b16 %v7242
        %v7275 = vpack.c.b16 %v7260, %v7259
        %v7276 = vpack.c.b16 %v7262, %v7261
        %v7277 = vpack.c.b16 %v7264, %v7263
        %v7278 = vpack.c.b16 %v7266, %v7265
        %v7279 = vpack.c.b16 %v7268, %v7267
        %v7280 = vpack.c.b16 %v7270, %v7269
        %v7281 = vpack.c.b16 %v7272, %v7271
        %v7282 = vpack.c.b16 %v7274, %v7273
        %7291 = vmatprep.subr.bf16.mxu0 0
        %7292 = vmatpush1.bf16.msra.mxu0 %v7282
        %7293 = vmatprep.subr.bf16.mxu0 0
        %7294 = vmatpush1.bf16.msra.mxu0 %v7281
        %7295 = vmatprep.subr.bf16.mxu0 0
        %7296 = vmatpush1.bf16.msra.mxu0 %v7280
        %7297 = vmatprep.subr.bf16.mxu0 0
        %7298 = vmatpush1.bf16.msra.mxu0 %v7279
        %7299 = vmatprep.subr.bf16.mxu0 0
        %7300 = vmatpush1.bf16.msra.mxu0 %v7278
        %7301 = vmatprep.subr.bf16.mxu0 0
        %7302 = vmatpush1.bf16.msra.mxu0 %v7277
        %7303 = vmatprep.subr.bf16.mxu0 0
        %7304 = vmatpush1.bf16.msra.mxu0 %v7276
        %7305 = vmatprep.subr.bf16.mxu0 0
        %7306 = vmatpush1.bf16.msra.mxu0 %v7275
        %7307 = vmatprep.subr.bf16.mxu0 0
        %7308 = vmatpush2.bf16.msra.mxu0 0
        %7309 = vmatprep.subr.bf16.mxu0 0
        %7310 = vmatpush2.bf16.msra.mxu0 0
        %7311 = vmatprep.subr.bf16.mxu0 0
        %7312 = vmatpush2.bf16.msra.mxu0 0
        %7313 = vmatprep.subr.bf16.mxu0 0
        %7314 = vmatpush2.bf16.msra.mxu0 0
        %7315 = vmatprep.subr.bf16.mxu0 0
        %7316 = vmatpush2.bf16.msra.mxu0 0
        %7317 = vmatprep.subr.bf16.mxu0 0
        %7318 = vmatpush2.bf16.msra.mxu0 0
        %7319 = vmatprep.subr.bf16.mxu0 0
        %7320 = vmatpush2.bf16.msra.mxu0 0
        %7321 = vmatprep.subr.bf16.mxu0 0
        %7322 = vmatpush2.bf16.msra.mxu0 0
        %7323 = vmatprep.mubr.bf16.mxu0 0
        %7324 = vmatmul.mubr.bf16.gmra.mxu0 %v7219
        %v7325 = vpop.f32.mrf.mxu0
        %v7326 = vadd.f32 0.0, %v7325
        %v7327 = vpop.f32.mrf.mxu0
        %v7328 = vpop.f32.mrf.mxu0
        %v7329 = vadd.f32 0.0, %v7328
        %v7330 = vpop.f32.mrf.mxu0
        %7331 = vmatprep.mubr.bf16.mxu0 0
        %7332 = vmatmul.mubr.bf16.gmra.mxu0 %v7220
        %v7333 = vpop.f32.mrf.mxu0
        %v7334 = vadd.f32 0.0, %v7333
        %v7335 = vpop.f32.mrf.mxu0
        %v7336 = vpop.f32.mrf.mxu0
        %v7337 = vadd.f32 0.0, %v7336
        %v7338 = vpop.f32.mrf.mxu0
        %7339 = vmatprep.mubr.bf16.mxu0 0
        %7340 = vmatmul.mubr.bf16.gmra.mxu0 %v7221
        %v7341 = vpop.f32.mrf.mxu0
        %v7342 = vadd.f32 0.0, %v7341
        %v7343 = vpop.f32.mrf.mxu0
        %v7344 = vpop.f32.mrf.mxu0
        %v7345 = vadd.f32 0.0, %v7344
        %v7346 = vpop.f32.mrf.mxu0
        %7347 = vmatprep.mubr.bf16.mxu0 0
        %7348 = vmatmul.mubr.bf16.gmra.mxu0 %v7222
        %v7349 = vpop.f32.mrf.mxu0
        %v7350 = vadd.f32 0.0, %v7349
        %v7351 = vpop.f32.mrf.mxu0
        %v7352 = vpop.f32.mrf.mxu0
        %v7353 = vadd.f32 0.0, %v7352
        %v7354 = vpop.f32.mrf.mxu0
        %7355 = vmatprep.mubr.bf16.mxu0 0
        %7356 = vmatmul.mubr.bf16.gmra.mxu0 %v7223
        %v7357 = vpop.f32.mrf.mxu0
        %v7358 = vadd.f32 0.0, %v7357
        %v7359 = vpop.f32.mrf.mxu0
        %v7360 = vpop.f32.mrf.mxu0
        %v7361 = vadd.f32 0.0, %v7360
        %v7362 = vpop.f32.mrf.mxu0
        %7363 = vmatprep.mubr.bf16.mxu0 0
        %7364 = vmatmul.mubr.bf16.gmra.mxu0 %v7224
        %v7365 = vpop.f32.mrf.mxu0
        %v7366 = vadd.f32 0.0, %v7365
        %v7367 = vpop.f32.mrf.mxu0
        %v7368 = vpop.f32.mrf.mxu0
        %v7369 = vadd.f32 0.0, %v7368
        %v7370 = vpop.f32.mrf.mxu0
        %7371 = vmatprep.mubr.bf16.mxu0 0
        %7372 = vmatmul.mubr.bf16.gmra.mxu0 %v7225
        %v7373 = vpop.f32.mrf.mxu0
        %v7374 = vadd.f32 0.0, %v7373
        %v7375 = vpop.f32.mrf.mxu0
        %v7376 = vpop.f32.mrf.mxu0
        %v7377 = vadd.f32 0.0, %v7376
        %v7378 = vpop.f32.mrf.mxu0
        %7379 = vmatprep.mubr.bf16.mxu0 0
        %7380 = vmatmul.mubr.bf16.gmra.mxu0 %v7226
        %v7381 = vpop.f32.mrf.mxu0
        %v7382 = vadd.f32 0.0, %v7381
        %v7383 = vpop.f32.mrf.mxu0
        %v7384 = vpop.f32.mrf.mxu0
        %v7385 = vadd.f32 0.0, %v7384
        %v7386 = vpop.f32.mrf.mxu0
        %7387 = vdwg.mxu0
        %v7388 = vadd.f32 %v7187, %v7326
        %v7389 = vadd.f32 %v7188, %v7329
        %v7390 = vadd.f32 %v7189, %v7334
        %v7391 = vadd.f32 %v7190, %v7337
        %v7392 = vadd.f32 %v7191, %v7342
        %v7393 = vadd.f32 %v7192, %v7345
        %v7394 = vadd.f32 %v7193, %v7350
        %v7395 = vadd.f32 %v7194, %v7353
        %v7396 = vadd.f32 %v7195, %v7358
        %v7397 = vadd.f32 %v7196, %v7361
        %v7398 = vadd.f32 %v7197, %v7366
        %v7399 = vadd.f32 %v7198, %v7369
        %v7400 = vadd.f32 %v7199, %v7374
        %v7401 = vadd.f32 %v7200, %v7377
        %v7402 = vadd.f32 %v7201, %v7382
        %v7403 = vadd.f32 %v7202, %v7385
        %v7404 = vld [vmem:[#allocation3 + $0x99] sm:$0xff]
        %v7405 = vld [vmem:[#allocation3 + $0xa1] sm:$0xff]
        %v7406 = vld [vmem:[#allocation3 + $0xa9] sm:$0xff]
        %v7407 = vld [vmem:[#allocation3 + $0xb1] sm:$0xff]
        %v7408 = vld [vmem:[#allocation3 + $0xb9] sm:$0xff]
        %v7409 = vld [vmem:[#allocation3 + $0xc1] sm:$0xff]
        %v7410 = vld [vmem:[#allocation3 + $0xc9] sm:$0xff]
        %v7411 = vld [vmem:[#allocation3 + $0xd1] sm:$0xff]
        %v7412 = vld [vmem:[#allocation3 + $0xd9] sm:$0xff]
        %v7413 = vld [vmem:[#allocation3 + $0xe1] sm:$0xff]
        %v7414 = vld [vmem:[#allocation3 + $0xe9] sm:$0xff]
        %v7415 = vld [vmem:[#allocation3 + $0xf1] sm:$0xff]
        %v7416 = vld [vmem:[#allocation3 + $0xf9] sm:$0xff]
        %v7417 = vld [vmem:[#allocation3 + $0x101] sm:$0xff]
        %v7418 = vld [vmem:[#allocation3 + $0x109] sm:$0xff]
        %v7419 = vld [vmem:[#allocation3 + $0x111] sm:$0xff]
        %v7420 = vpack.c.bf16 %v7405, %v7404
        %v7421 = vpack.c.bf16 %v7407, %v7406
        %v7422 = vpack.c.bf16 %v7409, %v7408
        %v7423 = vpack.c.bf16 %v7411, %v7410
        %v7424 = vpack.c.bf16 %v7413, %v7412
        %v7425 = vpack.c.bf16 %v7415, %v7414
        %v7426 = vpack.c.bf16 %v7417, %v7416
        %v7427 = vpack.c.bf16 %v7419, %v7418
        %v7428 = vsel %vm1129, %v7420, 0
        %v7429 = vsel %vm1130, %v7421, 0
        %v7430 = vsel %vm1131, %v7422, 0
        %v7431 = vsel %vm1132, %v7423, 0
        %v7432 = vsel %vm1133, %v7424, 0
        %v7433 = vsel %vm1134, %v7425, 0
        %v7434 = vsel %vm1135, %v7426, 0
        %v7435 = vsel %vm1136, %v7427, 0
        %v7436 = vld [vmem:[%s3 + $0x140] sm:$0xf]
        %v7437 = vld [vmem:[%s3 + $0x144] sm:$0xf]
        %v7438 = vld [vmem:[%s3 + $0x148] sm:$0xf]
        %v7439 = vld [vmem:[%s3 + $0x14c] sm:$0xf]
        %v7440 = vld [vmem:[%s3 + $0x150] sm:$0xf]
        %v7441 = vld [vmem:[%s3 + $0x154] sm:$0xf]
        %v7442 = vld [vmem:[%s3 + $0x158] sm:$0xf]
        %v7443 = vld [vmem:[%s3 + $0x15c] sm:$0xf]
        %v7444 = vld [vmem:[%s3 + $0x160] sm:$0xf]
        %v7445 = vld [vmem:[%s3 + $0x164] sm:$0xf]
        %v7446 = vld [vmem:[%s3 + $0x168] sm:$0xf]
        %v7447 = vld [vmem:[%s3 + $0x16c] sm:$0xf]
        %v7448 = vld [vmem:[%s3 + $0x170] sm:$0xf]
        %v7449 = vld [vmem:[%s3 + $0x174] sm:$0xf]
        %v7450 = vld [vmem:[%s3 + $0x178] sm:$0xf]
        %v7451 = vld [vmem:[%s3 + $0x17c] sm:$0xf]
        %v7468 = vunpack.c.l.b16 %v7436
        %v7469 = vunpack.c.l.b16 %v7437
        %v7470 = vunpack.c.l.b16 %v7438
        %v7471 = vunpack.c.l.b16 %v7439
        %v7472 = vunpack.c.l.b16 %v7440
        %v7473 = vunpack.c.l.b16 %v7441
        %v7474 = vunpack.c.l.b16 %v7442
        %v7475 = vunpack.c.l.b16 %v7443
        %v7476 = vunpack.c.l.b16 %v7444
        %v7477 = vunpack.c.l.b16 %v7445
        %v7478 = vunpack.c.l.b16 %v7446
        %v7479 = vunpack.c.l.b16 %v7447
        %v7480 = vunpack.c.l.b16 %v7448
        %v7481 = vunpack.c.l.b16 %v7449
        %v7482 = vunpack.c.l.b16 %v7450
        %v7483 = vunpack.c.l.b16 %v7451
        %v7484 = vpack.c.b16 %v7469, %v7468
        %v7485 = vpack.c.b16 %v7471, %v7470
        %v7486 = vpack.c.b16 %v7473, %v7472
        %v7487 = vpack.c.b16 %v7475, %v7474
        %v7488 = vpack.c.b16 %v7477, %v7476
        %v7489 = vpack.c.b16 %v7479, %v7478
        %v7490 = vpack.c.b16 %v7481, %v7480
        %v7491 = vpack.c.b16 %v7483, %v7482
        %7500 = vmatprep.subr.bf16.mxu0 0
        %7501 = vmatpush1.bf16.msra.mxu0 %v7491
        %7502 = vmatprep.subr.bf16.mxu0 0
        %7503 = vmatpush1.bf16.msra.mxu0 %v7490
        %7504 = vmatprep.subr.bf16.mxu0 0
        %7505 = vmatpush1.bf16.msra.mxu0 %v7489
        %7506 = vmatprep.subr.bf16.mxu0 0
        %7507 = vmatpush1.bf16.msra.mxu0 %v7488
        %7508 = vmatprep.subr.bf16.mxu0 0
        %7509 = vmatpush1.bf16.msra.mxu0 %v7487
        %7510 = vmatprep.subr.bf16.mxu0 0
        %7511 = vmatpush1.bf16.msra.mxu0 %v7486
        %7512 = vmatprep.subr.bf16.mxu0 0
        %7513 = vmatpush1.bf16.msra.mxu0 %v7485
        %7514 = vmatprep.subr.bf16.mxu0 0
        %7515 = vmatpush1.bf16.msra.mxu0 %v7484
        %7516 = vmatprep.subr.bf16.mxu0 0
        %7517 = vmatpush2.bf16.msra.mxu0 0
        %7518 = vmatprep.subr.bf16.mxu0 0
        %7519 = vmatpush2.bf16.msra.mxu0 0
        %7520 = vmatprep.subr.bf16.mxu0 0
        %7521 = vmatpush2.bf16.msra.mxu0 0
        %7522 = vmatprep.subr.bf16.mxu0 0
        %7523 = vmatpush2.bf16.msra.mxu0 0
        %7524 = vmatprep.subr.bf16.mxu0 0
        %7525 = vmatpush2.bf16.msra.mxu0 0
        %7526 = vmatprep.subr.bf16.mxu0 0
        %7527 = vmatpush2.bf16.msra.mxu0 0
        %7528 = vmatprep.subr.bf16.mxu0 0
        %7529 = vmatpush2.bf16.msra.mxu0 0
        %7530 = vmatprep.subr.bf16.mxu0 0
        %7531 = vmatpush2.bf16.msra.mxu0 0
        %7532 = vmatprep.mubr.bf16.mxu0 0
        %7533 = vmatmul.mubr.bf16.gmra.mxu0 %v7428
        %v7534 = vpop.f32.mrf.mxu0
        %v7535 = vadd.f32 0.0, %v7534
        %v7536 = vpop.f32.mrf.mxu0
        %v7537 = vpop.f32.mrf.mxu0
        %v7538 = vadd.f32 0.0, %v7537
        %v7539 = vpop.f32.mrf.mxu0
        %7540 = vmatprep.mubr.bf16.mxu0 0
        %7541 = vmatmul.mubr.bf16.gmra.mxu0 %v7429
        %v7542 = vpop.f32.mrf.mxu0
        %v7543 = vadd.f32 0.0, %v7542
        %v7544 = vpop.f32.mrf.mxu0
        %v7545 = vpop.f32.mrf.mxu0
        %v7546 = vadd.f32 0.0, %v7545
        %v7547 = vpop.f32.mrf.mxu0
        %7548 = vmatprep.mubr.bf16.mxu0 0
        %7549 = vmatmul.mubr.bf16.gmra.mxu0 %v7430
        %v7550 = vpop.f32.mrf.mxu0
        %v7551 = vadd.f32 0.0, %v7550
        %v7552 = vpop.f32.mrf.mxu0
        %v7553 = vpop.f32.mrf.mxu0
        %v7554 = vadd.f32 0.0, %v7553
        %v7555 = vpop.f32.mrf.mxu0
        %7556 = vmatprep.mubr.bf16.mxu0 0
        %7557 = vmatmul.mubr.bf16.gmra.mxu0 %v7431
        %v7558 = vpop.f32.mrf.mxu0
        %v7559 = vadd.f32 0.0, %v7558
        %v7560 = vpop.f32.mrf.mxu0
        %v7561 = vpop.f32.mrf.mxu0
        %v7562 = vadd.f32 0.0, %v7561
        %v7563 = vpop.f32.mrf.mxu0
        %7564 = vmatprep.mubr.bf16.mxu0 0
        %7565 = vmatmul.mubr.bf16.gmra.mxu0 %v7432
        %v7566 = vpop.f32.mrf.mxu0
        %v7567 = vadd.f32 0.0, %v7566
        %v7568 = vpop.f32.mrf.mxu0
        %v7569 = vpop.f32.mrf.mxu0
        %v7570 = vadd.f32 0.0, %v7569
        %v7571 = vpop.f32.mrf.mxu0
        %7572 = vmatprep.mubr.bf16.mxu0 0
        %7573 = vmatmul.mubr.bf16.gmra.mxu0 %v7433
        %v7574 = vpop.f32.mrf.mxu0
        %v7575 = vadd.f32 0.0, %v7574
        %v7576 = vpop.f32.mrf.mxu0
        %v7577 = vpop.f32.mrf.mxu0
        %v7578 = vadd.f32 0.0, %v7577
        %v7579 = vpop.f32.mrf.mxu0
        %7580 = vmatprep.mubr.bf16.mxu0 0
        %7581 = vmatmul.mubr.bf16.gmra.mxu0 %v7434
        %v7582 = vpop.f32.mrf.mxu0
        %v7583 = vadd.f32 0.0, %v7582
        %v7584 = vpop.f32.mrf.mxu0
        %v7585 = vpop.f32.mrf.mxu0
        %v7586 = vadd.f32 0.0, %v7585
        %v7587 = vpop.f32.mrf.mxu0
        %7588 = vmatprep.mubr.bf16.mxu0 0
        %7589 = vmatmul.mubr.bf16.gmra.mxu0 %v7435
        %v7590 = vpop.f32.mrf.mxu0
        %v7591 = vadd.f32 0.0, %v7590
        %v7592 = vpop.f32.mrf.mxu0
        %v7593 = vpop.f32.mrf.mxu0
        %v7594 = vadd.f32 0.0, %v7593
        %v7595 = vpop.f32.mrf.mxu0
        %7596 = vdwg.mxu0
        %v7597 = vadd.f32 %v7388, %v7535
        %v7598 = vadd.f32 %v7389, %v7538
        %v7599 = vadd.f32 %v7390, %v7543
        %v7600 = vadd.f32 %v7391, %v7546
        %v7601 = vadd.f32 %v7392, %v7551
        %v7602 = vadd.f32 %v7393, %v7554
        %v7603 = vadd.f32 %v7394, %v7559
        %v7604 = vadd.f32 %v7395, %v7562
        %v7605 = vadd.f32 %v7396, %v7567
        %v7606 = vadd.f32 %v7397, %v7570
        %v7607 = vadd.f32 %v7398, %v7575
        %v7608 = vadd.f32 %v7399, %v7578
        %v7609 = vadd.f32 %v7400, %v7583
        %v7610 = vadd.f32 %v7401, %v7586
        %v7611 = vadd.f32 %v7402, %v7591
        %v7612 = vadd.f32 %v7403, %v7594
        %v7613 = vld [vmem:[#allocation3 + $0xa7] sm:$0xff]
        %v7614 = vld [vmem:[#allocation3 + $0xaf] sm:$0xff]
        %v7615 = vld [vmem:[#allocation3 + $0xb7] sm:$0xff]
        %v7616 = vld [vmem:[#allocation3 + $0xbf] sm:$0xff]
        %v7617 = vld [vmem:[#allocation3 + $0xc7] sm:$0xff]
        %v7618 = vld [vmem:[#allocation3 + $0xcf] sm:$0xff]
        %v7619 = vld [vmem:[#allocation3 + $0xd7] sm:$0xff]
        %v7620 = vld [vmem:[#allocation3 + $0xdf] sm:$0xff]
        %v7621 = vld [vmem:[#allocation3 + $0xe7] sm:$0xff]
        %v7622 = vld [vmem:[#allocation3 + $0xef] sm:$0xff]
        %v7623 = vld [vmem:[#allocation3 + $0xf7] sm:$0xff]
        %v7624 = vld [vmem:[#allocation3 + $0xff] sm:$0xff]
        %v7625 = vld [vmem:[#allocation3 + $0x107] sm:$0xff]
        %v7626 = vld [vmem:[#allocation3 + $0x10f] sm:$0xff]
        %v7627 = vld [vmem:[#allocation3 + $0x117] sm:$0xff]
        %v7628 = vld [vmem:[#allocation3 + $0x11f] sm:$0xff]
        %v7629 = vpack.c.bf16 %v7614, %v7613
        %v7630 = vpack.c.bf16 %v7616, %v7615
        %v7631 = vpack.c.bf16 %v7618, %v7617
        %v7632 = vpack.c.bf16 %v7620, %v7619
        %v7633 = vpack.c.bf16 %v7622, %v7621
        %v7634 = vpack.c.bf16 %v7624, %v7623
        %v7635 = vpack.c.bf16 %v7626, %v7625
        %v7636 = vpack.c.bf16 %v7628, %v7627
        %v7637 = vsel %vm655, %v7629, 0
        %v7638 = vsel %vm656, %v7630, 0
        %v7639 = vsel %vm657, %v7631, 0
        %v7640 = vsel %vm658, %v7632, 0
        %v7641 = vsel %vm659, %v7633, 0
        %v7642 = vsel %vm660, %v7634, 0
        %v7643 = vsel %vm661, %v7635, 0
        %v7644 = vsel %vm662, %v7636, 0
        %v7645 = vld [vmem:[%s3 + $0x180] sm:$0xf]
        %v7646 = vld [vmem:[%s3 + $0x184] sm:$0xf]
        %v7647 = vld [vmem:[%s3 + $0x188] sm:$0xf]
        %v7648 = vld [vmem:[%s3 + $0x18c] sm:$0xf]
        %v7649 = vld [vmem:[%s3 + $0x190] sm:$0xf]
        %v7650 = vld [vmem:[%s3 + $0x194] sm:$0xf]
        %v7651 = vld [vmem:[%s3 + $0x198] sm:$0xf]
        %v7652 = vld [vmem:[%s3 + $0x19c] sm:$0xf]
        %v7653 = vld [vmem:[%s3 + $0x1a0] sm:$0xf]
        %v7654 = vld [vmem:[%s3 + $0x1a4] sm:$0xf]
        %v7655 = vld [vmem:[%s3 + $0x1a8] sm:$0xf]
        %v7656 = vld [vmem:[%s3 + $0x1ac] sm:$0xf]
        %v7657 = vld [vmem:[%s3 + $0x1b0] sm:$0xf]
        %v7658 = vld [vmem:[%s3 + $0x1b4] sm:$0xf]
        %v7659 = vld [vmem:[%s3 + $0x1b8] sm:$0xf]
        %v7660 = vld [vmem:[%s3 + $0x1bc] sm:$0xf]
        %v7677 = vunpack.c.l.b16 %v7645
        %v7678 = vunpack.c.l.b16 %v7646
        %v7679 = vunpack.c.l.b16 %v7647
        %v7680 = vunpack.c.l.b16 %v7648
        %v7681 = vunpack.c.l.b16 %v7649
        %v7682 = vunpack.c.l.b16 %v7650
        %v7683 = vunpack.c.l.b16 %v7651
        %v7684 = vunpack.c.l.b16 %v7652
        %v7685 = vunpack.c.l.b16 %v7653
        %v7686 = vunpack.c.l.b16 %v7654
        %v7687 = vunpack.c.l.b16 %v7655
        %v7688 = vunpack.c.l.b16 %v7656
        %v7689 = vunpack.c.l.b16 %v7657
        %v7690 = vunpack.c.l.b16 %v7658
        %v7691 = vunpack.c.l.b16 %v7659
        %v7692 = vunpack.c.l.b16 %v7660
        %v7693 = vpack.c.b16 %v7678, %v7677
        %v7694 = vpack.c.b16 %v7680, %v7679
        %v7695 = vpack.c.b16 %v7682, %v7681
        %v7696 = vpack.c.b16 %v7684, %v7683
        %v7697 = vpack.c.b16 %v7686, %v7685
        %v7698 = vpack.c.b16 %v7688, %v7687
        %v7699 = vpack.c.b16 %v7690, %v7689
        %v7700 = vpack.c.b16 %v7692, %v7691
        %7709 = vmatprep.subr.bf16.mxu0 0
        %7710 = vmatpush1.bf16.msra.mxu0 %v7700
        %7711 = vmatprep.subr.bf16.mxu0 0
        %7712 = vmatpush1.bf16.msra.mxu0 %v7699
        %7713 = vmatprep.subr.bf16.mxu0 0
        %7714 = vmatpush1.bf16.msra.mxu0 %v7698
        %7715 = vmatprep.subr.bf16.mxu0 0
        %7716 = vmatpush1.bf16.msra.mxu0 %v7697
        %7717 = vmatprep.subr.bf16.mxu0 0
        %7718 = vmatpush1.bf16.msra.mxu0 %v7696
        %7719 = vmatprep.subr.bf16.mxu0 0
        %7720 = vmatpush1.bf16.msra.mxu0 %v7695
        %7721 = vmatprep.subr.bf16.mxu0 0
        %7722 = vmatpush1.bf16.msra.mxu0 %v7694
        %7723 = vmatprep.subr.bf16.mxu0 0
        %7724 = vmatpush1.bf16.msra.mxu0 %v7693
        %7725 = vmatprep.subr.bf16.mxu0 0
        %7726 = vmatpush2.bf16.msra.mxu0 0
        %7727 = vmatprep.subr.bf16.mxu0 0
        %7728 = vmatpush2.bf16.msra.mxu0 0
        %7729 = vmatprep.subr.bf16.mxu0 0
        %7730 = vmatpush2.bf16.msra.mxu0 0
        %7731 = vmatprep.subr.bf16.mxu0 0
        %7732 = vmatpush2.bf16.msra.mxu0 0
        %7733 = vmatprep.subr.bf16.mxu0 0
        %7734 = vmatpush2.bf16.msra.mxu0 0
        %7735 = vmatprep.subr.bf16.mxu0 0
        %7736 = vmatpush2.bf16.msra.mxu0 0
        %7737 = vmatprep.subr.bf16.mxu0 0
        %7738 = vmatpush2.bf16.msra.mxu0 0
        %7739 = vmatprep.subr.bf16.mxu0 0
        %7740 = vmatpush2.bf16.msra.mxu0 0
        %7741 = vmatprep.mubr.bf16.mxu0 0
        %7742 = vmatmul.mubr.bf16.gmra.mxu0 %v7637
        %v7743 = vpop.f32.mrf.mxu0
        %v7744 = vadd.f32 0.0, %v7743
        %v7745 = vpop.f32.mrf.mxu0
        %v7746 = vpop.f32.mrf.mxu0
        %v7747 = vadd.f32 0.0, %v7746
        %v7748 = vpop.f32.mrf.mxu0
        %7749 = vmatprep.mubr.bf16.mxu0 0
        %7750 = vmatmul.mubr.bf16.gmra.mxu0 %v7638
        %v7751 = vpop.f32.mrf.mxu0
        %v7752 = vadd.f32 0.0, %v7751
        %v7753 = vpop.f32.mrf.mxu0
        %v7754 = vpop.f32.mrf.mxu0
        %v7755 = vadd.f32 0.0, %v7754
        %v7756 = vpop.f32.mrf.mxu0
        %7757 = vmatprep.mubr.bf16.mxu0 0
        %7758 = vmatmul.mubr.bf16.gmra.mxu0 %v7639
        %v7759 = vpop.f32.mrf.mxu0
        %v7760 = vadd.f32 0.0, %v7759
        %v7761 = vpop.f32.mrf.mxu0
        %v7762 = vpop.f32.mrf.mxu0
        %v7763 = vadd.f32 0.0, %v7762
        %v7764 = vpop.f32.mrf.mxu0
        %7765 = vmatprep.mubr.bf16.mxu0 0
        %7766 = vmatmul.mubr.bf16.gmra.mxu0 %v7640
        %v7767 = vpop.f32.mrf.mxu0
        %v7768 = vadd.f32 0.0, %v7767
        %v7769 = vpop.f32.mrf.mxu0
        %v7770 = vpop.f32.mrf.mxu0
        %v7771 = vadd.f32 0.0, %v7770
        %v7772 = vpop.f32.mrf.mxu0
        %7773 = vmatprep.mubr.bf16.mxu0 0
        %7774 = vmatmul.mubr.bf16.gmra.mxu0 %v7641
        %v7775 = vpop.f32.mrf.mxu0
        %v7776 = vadd.f32 0.0, %v7775
        %v7777 = vpop.f32.mrf.mxu0
        %v7778 = vpop.f32.mrf.mxu0
        %v7779 = vadd.f32 0.0, %v7778
        %v7780 = vpop.f32.mrf.mxu0
        %7781 = vmatprep.mubr.bf16.mxu0 0
        %7782 = vmatmul.mubr.bf16.gmra.mxu0 %v7642
        %v7783 = vpop.f32.mrf.mxu0
        %v7784 = vadd.f32 0.0, %v7783
        %v7785 = vpop.f32.mrf.mxu0
        %v7786 = vpop.f32.mrf.mxu0
        %v7787 = vadd.f32 0.0, %v7786
        %v7788 = vpop.f32.mrf.mxu0
        %7789 = vmatprep.mubr.bf16.mxu0 0
        %7790 = vmatmul.mubr.bf16.gmra.mxu0 %v7643
        %v7791 = vpop.f32.mrf.mxu0
        %v7792 = vadd.f32 0.0, %v7791
        %v7793 = vpop.f32.mrf.mxu0
        %v7794 = vpop.f32.mrf.mxu0
        %v7795 = vadd.f32 0.0, %v7794
        %v7796 = vpop.f32.mrf.mxu0
        %7797 = vmatprep.mubr.bf16.mxu0 0
        %7798 = vmatmul.mubr.bf16.gmra.mxu0 %v7644
        %v7799 = vpop.f32.mrf.mxu0
        %v7800 = vadd.f32 0.0, %v7799
        %v7801 = vpop.f32.mrf.mxu0
        %v7802 = vpop.f32.mrf.mxu0
        %v7803 = vadd.f32 0.0, %v7802
        %v7804 = vpop.f32.mrf.mxu0
        %7805 = vdwg.mxu0
        %v7806 = vadd.f32 %v7597, %v7744
        %v7807 = vadd.f32 %v7598, %v7747
        %v7808 = vadd.f32 %v7599, %v7752
        %v7809 = vadd.f32 %v7600, %v7755
        %v7810 = vadd.f32 %v7601, %v7760
        %v7811 = vadd.f32 %v7602, %v7763
        %v7812 = vadd.f32 %v7603, %v7768
        %v7813 = vadd.f32 %v7604, %v7771
        %v7814 = vadd.f32 %v7605, %v7776
        %v7815 = vadd.f32 %v7606, %v7779
        %v7816 = vadd.f32 %v7607, %v7784
        %v7817 = vadd.f32 %v7608, %v7787
        %v7818 = vadd.f32 %v7609, %v7792
        %v7819 = vadd.f32 %v7610, %v7795
        %v7820 = vadd.f32 %v7611, %v7800
        %v7821 = vadd.f32 %v7612, %v7803
        %v7822 = vld [vmem:[#allocation3 + $0xa8] sm:$0xff]
        %v7823 = vld [vmem:[#allocation3 + $0xb0] sm:$0xff]
        %v7824 = vld [vmem:[#allocation3 + $0xb8] sm:$0xff]
        %v7825 = vld [vmem:[#allocation3 + $0xc0] sm:$0xff]
        %v7826 = vld [vmem:[#allocation3 + $0xc8] sm:$0xff]
        %v7827 = vld [vmem:[#allocation3 + $0xd0] sm:$0xff]
        %v7828 = vld [vmem:[#allocation3 + $0xd8] sm:$0xff]
        %v7829 = vld [vmem:[#allocation3 + $0xe0] sm:$0xff]
        %v7830 = vld [vmem:[#allocation3 + $0xe8] sm:$0xff]
        %v7831 = vld [vmem:[#allocation3 + $0xf0] sm:$0xff]
        %v7832 = vld [vmem:[#allocation3 + $0xf8] sm:$0xff]
        %v7833 = vld [vmem:[#allocation3 + $0x100] sm:$0xff]
        %v7834 = vld [vmem:[#allocation3 + $0x108] sm:$0xff]
        %v7835 = vld [vmem:[#allocation3 + $0x110] sm:$0xff]
        %v7836 = vld [vmem:[#allocation3 + $0x118] sm:$0xff]
        %v7837 = vld [vmem:[#allocation3 + $0x120] sm:$0xff]
        %v7838 = vpack.c.bf16 %v7823, %v7822
        %v7839 = vpack.c.bf16 %v7825, %v7824
        %v7840 = vpack.c.bf16 %v7827, %v7826
        %v7841 = vpack.c.bf16 %v7829, %v7828
        %v7842 = vpack.c.bf16 %v7831, %v7830
        %v7843 = vpack.c.bf16 %v7833, %v7832
        %v7844 = vpack.c.bf16 %v7835, %v7834
        %v7845 = vpack.c.bf16 %v7837, %v7836
        %v7846 = vld [vmem:[%s3 + $0x1c0] sm:$0xf]
        %v7847 = vld [vmem:[%s3 + $0x1c4] sm:$0xf]
        %v7848 = vld [vmem:[%s3 + $0x1c8] sm:$0xf]
        %v7849 = vld [vmem:[%s3 + $0x1cc] sm:$0xf]
        %v7850 = vld [vmem:[%s3 + $0x1d0] sm:$0xf]
        %v7851 = vld [vmem:[%s3 + $0x1d4] sm:$0xf]
        %v7852 = vld [vmem:[%s3 + $0x1d8] sm:$0xf]
        %v7853 = vld [vmem:[%s3 + $0x1dc] sm:$0xf]
        %v7854 = vld [vmem:[%s3 + $0x1e0] sm:$0xf]
        %v7855 = vld [vmem:[%s3 + $0x1e4] sm:$0xf]
        %v7856 = vld [vmem:[%s3 + $0x1e8] sm:$0xf]
        %v7857 = vld [vmem:[%s3 + $0x1ec] sm:$0xf]
        %v7858 = vld [vmem:[%s3 + $0x1f0] sm:$0xf]
        %v7859 = vld [vmem:[%s3 + $0x1f4] sm:$0xf]
        %v7860 = vld [vmem:[%s3 + $0x1f8] sm:$0xf]
        %v7861 = vld [vmem:[%s3 + $0x1fc] sm:$0xf]
        %v7878 = vunpack.c.l.b16 %v7846
        %v7879 = vunpack.c.l.b16 %v7847
        %v7880 = vunpack.c.l.b16 %v7848
        %v7881 = vunpack.c.l.b16 %v7849
        %v7882 = vunpack.c.l.b16 %v7850
        %v7883 = vunpack.c.l.b16 %v7851
        %v7884 = vunpack.c.l.b16 %v7852
        %v7885 = vunpack.c.l.b16 %v7853
        %v7886 = vunpack.c.l.b16 %v7854
        %v7887 = vunpack.c.l.b16 %v7855
        %v7888 = vunpack.c.l.b16 %v7856
        %v7889 = vunpack.c.l.b16 %v7857
        %v7890 = vunpack.c.l.b16 %v7858
        %v7891 = vunpack.c.l.b16 %v7859
        %v7892 = vunpack.c.l.b16 %v7860
        %v7893 = vunpack.c.l.b16 %v7861
        %v7894 = vpack.c.b16 %v7879, %v7878
        %v7895 = vpack.c.b16 %v7881, %v7880
        %v7896 = vpack.c.b16 %v7883, %v7882
        %v7897 = vpack.c.b16 %v7885, %v7884
        %v7898 = vpack.c.b16 %v7887, %v7886
        %v7899 = vpack.c.b16 %v7889, %v7888
        %v7900 = vpack.c.b16 %v7891, %v7890
        %v7901 = vpack.c.b16 %v7893, %v7892
        %7910 = vmatprep.subr.bf16.mxu0 0
        %7911 = vmatpush1.bf16.msra.mxu0 %v7901
        %7912 = vmatprep.subr.bf16.mxu0 0
        %7913 = vmatpush1.bf16.msra.mxu0 %v7900
        %7914 = vmatprep.subr.bf16.mxu0 0
        %7915 = vmatpush1.bf16.msra.mxu0 %v7899
        %7916 = vmatprep.subr.bf16.mxu0 0
        %7917 = vmatpush1.bf16.msra.mxu0 %v7898
        %7918 = vmatprep.subr.bf16.mxu0 0
        %7919 = vmatpush1.bf16.msra.mxu0 %v7897
        %7920 = vmatprep.subr.bf16.mxu0 0
        %7921 = vmatpush1.bf16.msra.mxu0 %v7896
        %7922 = vmatprep.subr.bf16.mxu0 0
        %7923 = vmatpush1.bf16.msra.mxu0 %v7895
        %7924 = vmatprep.subr.bf16.mxu0 0
        %7925 = vmatpush1.bf16.msra.mxu0 %v7894
        %7926 = vmatprep.subr.bf16.mxu0 0
        %7927 = vmatpush2.bf16.msra.mxu0 0
        %7928 = vmatprep.subr.bf16.mxu0 0
        %7929 = vmatpush2.bf16.msra.mxu0 0
        %7930 = vmatprep.subr.bf16.mxu0 0
        %7931 = vmatpush2.bf16.msra.mxu0 0
        %7932 = vmatprep.subr.bf16.mxu0 0
        %7933 = vmatpush2.bf16.msra.mxu0 0
        %7934 = vmatprep.subr.bf16.mxu0 0
        %7935 = vmatpush2.bf16.msra.mxu0 0
        %7936 = vmatprep.subr.bf16.mxu0 0
        %7937 = vmatpush2.bf16.msra.mxu0 0
        %7938 = vmatprep.subr.bf16.mxu0 0
        %7939 = vmatpush2.bf16.msra.mxu0 0
        %7940 = vmatprep.subr.bf16.mxu0 0
        %7941 = vmatpush2.bf16.msra.mxu0 0
        %7942 = vmatprep.mubr.bf16.mxu0 0
        %7943 = vmatmul.mubr.bf16.gmra.mxu0 %v7838
        %v7944 = vpop.f32.mrf.mxu0
        %v7945 = vadd.f32 0.0, %v7944
        %v7946 = vpop.f32.mrf.mxu0
        %v7947 = vpop.f32.mrf.mxu0
        %v7948 = vadd.f32 0.0, %v7947
        %v7949 = vpop.f32.mrf.mxu0
        %7950 = vmatprep.mubr.bf16.mxu0 0
        %7951 = vmatmul.mubr.bf16.gmra.mxu0 %v7839
        %v7952 = vpop.f32.mrf.mxu0
        %v7953 = vadd.f32 0.0, %v7952
        %v7954 = vpop.f32.mrf.mxu0
        %v7955 = vpop.f32.mrf.mxu0
        %v7956 = vadd.f32 0.0, %v7955
        %v7957 = vpop.f32.mrf.mxu0
        %7958 = vmatprep.mubr.bf16.mxu0 0
        %7959 = vmatmul.mubr.bf16.gmra.mxu0 %v7840
        %v7960 = vpop.f32.mrf.mxu0
        %v7961 = vadd.f32 0.0, %v7960
        %v7962 = vpop.f32.mrf.mxu0
        %v7963 = vpop.f32.mrf.mxu0
        %v7964 = vadd.f32 0.0, %v7963
        %v7965 = vpop.f32.mrf.mxu0
        %7966 = vmatprep.mubr.bf16.mxu0 0
        %7967 = vmatmul.mubr.bf16.gmra.mxu0 %v7841
        %v7968 = vpop.f32.mrf.mxu0
        %v7969 = vadd.f32 0.0, %v7968
        %v7970 = vpop.f32.mrf.mxu0
        %v7971 = vpop.f32.mrf.mxu0
        %v7972 = vadd.f32 0.0, %v7971
        %v7973 = vpop.f32.mrf.mxu0
        %7974 = vmatprep.mubr.bf16.mxu0 0
        %7975 = vmatmul.mubr.bf16.gmra.mxu0 %v7842
        %v7976 = vpop.f32.mrf.mxu0
        %v7977 = vadd.f32 0.0, %v7976
        %v7978 = vpop.f32.mrf.mxu0
        %v7979 = vpop.f32.mrf.mxu0
        %v7980 = vadd.f32 0.0, %v7979
        %v7981 = vpop.f32.mrf.mxu0
        %7982 = vmatprep.mubr.bf16.mxu0 0
        %7983 = vmatmul.mubr.bf16.gmra.mxu0 %v7843
        %v7984 = vpop.f32.mrf.mxu0
        %v7985 = vadd.f32 0.0, %v7984
        %v7986 = vpop.f32.mrf.mxu0
        %v7987 = vpop.f32.mrf.mxu0
        %v7988 = vadd.f32 0.0, %v7987
        %v7989 = vpop.f32.mrf.mxu0
        %7990 = vmatprep.mubr.bf16.mxu0 0
        %7991 = vmatmul.mubr.bf16.gmra.mxu0 %v7844
        %v7992 = vpop.f32.mrf.mxu0
        %v7993 = vadd.f32 0.0, %v7992
        %v7994 = vpop.f32.mrf.mxu0
        %v7995 = vpop.f32.mrf.mxu0
        %v7996 = vadd.f32 0.0, %v7995
        %v7997 = vpop.f32.mrf.mxu0
        %7998 = vmatprep.mubr.bf16.mxu0 0
        %7999 = vmatmul.mubr.bf16.gmra.mxu0 %v7845
        %v8000 = vpop.f32.mrf.mxu0
        %v8001 = vadd.f32 0.0, %v8000
        %v8002 = vpop.f32.mrf.mxu0
        %v8003 = vpop.f32.mrf.mxu0
        %v8004 = vadd.f32 0.0, %v8003
        %v8005 = vpop.f32.mrf.mxu0
        %8006 = vdwg.mxu0
        %v8007 = vadd.f32 %v7806, %v7945
        %v8008 = vadd.f32 %v7807, %v7948
        %v8009 = vadd.f32 %v7808, %v7953
        %v8010 = vadd.f32 %v7809, %v7956
        %v8011 = vadd.f32 %v7810, %v7961
        %v8012 = vadd.f32 %v7811, %v7964
        %v8013 = vadd.f32 %v7812, %v7969
        %v8014 = vadd.f32 %v7813, %v7972
        %v8015 = vadd.f32 %v7814, %v7977
        %v8016 = vadd.f32 %v7815, %v7980
        %v8017 = vadd.f32 %v7816, %v7985
        %v8018 = vadd.f32 %v7817, %v7988
        %v8019 = vadd.f32 %v7818, %v7993
        %v8020 = vadd.f32 %v7819, %v7996
        %v8021 = vadd.f32 %v7820, %v8001
        %v8022 = vadd.f32 %v7821, %v8004
        %v8023 = vld [vmem:[#allocation3 + $0xa9] sm:$0xff]
        %v8024 = vld [vmem:[#allocation3 + $0xb1] sm:$0xff]
        %v8025 = vld [vmem:[#allocation3 + $0xb9] sm:$0xff]
        %v8026 = vld [vmem:[#allocation3 + $0xc1] sm:$0xff]
        %v8027 = vld [vmem:[#allocation3 + $0xc9] sm:$0xff]
        %v8028 = vld [vmem:[#allocation3 + $0xd1] sm:$0xff]
        %v8029 = vld [vmem:[#allocation3 + $0xd9] sm:$0xff]
        %v8030 = vld [vmem:[#allocation3 + $0xe1] sm:$0xff]
        %v8031 = vld [vmem:[#allocation3 + $0xe9] sm:$0xff]
        %v8032 = vld [vmem:[#allocation3 + $0xf1] sm:$0xff]
        %v8033 = vld [vmem:[#allocation3 + $0xf9] sm:$0xff]
        %v8034 = vld [vmem:[#allocation3 + $0x101] sm:$0xff]
        %v8035 = vld [vmem:[#allocation3 + $0x109] sm:$0xff]
        %v8036 = vld [vmem:[#allocation3 + $0x111] sm:$0xff]
        %v8037 = vld [vmem:[#allocation3 + $0x119] sm:$0xff]
        %v8038 = vld [vmem:[#allocation3 + $0x121] sm:$0xff]
        %v8039 = vpack.c.bf16 %v8024, %v8023
        %v8040 = vpack.c.bf16 %v8026, %v8025
        %v8041 = vpack.c.bf16 %v8028, %v8027
        %v8042 = vpack.c.bf16 %v8030, %v8029
        %v8043 = vpack.c.bf16 %v8032, %v8031
        %v8044 = vpack.c.bf16 %v8034, %v8033
        %v8045 = vpack.c.bf16 %v8036, %v8035
        %v8046 = vpack.c.bf16 %v8038, %v8037
        %v8047 = vsel %vm1129, %v8039, 0
        %v8048 = vsel %vm1130, %v8040, 0
        %v8049 = vsel %vm1131, %v8041, 0
        %v8050 = vsel %vm1132, %v8042, 0
        %v8051 = vsel %vm1133, %v8043, 0
        %v8052 = vsel %vm1134, %v8044, 0
        %v8053 = vsel %vm1135, %v8045, 0
        %v8054 = vsel %vm1136, %v8046, 0
        %v8055 = vld [vmem:[%s3 + $0x200] sm:$0xf]
        %v8056 = vld [vmem:[%s3 + $0x204] sm:$0xf]
        %v8057 = vld [vmem:[%s3 + $0x208] sm:$0xf]
        %v8058 = vld [vmem:[%s3 + $0x20c] sm:$0xf]
        %v8059 = vld [vmem:[%s3 + $0x210] sm:$0xf]
        %v8060 = vld [vmem:[%s3 + $0x214] sm:$0xf]
        %v8061 = vld [vmem:[%s3 + $0x218] sm:$0xf]
        %v8062 = vld [vmem:[%s3 + $0x21c] sm:$0xf]
        %v8063 = vld [vmem:[%s3 + $0x220] sm:$0xf]
        %v8064 = vld [vmem:[%s3 + $0x224] sm:$0xf]
        %v8065 = vld [vmem:[%s3 + $0x228] sm:$0xf]
        %v8066 = vld [vmem:[%s3 + $0x22c] sm:$0xf]
        %v8067 = vld [vmem:[%s3 + $0x230] sm:$0xf]
        %v8068 = vld [vmem:[%s3 + $0x234] sm:$0xf]
        %v8069 = vld [vmem:[%s3 + $0x238] sm:$0xf]
        %v8070 = vld [vmem:[%s3 + $0x23c] sm:$0xf]
        %v8087 = vunpack.c.l.b16 %v8055
        %v8088 = vunpack.c.l.b16 %v8056
        %v8089 = vunpack.c.l.b16 %v8057
        %v8090 = vunpack.c.l.b16 %v8058
        %v8091 = vunpack.c.l.b16 %v8059
        %v8092 = vunpack.c.l.b16 %v8060
        %v8093 = vunpack.c.l.b16 %v8061
        %v8094 = vunpack.c.l.b16 %v8062
        %v8095 = vunpack.c.l.b16 %v8063
        %v8096 = vunpack.c.l.b16 %v8064
        %v8097 = vunpack.c.l.b16 %v8065
        %v8098 = vunpack.c.l.b16 %v8066
        %v8099 = vunpack.c.l.b16 %v8067
        %v8100 = vunpack.c.l.b16 %v8068
        %v8101 = vunpack.c.l.b16 %v8069
        %v8102 = vunpack.c.l.b16 %v8070
        %v8103 = vpack.c.b16 %v8088, %v8087
        %v8104 = vpack.c.b16 %v8090, %v8089
        %v8105 = vpack.c.b16 %v8092, %v8091
        %v8106 = vpack.c.b16 %v8094, %v8093
        %v8107 = vpack.c.b16 %v8096, %v8095
        %v8108 = vpack.c.b16 %v8098, %v8097
        %v8109 = vpack.c.b16 %v8100, %v8099
        %v8110 = vpack.c.b16 %v8102, %v8101
        %8119 = vmatprep.subr.bf16.mxu0 0
        %8120 = vmatpush1.bf16.msra.mxu0 %v8110
        %8121 = vmatprep.subr.bf16.mxu0 0
        %8122 = vmatpush1.bf16.msra.mxu0 %v8109
        %8123 = vmatprep.subr.bf16.mxu0 0
        %8124 = vmatpush1.bf16.msra.mxu0 %v8108
        %8125 = vmatprep.subr.bf16.mxu0 0
        %8126 = vmatpush1.bf16.msra.mxu0 %v8107
        %8127 = vmatprep.subr.bf16.mxu0 0
        %8128 = vmatpush1.bf16.msra.mxu0 %v8106
        %8129 = vmatprep.subr.bf16.mxu0 0
        %8130 = vmatpush1.bf16.msra.mxu0 %v8105
        %8131 = vmatprep.subr.bf16.mxu0 0
        %8132 = vmatpush1.bf16.msra.mxu0 %v8104
        %8133 = vmatprep.subr.bf16.mxu0 0
        %8134 = vmatpush1.bf16.msra.mxu0 %v8103
        %8135 = vmatprep.subr.bf16.mxu0 0
        %8136 = vmatpush2.bf16.msra.mxu0 0
        %8137 = vmatprep.subr.bf16.mxu0 0
        %8138 = vmatpush2.bf16.msra.mxu0 0
        %8139 = vmatprep.subr.bf16.mxu0 0
        %8140 = vmatpush2.bf16.msra.mxu0 0
        %8141 = vmatprep.subr.bf16.mxu0 0
        %8142 = vmatpush2.bf16.msra.mxu0 0
        %8143 = vmatprep.subr.bf16.mxu0 0
        %8144 = vmatpush2.bf16.msra.mxu0 0
        %8145 = vmatprep.subr.bf16.mxu0 0
        %8146 = vmatpush2.bf16.msra.mxu0 0
        %8147 = vmatprep.subr.bf16.mxu0 0
        %8148 = vmatpush2.bf16.msra.mxu0 0
        %8149 = vmatprep.subr.bf16.mxu0 0
        %8150 = vmatpush2.bf16.msra.mxu0 0
        %8151 = vmatprep.mubr.bf16.mxu0 0
        %8152 = vmatmul.mubr.bf16.gmra.mxu0 %v8047
        %v8153 = vpop.f32.mrf.mxu0
        %v8154 = vadd.f32 0.0, %v8153
        %v8155 = vpop.f32.mrf.mxu0
        %v8156 = vpop.f32.mrf.mxu0
        %v8157 = vadd.f32 0.0, %v8156
        %v8158 = vpop.f32.mrf.mxu0
        %8159 = vmatprep.mubr.bf16.mxu0 0
        %8160 = vmatmul.mubr.bf16.gmra.mxu0 %v8048
        %v8161 = vpop.f32.mrf.mxu0
        %v8162 = vadd.f32 0.0, %v8161
        %v8163 = vpop.f32.mrf.mxu0
        %v8164 = vpop.f32.mrf.mxu0
        %v8165 = vadd.f32 0.0, %v8164
        %v8166 = vpop.f32.mrf.mxu0
        %8167 = vmatprep.mubr.bf16.mxu0 0
        %8168 = vmatmul.mubr.bf16.gmra.mxu0 %v8049
        %v8169 = vpop.f32.mrf.mxu0
        %v8170 = vadd.f32 0.0, %v8169
        %v8171 = vpop.f32.mrf.mxu0
        %v8172 = vpop.f32.mrf.mxu0
        %v8173 = vadd.f32 0.0, %v8172
        %v8174 = vpop.f32.mrf.mxu0
        %8175 = vmatprep.mubr.bf16.mxu0 0
        %8176 = vmatmul.mubr.bf16.gmra.mxu0 %v8050
        %v8177 = vpop.f32.mrf.mxu0
        %v8178 = vadd.f32 0.0, %v8177
        %v8179 = vpop.f32.mrf.mxu0
        %v8180 = vpop.f32.mrf.mxu0
        %v8181 = vadd.f32 0.0, %v8180
        %v8182 = vpop.f32.mrf.mxu0
        %8183 = vmatprep.mubr.bf16.mxu0 0
        %8184 = vmatmul.mubr.bf16.gmra.mxu0 %v8051
        %v8185 = vpop.f32.mrf.mxu0
        %v8186 = vadd.f32 0.0, %v8185
        %v8187 = vpop.f32.mrf.mxu0
        %v8188 = vpop.f32.mrf.mxu0
        %v8189 = vadd.f32 0.0, %v8188
        %v8190 = vpop.f32.mrf.mxu0
        %8191 = vmatprep.mubr.bf16.mxu0 0
        %8192 = vmatmul.mubr.bf16.gmra.mxu0 %v8052
        %v8193 = vpop.f32.mrf.mxu0
        %v8194 = vadd.f32 0.0, %v8193
        %v8195 = vpop.f32.mrf.mxu0
        %v8196 = vpop.f32.mrf.mxu0
        %v8197 = vadd.f32 0.0, %v8196
        %v8198 = vpop.f32.mrf.mxu0
        %8199 = vmatprep.mubr.bf16.mxu0 0
        %8200 = vmatmul.mubr.bf16.gmra.mxu0 %v8053
        %v8201 = vpop.f32.mrf.mxu0
        %v8202 = vadd.f32 0.0, %v8201
        %v8203 = vpop.f32.mrf.mxu0
        %v8204 = vpop.f32.mrf.mxu0
        %v8205 = vadd.f32 0.0, %v8204
        %v8206 = vpop.f32.mrf.mxu0
        %8207 = vmatprep.mubr.bf16.mxu0 0
        %8208 = vmatmul.mubr.bf16.gmra.mxu0 %v8054
        %v8209 = vpop.f32.mrf.mxu0
        %v8210 = vadd.f32 0.0, %v8209
        %v8211 = vpop.f32.mrf.mxu0
        %v8212 = vpop.f32.mrf.mxu0
        %v8213 = vadd.f32 0.0, %v8212
        %v8214 = vpop.f32.mrf.mxu0
        %8215 = vdwg.mxu0
        %v8216 = vadd.f32 %v8007, %v8154
        %v8217 = vadd.f32 %v8008, %v8157
        %v8218 = vadd.f32 %v8009, %v8162
        %v8219 = vadd.f32 %v8010, %v8165
        %v8220 = vadd.f32 %v8011, %v8170
        %v8221 = vadd.f32 %v8012, %v8173
        %v8222 = vadd.f32 %v8013, %v8178
        %v8223 = vadd.f32 %v8014, %v8181
        %v8224 = vadd.f32 %v8015, %v8186
        %v8225 = vadd.f32 %v8016, %v8189
        %v8226 = vadd.f32 %v8017, %v8194
        %v8227 = vadd.f32 %v8018, %v8197
        %v8228 = vadd.f32 %v8019, %v8202
        %v8229 = vadd.f32 %v8020, %v8205
        %v8230 = vadd.f32 %v8021, %v8210
        %v8231 = vadd.f32 %v8022, %v8213
        %v8232 = vld [vmem:[%s4] sm:$0x1]
        %v8234 = vlaneseq
        %v8235 = vshrl.u32 %v8234, 7
        %v8236 = vsub.s32 0, %v8235
        %v8237 = vrot.slane %v8232, %v8236
        %v8239 = vadd.f32 %v8216, %v8237
        %v8240 = vadd.f32 %v8217, %v8237
        %v8241 = vadd.f32 %v8218, %v8237
        %v8242 = vadd.f32 %v8219, %v8237
        %v8243 = vadd.f32 %v8220, %v8237
        %v8244 = vadd.f32 %v8221, %v8237
        %v8245 = vadd.f32 %v8222, %v8237
        %v8246 = vadd.f32 %v8223, %v8237
        %v8247 = vadd.f32 %v8224, %v8237
        %v8248 = vadd.f32 %v8225, %v8237
        %v8249 = vadd.f32 %v8226, %v8237
        %v8250 = vadd.f32 %v8227, %v8237
        %v8251 = vadd.f32 %v8228, %v8237
        %v8252 = vadd.f32 %v8229, %v8237
        %v8253 = vadd.f32 %v8230, %v8237
        %v8254 = vadd.f32 %v8231, %v8237
        %v8255 = vld [vmem:[#allocation2 + $0x98] sm:$0xff]
        %v8256 = vld [vmem:[#allocation2 + $0xa0] sm:$0xff]
        %v8257 = vld [vmem:[#allocation2 + $0xa8] sm:$0xff]
        %v8258 = vld [vmem:[#allocation2 + $0xb0] sm:$0xff]
        %v8259 = vld [vmem:[#allocation2 + $0xb8] sm:$0xff]
        %v8260 = vld [vmem:[#allocation2 + $0xc0] sm:$0xff]
        %v8261 = vld [vmem:[#allocation2 + $0xc8] sm:$0xff]
        %v8262 = vld [vmem:[#allocation2 + $0xd0] sm:$0xff]
        %v8263 = vld [vmem:[#allocation2 + $0xd8] sm:$0xff]
        %v8264 = vld [vmem:[#allocation2 + $0xe0] sm:$0xff]
        %v8265 = vld [vmem:[#allocation2 + $0xe8] sm:$0xff]
        %v8266 = vld [vmem:[#allocation2 + $0xf0] sm:$0xff]
        %v8267 = vld [vmem:[#allocation2 + $0xf8] sm:$0xff]
        %v8268 = vld [vmem:[#allocation2 + $0x100] sm:$0xff]
        %v8269 = vld [vmem:[#allocation2 + $0x108] sm:$0xff]
        %v8270 = vld [vmem:[#allocation2 + $0x110] sm:$0xff]
        %v8271 = vadd.f32 %v8239, %v8255
        %v8272 = vadd.f32 %v8240, %v8256
        %v8273 = vadd.f32 %v8241, %v8257
        %v8274 = vadd.f32 %v8242, %v8258
        %v8275 = vadd.f32 %v8243, %v8259
        %v8276 = vadd.f32 %v8244, %v8260
        %v8277 = vadd.f32 %v8245, %v8261
        %v8278 = vadd.f32 %v8246, %v8262
        %v8279 = vadd.f32 %v8247, %v8263
        %v8280 = vadd.f32 %v8248, %v8264
        %v8281 = vadd.f32 %v8249, %v8265
        %v8282 = vadd.f32 %v8250, %v8266
        %v8283 = vadd.f32 %v8251, %v8267
        %v8284 = vadd.f32 %v8252, %v8268
        %v8285 = vadd.f32 %v8253, %v8269
        %v8286 = vadd.f32 %v8254, %v8270
        %v8287 = vmax.f32 %v8271, 0.0
        %v8288 = vmax.f32 %v8272, 0.0
        %v8289 = vmax.f32 %v8273, 0.0
        %v8290 = vmax.f32 %v8274, 0.0
        %v8291 = vmax.f32 %v8275, 0.0
        %v8292 = vmax.f32 %v8276, 0.0
        %v8293 = vmax.f32 %v8277, 0.0
        %v8294 = vmax.f32 %v8278, 0.0
        %v8295 = vmax.f32 %v8279, 0.0
        %v8296 = vmax.f32 %v8280, 0.0
        %v8297 = vmax.f32 %v8281, 0.0
        %v8298 = vmax.f32 %v8282, 0.0
        %v8299 = vmax.f32 %v8283, 0.0
        %v8300 = vmax.f32 %v8284, 0.0
        %v8301 = vmax.f32 %v8285, 0.0
        %v8302 = vmax.f32 %v8286, 0.0
        %8303 = vst [vmem:[%s217 + $0x80] sm:$0xff] %v8287
        %8304 = vst [vmem:[%s217 + $0x88] sm:$0xff] %v8288
        %8305 = vst [vmem:[%s217 + $0x90] sm:$0xff] %v8289
        %8306 = vst [vmem:[%s217 + $0x98] sm:$0xff] %v8290
        %8307 = vst [vmem:[%s217 + $0xa0] sm:$0xff] %v8291
        %8308 = vst [vmem:[%s217 + $0xa8] sm:$0xff] %v8292
        %8309 = vst [vmem:[%s217 + $0xb0] sm:$0xff] %v8293
        %8310 = vst [vmem:[%s217 + $0xb8] sm:$0xff] %v8294
        %8311 = vst [vmem:[%s217 + $0xc0] sm:$0xff] %v8295
        %8312 = vst [vmem:[%s217 + $0xc8] sm:$0xff] %v8296
        %8313 = vst [vmem:[%s217 + $0xd0] sm:$0xff] %v8297
        %8314 = vst [vmem:[%s217 + $0xd8] sm:$0xff] %v8298
        %8315 = vst [vmem:[%s217 + $0xe0] sm:$0xff] %v8299
        %8316 = vst [vmem:[%s217 + $0xe8] sm:$0xff] %v8300
        %8317 = vst [vmem:[%s217 + $0xf0] sm:$0xff] %v8301
        %8318 = vst [vmem:[%s217 + $0xf8] sm:$0xff] %v8302
        %s8319 = sand.u32 %s137, 1
        %s8320 = scalar_lea.sflag [#allocation5], %s8319
        %s8321 = sand.u32 %s137, 1
        %s8322 = smul.addr %s8321, 256
        %s8323 = scalar_lea.vmem [#allocation4], %s8322
        // Predicated region
        $region41: #{basic_block_nhwc.1} parent=39 // pred_check
          %p8324 = pneg %p147
        $region42: #{basic_block_nhwc.1} parent=39 // pred_check_branch
          %8326 = sbr.rel (%p8324) target = $region44
        $region43: #{basic_block_nhwc.1} parent=39 // pred_region
          %s8328 = ssub.s32 4096, 4096
          %8329 = vsyncadd %s8320, %s8328
          %s8330 = smul.addr %s19, 32
          %s8331 = smul.addr %s8330, 128
          %s8332 = scalar_lea.hbm %s5, %s8331
          %s8333 = sshll.u32 %s8323, 4
          %s8334 = int_to_ptr.vmem [resolvable:$true] %s8333
          %8339 = dma.vmem_to_hbm [thread:$0]  %s8334, 4096, %s8332, %s8320, 128, 128, 8
        $region44: #{basic_block_nhwc.1} parent=39 // pred_fallthru
          _
      $region40: #{basic_block_nhwc.1} parent=5 // pred_fallthru
        _
      %p8340 = scmp.le.s32.totalorder 2, %s14
      // Predicated region
      $region45: #{basic_block_nhwc.1} parent=5 // pred_check
        %p8341 = pneg %p8340
      $region46: #{basic_block_nhwc.1} parent=5 // pred_check_branch
        %8343 = sbr.rel (%p8341) target = $region48
      $region47: #{basic_block_nhwc.1} parent=5 // pred_region
        %s8344 = ssub.s32 %s14, 2
        // Predicated region
        $region49: #{basic_block_nhwc.1} parent=47 // pred_check
          %p8345 = pneg %p153
        $region50: #{basic_block_nhwc.1} parent=47 // pred_check_branch
          %8347 = sbr.rel (%p8345) target = $region52
        $region51: #{basic_block_nhwc.1} parent=47 // pred_region
          %s8348 = sand.u32 %s138, 1
          %s8349 = scalar_lea.sflag [#allocation5], %s8348
          %s8350 = sand.u32 %s138, 1
          %s8351 = smul.addr %s8350, 256
          %s8352 = scalar_lea.vmem [#allocation4], %s8351
          %8353 = dma.done %s8349, 4096
        $region52: #{basic_block_nhwc.1} parent=47 // pred_fallthru
          _
      $region48: #{basic_block_nhwc.1} parent=5 // pred_fallthru
        _
    $region6: #{basic_block_nhwc.1} parent=1 // loop_footer
      %s18 = sadd.s32 1, %s14
    $region7: #{basic_block_nhwc.1} parent=1 // loop_footer_branch
      %13 = sbr.rel target = $region3
    $region8: #{basic_block_nhwc.1} parent=1 // loop_exit
      _
    %8354 = vsyncpa [#allocation5], 1
    %s8355 = scalar_lea.sflag [#allocation5], 1
    %8356 = vsyncpa %s8355, 1

</llo_original>
